<compile_context>
chip_gen: v7x
topology: tpu7x:2x2x1
jax: 0.10.0
libtpu: 0.0.40
codegen_flags: <defaults>
</compile_context>

<pallas_src>
import functools

import jax
import jax.numpy as jnp
from jax.experimental import pallas as pl
from jax.experimental.pallas import tpu as pltpu

EPS = 1e-5  # nn.InstanceNorm2d default eps
_PAD_MODE = {"zeros": "constant", "reflect": "reflect", "replicate": "edge"}


# ------------------------------ Fused kernel ------------------------------- #

def _residual_block_kernel(x_ref, w1_ref, w2_ref, o_ref, pad_ref, *,
                           H, W, pad_mode, mxu_dtype):
    """Fused out = x + IN(conv2(ReLU(IN(conv1(x))))) for one batch element.

    x_ref  : (H*W, C)      flattened NHWC input tile (one sample), f32
    w1_ref : (9, C, C)     conv1 weight, tap-major, each tap (Cin, Cout), MXU dtype
    w2_ref : (9, C, C)     conv2 weight
    o_ref  : (H*W, C)      output tile, f32
    pad_ref: ((H+2)*W, C)  VMEM scratch: row-padded activations, reused by BOTH convs
    """
    C = x_ref.shape[-1]
    HW = H * W
    R = (H + 2) * W
    cdt = pad_ref.dtype
    inv_n = 1.0 / float(HW)

    # Column-position masks (period W along the flattened row axis).  The wrapper
    # keeps W a multiple of 8, so every row offset below is sublane-aligned.
    row_idx = jax.lax.broadcasted_iota(jnp.int32, (R, C), 0)
    col_idx = (row_idx & (W - 1)) if (W & (W - 1)) == 0 else (row_idx % W)
    is_first_col = col_idx == 0
    is_last_col = col_idx == (W - 1)

    def write_padded(src):
        # Row-pad `src` (H*W, C) by one image row on top/bottom (torch semantics).
        # All stores are at offsets that are multiples of W -> aligned, unmasked.
        pad_ref[W:W + HW, :] = src
        if pad_mode == "reflect":
            pad_ref[0:W, :] = src[W:2 * W, :]
            pad_ref[(H + 1) * W:R, :] = src[(H - 2) * W:(H - 1) * W, :]
        elif pad_mode == "replicate":
            pad_ref[0:W, :] = src[0:W, :]
            pad_ref[(H + 1) * W:R, :] = src[(H - 1) * W:HW, :]
        else:  # zeros
            zrow = jnp.zeros((W, C), cdt)
            pad_ref[0:W, :] = zrow
            pad_ref[(H + 1) * W:R, :] = zrow

    def conv3x3_instance_norm(w_ref, relu):
        rp = pad_ref[...]                           # (R, C), aligned full load
        # +-1 column shifts via XLU rotations; the wrapped boundary column is
        # replaced by the torch padding value (corner rows included).
        r_p1 = pltpu.roll(rp, 1, axis=0)            # r_p1[i] = rp[i-1]
        r_m1 = pltpu.roll(rp, R - 1, axis=0)        # r_m1[i] = rp[i+1]
        if pad_mode == "reflect":
            lfill, rfill = r_m1, r_p1
        elif pad_mode == "replicate":
            lfill, rfill = rp, rp
        else:
            zfill = jnp.zeros_like(rp)
            lfill, rfill = zfill, zfill
        left = jnp.where(is_first_col, lfill, r_p1)    # value at column x-1
        right = jnp.where(is_last_col, rfill, r_m1)    # value at column x+1

        # 9 shifted-window MXU matmuls accumulated in f32.  Every window slice is
        # a leading offset that is a multiple of W (sublane-aligned, no relayout).
        # TODO(synk): fold the 9 taps into one im2col (H*W, 9C) @ (9C, C) matmul to
        # better fill the MXU K dim once the minor-dim concat path is validated.
        acc = jnp.zeros((HW, C), jnp.float32)
        for dy in range(3):
            lo = dy * W
            for dx, src in ((0, left), (1, rp), (2, right)):
                win = src[lo:lo + HW, :]
                acc = acc + jnp.dot(win.astype(mxu_dtype),
                                    w_ref[3 * dy + dx],
                                    preferred_element_type=jnp.float32)

        # Conv bias intentionally omitted: a per-channel constant is removed exactly
        # by the non-affine InstanceNorm mean subtraction.  Single-pass statistics
        # (sum / sum-of-squares); variance clamped at 0 against f32 cancellation.
        mean = jnp.sum(acc, axis=0, keepdims=True) * inv_n
        ex2 = jnp.sum(acc * acc, axis=0, keepdims=True) * inv_n
        var = jnp.maximum(ex2 - mean * mean, 0.0)
        y = (acc - mean) * jax.lax.rsqrt(var + EPS)
        if relu:
            y = jnp.maximum(y, 0.0)
        return y

    xv = x_ref[...]                                  # (HW, C) f32

    # conv1 -> IN -> ReLU
    write_padded(xv.astype(cdt))
    y = conv3x3_instance_norm(w1_ref, relu=True)

    # TODO(synk): nn.Dropout(0.5) is inference-mode identity here; torch
    # training-mode RNG masking is not replicated.

    # conv2 -> IN, then residual add.  The padded intermediate reuses the same
    # VMEM scratch, so it never touches HBM.
    write_padded(y.astype(cdt))
    z = conv3x3_instance_norm(w2_ref, relu=False)
    o_ref[...] = xv + z


# -------------------------------- Wrappers ---------------------------------- #

def prepare_params(params, mxu_dtype=jnp.bfloat16):
    """One-time weight prep: PyTorch OIHW -> tap-major (9, Cin, Cout), MXU dtype.

    Conv biases are accepted but unused: a per-channel constant is cancelled
    exactly by the non-affine InstanceNorm mean subtraction.
    """
    c = params["w1"].shape[0]

    def prep(w):
        return jnp.transpose(w, (2, 3, 1, 0)).reshape(9, c, c).astype(mxu_dtype)

    return prep(params["w1"]), prep(params["w2"])


def residual_block_nhwc(x_nhwc, w1_prep, w2_prep, padding_mode="reflect"):
    """Fused residual block on NHWC activations (preferred production entry)."""
    N, H, W, C = x_nhwc.shape
    assert padding_mode in _PAD_MODE
    assert H >= 2 and W >= 2, "3x3 reflect padding needs spatial dims >= 2"
    assert W % 8 == 0, "W must be a multiple of 8 (sublane-aligned row slices)"
    mxu_dtype = w1_prep.dtype

    x_flat = x_nhwc.reshape(N, H * W, C).astype(jnp.float32)  # contiguous reshape
    kernel = functools.partial(_residual_block_kernel, H=H, W=W,
                               pad_mode=padding_mode, mxu_dtype=mxu_dtype)

    # TODO(synk): for production sizes (e.g. C=256, 64x64) add a row-tiled grid axis
    # (2-row halo) with a two-phase InstanceNorm-stat pass so the per-step working
    # set fits v7x's 64 MiB / v5e's 16 MiB scoped VMEM and pipeline depth exceeds N.
    # TODO(synk): for C < 128 a lane-dense (W*C folded) output layout would avoid
    # masked partial stores; production C >= 128 is already lane-dense.
    out = pl.pallas_call(
        kernel,
        out_shape=jax.ShapeDtypeStruct((N, H * W, C), jnp.float32),
        grid=(N,),
        in_specs=[
            pl.BlockSpec((pl.Squeezed(), H * W, C), lambda n: (n, 0, 0)),
            # Constant weights: whole array resident in VMEM once -> no per-step
            # double-buffered DMA or buffer-swap bookkeeping.
            pl.BlockSpec(memory_space=pltpu.MemorySpace.VMEM),
            pl.BlockSpec(memory_space=pltpu.MemorySpace.VMEM),
        ],
        out_specs=pl.BlockSpec((pl.Squeezed(), H * W, C), lambda n: (n, 0, 0)),
        scratch_shapes=[pltpu.VMEM(((H + 2) * W, C), mxu_dtype)],
        compiler_params=pltpu.CompilerParams(
            dimension_semantics=("parallel",),
            vmem_limit_bytes=32 * 1024 * 1024),
    )(x_flat, w1_prep, w2_prep)
    return out.reshape(N, H, W, C)


def residual_block_with_dropout(x_nchw, params, padding_mode="reflect",
                                mxu_dtype=jnp.bfloat16):
    """PyTorch-parity wrapper: NCHW in/out, params in PyTorch layout.

    Production pipelines should keep activations NHWC and call residual_block_nhwc
    directly (the two transposes below are full HBM round trips).
    """
    w1p, w2p = prepare_params(params, mxu_dtype)
    x_nhwc = jnp.transpose(x_nchw, (0, 2, 3, 1))
    out = residual_block_nhwc(x_nhwc, w1p, w2p, padding_mode)
    return jnp.transpose(out, (0, 3, 1, 2))


# ----------------------------- Pure-JAX reference --------------------------- #

def _reference(x_nchw, params, padding_mode="reflect"):
    def conv(x, w, b):
        xp = jnp.pad(x, ((0, 0), (0, 0), (1, 1), (1, 1)),
                     mode=_PAD_MODE[padding_mode])
        y = jax.lax.conv_general_dilated(
            xp, w, (1, 1), "VALID",
            dimension_numbers=("NCHW", "OIHW", "NCHW"))
        return y + b[None, :, None, None]

    def inorm(x):
        m = x.mean(axis=(2, 3), keepdims=True)
        v = ((x - m) ** 2).mean(axis=(2, 3), keepdims=True)
        return (x - m) * jax.lax.rsqrt(v + EPS)

    y = jnp.maximum(inorm(conv(x_nchw, params["w1"], params["b1"])), 0.0)
    y = inorm(conv(y, params["w2"], params["b2"]))
    return x_nchw + y


# ----------------------------------- Main ------------------------------------ #

if __name__ == "__main__":
    N, C, H, W = 2, 8, 16, 16
    key = jax.random.PRNGKey(0)
    kx, k1, k2, k3, k4 = jax.random.split(key, 5)

    x = jax.random.normal(kx, (N, C, H, W), jnp.float32)
    params = {
        "w1": 0.1 * jax.random.normal(k1, (C, C, 3, 3), jnp.float32),
        "b1": 0.1 * jax.random.normal(k2, (C,), jnp.float32),
        "w2": 0.1 * jax.random.normal(k3, (C, C, 3, 3), jnp.float32),
        "b2": 0.1 * jax.random.normal(k4, (C,), jnp.float32),
    }

    ref = jax.block_until_ready(_reference(x, params, "reflect"))

    # Exact-semantics path (f32 MXU operands) vs the PyTorch-equivalent reference.
    out_f32 = jax.block_until_ready(
        residual_block_with_dropout(x, params, "reflect", mxu_dtype=jnp.float32))
    assert out_f32.shape == (N, C, H, W) and out_f32.dtype == jnp.float32
    err_f32 = float(jnp.max(jnp.abs(out_f32 - ref)))
    assert jnp.allclose(out_f32, ref, atol=1e-4, rtol=1e-4), err_f32

    # Fast path (bf16 MXU operands, f32 accumulation) -- default for v6e/v7x.
    out_bf16 = jax.block_until_ready(
        residual_block_with_dropout(x, params, "reflect"))
    rel = float(jnp.linalg.norm(out_bf16 - ref) / jnp.linalg.norm(ref))
    assert rel < 5e-2, rel

    print("KERNEL_OK")
</pallas_src>

<mosaic_0001>
module attributes {stable_mosaic.version = 11 : i64} {
  func.func @_residual_block_kernel(%arg0: i32, %arg1: memref<1x256x8xf32, #tpu.memory_space<vmem>>, %arg2: memref<9x8x8xf32, #tpu.memory_space<vmem>>, %arg3: memref<9x8x8xf32, #tpu.memory_space<vmem>>, %arg4: memref<1x256x8xf32, #tpu.memory_space<vmem>>, %arg5: memref<288x8xf32, #tpu.memory_space<vmem>>) attributes {dimension_semantics = [#tpu.dimension_semantics<parallel>], iteration_bounds = array<i64: 2>, scalar_prefetch = 0 : i64, scratch_operands = 1 : i64, tpu.core_type = #tpu.core_type<tc>, window_params = [{transform_indices = @transform_0, window_bounds = array<i64: 1, 256, 8>}, {pipeline_mode = #tpu.pipeline_mode<synchronous>, transform_indices = @transform_1, window_bounds = array<i64: 9, 8, 8>}, {pipeline_mode = #tpu.pipeline_mode<synchronous>, transform_indices = @transform_2, window_bounds = array<i64: 9, 8, 8>}, {transform_indices = @transform_3, window_bounds = array<i64: 1, 256, 8>}]} {
    %0 = tpu.iota {dimensions = array<i32: 0>} : vector<288x8xi32>
    %c15_i32 = arith.constant 15 : i32
    %1 = vector.broadcast %c15_i32 : i32 to vector<288x8xi32>
    %2 = arith.andi %0, %1 : vector<288x8xi32>
    %c0_i32 = arith.constant 0 : i32
    %3 = vector.broadcast %c0_i32 : i32 to vector<288x8xi32>
    %4 = arith.cmpi eq, %2, %3 : vector<288x8xi32>
    %c15_i32_0 = arith.constant 15 : i32
    %5 = vector.broadcast %c15_i32_0 : i32 to vector<288x8xi32>
    %6 = arith.cmpi eq, %2, %5 : vector<288x8xi32>
    %c0 = arith.constant 0 : index
    %c0_1 = arith.constant 0 : index
    %c0_2 = arith.constant 0 : index
    %7 = vector.load %arg1[%c0, %c0_1, %c0_2] : memref<1x256x8xf32, #tpu.memory_space<vmem>>, vector<1x256x8xf32>
    %8 = vector.shape_cast %7 : vector<1x256x8xf32> to vector<256x8xf32>
    %c16 = arith.constant 16 : index
    %c0_3 = arith.constant 0 : index
    %9 = vector.load %arg5[%c16, %c0_3] : memref<288x8xf32, #tpu.memory_space<vmem>>, vector<256x8xf32>
    tpu.vector_store %arg5[%c16, %c0_3], %8 {strides = array<i32>} : memref<288x8xf32, #tpu.memory_space<vmem>>, vector<256x8xf32>,
    %10 = vector.extract_strided_slice %8 {offsets = [16, 0], sizes = [16, 8], strides = [1, 1]} : vector<256x8xf32> to vector<16x8xf32>
    %c0_4 = arith.constant 0 : index
    %c0_5 = arith.constant 0 : index
    %11 = vector.load %arg5[%c0_4, %c0_5] : memref<288x8xf32, #tpu.memory_space<vmem>>, vector<16x8xf32>
    tpu.vector_store %arg5[%c0_4, %c0_5], %10 {strides = array<i32>} : memref<288x8xf32, #tpu.memory_space<vmem>>, vector<16x8xf32>,
    %12 = vector.extract_strided_slice %8 {offsets = [224, 0], sizes = [16, 8], strides = [1, 1]} : vector<256x8xf32> to vector<16x8xf32>
    %c272 = arith.constant 272 : index
    %c0_6 = arith.constant 0 : index
    %13 = vector.load %arg5[%c272, %c0_6] : memref<288x8xf32, #tpu.memory_space<vmem>>, vector<16x8xf32>
    tpu.vector_store %arg5[%c272, %c0_6], %12 {strides = array<i32>} : memref<288x8xf32, #tpu.memory_space<vmem>>, vector<16x8xf32>,
    %c0_7 = arith.constant 0 : index
    %c0_8 = arith.constant 0 : index
    %14 = vector.load %arg5[%c0_7, %c0_8] : memref<288x8xf32, #tpu.memory_space<vmem>>, vector<288x8xf32>
    %c1_i32 = arith.constant 1 : i32
    %15 = tpu.dynamic_rotate %14 by %c1_i32 dim 0 : vector<288x8xf32>, i32 -> vector<288x8xf32>
    %c287_i32 = arith.constant 287 : i32
    %16 = tpu.dynamic_rotate %14 by %c287_i32 dim 0 : vector<288x8xf32>, i32 -> vector<288x8xf32>
    %17 = arith.select %4, %16, %15 : vector<288x8xi1>, vector<288x8xf32>
    %18 = arith.select %6, %15, %16 : vector<288x8xi1>, vector<288x8xf32>
    %cst = arith.constant 0.000000e+00 : f32
    %19 = vector.broadcast %cst : f32 to vector<256x8xf32>
    %20 = vector.extract_strided_slice %17 {offsets = [0, 0], sizes = [256, 8], strides = [1, 1]} : vector<288x8xf32> to vector<256x8xf32>
    %c0_9 = arith.constant 0 : index
    %c0_10 = arith.constant 0 : index
    %c0_11 = arith.constant 0 : index
    %21 = vector.load %arg2[%c0_9, %c0_10, %c0_11] : memref<9x8x8xf32, #tpu.memory_space<vmem>>, vector<1x8x8xf32>
    %22 = vector.shape_cast %21 : vector<1x8x8xf32> to vector<8x8xf32>
    %cst_12 = arith.constant dense<0.000000e+00> : vector<256x8xf32>
    %23 = tpu.matmul %20, %22, %cst_12 {dimension_numbers = #tpu.dot_dimension_numbers<[1], [0], [0], [1], [0, 0, 1, 1], [], []>} : vector<256x8xf32>, vector<8x8xf32>, vector<256x8xf32> -> vector<256x8xf32>
    %24 = arith.addf %19, %23 : vector<256x8xf32>
    %25 = vector.extract_strided_slice %14 {offsets = [0, 0], sizes = [256, 8], strides = [1, 1]} : vector<288x8xf32> to vector<256x8xf32>
    %c1 = arith.constant 1 : index
    %c0_13 = arith.constant 0 : index
    %c0_14 = arith.constant 0 : index
    %26 = vector.load %arg2[%c1, %c0_13, %c0_14] : memref<9x8x8xf32, #tpu.memory_space<vmem>>, vector<1x8x8xf32>
    %27 = vector.shape_cast %26 : vector<1x8x8xf32> to vector<8x8xf32>
    %cst_15 = arith.constant dense<0.000000e+00> : vector<256x8xf32>
    %28 = tpu.matmul %25, %27, %cst_15 {dimension_numbers = #tpu.dot_dimension_numbers<[1], [0], [0], [1], [0, 0, 1, 1], [], []>} : vector<256x8xf32>, vector<8x8xf32>, vector<256x8xf32> -> vector<256x8xf32>
    %29 = arith.addf %24, %28 : vector<256x8xf32>
    %30 = vector.extract_strided_slice %18 {offsets = [0, 0], sizes = [256, 8], strides = [1, 1]} : vector<288x8xf32> to vector<256x8xf32>
    %c2 = arith.constant 2 : index
    %c0_16 = arith.constant 0 : index
    %c0_17 = arith.constant 0 : index
    %31 = vector.load %arg2[%c2, %c0_16, %c0_17] : memref<9x8x8xf32, #tpu.memory_space<vmem>>, vector<1x8x8xf32>
    %32 = vector.shape_cast %31 : vector<1x8x8xf32> to vector<8x8xf32>
    %cst_18 = arith.constant dense<0.000000e+00> : vector<256x8xf32>
    %33 = tpu.matmul %30, %32, %cst_18 {dimension_numbers = #tpu.dot_dimension_numbers<[1], [0], [0], [1], [0, 0, 1, 1], [], []>} : vector<256x8xf32>, vector<8x8xf32>, vector<256x8xf32> -> vector<256x8xf32>
    %34 = arith.addf %29, %33 : vector<256x8xf32>
    %35 = vector.extract_strided_slice %17 {offsets = [16, 0], sizes = [256, 8], strides = [1, 1]} : vector<288x8xf32> to vector<256x8xf32>
    %c3 = arith.constant 3 : index
    %c0_19 = arith.constant 0 : index
    %c0_20 = arith.constant 0 : index
    %36 = vector.load %arg2[%c3, %c0_19, %c0_20] : memref<9x8x8xf32, #tpu.memory_space<vmem>>, vector<1x8x8xf32>
    %37 = vector.shape_cast %36 : vector<1x8x8xf32> to vector<8x8xf32>
    %cst_21 = arith.constant dense<0.000000e+00> : vector<256x8xf32>
    %38 = tpu.matmul %35, %37, %cst_21 {dimension_numbers = #tpu.dot_dimension_numbers<[1], [0], [0], [1], [0, 0, 1, 1], [], []>} : vector<256x8xf32>, vector<8x8xf32>, vector<256x8xf32> -> vector<256x8xf32>
    %39 = arith.addf %34, %38 : vector<256x8xf32>
    %40 = vector.extract_strided_slice %14 {offsets = [16, 0], sizes = [256, 8], strides = [1, 1]} : vector<288x8xf32> to vector<256x8xf32>
    %c4 = arith.constant 4 : index
    %c0_22 = arith.constant 0 : index
    %c0_23 = arith.constant 0 : index
    %41 = vector.load %arg2[%c4, %c0_22, %c0_23] : memref<9x8x8xf32, #tpu.memory_space<vmem>>, vector<1x8x8xf32>
    %42 = vector.shape_cast %41 : vector<1x8x8xf32> to vector<8x8xf32>
    %cst_24 = arith.constant dense<0.000000e+00> : vector<256x8xf32>
    %43 = tpu.matmul %40, %42, %cst_24 {dimension_numbers = #tpu.dot_dimension_numbers<[1], [0], [0], [1], [0, 0, 1, 1], [], []>} : vector<256x8xf32>, vector<8x8xf32>, vector<256x8xf32> -> vector<256x8xf32>
    %44 = arith.addf %39, %43 : vector<256x8xf32>
    %45 = vector.extract_strided_slice %18 {offsets = [16, 0], sizes = [256, 8], strides = [1, 1]} : vector<288x8xf32> to vector<256x8xf32>
    %c5 = arith.constant 5 : index
    %c0_25 = arith.constant 0 : index
    %c0_26 = arith.constant 0 : index
    %46 = vector.load %arg2[%c5, %c0_25, %c0_26] : memref<9x8x8xf32, #tpu.memory_space<vmem>>, vector<1x8x8xf32>
    %47 = vector.shape_cast %46 : vector<1x8x8xf32> to vector<8x8xf32>
    %cst_27 = arith.constant dense<0.000000e+00> : vector<256x8xf32>
    %48 = tpu.matmul %45, %47, %cst_27 {dimension_numbers = #tpu.dot_dimension_numbers<[1], [0], [0], [1], [0, 0, 1, 1], [], []>} : vector<256x8xf32>, vector<8x8xf32>, vector<256x8xf32> -> vector<256x8xf32>
    %49 = arith.addf %44, %48 : vector<256x8xf32>
    %50 = vector.extract_strided_slice %17 {offsets = [32, 0], sizes = [256, 8], strides = [1, 1]} : vector<288x8xf32> to vector<256x8xf32>
    %c6 = arith.constant 6 : index
    %c0_28 = arith.constant 0 : index
    %c0_29 = arith.constant 0 : index
    %51 = vector.load %arg2[%c6, %c0_28, %c0_29] : memref<9x8x8xf32, #tpu.memory_space<vmem>>, vector<1x8x8xf32>
    %52 = vector.shape_cast %51 : vector<1x8x8xf32> to vector<8x8xf32>
    %cst_30 = arith.constant dense<0.000000e+00> : vector<256x8xf32>
    %53 = tpu.matmul %50, %52, %cst_30 {dimension_numbers = #tpu.dot_dimension_numbers<[1], [0], [0], [1], [0, 0, 1, 1], [], []>} : vector<256x8xf32>, vector<8x8xf32>, vector<256x8xf32> -> vector<256x8xf32>
    %54 = arith.addf %49, %53 : vector<256x8xf32>
    %55 = vector.extract_strided_slice %14 {offsets = [32, 0], sizes = [256, 8], strides = [1, 1]} : vector<288x8xf32> to vector<256x8xf32>
    %c7 = arith.constant 7 : index
    %c0_31 = arith.constant 0 : index
    %c0_32 = arith.constant 0 : index
    %56 = vector.load %arg2[%c7, %c0_31, %c0_32] : memref<9x8x8xf32, #tpu.memory_space<vmem>>, vector<1x8x8xf32>
    %57 = vector.shape_cast %56 : vector<1x8x8xf32> to vector<8x8xf32>
    %cst_33 = arith.constant dense<0.000000e+00> : vector<256x8xf32>
    %58 = tpu.matmul %55, %57, %cst_33 {dimension_numbers = #tpu.dot_dimension_numbers<[1], [0], [0], [1], [0, 0, 1, 1], [], []>} : vector<256x8xf32>, vector<8x8xf32>, vector<256x8xf32> -> vector<256x8xf32>
    %59 = arith.addf %54, %58 : vector<256x8xf32>
    %60 = vector.extract_strided_slice %18 {offsets = [32, 0], sizes = [256, 8], strides = [1, 1]} : vector<288x8xf32> to vector<256x8xf32>
    %c8 = arith.constant 8 : index
    %c0_34 = arith.constant 0 : index
    %c0_35 = arith.constant 0 : index
    %61 = vector.load %arg2[%c8, %c0_34, %c0_35] : memref<9x8x8xf32, #tpu.memory_space<vmem>>, vector<1x8x8xf32>
    %62 = vector.shape_cast %61 : vector<1x8x8xf32> to vector<8x8xf32>
    %cst_36 = arith.constant dense<0.000000e+00> : vector<256x8xf32>
    %63 = tpu.matmul %60, %62, %cst_36 {dimension_numbers = #tpu.dot_dimension_numbers<[1], [0], [0], [1], [0, 0, 1, 1], [], []>} : vector<256x8xf32>, vector<8x8xf32>, vector<256x8xf32> -> vector<256x8xf32>
    %64 = arith.addf %59, %63 : vector<256x8xf32>
    %cst_37 = arith.constant dense<0.000000e+00> : vector<8xf32>
    %65 = vector.multi_reduction <add>, %64, %cst_37 [0] : vector<256x8xf32> to vector<8xf32>
    %66 = vector.shape_cast %65 : vector<8xf32> to vector<1x8xf32>
    %cst_38 = arith.constant 3.906250e-03 : f32
    %67 = vector.broadcast %cst_38 : f32 to vector<1x8xf32>
    %68 = arith.mulf %66, %67 : vector<1x8xf32>
    %69 = arith.mulf %64, %64 : vector<256x8xf32>
    %cst_39 = arith.constant dense<0.000000e+00> : vector<8xf32>
    %70 = vector.multi_reduction <add>, %69, %cst_39 [0] : vector<256x8xf32> to vector<8xf32>
    %71 = vector.shape_cast %70 : vector<8xf32> to vector<1x8xf32>
    %cst_40 = arith.constant 3.906250e-03 : f32
    %72 = vector.broadcast %cst_40 : f32 to vector<1x8xf32>
    %73 = arith.mulf %71, %72 : vector<1x8xf32>
    %74 = arith.mulf %68, %68 : vector<1x8xf32>
    %75 = arith.subf %73, %74 : vector<1x8xf32>
    %cst_41 = arith.constant 0.000000e+00 : f32
    %76 = vector.broadcast %cst_41 : f32 to vector<1x8xf32>
    %77 = arith.maximumf %75, %76 : vector<1x8xf32>
    %78 = vector.broadcast %68 : vector<1x8xf32> to vector<256x8xf32>
    %79 = arith.subf %64, %78 : vector<256x8xf32>
    %cst_42 = arith.constant 9.99999974E-6 : f32
    %80 = vector.broadcast %cst_42 : f32 to vector<1x8xf32>
    %81 = arith.addf %77, %80 : vector<1x8xf32>
    %82 = math.rsqrt %81 : vector<1x8xf32>
    %83 = vector.broadcast %82 : vector<1x8xf32> to vector<256x8xf32>
    %84 = arith.mulf %79, %83 : vector<256x8xf32>
    %cst_43 = arith.constant 0.000000e+00 : f32
    %85 = vector.broadcast %cst_43 : f32 to vector<256x8xf32>
    %86 = arith.maximumf %84, %85 : vector<256x8xf32>
    %c16_44 = arith.constant 16 : index
    %c0_45 = arith.constant 0 : index
    %87 = vector.load %arg5[%c16_44, %c0_45] : memref<288x8xf32, #tpu.memory_space<vmem>>, vector<256x8xf32>
    tpu.vector_store %arg5[%c16_44, %c0_45], %86 {strides = array<i32>} : memref<288x8xf32, #tpu.memory_space<vmem>>, vector<256x8xf32>,
    %88 = vector.extract_strided_slice %86 {offsets = [16, 0], sizes = [16, 8], strides = [1, 1]} : vector<256x8xf32> to vector<16x8xf32>
    %c0_46 = arith.constant 0 : index
    %c0_47 = arith.constant 0 : index
    %89 = vector.load %arg5[%c0_46, %c0_47] : memref<288x8xf32, #tpu.memory_space<vmem>>, vector<16x8xf32>
    tpu.vector_store %arg5[%c0_46, %c0_47], %88 {strides = array<i32>} : memref<288x8xf32, #tpu.memory_space<vmem>>, vector<16x8xf32>,
    %90 = vector.extract_strided_slice %86 {offsets = [224, 0], sizes = [16, 8], strides = [1, 1]} : vector<256x8xf32> to vector<16x8xf32>
    %c272_48 = arith.constant 272 : index
    %c0_49 = arith.constant 0 : index
    %91 = vector.load %arg5[%c272_48, %c0_49] : memref<288x8xf32, #tpu.memory_space<vmem>>, vector<16x8xf32>
    tpu.vector_store %arg5[%c272_48, %c0_49], %90 {strides = array<i32>} : memref<288x8xf32, #tpu.memory_space<vmem>>, vector<16x8xf32>,
    %c0_50 = arith.constant 0 : index
    %c0_51 = arith.constant 0 : index
    %92 = vector.load %arg5[%c0_50, %c0_51] : memref<288x8xf32, #tpu.memory_space<vmem>>, vector<288x8xf32>
    %c1_i32_52 = arith.constant 1 : i32
    %93 = tpu.dynamic_rotate %92 by %c1_i32_52 dim 0 : vector<288x8xf32>, i32 -> vector<288x8xf32>
    %c287_i32_53 = arith.constant 287 : i32
    %94 = tpu.dynamic_rotate %92 by %c287_i32_53 dim 0 : vector<288x8xf32>, i32 -> vector<288x8xf32>
    %95 = arith.select %4, %94, %93 : vector<288x8xi1>, vector<288x8xf32>
    %96 = arith.select %6, %93, %94 : vector<288x8xi1>, vector<288x8xf32>
    %cst_54 = arith.constant 0.000000e+00 : f32
    %97 = vector.broadcast %cst_54 : f32 to vector<256x8xf32>
    %98 = vector.extract_strided_slice %95 {offsets = [0, 0], sizes = [256, 8], strides = [1, 1]} : vector<288x8xf32> to vector<256x8xf32>
    %c0_55 = arith.constant 0 : index
    %c0_56 = arith.constant 0 : index
    %c0_57 = arith.constant 0 : index
    %99 = vector.load %arg3[%c0_55, %c0_56, %c0_57] : memref<9x8x8xf32, #tpu.memory_space<vmem>>, vector<1x8x8xf32>
    %100 = vector.shape_cast %99 : vector<1x8x8xf32> to vector<8x8xf32>
    %cst_58 = arith.constant dense<0.000000e+00> : vector<256x8xf32>
    %101 = tpu.matmul %98, %100, %cst_58 {dimension_numbers = #tpu.dot_dimension_numbers<[1], [0], [0], [1], [0, 0, 1, 1], [], []>} : vector<256x8xf32>, vector<8x8xf32>, vector<256x8xf32> -> vector<256x8xf32>
    %102 = arith.addf %97, %101 : vector<256x8xf32>
    %103 = vector.extract_strided_slice %92 {offsets = [0, 0], sizes = [256, 8], strides = [1, 1]} : vector<288x8xf32> to vector<256x8xf32>
    %c1_59 = arith.constant 1 : index
    %c0_60 = arith.constant 0 : index
    %c0_61 = arith.constant 0 : index
    %104 = vector.load %arg3[%c1_59, %c0_60, %c0_61] : memref<9x8x8xf32, #tpu.memory_space<vmem>>, vector<1x8x8xf32>
    %105 = vector.shape_cast %104 : vector<1x8x8xf32> to vector<8x8xf32>
    %cst_62 = arith.constant dense<0.000000e+00> : vector<256x8xf32>
    %106 = tpu.matmul %103, %105, %cst_62 {dimension_numbers = #tpu.dot_dimension_numbers<[1], [0], [0], [1], [0, 0, 1, 1], [], []>} : vector<256x8xf32>, vector<8x8xf32>, vector<256x8xf32> -> vector<256x8xf32>
    %107 = arith.addf %102, %106 : vector<256x8xf32>
    %108 = vector.extract_strided_slice %96 {offsets = [0, 0], sizes = [256, 8], strides = [1, 1]} : vector<288x8xf32> to vector<256x8xf32>
    %c2_63 = arith.constant 2 : index
    %c0_64 = arith.constant 0 : index
    %c0_65 = arith.constant 0 : index
    %109 = vector.load %arg3[%c2_63, %c0_64, %c0_65] : memref<9x8x8xf32, #tpu.memory_space<vmem>>, vector<1x8x8xf32>
    %110 = vector.shape_cast %109 : vector<1x8x8xf32> to vector<8x8xf32>
    %cst_66 = arith.constant dense<0.000000e+00> : vector<256x8xf32>
    %111 = tpu.matmul %108, %110, %cst_66 {dimension_numbers = #tpu.dot_dimension_numbers<[1], [0], [0], [1], [0, 0, 1, 1], [], []>} : vector<256x8xf32>, vector<8x8xf32>, vector<256x8xf32> -> vector<256x8xf32>
    %112 = arith.addf %107, %111 : vector<256x8xf32>
    %113 = vector.extract_strided_slice %95 {offsets = [16, 0], sizes = [256, 8], strides = [1, 1]} : vector<288x8xf32> to vector<256x8xf32>
    %c3_67 = arith.constant 3 : index
    %c0_68 = arith.constant 0 : index
    %c0_69 = arith.constant 0 : index
    %114 = vector.load %arg3[%c3_67, %c0_68, %c0_69] : memref<9x8x8xf32, #tpu.memory_space<vmem>>, vector<1x8x8xf32>
    %115 = vector.shape_cast %114 : vector<1x8x8xf32> to vector<8x8xf32>
    %cst_70 = arith.constant dense<0.000000e+00> : vector<256x8xf32>
    %116 = tpu.matmul %113, %115, %cst_70 {dimension_numbers = #tpu.dot_dimension_numbers<[1], [0], [0], [1], [0, 0, 1, 1], [], []>} : vector<256x8xf32>, vector<8x8xf32>, vector<256x8xf32> -> vector<256x8xf32>
    %117 = arith.addf %112, %116 : vector<256x8xf32>
    %118 = vector.extract_strided_slice %92 {offsets = [16, 0], sizes = [256, 8], strides = [1, 1]} : vector<288x8xf32> to vector<256x8xf32>
    %c4_71 = arith.constant 4 : index
    %c0_72 = arith.constant 0 : index
    %c0_73 = arith.constant 0 : index
    %119 = vector.load %arg3[%c4_71, %c0_72, %c0_73] : memref<9x8x8xf32, #tpu.memory_space<vmem>>, vector<1x8x8xf32>
    %120 = vector.shape_cast %119 : vector<1x8x8xf32> to vector<8x8xf32>
    %cst_74 = arith.constant dense<0.000000e+00> : vector<256x8xf32>
    %121 = tpu.matmul %118, %120, %cst_74 {dimension_numbers = #tpu.dot_dimension_numbers<[1], [0], [0], [1], [0, 0, 1, 1], [], []>} : vector<256x8xf32>, vector<8x8xf32>, vector<256x8xf32> -> vector<256x8xf32>
    %122 = arith.addf %117, %121 : vector<256x8xf32>
    %123 = vector.extract_strided_slice %96 {offsets = [16, 0], sizes = [256, 8], strides = [1, 1]} : vector<288x8xf32> to vector<256x8xf32>
    %c5_75 = arith.constant 5 : index
    %c0_76 = arith.constant 0 : index
    %c0_77 = arith.constant 0 : index
    %124 = vector.load %arg3[%c5_75, %c0_76, %c0_77] : memref<9x8x8xf32, #tpu.memory_space<vmem>>, vector<1x8x8xf32>
    %125 = vector.shape_cast %124 : vector<1x8x8xf32> to vector<8x8xf32>
    %cst_78 = arith.constant dense<0.000000e+00> : vector<256x8xf32>
    %126 = tpu.matmul %123, %125, %cst_78 {dimension_numbers = #tpu.dot_dimension_numbers<[1], [0], [0], [1], [0, 0, 1, 1], [], []>} : vector<256x8xf32>, vector<8x8xf32>, vector<256x8xf32> -> vector<256x8xf32>
    %127 = arith.addf %122, %126 : vector<256x8xf32>
    %128 = vector.extract_strided_slice %95 {offsets = [32, 0], sizes = [256, 8], strides = [1, 1]} : vector<288x8xf32> to vector<256x8xf32>
    %c6_79 = arith.constant 6 : index
    %c0_80 = arith.constant 0 : index
    %c0_81 = arith.constant 0 : index
    %129 = vector.load %arg3[%c6_79, %c0_80, %c0_81] : memref<9x8x8xf32, #tpu.memory_space<vmem>>, vector<1x8x8xf32>
    %130 = vector.shape_cast %129 : vector<1x8x8xf32> to vector<8x8xf32>
    %cst_82 = arith.constant dense<0.000000e+00> : vector<256x8xf32>
    %131 = tpu.matmul %128, %130, %cst_82 {dimension_numbers = #tpu.dot_dimension_numbers<[1], [0], [0], [1], [0, 0, 1, 1], [], []>} : vector<256x8xf32>, vector<8x8xf32>, vector<256x8xf32> -> vector<256x8xf32>
    %132 = arith.addf %127, %131 : vector<256x8xf32>
    %133 = vector.extract_strided_slice %92 {offsets = [32, 0], sizes = [256, 8], strides = [1, 1]} : vector<288x8xf32> to vector<256x8xf32>
    %c7_83 = arith.constant 7 : index
    %c0_84 = arith.constant 0 : index
    %c0_85 = arith.constant 0 : index
    %134 = vector.load %arg3[%c7_83, %c0_84, %c0_85] : memref<9x8x8xf32, #tpu.memory_space<vmem>>, vector<1x8x8xf32>
    %135 = vector.shape_cast %134 : vector<1x8x8xf32> to vector<8x8xf32>
    %cst_86 = arith.constant dense<0.000000e+00> : vector<256x8xf32>
    %136 = tpu.matmul %133, %135, %cst_86 {dimension_numbers = #tpu.dot_dimension_numbers<[1], [0], [0], [1], [0, 0, 1, 1], [], []>} : vector<256x8xf32>, vector<8x8xf32>, vector<256x8xf32> -> vector<256x8xf32>
    %137 = arith.addf %132, %136 : vector<256x8xf32>
    %138 = vector.extract_strided_slice %96 {offsets = [32, 0], sizes = [256, 8], strides = [1, 1]} : vector<288x8xf32> to vector<256x8xf32>
    %c8_87 = arith.constant 8 : index
    %c0_88 = arith.constant 0 : index
    %c0_89 = arith.constant 0 : index
    %139 = vector.load %arg3[%c8_87, %c0_88, %c0_89] : memref<9x8x8xf32, #tpu.memory_space<vmem>>, vector<1x8x8xf32>
    %140 = vector.shape_cast %139 : vector<1x8x8xf32> to vector<8x8xf32>
    %cst_90 = arith.constant dense<0.000000e+00> : vector<256x8xf32>
    %141 = tpu.matmul %138, %140, %cst_90 {dimension_numbers = #tpu.dot_dimension_numbers<[1], [0], [0], [1], [0, 0, 1, 1], [], []>} : vector<256x8xf32>, vector<8x8xf32>, vector<256x8xf32> -> vector<256x8xf32>
    %142 = arith.addf %137, %141 : vector<256x8xf32>
    %cst_91 = arith.constant dense<0.000000e+00> : vector<8xf32>
    %143 = vector.multi_reduction <add>, %142, %cst_91 [0] : vector<256x8xf32> to vector<8xf32>
    %144 = vector.shape_cast %143 : vector<8xf32> to vector<1x8xf32>
    %cst_92 = arith.constant 3.906250e-03 : f32
    %145 = vector.broadcast %cst_92 : f32 to vector<1x8xf32>
    %146 = arith.mulf %144, %145 : vector<1x8xf32>
    %147 = arith.mulf %142, %142 : vector<256x8xf32>
    %cst_93 = arith.constant dense<0.000000e+00> : vector<8xf32>
    %148 = vector.multi_reduction <add>, %147, %cst_93 [0] : vector<256x8xf32> to vector<8xf32>
    %149 = vector.shape_cast %148 : vector<8xf32> to vector<1x8xf32>
    %cst_94 = arith.constant 3.906250e-03 : f32
    %150 = vector.broadcast %cst_94 : f32 to vector<1x8xf32>
    %151 = arith.mulf %149, %150 : vector<1x8xf32>
    %152 = arith.mulf %146, %146 : vector<1x8xf32>
    %153 = arith.subf %151, %152 : vector<1x8xf32>
    %cst_95 = arith.constant 0.000000e+00 : f32
    %154 = vector.broadcast %cst_95 : f32 to vector<1x8xf32>
    %155 = arith.maximumf %153, %154 : vector<1x8xf32>
    %156 = vector.broadcast %146 : vector<1x8xf32> to vector<256x8xf32>
    %157 = arith.subf %142, %156 : vector<256x8xf32>
    %cst_96 = arith.constant 9.99999974E-6 : f32
    %158 = vector.broadcast %cst_96 : f32 to vector<1x8xf32>
    %159 = arith.addf %155, %158 : vector<1x8xf32>
    %160 = math.rsqrt %159 : vector<1x8xf32>
    %161 = vector.broadcast %160 : vector<1x8xf32> to vector<256x8xf32>
    %162 = arith.mulf %157, %161 : vector<256x8xf32>
    %163 = arith.addf %8, %162 : vector<256x8xf32>
    %c0_97 = arith.constant 0 : index
    %c0_98 = arith.constant 0 : index
    %c0_99 = arith.constant 0 : index
    %164 = vector.load %arg4[%c0_97, %c0_98, %c0_99] : memref<1x256x8xf32, #tpu.memory_space<vmem>>, vector<1x256x8xf32>
    %165 = vector.shape_cast %164 : vector<1x256x8xf32> to vector<256x8xf32>
    %166 = vector.shape_cast %163 : vector<256x8xf32> to vector<1x256x8xf32>
    tpu.vector_store %arg4[%c0_97, %c0_98, %c0_99], %166 {strides = array<i32>} : memref<1x256x8xf32, #tpu.memory_space<vmem>>, vector<1x256x8xf32>,
    return
  }
  func.func @transform_0(%arg0: i32) -> (i32, i32, i32) {
    %c0_i32 = arith.constant 0 : i32
    %c0_i32_0 = arith.constant 0 : i32
    %c0_i32_1 = arith.constant 0 : i32
    return %arg0, %c0_i32, %c0_i32_0 : i32, i32, i32
  }
  func.func @transform_1(%arg0: i32) -> (i32, i32, i32) {
    %c0_i32 = arith.constant 0 : i32
    %c0_i32_0 = arith.constant 0 : i32
    %c0_i32_1 = arith.constant 0 : i32
    %c0_i32_2 = arith.constant 0 : i32
    return %c0_i32, %c0_i32_0, %c0_i32_1 : i32, i32, i32
  }
  func.func @transform_2(%arg0: i32) -> (i32, i32, i32) {
    %c0_i32 = arith.constant 0 : i32
    %c0_i32_0 = arith.constant 0 : i32
    %c0_i32_1 = arith.constant 0 : i32
    %c0_i32_2 = arith.constant 0 : i32
    return %c0_i32, %c0_i32_0, %c0_i32_1 : i32, i32, i32
  }
  func.func @transform_3(%arg0: i32) -> (i32, i32, i32) {
    %c0_i32 = arith.constant 0 : i32
    %c0_i32_0 = arith.constant 0 : i32
    %c0_i32_1 = arith.constant 0 : i32
    return %arg0, %c0_i32, %c0_i32_0 : i32, i32, i32
  }
}

</mosaic_0001>

<llo_original>
// kernel: tpu_custom_call.1
$region0: #{tpu_custom_call.1}
  #allocation0 [shape = 'u32[]', space=smem, size = 0x4, offset = 0x4, fixed_abs, tag = 'smem constant byte address 0x4 - core index']
  #allocation1 [shape = 'u32[144,128]{1,0:T(1,128)}', space=vmem, size = 0x12000, scoped, tag = 'internal scratch']
  #allocation2 [shape = 'f32[288,8]{1,0:T(8,128)}', space=vmem, size = 0x24000, scoped, tag = 'scratch operand']
  %s0 = inlined_call_operand.vmem [shape: f32[2,256,8], index: 0, kind: input, shape index: {}]
  %s1 = inlined_call_operand.vmem [shape: f32[9,8,8], index: 1, kind: input, shape index: {}]
  %s2 = inlined_call_operand.vmem [shape: f32[9,8,8], index: 2, kind: input, shape index: {}]
  %s3 = inlined_call_operand.vmem [shape: f32[2,256,8], index: 3, kind: output, shape index: {}]
  %s4 = sld [smem:[#allocation0]]
  $region45: #{tpu_custom_call.1} parent=0
    _
  %s6 = ssub.s32 1, %s4
  %s7 = scalar_select 0, %s6, %s4
  loop: start=0, step=1, limit=4
  $region2: #{tpu_custom_call.1} parent=0 // loop_pre_header
    _
  $region3: #{tpu_custom_call.1} parent=0 // loop_header
    %s9 = sphi 0, %s13
    %p10 = scmp.ge.s32.totalorder %s9, 4
    %s19 = sphi 0, %s21
    %s22 = sphi 0, %s19
    %s23 = sphi 0, %s22
    %s39 = sphi 0, %s23
    %s43 = sphi 0, %s43
    %s45 = sphi 0, %s43
    %s46 = sphi 0, %s45
    %s60 = sphi 0, %s46
    %s64 = sphi 0, %s64
    %s66 = sphi 0, %s64
    %s67 = sphi 0, %s66
    %s81 = sphi 0, %s67
    %s87 = sphi 0, %s89
    %s90 = sphi 0, %s87
    %s91 = sphi 0, %s90
    %s107 = sphi 0, %s91
  $region4: #{tpu_custom_call.1} parent=0 // loop_header_branch
    %12 = sbr.rel (%p10) target = $region8
  $region5: #{tpu_custom_call.1} parent=0 // loop_body
    %s14 = ssub.s32 %s9, 1
    %s15 = ssub.s32 %s9, 2
    %s16 = sadd.s32 %s9, 1
    %s17 = ssub.s32 %s9, %s16
    %p18 = scmp.eq.s32.totalorder %s17, 0
    %s20 = sadd.s32 %s19, 1
    %s21 = scalar_select %p18, %s19, %s20
    %p24 = pneg %p18
    %p25 = scmp.eq.s32.totalorder %s9, 1
    %p26 = por %p24, %p25
    %p27 = scmp.ne.s32.totalorder %s19, %s22
    %p28 = scmp.eq.s32.totalorder %s9, 0
    %p29 = por %p27, %p28
    %p30 = scmp.ne.s32.totalorder %s19, %s22
    %p31 = scmp.eq.s32.totalorder %s14, 1
    %p32 = por %p30, %p31
    %p33 = scmp.ne.s32.totalorder %s22, %s23
    %p34 = scmp.eq.s32.totalorder %s14, 0
    %p35 = por %p33, %p34
    %p36 = scmp.ne.s32.totalorder %s22, %s23
    %p37 = scmp.eq.s32.totalorder %s15, 1
    %p38 = por %p36, %p37
    %p40 = scmp.ne.s32.totalorder %s23, %s39
    %p41 = scmp.eq.s32.totalorder %s15, 0
    %p42 = por %p40, %p41
    %s44 = sadd.s32 %s43, 1
    %p47 = scmp.eq.s32.totalorder %s9, 1
    %p48 = scmp.ne.s32.totalorder %s43, %s45
    %p49 = scmp.eq.s32.totalorder %s9, 0
    %p50 = por %p48, %p49
    %p51 = scmp.ne.s32.totalorder %s43, %s45
    %p52 = scmp.eq.s32.totalorder %s14, 1
    %p53 = por %p51, %p52
    %p54 = scmp.ne.s32.totalorder %s45, %s46
    %p55 = scmp.eq.s32.totalorder %s14, 0
    %p56 = por %p54, %p55
    %p57 = scmp.ne.s32.totalorder %s45, %s46
    %p58 = scmp.eq.s32.totalorder %s15, 1
    %p59 = por %p57, %p58
    %p61 = scmp.ne.s32.totalorder %s46, %s60
    %p62 = scmp.eq.s32.totalorder %s15, 0
    %p63 = por %p61, %p62
    %s65 = sadd.s32 %s64, 1
    %p68 = scmp.eq.s32.totalorder %s9, 1
    %p69 = scmp.ne.s32.totalorder %s64, %s66
    %p70 = scmp.eq.s32.totalorder %s9, 0
    %p71 = por %p69, %p70
    %p72 = scmp.ne.s32.totalorder %s64, %s66
    %p73 = scmp.eq.s32.totalorder %s14, 1
    %p74 = por %p72, %p73
    %p75 = scmp.ne.s32.totalorder %s66, %s67
    %p76 = scmp.eq.s32.totalorder %s14, 0
    %p77 = por %p75, %p76
    %p78 = scmp.ne.s32.totalorder %s66, %s67
    %p79 = scmp.eq.s32.totalorder %s15, 1
    %p80 = por %p78, %p79
    %p82 = scmp.ne.s32.totalorder %s67, %s81
    %p83 = scmp.eq.s32.totalorder %s15, 0
    %p84 = por %p82, %p83
    %s85 = ssub.s32 %s9, %s16
    %p86 = scmp.eq.s32.totalorder %s85, 0
    %s88 = sadd.s32 %s87, 1
    %s89 = scalar_select %p86, %s87, %s88
    %p92 = pneg %p86
    %p93 = scmp.eq.s32.totalorder %s9, 1
    %p94 = por %p92, %p93
    %p95 = scmp.ne.s32.totalorder %s87, %s90
    %p96 = scmp.eq.s32.totalorder %s9, 0
    %p97 = por %p95, %p96
    %p98 = scmp.ne.s32.totalorder %s87, %s90
    %p99 = scmp.eq.s32.totalorder %s14, 1
    %p100 = por %p98, %p99
    %p101 = scmp.ne.s32.totalorder %s90, %s91
    %p102 = scmp.eq.s32.totalorder %s14, 0
    %p103 = por %p101, %p102
    %p104 = scmp.ne.s32.totalorder %s90, %s91
    %p105 = scmp.eq.s32.totalorder %s15, 1
    %p106 = por %p104, %p105
    %p108 = scmp.ne.s32.totalorder %s91, %s107
    %p109 = scmp.eq.s32.totalorder %s15, 0
    %p110 = por %p108, %p109
    %p111 = scmp.le.s32.totalorder 1, %s9
    %p112 = scmp.lt.s32.totalorder %s9, 3
    %p113 = pnand %p111, %p112
    %p114 = pneg %p113
    // Predicated region
    $region9: #{tpu_custom_call.1} parent=5 // pred_check
      _
    $region10: #{tpu_custom_call.1} parent=5 // pred_check_branch
      %116 = sbr.rel (%p113) target = $region12
    $region11: #{tpu_custom_call.1} parent=5 // pred_region
      %s117 = ssub.s32 %s9, 1
      // Predicated region
      $region13: #{tpu_custom_call.1} parent=11 // pred_check
        %p118 = pneg %p56
      $region14: #{tpu_custom_call.1} parent=11 // pred_check_branch
        %120 = sbr.rel (%p118) target = $region16
      $region15: #{tpu_custom_call.1} parent=11 // pred_region
        _
      $region16: #{tpu_custom_call.1} parent=11 // pred_fallthru
        _
      // Predicated region
      $region17: #{tpu_custom_call.1} parent=11 // pred_check
        %p121 = pneg %p77
      $region18: #{tpu_custom_call.1} parent=11 // pred_check_branch
        %123 = sbr.rel (%p121) target = $region20
      $region19: #{tpu_custom_call.1} parent=11 // pred_region
        _
      $region20: #{tpu_custom_call.1} parent=11 // pred_fallthru
        _
    $region12: #{tpu_custom_call.1} parent=5 // pred_fallthru
      _
    %p124 = scmp.lt.s32.totalorder %s9, 2
    // Predicated region
    $region21: #{tpu_custom_call.1} parent=5 // pred_check
      %p125 = pneg %p124
    $region22: #{tpu_custom_call.1} parent=5 // pred_check_branch
      %127 = sbr.rel (%p125) target = $region24
    $region23: #{tpu_custom_call.1} parent=5 // pred_region
      // Predicated region
      $region25: #{tpu_custom_call.1} parent=23 // pred_check
        %p128 = pneg %p29
      $region26: #{tpu_custom_call.1} parent=23 // pred_check_branch
        %130 = sbr.rel (%p128) target = $region28
      $region27: #{tpu_custom_call.1} parent=23 // pred_region
        %p131 = scmp.lt.s32.totalorder %s9, 1
        %s132 = scalar_select %p131, %s9, 1
        %s133 = smul.addr %s132, 32
        %s134 = smul.addr %s133, 8
        %s135 = scalar_lea.vmem %s0, %s134
      $region28: #{tpu_custom_call.1} parent=23 // pred_fallthru
        _
    $region24: #{tpu_custom_call.1} parent=5 // pred_fallthru
      _
    %p136 = scmp.le.s32.totalorder 1, %s9
    %p137 = scmp.lt.s32.totalorder %s9, 3
    %p138 = pnand %p136, %p137
    %p139 = pneg %p138
    // Predicated region
    $region29: #{tpu_custom_call.1} parent=5 // pred_check
      _
    $region30: #{tpu_custom_call.1} parent=5 // pred_check_branch
      %141 = sbr.rel (%p138) target = $region32
    $region31: #{tpu_custom_call.1} parent=5 // pred_region
      %s142 = ssub.s32 %s9, 1
      %p143 = scmp.lt.s32.totalorder %s14, 1
      %s144 = scalar_select %p143, %s14, 1
      %s145 = smul.addr %s144, 32
      %s146 = smul.addr %s145, 8
      %s147 = scalar_lea.vmem %s0, %s146
      %p148 = pneg %p35
      %p149 = pneg %p32
      %p150 = pneg %p56
      %p151 = pneg %p53
      %p152 = pneg %p77
      %p153 = pneg %p74
      %p154 = pneg %p103
      %p155 = pneg %p100
      %p156 = scmp.lt.s32.totalorder %s14, 1
      %s157 = scalar_select %p156, %s14, 1
      %s158 = smul.addr %s157, 32
      %s159 = smul.addr %s158, 8
      %s160 = scalar_lea.vmem %s3, %s159
      %p161 = scmp.lt.s32.totalorder %s14, 1
      %s162 = scalar_select %p161, %s14, 1
      %s163 = smul.addr %s162, 32
      %s164 = smul.addr %s163, 8
      %s165 = scalar_lea.vmem %s0, %s164
      %p166 = scmp.lt.s32.totalorder %s14, 1
      %s167 = scalar_select %p166, %s14, 1
      %s168 = smul.addr %s167, 32
      %s169 = smul.addr %s168, 8
      %s170 = scalar_lea.vmem %s3, %s169
      %v171 = vlaneseq
      %v172 = vshrl.u32 %v171, 7
      %v173 = vadd.s32 %v172, 8
      %v174 = vadd.s32 %v172, 16
      %v175 = vadd.s32 %v172, 24
      %v176 = vadd.s32 %v172, 32
      %v177 = vadd.s32 %v172, 40
      %v178 = vadd.s32 %v172, 48
      %v179 = vadd.s32 %v172, 56
      %v180 = vadd.s32 %v172, 64
      %v181 = vadd.s32 %v172, 72
      %v182 = vadd.s32 %v172, 80
      %v183 = vadd.s32 %v172, 88
      %v184 = vadd.s32 %v172, 96
      %v185 = vadd.s32 %v172, 104
      %v186 = vadd.s32 %v172, 112
      %v187 = vadd.s32 %v172, 120
      %v188 = vadd.s32 %v172, 128
      %v189 = vadd.s32 %v172, 136
      %v190 = vadd.s32 %v172, 144
      %v191 = vadd.s32 %v172, 152
      %v192 = vadd.s32 %v172, 160
      %v193 = vadd.s32 %v172, 168
      %v194 = vadd.s32 %v172, 176
      %v195 = vadd.s32 %v172, 184
      %v196 = vadd.s32 %v172, 192
      %v197 = vadd.s32 %v172, 200
      %v198 = vadd.s32 %v172, 208
      %v199 = vadd.s32 %v172, 216
      %v200 = vadd.s32 %v172, 224
      %v201 = vadd.s32 %v172, 232
      %v202 = vadd.s32 %v172, 240
      %v203 = vadd.s32 %v172, 248
      %v204 = vadd.s32 %v172, 256
      %v205 = vadd.s32 %v172, 264
      %v206 = vadd.s32 %v172, 272
      %v207 = vadd.s32 %v172, 280
      %v208 = vand.u32 %v172, 15
      %v209 = vand.u32 %v173, 15
      %v210 = vand.u32 %v174, 15
      %v211 = vand.u32 %v175, 15
      %v212 = vand.u32 %v176, 15
      %v213 = vand.u32 %v177, 15
      %v214 = vand.u32 %v178, 15
      %v215 = vand.u32 %v179, 15
      %v216 = vand.u32 %v180, 15
      %v217 = vand.u32 %v181, 15
      %v218 = vand.u32 %v182, 15
      %v219 = vand.u32 %v183, 15
      %v220 = vand.u32 %v184, 15
      %v221 = vand.u32 %v185, 15
      %v222 = vand.u32 %v186, 15
      %v223 = vand.u32 %v187, 15
      %v224 = vand.u32 %v188, 15
      %v225 = vand.u32 %v189, 15
      %v226 = vand.u32 %v190, 15
      %v227 = vand.u32 %v191, 15
      %v228 = vand.u32 %v192, 15
      %v229 = vand.u32 %v193, 15
      %v230 = vand.u32 %v194, 15
      %v231 = vand.u32 %v195, 15
      %v232 = vand.u32 %v196, 15
      %v233 = vand.u32 %v197, 15
      %v234 = vand.u32 %v198, 15
      %v235 = vand.u32 %v199, 15
      %v236 = vand.u32 %v200, 15
      %v237 = vand.u32 %v201, 15
      %v238 = vand.u32 %v202, 15
      %v239 = vand.u32 %v203, 15
      %v240 = vand.u32 %v204, 15
      %v241 = vand.u32 %v205, 15
      %v242 = vand.u32 %v206, 15
      %v243 = vand.u32 %v207, 15
      %vm244 = vcmp.eq.s32.totalorder %v208, 0
      %vm245 = vcmp.eq.s32.totalorder %v209, 0
      %vm246 = vcmp.eq.s32.totalorder %v210, 0
      %vm247 = vcmp.eq.s32.totalorder %v211, 0
      %vm248 = vcmp.eq.s32.totalorder %v212, 0
      %vm249 = vcmp.eq.s32.totalorder %v213, 0
      %vm250 = vcmp.eq.s32.totalorder %v214, 0
      %vm251 = vcmp.eq.s32.totalorder %v215, 0
      %vm252 = vcmp.eq.s32.totalorder %v216, 0
      %vm253 = vcmp.eq.s32.totalorder %v217, 0
      %vm254 = vcmp.eq.s32.totalorder %v218, 0
      %vm255 = vcmp.eq.s32.totalorder %v219, 0
      %vm256 = vcmp.eq.s32.totalorder %v220, 0
      %vm257 = vcmp.eq.s32.totalorder %v221, 0
      %vm258 = vcmp.eq.s32.totalorder %v222, 0
      %vm259 = vcmp.eq.s32.totalorder %v223, 0
      %vm260 = vcmp.eq.s32.totalorder %v224, 0
      %vm261 = vcmp.eq.s32.totalorder %v225, 0
      %vm262 = vcmp.eq.s32.totalorder %v226, 0
      %vm263 = vcmp.eq.s32.totalorder %v227, 0
      %vm264 = vcmp.eq.s32.totalorder %v228, 0
      %vm265 = vcmp.eq.s32.totalorder %v229, 0
      %vm266 = vcmp.eq.s32.totalorder %v230, 0
      %vm267 = vcmp.eq.s32.totalorder %v231, 0
      %vm268 = vcmp.eq.s32.totalorder %v232, 0
      %vm269 = vcmp.eq.s32.totalorder %v233, 0
      %vm270 = vcmp.eq.s32.totalorder %v234, 0
      %vm271 = vcmp.eq.s32.totalorder %v235, 0
      %vm272 = vcmp.eq.s32.totalorder %v236, 0
      %vm273 = vcmp.eq.s32.totalorder %v237, 0
      %vm274 = vcmp.eq.s32.totalorder %v238, 0
      %vm275 = vcmp.eq.s32.totalorder %v239, 0
      %vm276 = vcmp.eq.s32.totalorder %v240, 0
      %vm277 = vcmp.eq.s32.totalorder %v241, 0
      %vm278 = vcmp.eq.s32.totalorder %v242, 0
      %vm279 = vcmp.eq.s32.totalorder %v243, 0
      %vm280 = vcmp.eq.s32.totalorder %v208, 15
      %vm281 = vcmp.eq.s32.totalorder %v209, 15
      %vm282 = vcmp.eq.s32.totalorder %v210, 15
      %vm283 = vcmp.eq.s32.totalorder %v211, 15
      %vm284 = vcmp.eq.s32.totalorder %v212, 15
      %vm285 = vcmp.eq.s32.totalorder %v213, 15
      %vm286 = vcmp.eq.s32.totalorder %v214, 15
      %vm287 = vcmp.eq.s32.totalorder %v215, 15
      %vm288 = vcmp.eq.s32.totalorder %v216, 15
      %vm289 = vcmp.eq.s32.totalorder %v217, 15
      %vm290 = vcmp.eq.s32.totalorder %v218, 15
      %vm291 = vcmp.eq.s32.totalorder %v219, 15
      %vm292 = vcmp.eq.s32.totalorder %v220, 15
      %vm293 = vcmp.eq.s32.totalorder %v221, 15
      %vm294 = vcmp.eq.s32.totalorder %v222, 15
      %vm295 = vcmp.eq.s32.totalorder %v223, 15
      %vm296 = vcmp.eq.s32.totalorder %v224, 15
      %vm297 = vcmp.eq.s32.totalorder %v225, 15
      %vm298 = vcmp.eq.s32.totalorder %v226, 15
      %vm299 = vcmp.eq.s32.totalorder %v227, 15
      %vm300 = vcmp.eq.s32.totalorder %v228, 15
      %vm301 = vcmp.eq.s32.totalorder %v229, 15
      %vm302 = vcmp.eq.s32.totalorder %v230, 15
      %vm303 = vcmp.eq.s32.totalorder %v231, 15
      %vm304 = vcmp.eq.s32.totalorder %v232, 15
      %vm305 = vcmp.eq.s32.totalorder %v233, 15
      %vm306 = vcmp.eq.s32.totalorder %v234, 15
      %vm307 = vcmp.eq.s32.totalorder %v235, 15
      %vm308 = vcmp.eq.s32.totalorder %v236, 15
      %vm309 = vcmp.eq.s32.totalorder %v237, 15
      %vm310 = vcmp.eq.s32.totalorder %v238, 15
      %vm311 = vcmp.eq.s32.totalorder %v239, 15
      %vm312 = vcmp.eq.s32.totalorder %v240, 15
      %vm313 = vcmp.eq.s32.totalorder %v241, 15
      %vm314 = vcmp.eq.s32.totalorder %v242, 15
      %vm315 = vcmp.eq.s32.totalorder %v243, 15
      %v316 = vld [vmem:[%s165] sm:$0xff]
      %v317 = vld [vmem:[%s165 + $0x8] sm:$0xff]
      %v318 = vld [vmem:[%s165 + $0x10] sm:$0xff]
      %v319 = vld [vmem:[%s165 + $0x18] sm:$0xff]
      %v320 = vld [vmem:[%s165 + $0x20] sm:$0xff]
      %v321 = vld [vmem:[%s165 + $0x28] sm:$0xff]
      %v322 = vld [vmem:[%s165 + $0x30] sm:$0xff]
      %v323 = vld [vmem:[%s165 + $0x38] sm:$0xff]
      %v324 = vld [vmem:[%s165 + $0x40] sm:$0xff]
      %v325 = vld [vmem:[%s165 + $0x48] sm:$0xff]
      %v326 = vld [vmem:[%s165 + $0x50] sm:$0xff]
      %v327 = vld [vmem:[%s165 + $0x58] sm:$0xff]
      %v328 = vld [vmem:[%s165 + $0x60] sm:$0xff]
      %v329 = vld [vmem:[%s165 + $0x68] sm:$0xff]
      %v330 = vld [vmem:[%s165 + $0x70] sm:$0xff]
      %v331 = vld [vmem:[%s165 + $0x78] sm:$0xff]
      %v332 = vld [vmem:[%s165 + $0x80] sm:$0xff]
      %v333 = vld [vmem:[%s165 + $0x88] sm:$0xff]
      %v334 = vld [vmem:[%s165 + $0x90] sm:$0xff]
      %v335 = vld [vmem:[%s165 + $0x98] sm:$0xff]
      %v336 = vld [vmem:[%s165 + $0xa0] sm:$0xff]
      %v337 = vld [vmem:[%s165 + $0xa8] sm:$0xff]
      %v338 = vld [vmem:[%s165 + $0xb0] sm:$0xff]
      %v339 = vld [vmem:[%s165 + $0xb8] sm:$0xff]
      %v340 = vld [vmem:[%s165 + $0xc0] sm:$0xff]
      %v341 = vld [vmem:[%s165 + $0xc8] sm:$0xff]
      %v342 = vld [vmem:[%s165 + $0xd0] sm:$0xff]
      %v343 = vld [vmem:[%s165 + $0xd8] sm:$0xff]
      %v344 = vld [vmem:[%s165 + $0xe0] sm:$0xff]
      %v345 = vld [vmem:[%s165 + $0xe8] sm:$0xff]
      %v346 = vld [vmem:[%s165 + $0xf0] sm:$0xff]
      %v347 = vld [vmem:[%s165 + $0xf8] sm:$0xff]
      %vm348 = vcmask 64512
      %349 = vst.msk [vmem:[#allocation2 + $0x10] sm:$0xff] %vm348, %v316
      %350 = vst.msk [vmem:[#allocation2 + $0x18] sm:$0xff] %vm348, %v317
      %351 = vst.msk [vmem:[#allocation2 + $0x20] sm:$0xff] %vm348, %v318
      %352 = vst.msk [vmem:[#allocation2 + $0x28] sm:$0xff] %vm348, %v319
      %353 = vst.msk [vmem:[#allocation2 + $0x30] sm:$0xff] %vm348, %v320
      %354 = vst.msk [vmem:[#allocation2 + $0x38] sm:$0xff] %vm348, %v321
      %355 = vst.msk [vmem:[#allocation2 + $0x40] sm:$0xff] %vm348, %v322
      %356 = vst.msk [vmem:[#allocation2 + $0x48] sm:$0xff] %vm348, %v323
      %357 = vst.msk [vmem:[#allocation2 + $0x50] sm:$0xff] %vm348, %v324
      %358 = vst.msk [vmem:[#allocation2 + $0x58] sm:$0xff] %vm348, %v325
      %359 = vst.msk [vmem:[#allocation2 + $0x60] sm:$0xff] %vm348, %v326
      %360 = vst.msk [vmem:[#allocation2 + $0x68] sm:$0xff] %vm348, %v327
      %361 = vst.msk [vmem:[#allocation2 + $0x70] sm:$0xff] %vm348, %v328
      %362 = vst.msk [vmem:[#allocation2 + $0x78] sm:$0xff] %vm348, %v329
      %363 = vst.msk [vmem:[#allocation2 + $0x80] sm:$0xff] %vm348, %v330
      %364 = vst.msk [vmem:[#allocation2 + $0x88] sm:$0xff] %vm348, %v331
      %365 = vst.msk [vmem:[#allocation2 + $0x90] sm:$0xff] %vm348, %v332
      %366 = vst.msk [vmem:[#allocation2 + $0x98] sm:$0xff] %vm348, %v333
      %367 = vst.msk [vmem:[#allocation2 + $0xa0] sm:$0xff] %vm348, %v334
      %368 = vst.msk [vmem:[#allocation2 + $0xa8] sm:$0xff] %vm348, %v335
      %369 = vst.msk [vmem:[#allocation2 + $0xb0] sm:$0xff] %vm348, %v336
      %370 = vst.msk [vmem:[#allocation2 + $0xb8] sm:$0xff] %vm348, %v337
      %371 = vst.msk [vmem:[#allocation2 + $0xc0] sm:$0xff] %vm348, %v338
      %372 = vst.msk [vmem:[#allocation2 + $0xc8] sm:$0xff] %vm348, %v339
      %373 = vst.msk [vmem:[#allocation2 + $0xd0] sm:$0xff] %vm348, %v340
      %374 = vst.msk [vmem:[#allocation2 + $0xd8] sm:$0xff] %vm348, %v341
      %375 = vst.msk [vmem:[#allocation2 + $0xe0] sm:$0xff] %vm348, %v342
      %376 = vst.msk [vmem:[#allocation2 + $0xe8] sm:$0xff] %vm348, %v343
      %377 = vst.msk [vmem:[#allocation2 + $0xf0] sm:$0xff] %vm348, %v344
      %378 = vst.msk [vmem:[#allocation2 + $0xf8] sm:$0xff] %vm348, %v345
      %379 = vst.msk [vmem:[#allocation2 + $0x100] sm:$0xff] %vm348, %v346
      %380 = vst.msk [vmem:[#allocation2 + $0x108] sm:$0xff] %vm348, %v347
      %381 = vst.msk [vmem:[#allocation2] sm:$0xff] %vm348, %v318
      %382 = vst.msk [vmem:[#allocation2 + $0x8] sm:$0xff] %vm348, %v319
      %383 = vst.msk [vmem:[#allocation2 + $0x110] sm:$0xff] %vm348, %v344
      %384 = vst.msk [vmem:[#allocation2 + $0x118] sm:$0xff] %vm348, %v345
      %v385 = vld [vmem:[#allocation2] sm:$0xff]
      %v386 = vld [vmem:[#allocation2 + $0x8] sm:$0xff]
      %v387 = vld [vmem:[#allocation2 + $0x10] sm:$0xff]
      %v388 = vld [vmem:[#allocation2 + $0x18] sm:$0xff]
      %v389 = vld [vmem:[#allocation2 + $0x20] sm:$0xff]
      %v390 = vld [vmem:[#allocation2 + $0x28] sm:$0xff]
      %v391 = vld [vmem:[#allocation2 + $0x30] sm:$0xff]
      %v392 = vld [vmem:[#allocation2 + $0x38] sm:$0xff]
      %v393 = vld [vmem:[#allocation2 + $0x40] sm:$0xff]
      %v394 = vld [vmem:[#allocation2 + $0x48] sm:$0xff]
      %v395 = vld [vmem:[#allocation2 + $0x50] sm:$0xff]
      %v396 = vld [vmem:[#allocation2 + $0x58] sm:$0xff]
      %v397 = vld [vmem:[#allocation2 + $0x60] sm:$0xff]
      %v398 = vld [vmem:[#allocation2 + $0x68] sm:$0xff]
      %v399 = vld [vmem:[#allocation2 + $0x70] sm:$0xff]
      %v400 = vld [vmem:[#allocation2 + $0x78] sm:$0xff]
      %v401 = vld [vmem:[#allocation2 + $0x80] sm:$0xff]
      %v402 = vld [vmem:[#allocation2 + $0x88] sm:$0xff]
      %v403 = vld [vmem:[#allocation2 + $0x90] sm:$0xff]
      %v404 = vld [vmem:[#allocation2 + $0x98] sm:$0xff]
      %v405 = vld [vmem:[#allocation2 + $0xa0] sm:$0xff]
      %v406 = vld [vmem:[#allocation2 + $0xa8] sm:$0xff]
      %v407 = vld [vmem:[#allocation2 + $0xb0] sm:$0xff]
      %v408 = vld [vmem:[#allocation2 + $0xb8] sm:$0xff]
      %v409 = vld [vmem:[#allocation2 + $0xc0] sm:$0xff]
      %v410 = vld [vmem:[#allocation2 + $0xc8] sm:$0xff]
      %v411 = vld [vmem:[#allocation2 + $0xd0] sm:$0xff]
      %v412 = vld [vmem:[#allocation2 + $0xd8] sm:$0xff]
      %v413 = vld [vmem:[#allocation2 + $0xe0] sm:$0xff]
      %v414 = vld [vmem:[#allocation2 + $0xe8] sm:$0xff]
      %v415 = vld [vmem:[#allocation2 + $0xf0] sm:$0xff]
      %v416 = vld [vmem:[#allocation2 + $0xf8] sm:$0xff]
      %v417 = vld [vmem:[#allocation2 + $0x100] sm:$0xff]
      %v418 = vld [vmem:[#allocation2 + $0x108] sm:$0xff]
      %v419 = vld [vmem:[#allocation2 + $0x110] sm:$0xff]
      %v420 = vld [vmem:[#allocation2 + $0x118] sm:$0xff]
      %v421 = vrot.slane %v385, 7
      %v422 = vrot.slane %v386, 7
      %v423 = vrot.slane %v387, 7
      %v424 = vrot.slane %v388, 7
      %v425 = vrot.slane %v389, 7
      %v426 = vrot.slane %v390, 7
      %v427 = vrot.slane %v391, 7
      %v428 = vrot.slane %v392, 7
      %v429 = vrot.slane %v393, 7
      %v430 = vrot.slane %v394, 7
      %v431 = vrot.slane %v395, 7
      %v432 = vrot.slane %v396, 7
      %v433 = vrot.slane %v397, 7
      %v434 = vrot.slane %v398, 7
      %v435 = vrot.slane %v399, 7
      %v436 = vrot.slane %v400, 7
      %v437 = vrot.slane %v401, 7
      %v438 = vrot.slane %v402, 7
      %v439 = vrot.slane %v403, 7
      %v440 = vrot.slane %v404, 7
      %v441 = vrot.slane %v405, 7
      %v442 = vrot.slane %v406, 7
      %v443 = vrot.slane %v407, 7
      %v444 = vrot.slane %v408, 7
      %v445 = vrot.slane %v409, 7
      %v446 = vrot.slane %v410, 7
      %v447 = vrot.slane %v411, 7
      %v448 = vrot.slane %v412, 7
      %v449 = vrot.slane %v413, 7
      %v450 = vrot.slane %v414, 7
      %v451 = vrot.slane %v415, 7
      %v452 = vrot.slane %v416, 7
      %v453 = vrot.slane %v417, 7
      %v454 = vrot.slane %v418, 7
      %v455 = vrot.slane %v419, 7
      %v456 = vrot.slane %v420, 7
      %vm457 = vcmp.lt.s32.totalorder %v172, 1
      %v458 = vsel %vm457, %v455, %v456
      %v459 = vsel %vm457, %v454, %v455
      %v460 = vsel %vm457, %v453, %v454
      %v461 = vsel %vm457, %v452, %v453
      %v462 = vsel %vm457, %v451, %v452
      %v463 = vsel %vm457, %v450, %v451
      %v464 = vsel %vm457, %v449, %v450
      %v465 = vsel %vm457, %v448, %v449
      %v466 = vsel %vm457, %v447, %v448
      %v467 = vsel %vm457, %v446, %v447
      %v468 = vsel %vm457, %v445, %v446
      %v469 = vsel %vm457, %v444, %v445
      %v470 = vsel %vm457, %v443, %v444
      %v471 = vsel %vm457, %v442, %v443
      %v472 = vsel %vm457, %v441, %v442
      %v473 = vsel %vm457, %v440, %v441
      %v474 = vsel %vm457, %v439, %v440
      %v475 = vsel %vm457, %v438, %v439
      %v476 = vsel %vm457, %v437, %v438
      %v477 = vsel %vm457, %v436, %v437
      %v478 = vsel %vm457, %v435, %v436
      %v479 = vsel %vm457, %v434, %v435
      %v480 = vsel %vm457, %v433, %v434
      %v481 = vsel %vm457, %v432, %v433
      %v482 = vsel %vm457, %v431, %v432
      %v483 = vsel %vm457, %v430, %v431
      %v484 = vsel %vm457, %v429, %v430
      %v485 = vsel %vm457, %v428, %v429
      %v486 = vsel %vm457, %v427, %v428
      %v487 = vsel %vm457, %v426, %v427
      %v488 = vsel %vm457, %v425, %v426
      %v489 = vsel %vm457, %v424, %v425
      %v490 = vsel %vm457, %v423, %v424
      %v491 = vsel %vm457, %v422, %v423
      %v492 = vsel %vm457, %v421, %v422
      %v493 = vsel %vm457, %v456, %v421
      %v494 = vrot.slane %v385, 1
      %v495 = vrot.slane %v386, 1
      %v496 = vrot.slane %v387, 1
      %v497 = vrot.slane %v388, 1
      %v498 = vrot.slane %v389, 1
      %v499 = vrot.slane %v390, 1
      %v500 = vrot.slane %v391, 1
      %v501 = vrot.slane %v392, 1
      %v502 = vrot.slane %v393, 1
      %v503 = vrot.slane %v394, 1
      %v504 = vrot.slane %v395, 1
      %v505 = vrot.slane %v396, 1
      %v506 = vrot.slane %v397, 1
      %v507 = vrot.slane %v398, 1
      %v508 = vrot.slane %v399, 1
      %v509 = vrot.slane %v400, 1
      %v510 = vrot.slane %v401, 1
      %v511 = vrot.slane %v402, 1
      %v512 = vrot.slane %v403, 1
      %v513 = vrot.slane %v404, 1
      %v514 = vrot.slane %v405, 1
      %v515 = vrot.slane %v406, 1
      %v516 = vrot.slane %v407, 1
      %v517 = vrot.slane %v408, 1
      %v518 = vrot.slane %v409, 1
      %v519 = vrot.slane %v410, 1
      %v520 = vrot.slane %v411, 1
      %v521 = vrot.slane %v412, 1
      %v522 = vrot.slane %v413, 1
      %v523 = vrot.slane %v414, 1
      %v524 = vrot.slane %v415, 1
      %v525 = vrot.slane %v416, 1
      %v526 = vrot.slane %v417, 1
      %v527 = vrot.slane %v418, 1
      %v528 = vrot.slane %v419, 1
      %v529 = vrot.slane %v420, 1
      %vm530 = vcmp.lt.s32.totalorder %v172, 7
      %v531 = vsel %vm530, %v528, %v529
      %v532 = vsel %vm530, %v527, %v528
      %v533 = vsel %vm530, %v526, %v527
      %v534 = vsel %vm530, %v525, %v526
      %v535 = vsel %vm530, %v524, %v525
      %v536 = vsel %vm530, %v523, %v524
      %v537 = vsel %vm530, %v522, %v523
      %v538 = vsel %vm530, %v521, %v522
      %v539 = vsel %vm530, %v520, %v521
      %v540 = vsel %vm530, %v519, %v520
      %v541 = vsel %vm530, %v518, %v519
      %v542 = vsel %vm530, %v517, %v518
      %v543 = vsel %vm530, %v516, %v517
      %v544 = vsel %vm530, %v515, %v516
      %v545 = vsel %vm530, %v514, %v515
      %v546 = vsel %vm530, %v513, %v514
      %v547 = vsel %vm530, %v512, %v513
      %v548 = vsel %vm530, %v511, %v512
      %v549 = vsel %vm530, %v510, %v511
      %v550 = vsel %vm530, %v509, %v510
      %v551 = vsel %vm530, %v508, %v509
      %v552 = vsel %vm530, %v507, %v508
      %v553 = vsel %vm530, %v506, %v507
      %v554 = vsel %vm530, %v505, %v506
      %v555 = vsel %vm530, %v504, %v505
      %v556 = vsel %vm530, %v503, %v504
      %v557 = vsel %vm530, %v502, %v503
      %v558 = vsel %vm530, %v501, %v502
      %v559 = vsel %vm530, %v500, %v501
      %v560 = vsel %vm530, %v499, %v500
      %v561 = vsel %vm530, %v498, %v499
      %v562 = vsel %vm530, %v497, %v498
      %v563 = vsel %vm530, %v496, %v497
      %v564 = vsel %vm530, %v495, %v496
      %v565 = vsel %vm530, %v494, %v495
      %v566 = vsel %vm530, %v529, %v494
      %v567 = vsel %vm244, %v565, %v493
      %v568 = vsel %vm245, %v564, %v492
      %v569 = vsel %vm246, %v563, %v491
      %v570 = vsel %vm247, %v562, %v490
      %v571 = vsel %vm248, %v561, %v489
      %v572 = vsel %vm249, %v560, %v488
      %v573 = vsel %vm250, %v559, %v487
      %v574 = vsel %vm251, %v558, %v486
      %v575 = vsel %vm252, %v557, %v485
      %v576 = vsel %vm253, %v556, %v484
      %v577 = vsel %vm254, %v555, %v483
      %v578 = vsel %vm255, %v554, %v482
      %v579 = vsel %vm256, %v553, %v481
      %v580 = vsel %vm257, %v552, %v480
      %v581 = vsel %vm258, %v551, %v479
      %v582 = vsel %vm259, %v550, %v478
      %v583 = vsel %vm260, %v549, %v477
      %v584 = vsel %vm261, %v548, %v476
      %v585 = vsel %vm262, %v547, %v475
      %v586 = vsel %vm263, %v546, %v474
      %v587 = vsel %vm264, %v545, %v473
      %v588 = vsel %vm265, %v544, %v472
      %v589 = vsel %vm266, %v543, %v471
      %v590 = vsel %vm267, %v542, %v470
      %v591 = vsel %vm268, %v541, %v469
      %v592 = vsel %vm269, %v540, %v468
      %v593 = vsel %vm270, %v539, %v467
      %v594 = vsel %vm271, %v538, %v466
      %v595 = vsel %vm272, %v537, %v465
      %v596 = vsel %vm273, %v536, %v464
      %v597 = vsel %vm274, %v535, %v463
      %v598 = vsel %vm275, %v534, %v462
      %v599 = vsel %vm276, %v533, %v461
      %v600 = vsel %vm277, %v532, %v460
      %v601 = vsel %vm278, %v531, %v459
      %v602 = vsel %vm279, %v566, %v458
      %v603 = vsel %vm280, %v493, %v565
      %v604 = vsel %vm281, %v492, %v564
      %v605 = vsel %vm282, %v491, %v563
      %v606 = vsel %vm283, %v490, %v562
      %v607 = vsel %vm284, %v489, %v561
      %v608 = vsel %vm285, %v488, %v560
      %v609 = vsel %vm286, %v487, %v559
      %v610 = vsel %vm287, %v486, %v558
      %v611 = vsel %vm288, %v485, %v557
      %v612 = vsel %vm289, %v484, %v556
      %v613 = vsel %vm290, %v483, %v555
      %v614 = vsel %vm291, %v482, %v554
      %v615 = vsel %vm292, %v481, %v553
      %v616 = vsel %vm293, %v480, %v552
      %v617 = vsel %vm294, %v479, %v551
      %v618 = vsel %vm295, %v478, %v550
      %v619 = vsel %vm296, %v477, %v549
      %v620 = vsel %vm297, %v476, %v548
      %v621 = vsel %vm298, %v475, %v547
      %v622 = vsel %vm299, %v474, %v546
      %v623 = vsel %vm300, %v473, %v545
      %v624 = vsel %vm301, %v472, %v544
      %v625 = vsel %vm302, %v471, %v543
      %v626 = vsel %vm303, %v470, %v542
      %v627 = vsel %vm304, %v469, %v541
      %v628 = vsel %vm305, %v468, %v540
      %v629 = vsel %vm306, %v467, %v539
      %v630 = vsel %vm307, %v466, %v538
      %v631 = vsel %vm308, %v465, %v537
      %v632 = vsel %vm309, %v464, %v536
      %v633 = vsel %vm310, %v463, %v535
      %v634 = vsel %vm311, %v462, %v534
      %v635 = vsel %vm312, %v461, %v533
      %v636 = vsel %vm313, %v460, %v532
      %v637 = vsel %vm314, %v459, %v531
      %v638 = vsel %vm315, %v458, %v566
      %v639 = vld [vmem:[%s1] sm:$0xff]
      %s640 = scalar_lea.vmem %s1, 8
      %v641 = vld [vmem:[%s640] sm:$0xff]
      %v643 = vsel %vm348, %v385, 0
      %v646 = vsel %vm348, %v386, 0
      %v649 = vsel %vm348, %v387, 0
      %v652 = vsel %vm348, %v388, 0
      %v655 = vsel %vm348, %v389, 0
      %v658 = vsel %vm348, %v390, 0
      %v661 = vsel %vm348, %v391, 0
      %v664 = vsel %vm348, %v392, 0
      %v667 = vsel %vm348, %v393, 0
      %v670 = vsel %vm348, %v394, 0
      %v673 = vsel %vm348, %v395, 0
      %v676 = vsel %vm348, %v396, 0
      %v679 = vsel %vm348, %v397, 0
      %v682 = vsel %vm348, %v398, 0
      %v685 = vsel %vm348, %v399, 0
      %v688 = vsel %vm348, %v400, 0
      %v691 = vsel %vm348, %v401, 0
      %v694 = vsel %vm348, %v402, 0
      %v697 = vsel %vm348, %v403, 0
      %v700 = vsel %vm348, %v404, 0
      %v703 = vsel %vm348, %v405, 0
      %v706 = vsel %vm348, %v406, 0
      %v709 = vsel %vm348, %v407, 0
      %v712 = vsel %vm348, %v408, 0
      %v715 = vsel %vm348, %v409, 0
      %v718 = vsel %vm348, %v410, 0
      %v721 = vsel %vm348, %v411, 0
      %v724 = vsel %vm348, %v412, 0
      %v727 = vsel %vm348, %v413, 0
      %v730 = vsel %vm348, %v414, 0
      %v733 = vsel %vm348, %v415, 0
      %v736 = vsel %vm348, %v416, 0
      %738 = vmatprep.subr.mxu0 0.0
      %739 = vmatpush1.msra.mxu0 %v641
      %740 = vmatprep.subr.mxu0 0.0
      %741 = vmatpush1.msra.mxu0 0.0
      %742 = vmatprep.subr.mxu0 0.0
      %743 = vmatpush1.msra.mxu0 0.0
      %744 = vmatprep.subr.mxu0 0.0
      %745 = vmatpush1.msra.mxu0 0.0
      %746 = vmatprep.subr.mxu0 0.0
      %747 = vmatpush1.msra.mxu0 0.0
      %748 = vmatprep.subr.mxu0 0.0
      %749 = vmatpush1.msra.mxu0 0.0
      %750 = vmatprep.subr.mxu0 0.0
      %751 = vmatpush1.msra.mxu0 0.0
      %752 = vmatprep.subr.mxu0 0.0
      %753 = vmatpush1.msra.mxu0 0.0
      %754 = vmatprep.subr.mxu0 0.0
      %755 = vmatpush1.msra.mxu0 0.0
      %756 = vmatprep.subr.mxu0 0.0
      %757 = vmatpush1.msra.mxu0 0.0
      %758 = vmatprep.subr.mxu0 0.0
      %759 = vmatpush1.msra.mxu0 0.0
      %760 = vmatprep.subr.mxu0 0.0
      %761 = vmatpush1.msra.mxu0 0.0
      %762 = vmatprep.subr.mxu0 0.0
      %763 = vmatpush1.msra.mxu0 0.0
      %764 = vmatprep.subr.mxu0 0.0
      %765 = vmatpush1.msra.mxu0 0.0
      %766 = vmatprep.subr.mxu0 0.0
      %767 = vmatpush1.msra.mxu0 0.0
      %768 = vmatprep.subr.mxu0 0.0
      %769 = vmatpush1.msra.mxu0 0.0
      %770 = vmatprep.subr.mxu0 0.0
      %771 = vmatpush1.msra.mxu0 0.0
      %772 = vmatprep.subr.mxu0 0.0
      %773 = vmatpush1.msra.mxu0 0.0
      %774 = vmatprep.subr.mxu0 0.0
      %775 = vmatpush1.msra.mxu0 0.0
      %776 = vmatprep.subr.mxu0 0.0
      %777 = vmatpush1.msra.mxu0 0.0
      %778 = vmatprep.subr.mxu0 0.0
      %779 = vmatpush1.msra.mxu0 0.0
      %780 = vmatprep.subr.mxu0 0.0
      %781 = vmatpush1.msra.mxu0 0.0
      %782 = vmatprep.subr.mxu0 0.0
      %783 = vmatpush1.msra.mxu0 0.0
      %784 = vmatprep.subr.mxu0 0.0
      %785 = vmatpush1.msra.mxu0 0.0
      %786 = vmatprep.subr.mxu0 0.0
      %787 = vmatpush1.msra.mxu0 0.0
      %788 = vmatprep.subr.mxu0 0.0
      %789 = vmatpush1.msra.mxu0 0.0
      %790 = vmatprep.subr.mxu0 0.0
      %791 = vmatpush1.msra.mxu0 0.0
      %792 = vmatprep.subr.mxu0 0.0
      %793 = vmatpush1.msra.mxu0 0.0
      %794 = vmatprep.subr.mxu0 0.0
      %795 = vmatpush1.msra.mxu0 0.0
      %796 = vmatprep.subr.mxu0 0.0
      %797 = vmatpush1.msra.mxu0 0.0
      %798 = vmatprep.subr.mxu0 0.0
      %799 = vmatpush1.msra.mxu0 0.0
      %800 = vmatprep.subr.mxu0 0.0
      %801 = vmatpush1.msra.mxu0 0.0
      %802 = vmatprep.mubr.f32.mxu0 0.0
      %803 = vmatmul.mubr.f32.gmra.mrb[0].mxu0 %v643
      %v804 = vpop.f32.mrb[0].mxu0
      %v805 = vadd.f32 0.0, %v804
      %v806 = vpop.f32.mrb[0].mxu0
      %807 = vmatprep.mubr.f32.mxu0 0.0
      %808 = vmatmul.mubr.f32.gmra.mrb[0].mxu0 %v646
      %v809 = vpop.f32.mrb[0].mxu0
      %v810 = vadd.f32 0.0, %v809
      %v811 = vpop.f32.mrb[0].mxu0
      %812 = vmatprep.mubr.f32.mxu0 0.0
      %813 = vmatmul.mubr.f32.gmra.mrb[0].mxu0 %v649
      %v814 = vpop.f32.mrb[0].mxu0
      %v815 = vadd.f32 0.0, %v814
      %v816 = vpop.f32.mrb[0].mxu0
      %817 = vmatprep.mubr.f32.mxu0 0.0
      %818 = vmatmul.mubr.f32.gmra.mrb[0].mxu0 %v652
      %v819 = vpop.f32.mrb[0].mxu0
      %v820 = vadd.f32 0.0, %v819
      %v821 = vpop.f32.mrb[0].mxu0
      %822 = vmatprep.mubr.f32.mxu0 0.0
      %823 = vmatmul.mubr.f32.gmra.mrb[0].mxu0 %v655
      %v824 = vpop.f32.mrb[0].mxu0
      %v825 = vadd.f32 0.0, %v824
      %v826 = vpop.f32.mrb[0].mxu0
      %827 = vmatprep.mubr.f32.mxu0 0.0
      %828 = vmatmul.mubr.f32.gmra.mrb[0].mxu0 %v658
      %v829 = vpop.f32.mrb[0].mxu0
      %v830 = vadd.f32 0.0, %v829
      %v831 = vpop.f32.mrb[0].mxu0
      %832 = vmatprep.mubr.f32.mxu0 0.0
      %833 = vmatmul.mubr.f32.gmra.mrb[0].mxu0 %v661
      %v834 = vpop.f32.mrb[0].mxu0
      %v835 = vadd.f32 0.0, %v834
      %v836 = vpop.f32.mrb[0].mxu0
      %837 = vmatprep.mubr.f32.mxu0 0.0
      %838 = vmatmul.mubr.f32.gmra.mrb[0].mxu0 %v664
      %v839 = vpop.f32.mrb[0].mxu0
      %v840 = vadd.f32 0.0, %v839
      %v841 = vpop.f32.mrb[0].mxu0
      %842 = vmatprep.mubr.f32.mxu0 0.0
      %843 = vmatmul.mubr.f32.gmra.mrb[0].mxu0 %v667
      %v844 = vpop.f32.mrb[0].mxu0
      %v845 = vadd.f32 0.0, %v844
      %v846 = vpop.f32.mrb[0].mxu0
      %847 = vmatprep.mubr.f32.mxu0 0.0
      %848 = vmatmul.mubr.f32.gmra.mrb[0].mxu0 %v670
      %v849 = vpop.f32.mrb[0].mxu0
      %v850 = vadd.f32 0.0, %v849
      %v851 = vpop.f32.mrb[0].mxu0
      %852 = vmatprep.mubr.f32.mxu0 0.0
      %853 = vmatmul.mubr.f32.gmra.mrb[0].mxu0 %v673
      %v854 = vpop.f32.mrb[0].mxu0
      %v855 = vadd.f32 0.0, %v854
      %v856 = vpop.f32.mrb[0].mxu0
      %857 = vmatprep.mubr.f32.mxu0 0.0
      %858 = vmatmul.mubr.f32.gmra.mrb[0].mxu0 %v676
      %v859 = vpop.f32.mrb[0].mxu0
      %v860 = vadd.f32 0.0, %v859
      %v861 = vpop.f32.mrb[0].mxu0
      %862 = vmatprep.mubr.f32.mxu0 0.0
      %863 = vmatmul.mubr.f32.gmra.mrb[0].mxu0 %v679
      %v864 = vpop.f32.mrb[0].mxu0
      %v865 = vadd.f32 0.0, %v864
      %v866 = vpop.f32.mrb[0].mxu0
      %867 = vmatprep.mubr.f32.mxu0 0.0
      %868 = vmatmul.mubr.f32.gmra.mrb[0].mxu0 %v682
      %v869 = vpop.f32.mrb[0].mxu0
      %v870 = vadd.f32 0.0, %v869
      %v871 = vpop.f32.mrb[0].mxu0
      %872 = vmatprep.mubr.f32.mxu0 0.0
      %873 = vmatmul.mubr.f32.gmra.mrb[0].mxu0 %v685
      %v874 = vpop.f32.mrb[0].mxu0
      %v875 = vadd.f32 0.0, %v874
      %v876 = vpop.f32.mrb[0].mxu0
      %877 = vmatprep.mubr.f32.mxu0 0.0
      %878 = vmatmul.mubr.f32.gmra.mrb[0].mxu0 %v688
      %v879 = vpop.f32.mrb[0].mxu0
      %v880 = vadd.f32 0.0, %v879
      %v881 = vpop.f32.mrb[0].mxu0
      %882 = vmatprep.mubr.f32.mxu0 0.0
      %883 = vmatmul.mubr.f32.gmra.mrb[0].mxu0 %v691
      %v884 = vpop.f32.mrb[0].mxu0
      %v885 = vadd.f32 0.0, %v884
      %v886 = vpop.f32.mrb[0].mxu0
      %887 = vmatprep.mubr.f32.mxu0 0.0
      %888 = vmatmul.mubr.f32.gmra.mrb[0].mxu0 %v694
      %v889 = vpop.f32.mrb[0].mxu0
      %v890 = vadd.f32 0.0, %v889
      %v891 = vpop.f32.mrb[0].mxu0
      %892 = vmatprep.mubr.f32.mxu0 0.0
      %893 = vmatmul.mubr.f32.gmra.mrb[0].mxu0 %v697
      %v894 = vpop.f32.mrb[0].mxu0
      %v895 = vadd.f32 0.0, %v894
      %v896 = vpop.f32.mrb[0].mxu0
      %897 = vmatprep.mubr.f32.mxu0 0.0
      %898 = vmatmul.mubr.f32.gmra.mrb[0].mxu0 %v700
      %v899 = vpop.f32.mrb[0].mxu0
      %v900 = vadd.f32 0.0, %v899
      %v901 = vpop.f32.mrb[0].mxu0
      %902 = vmatprep.mubr.f32.mxu0 0.0
      %903 = vmatmul.mubr.f32.gmra.mrb[0].mxu0 %v703
      %v904 = vpop.f32.mrb[0].mxu0
      %v905 = vadd.f32 0.0, %v904
      %v906 = vpop.f32.mrb[0].mxu0
      %907 = vmatprep.mubr.f32.mxu0 0.0
      %908 = vmatmul.mubr.f32.gmra.mrb[0].mxu0 %v706
      %v909 = vpop.f32.mrb[0].mxu0
      %v910 = vadd.f32 0.0, %v909
      %v911 = vpop.f32.mrb[0].mxu0
      %912 = vmatprep.mubr.f32.mxu0 0.0
      %913 = vmatmul.mubr.f32.gmra.mrb[0].mxu0 %v709
      %v914 = vpop.f32.mrb[0].mxu0
      %v915 = vadd.f32 0.0, %v914
      %v916 = vpop.f32.mrb[0].mxu0
      %917 = vmatprep.mubr.f32.mxu0 0.0
      %918 = vmatmul.mubr.f32.gmra.mrb[0].mxu0 %v712
      %v919 = vpop.f32.mrb[0].mxu0
      %v920 = vadd.f32 0.0, %v919
      %v921 = vpop.f32.mrb[0].mxu0
      %922 = vmatprep.mubr.f32.mxu0 0.0
      %923 = vmatmul.mubr.f32.gmra.mrb[0].mxu0 %v715
      %v924 = vpop.f32.mrb[0].mxu0
      %v925 = vadd.f32 0.0, %v924
      %v926 = vpop.f32.mrb[0].mxu0
      %927 = vmatprep.mubr.f32.mxu0 0.0
      %928 = vmatmul.mubr.f32.gmra.mrb[0].mxu0 %v718
      %v929 = vpop.f32.mrb[0].mxu0
      %v930 = vadd.f32 0.0, %v929
      %v931 = vpop.f32.mrb[0].mxu0
      %932 = vmatprep.mubr.f32.mxu0 0.0
      %933 = vmatmul.mubr.f32.gmra.mrb[0].mxu0 %v721
      %v934 = vpop.f32.mrb[0].mxu0
      %v935 = vadd.f32 0.0, %v934
      %v936 = vpop.f32.mrb[0].mxu0
      %937 = vmatprep.mubr.f32.mxu0 0.0
      %938 = vmatmul.mubr.f32.gmra.mrb[0].mxu0 %v724
      %v939 = vpop.f32.mrb[0].mxu0
      %v940 = vadd.f32 0.0, %v939
      %v941 = vpop.f32.mrb[0].mxu0
      %942 = vmatprep.mubr.f32.mxu0 0.0
      %943 = vmatmul.mubr.f32.gmra.mrb[0].mxu0 %v727
      %v944 = vpop.f32.mrb[0].mxu0
      %v945 = vadd.f32 0.0, %v944
      %v946 = vpop.f32.mrb[0].mxu0
      %947 = vmatprep.mubr.f32.mxu0 0.0
      %948 = vmatmul.mubr.f32.gmra.mrb[0].mxu0 %v730
      %v949 = vpop.f32.mrb[0].mxu0
      %v950 = vadd.f32 0.0, %v949
      %v951 = vpop.f32.mrb[0].mxu0
      %952 = vmatprep.mubr.f32.mxu0 0.0
      %953 = vmatmul.mubr.f32.gmra.mrb[0].mxu0 %v733
      %v954 = vpop.f32.mrb[0].mxu0
      %v955 = vadd.f32 0.0, %v954
      %v956 = vpop.f32.mrb[0].mxu0
      %957 = vmatprep.mubr.f32.mxu0 0.0
      %958 = vmatmul.mubr.f32.gmra.mrb[0].mxu0 %v736
      %v959 = vpop.f32.mrb[0].mxu0
      %v960 = vadd.f32 0.0, %v959
      %v961 = vpop.f32.mrb[0].mxu0
      %962 = vdwg.mxu0
      %v964 = vsel %vm348, %v567, 0
      %v967 = vsel %vm348, %v568, 0
      %v970 = vsel %vm348, %v569, 0
      %v973 = vsel %vm348, %v570, 0
      %v976 = vsel %vm348, %v571, 0
      %v979 = vsel %vm348, %v572, 0
      %v982 = vsel %vm348, %v573, 0
      %v985 = vsel %vm348, %v574, 0
      %v988 = vsel %vm348, %v575, 0
      %v991 = vsel %vm348, %v576, 0
      %v994 = vsel %vm348, %v577, 0
      %v997 = vsel %vm348, %v578, 0
      %v1000 = vsel %vm348, %v579, 0
      %v1003 = vsel %vm348, %v580, 0
      %v1006 = vsel %vm348, %v581, 0
      %v1009 = vsel %vm348, %v582, 0
      %v1012 = vsel %vm348, %v583, 0
      %v1015 = vsel %vm348, %v584, 0
      %v1018 = vsel %vm348, %v585, 0
      %v1021 = vsel %vm348, %v586, 0
      %v1024 = vsel %vm348, %v587, 0
      %v1027 = vsel %vm348, %v588, 0
      %v1030 = vsel %vm348, %v589, 0
      %v1033 = vsel %vm348, %v590, 0
      %v1036 = vsel %vm348, %v591, 0
      %v1039 = vsel %vm348, %v592, 0
      %v1042 = vsel %vm348, %v593, 0
      %v1045 = vsel %vm348, %v594, 0
      %v1048 = vsel %vm348, %v595, 0
      %v1051 = vsel %vm348, %v596, 0
      %v1054 = vsel %vm348, %v597, 0
      %v1057 = vsel %vm348, %v598, 0
      %1059 = vmatprep.subr.mxu0 0.0
      %1060 = vmatpush1.msra.mxu0 %v639
      %1061 = vmatprep.subr.mxu0 0.0
      %1062 = vmatpush1.msra.mxu0 0.0
      %1063 = vmatprep.subr.mxu0 0.0
      %1064 = vmatpush1.msra.mxu0 0.0
      %1065 = vmatprep.subr.mxu0 0.0
      %1066 = vmatpush1.msra.mxu0 0.0
      %1067 = vmatprep.subr.mxu0 0.0
      %1068 = vmatpush1.msra.mxu0 0.0
      %1069 = vmatprep.subr.mxu0 0.0
      %1070 = vmatpush1.msra.mxu0 0.0
      %1071 = vmatprep.subr.mxu0 0.0
      %1072 = vmatpush1.msra.mxu0 0.0
      %1073 = vmatprep.subr.mxu0 0.0
      %1074 = vmatpush1.msra.mxu0 0.0
      %1075 = vmatprep.subr.mxu0 0.0
      %1076 = vmatpush1.msra.mxu0 0.0
      %1077 = vmatprep.subr.mxu0 0.0
      %1078 = vmatpush1.msra.mxu0 0.0
      %1079 = vmatprep.subr.mxu0 0.0
      %1080 = vmatpush1.msra.mxu0 0.0
      %1081 = vmatprep.subr.mxu0 0.0
      %1082 = vmatpush1.msra.mxu0 0.0
      %1083 = vmatprep.subr.mxu0 0.0
      %1084 = vmatpush1.msra.mxu0 0.0
      %1085 = vmatprep.subr.mxu0 0.0
      %1086 = vmatpush1.msra.mxu0 0.0
      %1087 = vmatprep.subr.mxu0 0.0
      %1088 = vmatpush1.msra.mxu0 0.0
      %1089 = vmatprep.subr.mxu0 0.0
      %1090 = vmatpush1.msra.mxu0 0.0
      %1091 = vmatprep.subr.mxu0 0.0
      %1092 = vmatpush1.msra.mxu0 0.0
      %1093 = vmatprep.subr.mxu0 0.0
      %1094 = vmatpush1.msra.mxu0 0.0
      %1095 = vmatprep.subr.mxu0 0.0
      %1096 = vmatpush1.msra.mxu0 0.0
      %1097 = vmatprep.subr.mxu0 0.0
      %1098 = vmatpush1.msra.mxu0 0.0
      %1099 = vmatprep.subr.mxu0 0.0
      %1100 = vmatpush1.msra.mxu0 0.0
      %1101 = vmatprep.subr.mxu0 0.0
      %1102 = vmatpush1.msra.mxu0 0.0
      %1103 = vmatprep.subr.mxu0 0.0
      %1104 = vmatpush1.msra.mxu0 0.0
      %1105 = vmatprep.subr.mxu0 0.0
      %1106 = vmatpush1.msra.mxu0 0.0
      %1107 = vmatprep.subr.mxu0 0.0
      %1108 = vmatpush1.msra.mxu0 0.0
      %1109 = vmatprep.subr.mxu0 0.0
      %1110 = vmatpush1.msra.mxu0 0.0
      %1111 = vmatprep.subr.mxu0 0.0
      %1112 = vmatpush1.msra.mxu0 0.0
      %1113 = vmatprep.subr.mxu0 0.0
      %1114 = vmatpush1.msra.mxu0 0.0
      %1115 = vmatprep.subr.mxu0 0.0
      %1116 = vmatpush1.msra.mxu0 0.0
      %1117 = vmatprep.subr.mxu0 0.0
      %1118 = vmatpush1.msra.mxu0 0.0
      %1119 = vmatprep.subr.mxu0 0.0
      %1120 = vmatpush1.msra.mxu0 0.0
      %1121 = vmatprep.subr.mxu0 0.0
      %1122 = vmatpush1.msra.mxu0 0.0
      %1123 = vmatprep.mubr.f32.mxu0 0.0
      %1124 = vmatmul.mubr.f32.gmra.mrb[0].mxu0 %v964
      %v1125 = vpop.f32.mrb[0].mxu0
      %v1126 = vadd.f32 %v805, %v1125
      %v1127 = vpop.f32.mrb[0].mxu0
      %1128 = vmatprep.mubr.f32.mxu0 0.0
      %1129 = vmatmul.mubr.f32.gmra.mrb[0].mxu0 %v967
      %v1130 = vpop.f32.mrb[0].mxu0
      %v1131 = vadd.f32 %v810, %v1130
      %v1132 = vpop.f32.mrb[0].mxu0
      %1133 = vmatprep.mubr.f32.mxu0 0.0
      %1134 = vmatmul.mubr.f32.gmra.mrb[0].mxu0 %v970
      %v1135 = vpop.f32.mrb[0].mxu0
      %v1136 = vadd.f32 %v815, %v1135
      %v1137 = vpop.f32.mrb[0].mxu0
      %1138 = vmatprep.mubr.f32.mxu0 0.0
      %1139 = vmatmul.mubr.f32.gmra.mrb[0].mxu0 %v973
      %v1140 = vpop.f32.mrb[0].mxu0
      %v1141 = vadd.f32 %v820, %v1140
      %v1142 = vpop.f32.mrb[0].mxu0
      %1143 = vmatprep.mubr.f32.mxu0 0.0
      %1144 = vmatmul.mubr.f32.gmra.mrb[0].mxu0 %v976
      %v1145 = vpop.f32.mrb[0].mxu0
      %v1146 = vadd.f32 %v825, %v1145
      %v1147 = vpop.f32.mrb[0].mxu0
      %1148 = vmatprep.mubr.f32.mxu0 0.0
      %1149 = vmatmul.mubr.f32.gmra.mrb[0].mxu0 %v979
      %v1150 = vpop.f32.mrb[0].mxu0
      %v1151 = vadd.f32 %v830, %v1150
      %v1152 = vpop.f32.mrb[0].mxu0
      %1153 = vmatprep.mubr.f32.mxu0 0.0
      %1154 = vmatmul.mubr.f32.gmra.mrb[0].mxu0 %v982
      %v1155 = vpop.f32.mrb[0].mxu0
      %v1156 = vadd.f32 %v835, %v1155
      %v1157 = vpop.f32.mrb[0].mxu0
      %1158 = vmatprep.mubr.f32.mxu0 0.0
      %1159 = vmatmul.mubr.f32.gmra.mrb[0].mxu0 %v985
      %v1160 = vpop.f32.mrb[0].mxu0
      %v1161 = vadd.f32 %v840, %v1160
      %v1162 = vpop.f32.mrb[0].mxu0
      %1163 = vmatprep.mubr.f32.mxu0 0.0
      %1164 = vmatmul.mubr.f32.gmra.mrb[0].mxu0 %v988
      %v1165 = vpop.f32.mrb[0].mxu0
      %v1166 = vadd.f32 %v845, %v1165
      %v1167 = vpop.f32.mrb[0].mxu0
      %1168 = vmatprep.mubr.f32.mxu0 0.0
      %1169 = vmatmul.mubr.f32.gmra.mrb[0].mxu0 %v991
      %v1170 = vpop.f32.mrb[0].mxu0
      %v1171 = vadd.f32 %v850, %v1170
      %v1172 = vpop.f32.mrb[0].mxu0
      %1173 = vmatprep.mubr.f32.mxu0 0.0
      %1174 = vmatmul.mubr.f32.gmra.mrb[0].mxu0 %v994
      %v1175 = vpop.f32.mrb[0].mxu0
      %v1176 = vadd.f32 %v855, %v1175
      %v1177 = vpop.f32.mrb[0].mxu0
      %1178 = vmatprep.mubr.f32.mxu0 0.0
      %1179 = vmatmul.mubr.f32.gmra.mrb[0].mxu0 %v997
      %v1180 = vpop.f32.mrb[0].mxu0
      %v1181 = vadd.f32 %v860, %v1180
      %v1182 = vpop.f32.mrb[0].mxu0
      %1183 = vmatprep.mubr.f32.mxu0 0.0
      %1184 = vmatmul.mubr.f32.gmra.mrb[0].mxu0 %v1000
      %v1185 = vpop.f32.mrb[0].mxu0
      %v1186 = vadd.f32 %v865, %v1185
      %v1187 = vpop.f32.mrb[0].mxu0
      %1188 = vmatprep.mubr.f32.mxu0 0.0
      %1189 = vmatmul.mubr.f32.gmra.mrb[0].mxu0 %v1003
      %v1190 = vpop.f32.mrb[0].mxu0
      %v1191 = vadd.f32 %v870, %v1190
      %v1192 = vpop.f32.mrb[0].mxu0
      %1193 = vmatprep.mubr.f32.mxu0 0.0
      %1194 = vmatmul.mubr.f32.gmra.mrb[0].mxu0 %v1006
      %v1195 = vpop.f32.mrb[0].mxu0
      %v1196 = vadd.f32 %v875, %v1195
      %v1197 = vpop.f32.mrb[0].mxu0
      %1198 = vmatprep.mubr.f32.mxu0 0.0
      %1199 = vmatmul.mubr.f32.gmra.mrb[0].mxu0 %v1009
      %v1200 = vpop.f32.mrb[0].mxu0
      %v1201 = vadd.f32 %v880, %v1200
      %v1202 = vpop.f32.mrb[0].mxu0
      %1203 = vmatprep.mubr.f32.mxu0 0.0
      %1204 = vmatmul.mubr.f32.gmra.mrb[0].mxu0 %v1012
      %v1205 = vpop.f32.mrb[0].mxu0
      %v1206 = vadd.f32 %v885, %v1205
      %v1207 = vpop.f32.mrb[0].mxu0
      %1208 = vmatprep.mubr.f32.mxu0 0.0
      %1209 = vmatmul.mubr.f32.gmra.mrb[0].mxu0 %v1015
      %v1210 = vpop.f32.mrb[0].mxu0
      %v1211 = vadd.f32 %v890, %v1210
      %v1212 = vpop.f32.mrb[0].mxu0
      %1213 = vmatprep.mubr.f32.mxu0 0.0
      %1214 = vmatmul.mubr.f32.gmra.mrb[0].mxu0 %v1018
      %v1215 = vpop.f32.mrb[0].mxu0
      %v1216 = vadd.f32 %v895, %v1215
      %v1217 = vpop.f32.mrb[0].mxu0
      %1218 = vmatprep.mubr.f32.mxu0 0.0
      %1219 = vmatmul.mubr.f32.gmra.mrb[0].mxu0 %v1021
      %v1220 = vpop.f32.mrb[0].mxu0
      %v1221 = vadd.f32 %v900, %v1220
      %v1222 = vpop.f32.mrb[0].mxu0
      %1223 = vmatprep.mubr.f32.mxu0 0.0
      %1224 = vmatmul.mubr.f32.gmra.mrb[0].mxu0 %v1024
      %v1225 = vpop.f32.mrb[0].mxu0
      %v1226 = vadd.f32 %v905, %v1225
      %v1227 = vpop.f32.mrb[0].mxu0
      %1228 = vmatprep.mubr.f32.mxu0 0.0
      %1229 = vmatmul.mubr.f32.gmra.mrb[0].mxu0 %v1027
      %v1230 = vpop.f32.mrb[0].mxu0
      %v1231 = vadd.f32 %v910, %v1230
      %v1232 = vpop.f32.mrb[0].mxu0
      %1233 = vmatprep.mubr.f32.mxu0 0.0
      %1234 = vmatmul.mubr.f32.gmra.mrb[0].mxu0 %v1030
      %v1235 = vpop.f32.mrb[0].mxu0
      %v1236 = vadd.f32 %v915, %v1235
      %v1237 = vpop.f32.mrb[0].mxu0
      %1238 = vmatprep.mubr.f32.mxu0 0.0
      %1239 = vmatmul.mubr.f32.gmra.mrb[0].mxu0 %v1033
      %v1240 = vpop.f32.mrb[0].mxu0
      %v1241 = vadd.f32 %v920, %v1240
      %v1242 = vpop.f32.mrb[0].mxu0
      %1243 = vmatprep.mubr.f32.mxu0 0.0
      %1244 = vmatmul.mubr.f32.gmra.mrb[0].mxu0 %v1036
      %v1245 = vpop.f32.mrb[0].mxu0
      %v1246 = vadd.f32 %v925, %v1245
      %v1247 = vpop.f32.mrb[0].mxu0
      %1248 = vmatprep.mubr.f32.mxu0 0.0
      %1249 = vmatmul.mubr.f32.gmra.mrb[0].mxu0 %v1039
      %v1250 = vpop.f32.mrb[0].mxu0
      %v1251 = vadd.f32 %v930, %v1250
      %v1252 = vpop.f32.mrb[0].mxu0
      %1253 = vmatprep.mubr.f32.mxu0 0.0
      %1254 = vmatmul.mubr.f32.gmra.mrb[0].mxu0 %v1042
      %v1255 = vpop.f32.mrb[0].mxu0
      %v1256 = vadd.f32 %v935, %v1255
      %v1257 = vpop.f32.mrb[0].mxu0
      %1258 = vmatprep.mubr.f32.mxu0 0.0
      %1259 = vmatmul.mubr.f32.gmra.mrb[0].mxu0 %v1045
      %v1260 = vpop.f32.mrb[0].mxu0
      %v1261 = vadd.f32 %v940, %v1260
      %v1262 = vpop.f32.mrb[0].mxu0
      %1263 = vmatprep.mubr.f32.mxu0 0.0
      %1264 = vmatmul.mubr.f32.gmra.mrb[0].mxu0 %v1048
      %v1265 = vpop.f32.mrb[0].mxu0
      %v1266 = vadd.f32 %v945, %v1265
      %v1267 = vpop.f32.mrb[0].mxu0
      %1268 = vmatprep.mubr.f32.mxu0 0.0
      %1269 = vmatmul.mubr.f32.gmra.mrb[0].mxu0 %v1051
      %v1270 = vpop.f32.mrb[0].mxu0
      %v1271 = vadd.f32 %v950, %v1270
      %v1272 = vpop.f32.mrb[0].mxu0
      %1273 = vmatprep.mubr.f32.mxu0 0.0
      %1274 = vmatmul.mubr.f32.gmra.mrb[0].mxu0 %v1054
      %v1275 = vpop.f32.mrb[0].mxu0
      %v1276 = vadd.f32 %v955, %v1275
      %v1277 = vpop.f32.mrb[0].mxu0
      %1278 = vmatprep.mubr.f32.mxu0 0.0
      %1279 = vmatmul.mubr.f32.gmra.mrb[0].mxu0 %v1057
      %v1280 = vpop.f32.mrb[0].mxu0
      %v1281 = vadd.f32 %v960, %v1280
      %v1282 = vpop.f32.mrb[0].mxu0
      %1283 = vdwg.mxu0
      %s1284 = scalar_lea.vmem %s1, 16
      %v1285 = vld [vmem:[%s1284] sm:$0xff]
      %v1287 = vsel %vm348, %v603, 0
      %v1290 = vsel %vm348, %v604, 0
      %v1293 = vsel %vm348, %v605, 0
      %v1296 = vsel %vm348, %v606, 0
      %v1299 = vsel %vm348, %v607, 0
      %v1302 = vsel %vm348, %v608, 0
      %v1305 = vsel %vm348, %v609, 0
      %v1308 = vsel %vm348, %v610, 0
      %v1311 = vsel %vm348, %v611, 0
      %v1314 = vsel %vm348, %v612, 0
      %v1317 = vsel %vm348, %v613, 0
      %v1320 = vsel %vm348, %v614, 0
      %v1323 = vsel %vm348, %v615, 0
      %v1326 = vsel %vm348, %v616, 0
      %v1329 = vsel %vm348, %v617, 0
      %v1332 = vsel %vm348, %v618, 0
      %v1335 = vsel %vm348, %v619, 0
      %v1338 = vsel %vm348, %v620, 0
      %v1341 = vsel %vm348, %v621, 0
      %v1344 = vsel %vm348, %v622, 0
      %v1347 = vsel %vm348, %v623, 0
      %v1350 = vsel %vm348, %v624, 0
      %v1353 = vsel %vm348, %v625, 0
      %v1356 = vsel %vm348, %v626, 0
      %v1359 = vsel %vm348, %v627, 0
      %v1362 = vsel %vm348, %v628, 0
      %v1365 = vsel %vm348, %v629, 0
      %v1368 = vsel %vm348, %v630, 0
      %v1371 = vsel %vm348, %v631, 0
      %v1374 = vsel %vm348, %v632, 0
      %v1377 = vsel %vm348, %v633, 0
      %v1380 = vsel %vm348, %v634, 0
      %1382 = vmatprep.subr.mxu0 0.0
      %1383 = vmatpush1.msra.mxu0 %v1285
      %1384 = vmatprep.subr.mxu0 0.0
      %1385 = vmatpush1.msra.mxu0 0.0
      %1386 = vmatprep.subr.mxu0 0.0
      %1387 = vmatpush1.msra.mxu0 0.0
      %1388 = vmatprep.subr.mxu0 0.0
      %1389 = vmatpush1.msra.mxu0 0.0
      %1390 = vmatprep.subr.mxu0 0.0
      %1391 = vmatpush1.msra.mxu0 0.0
      %1392 = vmatprep.subr.mxu0 0.0
      %1393 = vmatpush1.msra.mxu0 0.0
      %1394 = vmatprep.subr.mxu0 0.0
      %1395 = vmatpush1.msra.mxu0 0.0
      %1396 = vmatprep.subr.mxu0 0.0
      %1397 = vmatpush1.msra.mxu0 0.0
      %1398 = vmatprep.subr.mxu0 0.0
      %1399 = vmatpush1.msra.mxu0 0.0
      %1400 = vmatprep.subr.mxu0 0.0
      %1401 = vmatpush1.msra.mxu0 0.0
      %1402 = vmatprep.subr.mxu0 0.0
      %1403 = vmatpush1.msra.mxu0 0.0
      %1404 = vmatprep.subr.mxu0 0.0
      %1405 = vmatpush1.msra.mxu0 0.0
      %1406 = vmatprep.subr.mxu0 0.0
      %1407 = vmatpush1.msra.mxu0 0.0
      %1408 = vmatprep.subr.mxu0 0.0
      %1409 = vmatpush1.msra.mxu0 0.0
      %1410 = vmatprep.subr.mxu0 0.0
      %1411 = vmatpush1.msra.mxu0 0.0
      %1412 = vmatprep.subr.mxu0 0.0
      %1413 = vmatpush1.msra.mxu0 0.0
      %1414 = vmatprep.subr.mxu0 0.0
      %1415 = vmatpush1.msra.mxu0 0.0
      %1416 = vmatprep.subr.mxu0 0.0
      %1417 = vmatpush1.msra.mxu0 0.0
      %1418 = vmatprep.subr.mxu0 0.0
      %1419 = vmatpush1.msra.mxu0 0.0
      %1420 = vmatprep.subr.mxu0 0.0
      %1421 = vmatpush1.msra.mxu0 0.0
      %1422 = vmatprep.subr.mxu0 0.0
      %1423 = vmatpush1.msra.mxu0 0.0
      %1424 = vmatprep.subr.mxu0 0.0
      %1425 = vmatpush1.msra.mxu0 0.0
      %1426 = vmatprep.subr.mxu0 0.0
      %1427 = vmatpush1.msra.mxu0 0.0
      %1428 = vmatprep.subr.mxu0 0.0
      %1429 = vmatpush1.msra.mxu0 0.0
      %1430 = vmatprep.subr.mxu0 0.0
      %1431 = vmatpush1.msra.mxu0 0.0
      %1432 = vmatprep.subr.mxu0 0.0
      %1433 = vmatpush1.msra.mxu0 0.0
      %1434 = vmatprep.subr.mxu0 0.0
      %1435 = vmatpush1.msra.mxu0 0.0
      %1436 = vmatprep.subr.mxu0 0.0
      %1437 = vmatpush1.msra.mxu0 0.0
      %1438 = vmatprep.subr.mxu0 0.0
      %1439 = vmatpush1.msra.mxu0 0.0
      %1440 = vmatprep.subr.mxu0 0.0
      %1441 = vmatpush1.msra.mxu0 0.0
      %1442 = vmatprep.subr.mxu0 0.0
      %1443 = vmatpush1.msra.mxu0 0.0
      %1444 = vmatprep.subr.mxu0 0.0
      %1445 = vmatpush1.msra.mxu0 0.0
      %1446 = vmatprep.mubr.f32.mxu0 0.0
      %1447 = vmatmul.mubr.f32.gmra.mrb[0].mxu0 %v1287
      %v1448 = vpop.f32.mrb[0].mxu0
      %v1449 = vadd.f32 0.0, %v1448
      %v1450 = vpop.f32.mrb[0].mxu0
      %1451 = vmatprep.mubr.f32.mxu0 0.0
      %1452 = vmatmul.mubr.f32.gmra.mrb[0].mxu0 %v1290
      %v1453 = vpop.f32.mrb[0].mxu0
      %v1454 = vadd.f32 0.0, %v1453
      %v1455 = vpop.f32.mrb[0].mxu0
      %1456 = vmatprep.mubr.f32.mxu0 0.0
      %1457 = vmatmul.mubr.f32.gmra.mrb[0].mxu0 %v1293
      %v1458 = vpop.f32.mrb[0].mxu0
      %v1459 = vadd.f32 0.0, %v1458
      %v1460 = vpop.f32.mrb[0].mxu0
      %1461 = vmatprep.mubr.f32.mxu0 0.0
      %1462 = vmatmul.mubr.f32.gmra.mrb[0].mxu0 %v1296
      %v1463 = vpop.f32.mrb[0].mxu0
      %v1464 = vadd.f32 0.0, %v1463
      %v1465 = vpop.f32.mrb[0].mxu0
      %1466 = vmatprep.mubr.f32.mxu0 0.0
      %1467 = vmatmul.mubr.f32.gmra.mrb[0].mxu0 %v1299
      %v1468 = vpop.f32.mrb[0].mxu0
      %v1469 = vadd.f32 0.0, %v1468
      %v1470 = vpop.f32.mrb[0].mxu0
      %1471 = vmatprep.mubr.f32.mxu0 0.0
      %1472 = vmatmul.mubr.f32.gmra.mrb[0].mxu0 %v1302
      %v1473 = vpop.f32.mrb[0].mxu0
      %v1474 = vadd.f32 0.0, %v1473
      %v1475 = vpop.f32.mrb[0].mxu0
      %1476 = vmatprep.mubr.f32.mxu0 0.0
      %1477 = vmatmul.mubr.f32.gmra.mrb[0].mxu0 %v1305
      %v1478 = vpop.f32.mrb[0].mxu0
      %v1479 = vadd.f32 0.0, %v1478
      %v1480 = vpop.f32.mrb[0].mxu0
      %1481 = vmatprep.mubr.f32.mxu0 0.0
      %1482 = vmatmul.mubr.f32.gmra.mrb[0].mxu0 %v1308
      %v1483 = vpop.f32.mrb[0].mxu0
      %v1484 = vadd.f32 0.0, %v1483
      %v1485 = vpop.f32.mrb[0].mxu0
      %1486 = vmatprep.mubr.f32.mxu0 0.0
      %1487 = vmatmul.mubr.f32.gmra.mrb[0].mxu0 %v1311
      %v1488 = vpop.f32.mrb[0].mxu0
      %v1489 = vadd.f32 0.0, %v1488
      %v1490 = vpop.f32.mrb[0].mxu0
      %1491 = vmatprep.mubr.f32.mxu0 0.0
      %1492 = vmatmul.mubr.f32.gmra.mrb[0].mxu0 %v1314
      %v1493 = vpop.f32.mrb[0].mxu0
      %v1494 = vadd.f32 0.0, %v1493
      %v1495 = vpop.f32.mrb[0].mxu0
      %1496 = vmatprep.mubr.f32.mxu0 0.0
      %1497 = vmatmul.mubr.f32.gmra.mrb[0].mxu0 %v1317
      %v1498 = vpop.f32.mrb[0].mxu0
      %v1499 = vadd.f32 0.0, %v1498
      %v1500 = vpop.f32.mrb[0].mxu0
      %1501 = vmatprep.mubr.f32.mxu0 0.0
      %1502 = vmatmul.mubr.f32.gmra.mrb[0].mxu0 %v1320
      %v1503 = vpop.f32.mrb[0].mxu0
      %v1504 = vadd.f32 0.0, %v1503
      %v1505 = vpop.f32.mrb[0].mxu0
      %1506 = vmatprep.mubr.f32.mxu0 0.0
      %1507 = vmatmul.mubr.f32.gmra.mrb[0].mxu0 %v1323
      %v1508 = vpop.f32.mrb[0].mxu0
      %v1509 = vadd.f32 0.0, %v1508
      %v1510 = vpop.f32.mrb[0].mxu0
      %1511 = vmatprep.mubr.f32.mxu0 0.0
      %1512 = vmatmul.mubr.f32.gmra.mrb[0].mxu0 %v1326
      %v1513 = vpop.f32.mrb[0].mxu0
      %v1514 = vadd.f32 0.0, %v1513
      %v1515 = vpop.f32.mrb[0].mxu0
      %1516 = vmatprep.mubr.f32.mxu0 0.0
      %1517 = vmatmul.mubr.f32.gmra.mrb[0].mxu0 %v1329
      %v1518 = vpop.f32.mrb[0].mxu0
      %v1519 = vadd.f32 0.0, %v1518
      %v1520 = vpop.f32.mrb[0].mxu0
      %1521 = vmatprep.mubr.f32.mxu0 0.0
      %1522 = vmatmul.mubr.f32.gmra.mrb[0].mxu0 %v1332
      %v1523 = vpop.f32.mrb[0].mxu0
      %v1524 = vadd.f32 0.0, %v1523
      %v1525 = vpop.f32.mrb[0].mxu0
      %1526 = vmatprep.mubr.f32.mxu0 0.0
      %1527 = vmatmul.mubr.f32.gmra.mrb[0].mxu0 %v1335
      %v1528 = vpop.f32.mrb[0].mxu0
      %v1529 = vadd.f32 0.0, %v1528
      %v1530 = vpop.f32.mrb[0].mxu0
      %1531 = vmatprep.mubr.f32.mxu0 0.0
      %1532 = vmatmul.mubr.f32.gmra.mrb[0].mxu0 %v1338
      %v1533 = vpop.f32.mrb[0].mxu0
      %v1534 = vadd.f32 0.0, %v1533
      %v1535 = vpop.f32.mrb[0].mxu0
      %1536 = vmatprep.mubr.f32.mxu0 0.0
      %1537 = vmatmul.mubr.f32.gmra.mrb[0].mxu0 %v1341
      %v1538 = vpop.f32.mrb[0].mxu0
      %v1539 = vadd.f32 0.0, %v1538
      %v1540 = vpop.f32.mrb[0].mxu0
      %1541 = vmatprep.mubr.f32.mxu0 0.0
      %1542 = vmatmul.mubr.f32.gmra.mrb[0].mxu0 %v1344
      %v1543 = vpop.f32.mrb[0].mxu0
      %v1544 = vadd.f32 0.0, %v1543
      %v1545 = vpop.f32.mrb[0].mxu0
      %1546 = vmatprep.mubr.f32.mxu0 0.0
      %1547 = vmatmul.mubr.f32.gmra.mrb[0].mxu0 %v1347
      %v1548 = vpop.f32.mrb[0].mxu0
      %v1549 = vadd.f32 0.0, %v1548
      %v1550 = vpop.f32.mrb[0].mxu0
      %1551 = vmatprep.mubr.f32.mxu0 0.0
      %1552 = vmatmul.mubr.f32.gmra.mrb[0].mxu0 %v1350
      %v1553 = vpop.f32.mrb[0].mxu0
      %v1554 = vadd.f32 0.0, %v1553
      %v1555 = vpop.f32.mrb[0].mxu0
      %1556 = vmatprep.mubr.f32.mxu0 0.0
      %1557 = vmatmul.mubr.f32.gmra.mrb[0].mxu0 %v1353
      %v1558 = vpop.f32.mrb[0].mxu0
      %v1559 = vadd.f32 0.0, %v1558
      %v1560 = vpop.f32.mrb[0].mxu0
      %1561 = vmatprep.mubr.f32.mxu0 0.0
      %1562 = vmatmul.mubr.f32.gmra.mrb[0].mxu0 %v1356
      %v1563 = vpop.f32.mrb[0].mxu0
      %v1564 = vadd.f32 0.0, %v1563
      %v1565 = vpop.f32.mrb[0].mxu0
      %1566 = vmatprep.mubr.f32.mxu0 0.0
      %1567 = vmatmul.mubr.f32.gmra.mrb[0].mxu0 %v1359
      %v1568 = vpop.f32.mrb[0].mxu0
      %v1569 = vadd.f32 0.0, %v1568
      %v1570 = vpop.f32.mrb[0].mxu0
      %1571 = vmatprep.mubr.f32.mxu0 0.0
      %1572 = vmatmul.mubr.f32.gmra.mrb[0].mxu0 %v1362
      %v1573 = vpop.f32.mrb[0].mxu0
      %v1574 = vadd.f32 0.0, %v1573
      %v1575 = vpop.f32.mrb[0].mxu0
      %1576 = vmatprep.mubr.f32.mxu0 0.0
      %1577 = vmatmul.mubr.f32.gmra.mrb[0].mxu0 %v1365
      %v1578 = vpop.f32.mrb[0].mxu0
      %v1579 = vadd.f32 0.0, %v1578
      %v1580 = vpop.f32.mrb[0].mxu0
      %1581 = vmatprep.mubr.f32.mxu0 0.0
      %1582 = vmatmul.mubr.f32.gmra.mrb[0].mxu0 %v1368
      %v1583 = vpop.f32.mrb[0].mxu0
      %v1584 = vadd.f32 0.0, %v1583
      %v1585 = vpop.f32.mrb[0].mxu0
      %1586 = vmatprep.mubr.f32.mxu0 0.0
      %1587 = vmatmul.mubr.f32.gmra.mrb[0].mxu0 %v1371
      %v1588 = vpop.f32.mrb[0].mxu0
      %v1589 = vadd.f32 0.0, %v1588
      %v1590 = vpop.f32.mrb[0].mxu0
      %1591 = vmatprep.mubr.f32.mxu0 0.0
      %1592 = vmatmul.mubr.f32.gmra.mrb[0].mxu0 %v1374
      %v1593 = vpop.f32.mrb[0].mxu0
      %v1594 = vadd.f32 0.0, %v1593
      %v1595 = vpop.f32.mrb[0].mxu0
      %1596 = vmatprep.mubr.f32.mxu0 0.0
      %1597 = vmatmul.mubr.f32.gmra.mrb[0].mxu0 %v1377
      %v1598 = vpop.f32.mrb[0].mxu0
      %v1599 = vadd.f32 0.0, %v1598
      %v1600 = vpop.f32.mrb[0].mxu0
      %1601 = vmatprep.mubr.f32.mxu0 0.0
      %1602 = vmatmul.mubr.f32.gmra.mrb[0].mxu0 %v1380
      %v1603 = vpop.f32.mrb[0].mxu0
      %v1604 = vadd.f32 0.0, %v1603
      %v1605 = vpop.f32.mrb[0].mxu0
      %1606 = vdwg.mxu0
      %v1607 = vadd.f32 %v1126, %v1449
      %v1608 = vadd.f32 %v1131, %v1454
      %v1609 = vadd.f32 %v1136, %v1459
      %v1610 = vadd.f32 %v1141, %v1464
      %v1611 = vadd.f32 %v1146, %v1469
      %v1612 = vadd.f32 %v1151, %v1474
      %v1613 = vadd.f32 %v1156, %v1479
      %v1614 = vadd.f32 %v1161, %v1484
      %v1615 = vadd.f32 %v1166, %v1489
      %v1616 = vadd.f32 %v1171, %v1494
      %v1617 = vadd.f32 %v1176, %v1499
      %v1618 = vadd.f32 %v1181, %v1504
      %v1619 = vadd.f32 %v1186, %v1509
      %v1620 = vadd.f32 %v1191, %v1514
      %v1621 = vadd.f32 %v1196, %v1519
      %v1622 = vadd.f32 %v1201, %v1524
      %v1623 = vadd.f32 %v1206, %v1529
      %v1624 = vadd.f32 %v1211, %v1534
      %v1625 = vadd.f32 %v1216, %v1539
      %v1626 = vadd.f32 %v1221, %v1544
      %v1627 = vadd.f32 %v1226, %v1549
      %v1628 = vadd.f32 %v1231, %v1554
      %v1629 = vadd.f32 %v1236, %v1559
      %v1630 = vadd.f32 %v1241, %v1564
      %v1631 = vadd.f32 %v1246, %v1569
      %v1632 = vadd.f32 %v1251, %v1574
      %v1633 = vadd.f32 %v1256, %v1579
      %v1634 = vadd.f32 %v1261, %v1584
      %v1635 = vadd.f32 %v1266, %v1589
      %v1636 = vadd.f32 %v1271, %v1594
      %v1637 = vadd.f32 %v1276, %v1599
      %v1638 = vadd.f32 %v1281, %v1604
      %s1639 = scalar_lea.vmem %s1, 24
      %v1640 = vld [vmem:[%s1639] sm:$0xff]
      %v1642 = vsel %vm348, %v599, 0
      %v1645 = vsel %vm348, %v600, 0
      %1647 = vmatprep.subr.mxu0 0.0
      %1648 = vmatpush1.msra.mxu0 %v1640
      %1649 = vmatprep.subr.mxu0 0.0
      %1650 = vmatpush1.msra.mxu0 0.0
      %1651 = vmatprep.subr.mxu0 0.0
      %1652 = vmatpush1.msra.mxu0 0.0
      %1653 = vmatprep.subr.mxu0 0.0
      %1654 = vmatpush1.msra.mxu0 0.0
      %1655 = vmatprep.subr.mxu0 0.0
      %1656 = vmatpush1.msra.mxu0 0.0
      %1657 = vmatprep.subr.mxu0 0.0
      %1658 = vmatpush1.msra.mxu0 0.0
      %1659 = vmatprep.subr.mxu0 0.0
      %1660 = vmatpush1.msra.mxu0 0.0
      %1661 = vmatprep.subr.mxu0 0.0
      %1662 = vmatpush1.msra.mxu0 0.0
      %1663 = vmatprep.subr.mxu0 0.0
      %1664 = vmatpush1.msra.mxu0 0.0
      %1665 = vmatprep.subr.mxu0 0.0
      %1666 = vmatpush1.msra.mxu0 0.0
      %1667 = vmatprep.subr.mxu0 0.0
      %1668 = vmatpush1.msra.mxu0 0.0
      %1669 = vmatprep.subr.mxu0 0.0
      %1670 = vmatpush1.msra.mxu0 0.0
      %1671 = vmatprep.subr.mxu0 0.0
      %1672 = vmatpush1.msra.mxu0 0.0
      %1673 = vmatprep.subr.mxu0 0.0
      %1674 = vmatpush1.msra.mxu0 0.0
      %1675 = vmatprep.subr.mxu0 0.0
      %1676 = vmatpush1.msra.mxu0 0.0
      %1677 = vmatprep.subr.mxu0 0.0
      %1678 = vmatpush1.msra.mxu0 0.0
      %1679 = vmatprep.subr.mxu0 0.0
      %1680 = vmatpush1.msra.mxu0 0.0
      %1681 = vmatprep.subr.mxu0 0.0
      %1682 = vmatpush1.msra.mxu0 0.0
      %1683 = vmatprep.subr.mxu0 0.0
      %1684 = vmatpush1.msra.mxu0 0.0
      %1685 = vmatprep.subr.mxu0 0.0
      %1686 = vmatpush1.msra.mxu0 0.0
      %1687 = vmatprep.subr.mxu0 0.0
      %1688 = vmatpush1.msra.mxu0 0.0
      %1689 = vmatprep.subr.mxu0 0.0
      %1690 = vmatpush1.msra.mxu0 0.0
      %1691 = vmatprep.subr.mxu0 0.0
      %1692 = vmatpush1.msra.mxu0 0.0
      %1693 = vmatprep.subr.mxu0 0.0
      %1694 = vmatpush1.msra.mxu0 0.0
      %1695 = vmatprep.subr.mxu0 0.0
      %1696 = vmatpush1.msra.mxu0 0.0
      %1697 = vmatprep.subr.mxu0 0.0
      %1698 = vmatpush1.msra.mxu0 0.0
      %1699 = vmatprep.subr.mxu0 0.0
      %1700 = vmatpush1.msra.mxu0 0.0
      %1701 = vmatprep.subr.mxu0 0.0
      %1702 = vmatpush1.msra.mxu0 0.0
      %1703 = vmatprep.subr.mxu0 0.0
      %1704 = vmatpush1.msra.mxu0 0.0
      %1705 = vmatprep.subr.mxu0 0.0
      %1706 = vmatpush1.msra.mxu0 0.0
      %1707 = vmatprep.subr.mxu0 0.0
      %1708 = vmatpush1.msra.mxu0 0.0
      %1709 = vmatprep.subr.mxu0 0.0
      %1710 = vmatpush1.msra.mxu0 0.0
      %1711 = vmatprep.mubr.f32.mxu0 0.0
      %1712 = vmatmul.mubr.f32.gmra.mrb[0].mxu0 %v970
      %v1713 = vpop.f32.mrb[0].mxu0
      %v1714 = vadd.f32 0.0, %v1713
      %v1715 = vpop.f32.mrb[0].mxu0
      %1716 = vmatprep.mubr.f32.mxu0 0.0
      %1717 = vmatmul.mubr.f32.gmra.mrb[0].mxu0 %v973
      %v1718 = vpop.f32.mrb[0].mxu0
      %v1719 = vadd.f32 0.0, %v1718
      %v1720 = vpop.f32.mrb[0].mxu0
      %1721 = vmatprep.mubr.f32.mxu0 0.0
      %1722 = vmatmul.mubr.f32.gmra.mrb[0].mxu0 %v976
      %v1723 = vpop.f32.mrb[0].mxu0
      %v1724 = vadd.f32 0.0, %v1723
      %v1725 = vpop.f32.mrb[0].mxu0
      %1726 = vmatprep.mubr.f32.mxu0 0.0
      %1727 = vmatmul.mubr.f32.gmra.mrb[0].mxu0 %v979
      %v1728 = vpop.f32.mrb[0].mxu0
      %v1729 = vadd.f32 0.0, %v1728
      %v1730 = vpop.f32.mrb[0].mxu0
      %1731 = vmatprep.mubr.f32.mxu0 0.0
      %1732 = vmatmul.mubr.f32.gmra.mrb[0].mxu0 %v982
      %v1733 = vpop.f32.mrb[0].mxu0
      %v1734 = vadd.f32 0.0, %v1733
      %v1735 = vpop.f32.mrb[0].mxu0
      %1736 = vmatprep.mubr.f32.mxu0 0.0
      %1737 = vmatmul.mubr.f32.gmra.mrb[0].mxu0 %v985
      %v1738 = vpop.f32.mrb[0].mxu0
      %v1739 = vadd.f32 0.0, %v1738
      %v1740 = vpop.f32.mrb[0].mxu0
      %1741 = vmatprep.mubr.f32.mxu0 0.0
      %1742 = vmatmul.mubr.f32.gmra.mrb[0].mxu0 %v988
      %v1743 = vpop.f32.mrb[0].mxu0
      %v1744 = vadd.f32 0.0, %v1743
      %v1745 = vpop.f32.mrb[0].mxu0
      %1746 = vmatprep.mubr.f32.mxu0 0.0
      %1747 = vmatmul.mubr.f32.gmra.mrb[0].mxu0 %v991
      %v1748 = vpop.f32.mrb[0].mxu0
      %v1749 = vadd.f32 0.0, %v1748
      %v1750 = vpop.f32.mrb[0].mxu0
      %1751 = vmatprep.mubr.f32.mxu0 0.0
      %1752 = vmatmul.mubr.f32.gmra.mrb[0].mxu0 %v994
      %v1753 = vpop.f32.mrb[0].mxu0
      %v1754 = vadd.f32 0.0, %v1753
      %v1755 = vpop.f32.mrb[0].mxu0
      %1756 = vmatprep.mubr.f32.mxu0 0.0
      %1757 = vmatmul.mubr.f32.gmra.mrb[0].mxu0 %v997
      %v1758 = vpop.f32.mrb[0].mxu0
      %v1759 = vadd.f32 0.0, %v1758
      %v1760 = vpop.f32.mrb[0].mxu0
      %1761 = vmatprep.mubr.f32.mxu0 0.0
      %1762 = vmatmul.mubr.f32.gmra.mrb[0].mxu0 %v1000
      %v1763 = vpop.f32.mrb[0].mxu0
      %v1764 = vadd.f32 0.0, %v1763
      %v1765 = vpop.f32.mrb[0].mxu0
      %1766 = vmatprep.mubr.f32.mxu0 0.0
      %1767 = vmatmul.mubr.f32.gmra.mrb[0].mxu0 %v1003
      %v1768 = vpop.f32.mrb[0].mxu0
      %v1769 = vadd.f32 0.0, %v1768
      %v1770 = vpop.f32.mrb[0].mxu0
      %1771 = vmatprep.mubr.f32.mxu0 0.0
      %1772 = vmatmul.mubr.f32.gmra.mrb[0].mxu0 %v1006
      %v1773 = vpop.f32.mrb[0].mxu0
      %v1774 = vadd.f32 0.0, %v1773
      %v1775 = vpop.f32.mrb[0].mxu0
      %1776 = vmatprep.mubr.f32.mxu0 0.0
      %1777 = vmatmul.mubr.f32.gmra.mrb[0].mxu0 %v1009
      %v1778 = vpop.f32.mrb[0].mxu0
      %v1779 = vadd.f32 0.0, %v1778
      %v1780 = vpop.f32.mrb[0].mxu0
      %1781 = vmatprep.mubr.f32.mxu0 0.0
      %1782 = vmatmul.mubr.f32.gmra.mrb[0].mxu0 %v1012
      %v1783 = vpop.f32.mrb[0].mxu0
      %v1784 = vadd.f32 0.0, %v1783
      %v1785 = vpop.f32.mrb[0].mxu0
      %1786 = vmatprep.mubr.f32.mxu0 0.0
      %1787 = vmatmul.mubr.f32.gmra.mrb[0].mxu0 %v1015
      %v1788 = vpop.f32.mrb[0].mxu0
      %v1789 = vadd.f32 0.0, %v1788
      %v1790 = vpop.f32.mrb[0].mxu0
      %1791 = vmatprep.mubr.f32.mxu0 0.0
      %1792 = vmatmul.mubr.f32.gmra.mrb[0].mxu0 %v1018
      %v1793 = vpop.f32.mrb[0].mxu0
      %v1794 = vadd.f32 0.0, %v1793
      %v1795 = vpop.f32.mrb[0].mxu0
      %1796 = vmatprep.mubr.f32.mxu0 0.0
      %1797 = vmatmul.mubr.f32.gmra.mrb[0].mxu0 %v1021
      %v1798 = vpop.f32.mrb[0].mxu0
      %v1799 = vadd.f32 0.0, %v1798
      %v1800 = vpop.f32.mrb[0].mxu0
      %1801 = vmatprep.mubr.f32.mxu0 0.0
      %1802 = vmatmul.mubr.f32.gmra.mrb[0].mxu0 %v1024
      %v1803 = vpop.f32.mrb[0].mxu0
      %v1804 = vadd.f32 0.0, %v1803
      %v1805 = vpop.f32.mrb[0].mxu0
      %1806 = vmatprep.mubr.f32.mxu0 0.0
      %1807 = vmatmul.mubr.f32.gmra.mrb[0].mxu0 %v1027
      %v1808 = vpop.f32.mrb[0].mxu0
      %v1809 = vadd.f32 0.0, %v1808
      %v1810 = vpop.f32.mrb[0].mxu0
      %1811 = vmatprep.mubr.f32.mxu0 0.0
      %1812 = vmatmul.mubr.f32.gmra.mrb[0].mxu0 %v1030
      %v1813 = vpop.f32.mrb[0].mxu0
      %v1814 = vadd.f32 0.0, %v1813
      %v1815 = vpop.f32.mrb[0].mxu0
      %1816 = vmatprep.mubr.f32.mxu0 0.0
      %1817 = vmatmul.mubr.f32.gmra.mrb[0].mxu0 %v1033
      %v1818 = vpop.f32.mrb[0].mxu0
      %v1819 = vadd.f32 0.0, %v1818
      %v1820 = vpop.f32.mrb[0].mxu0
      %1821 = vmatprep.mubr.f32.mxu0 0.0
      %1822 = vmatmul.mubr.f32.gmra.mrb[0].mxu0 %v1036
      %v1823 = vpop.f32.mrb[0].mxu0
      %v1824 = vadd.f32 0.0, %v1823
      %v1825 = vpop.f32.mrb[0].mxu0
      %1826 = vmatprep.mubr.f32.mxu0 0.0
      %1827 = vmatmul.mubr.f32.gmra.mrb[0].mxu0 %v1039
      %v1828 = vpop.f32.mrb[0].mxu0
      %v1829 = vadd.f32 0.0, %v1828
      %v1830 = vpop.f32.mrb[0].mxu0
      %1831 = vmatprep.mubr.f32.mxu0 0.0
      %1832 = vmatmul.mubr.f32.gmra.mrb[0].mxu0 %v1042
      %v1833 = vpop.f32.mrb[0].mxu0
      %v1834 = vadd.f32 0.0, %v1833
      %v1835 = vpop.f32.mrb[0].mxu0
      %1836 = vmatprep.mubr.f32.mxu0 0.0
      %1837 = vmatmul.mubr.f32.gmra.mrb[0].mxu0 %v1045
      %v1838 = vpop.f32.mrb[0].mxu0
      %v1839 = vadd.f32 0.0, %v1838
      %v1840 = vpop.f32.mrb[0].mxu0
      %1841 = vmatprep.mubr.f32.mxu0 0.0
      %1842 = vmatmul.mubr.f32.gmra.mrb[0].mxu0 %v1048
      %v1843 = vpop.f32.mrb[0].mxu0
      %v1844 = vadd.f32 0.0, %v1843
      %v1845 = vpop.f32.mrb[0].mxu0
      %1846 = vmatprep.mubr.f32.mxu0 0.0
      %1847 = vmatmul.mubr.f32.gmra.mrb[0].mxu0 %v1051
      %v1848 = vpop.f32.mrb[0].mxu0
      %v1849 = vadd.f32 0.0, %v1848
      %v1850 = vpop.f32.mrb[0].mxu0
      %1851 = vmatprep.mubr.f32.mxu0 0.0
      %1852 = vmatmul.mubr.f32.gmra.mrb[0].mxu0 %v1054
      %v1853 = vpop.f32.mrb[0].mxu0
      %v1854 = vadd.f32 0.0, %v1853
      %v1855 = vpop.f32.mrb[0].mxu0
      %1856 = vmatprep.mubr.f32.mxu0 0.0
      %1857 = vmatmul.mubr.f32.gmra.mrb[0].mxu0 %v1057
      %v1858 = vpop.f32.mrb[0].mxu0
      %v1859 = vadd.f32 0.0, %v1858
      %v1860 = vpop.f32.mrb[0].mxu0
      %1861 = vmatprep.mubr.f32.mxu0 0.0
      %1862 = vmatmul.mubr.f32.gmra.mrb[0].mxu0 %v1642
      %v1863 = vpop.f32.mrb[0].mxu0
      %v1864 = vadd.f32 0.0, %v1863
      %v1865 = vpop.f32.mrb[0].mxu0
      %1866 = vmatprep.mubr.f32.mxu0 0.0
      %1867 = vmatmul.mubr.f32.gmra.mrb[0].mxu0 %v1645
      %v1868 = vpop.f32.mrb[0].mxu0
      %v1869 = vadd.f32 0.0, %v1868
      %v1870 = vpop.f32.mrb[0].mxu0
      %1871 = vdwg.mxu0
      %v1872 = vadd.f32 %v1607, %v1714
      %v1873 = vadd.f32 %v1608, %v1719
      %v1874 = vadd.f32 %v1609, %v1724
      %v1875 = vadd.f32 %v1610, %v1729
      %v1876 = vadd.f32 %v1611, %v1734
      %v1877 = vadd.f32 %v1612, %v1739
      %v1878 = vadd.f32 %v1613, %v1744
      %v1879 = vadd.f32 %v1614, %v1749
      %v1880 = vadd.f32 %v1615, %v1754
      %v1881 = vadd.f32 %v1616, %v1759
      %v1882 = vadd.f32 %v1617, %v1764
      %v1883 = vadd.f32 %v1618, %v1769
      %v1884 = vadd.f32 %v1619, %v1774
      %v1885 = vadd.f32 %v1620, %v1779
      %v1886 = vadd.f32 %v1621, %v1784
      %v1887 = vadd.f32 %v1622, %v1789
      %v1888 = vadd.f32 %v1623, %v1794
      %v1889 = vadd.f32 %v1624, %v1799
      %v1890 = vadd.f32 %v1625, %v1804
      %v1891 = vadd.f32 %v1626, %v1809
      %v1892 = vadd.f32 %v1627, %v1814
      %v1893 = vadd.f32 %v1628, %v1819
      %v1894 = vadd.f32 %v1629, %v1824
      %v1895 = vadd.f32 %v1630, %v1829
      %v1896 = vadd.f32 %v1631, %v1834
      %v1897 = vadd.f32 %v1632, %v1839
      %v1898 = vadd.f32 %v1633, %v1844
      %v1899 = vadd.f32 %v1634, %v1849
      %v1900 = vadd.f32 %v1635, %v1854
      %v1901 = vadd.f32 %v1636, %v1859
      %v1902 = vadd.f32 %v1637, %v1864
      %v1903 = vadd.f32 %v1638, %v1869
      %s1904 = scalar_lea.vmem %s1, 32
      %v1905 = vld [vmem:[%s1904] sm:$0xff]
      %v1907 = vsel %vm348, %v417, 0
      %v1910 = vsel %vm348, %v418, 0
      %1912 = vmatprep.subr.mxu0 0.0
      %1913 = vmatpush1.msra.mxu0 %v1905
      %1914 = vmatprep.subr.mxu0 0.0
      %1915 = vmatpush1.msra.mxu0 0.0
      %1916 = vmatprep.subr.mxu0 0.0
      %1917 = vmatpush1.msra.mxu0 0.0
      %1918 = vmatprep.subr.mxu0 0.0
      %1919 = vmatpush1.msra.mxu0 0.0
      %1920 = vmatprep.subr.mxu0 0.0
      %1921 = vmatpush1.msra.mxu0 0.0
      %1922 = vmatprep.subr.mxu0 0.0
      %1923 = vmatpush1.msra.mxu0 0.0
      %1924 = vmatprep.subr.mxu0 0.0
      %1925 = vmatpush1.msra.mxu0 0.0
      %1926 = vmatprep.subr.mxu0 0.0
      %1927 = vmatpush1.msra.mxu0 0.0
      %1928 = vmatprep.subr.mxu0 0.0
      %1929 = vmatpush1.msra.mxu0 0.0
      %1930 = vmatprep.subr.mxu0 0.0
      %1931 = vmatpush1.msra.mxu0 0.0
      %1932 = vmatprep.subr.mxu0 0.0
      %1933 = vmatpush1.msra.mxu0 0.0
      %1934 = vmatprep.subr.mxu0 0.0
      %1935 = vmatpush1.msra.mxu0 0.0
      %1936 = vmatprep.subr.mxu0 0.0
      %1937 = vmatpush1.msra.mxu0 0.0
      %1938 = vmatprep.subr.mxu0 0.0
      %1939 = vmatpush1.msra.mxu0 0.0
      %1940 = vmatprep.subr.mxu0 0.0
      %1941 = vmatpush1.msra.mxu0 0.0
      %1942 = vmatprep.subr.mxu0 0.0
      %1943 = vmatpush1.msra.mxu0 0.0
      %1944 = vmatprep.subr.mxu0 0.0
      %1945 = vmatpush1.msra.mxu0 0.0
      %1946 = vmatprep.subr.mxu0 0.0
      %1947 = vmatpush1.msra.mxu0 0.0
      %1948 = vmatprep.subr.mxu0 0.0
      %1949 = vmatpush1.msra.mxu0 0.0
      %1950 = vmatprep.subr.mxu0 0.0
      %1951 = vmatpush1.msra.mxu0 0.0
      %1952 = vmatprep.subr.mxu0 0.0
      %1953 = vmatpush1.msra.mxu0 0.0
      %1954 = vmatprep.subr.mxu0 0.0
      %1955 = vmatpush1.msra.mxu0 0.0
      %1956 = vmatprep.subr.mxu0 0.0
      %1957 = vmatpush1.msra.mxu0 0.0
      %1958 = vmatprep.subr.mxu0 0.0
      %1959 = vmatpush1.msra.mxu0 0.0
      %1960 = vmatprep.subr.mxu0 0.0
      %1961 = vmatpush1.msra.mxu0 0.0
      %1962 = vmatprep.subr.mxu0 0.0
      %1963 = vmatpush1.msra.mxu0 0.0
      %1964 = vmatprep.subr.mxu0 0.0
      %1965 = vmatpush1.msra.mxu0 0.0
      %1966 = vmatprep.subr.mxu0 0.0
      %1967 = vmatpush1.msra.mxu0 0.0
      %1968 = vmatprep.subr.mxu0 0.0
      %1969 = vmatpush1.msra.mxu0 0.0
      %1970 = vmatprep.subr.mxu0 0.0
      %1971 = vmatpush1.msra.mxu0 0.0
      %1972 = vmatprep.subr.mxu0 0.0
      %1973 = vmatpush1.msra.mxu0 0.0
      %1974 = vmatprep.subr.mxu0 0.0
      %1975 = vmatpush1.msra.mxu0 0.0
      %1976 = vmatprep.mubr.f32.mxu0 0.0
      %1977 = vmatmul.mubr.f32.gmra.mrb[0].mxu0 %v649
      %v1978 = vpop.f32.mrb[0].mxu0
      %v1979 = vadd.f32 0.0, %v1978
      %v1980 = vpop.f32.mrb[0].mxu0
      %1981 = vmatprep.mubr.f32.mxu0 0.0
      %1982 = vmatmul.mubr.f32.gmra.mrb[0].mxu0 %v652
      %v1983 = vpop.f32.mrb[0].mxu0
      %v1984 = vadd.f32 0.0, %v1983
      %v1985 = vpop.f32.mrb[0].mxu0
      %1986 = vmatprep.mubr.f32.mxu0 0.0
      %1987 = vmatmul.mubr.f32.gmra.mrb[0].mxu0 %v655
      %v1988 = vpop.f32.mrb[0].mxu0
      %v1989 = vadd.f32 0.0, %v1988
      %v1990 = vpop.f32.mrb[0].mxu0
      %1991 = vmatprep.mubr.f32.mxu0 0.0
      %1992 = vmatmul.mubr.f32.gmra.mrb[0].mxu0 %v658
      %v1993 = vpop.f32.mrb[0].mxu0
      %v1994 = vadd.f32 0.0, %v1993
      %v1995 = vpop.f32.mrb[0].mxu0
      %1996 = vmatprep.mubr.f32.mxu0 0.0
      %1997 = vmatmul.mubr.f32.gmra.mrb[0].mxu0 %v661
      %v1998 = vpop.f32.mrb[0].mxu0
      %v1999 = vadd.f32 0.0, %v1998
      %v2000 = vpop.f32.mrb[0].mxu0
      %2001 = vmatprep.mubr.f32.mxu0 0.0
      %2002 = vmatmul.mubr.f32.gmra.mrb[0].mxu0 %v664
      %v2003 = vpop.f32.mrb[0].mxu0
      %v2004 = vadd.f32 0.0, %v2003
      %v2005 = vpop.f32.mrb[0].mxu0
      %2006 = vmatprep.mubr.f32.mxu0 0.0
      %2007 = vmatmul.mubr.f32.gmra.mrb[0].mxu0 %v667
      %v2008 = vpop.f32.mrb[0].mxu0
      %v2009 = vadd.f32 0.0, %v2008
      %v2010 = vpop.f32.mrb[0].mxu0
      %2011 = vmatprep.mubr.f32.mxu0 0.0
      %2012 = vmatmul.mubr.f32.gmra.mrb[0].mxu0 %v670
      %v2013 = vpop.f32.mrb[0].mxu0
      %v2014 = vadd.f32 0.0, %v2013
      %v2015 = vpop.f32.mrb[0].mxu0
      %2016 = vmatprep.mubr.f32.mxu0 0.0
      %2017 = vmatmul.mubr.f32.gmra.mrb[0].mxu0 %v673
      %v2018 = vpop.f32.mrb[0].mxu0
      %v2019 = vadd.f32 0.0, %v2018
      %v2020 = vpop.f32.mrb[0].mxu0
      %2021 = vmatprep.mubr.f32.mxu0 0.0
      %2022 = vmatmul.mubr.f32.gmra.mrb[0].mxu0 %v676
      %v2023 = vpop.f32.mrb[0].mxu0
      %v2024 = vadd.f32 0.0, %v2023
      %v2025 = vpop.f32.mrb[0].mxu0
      %2026 = vmatprep.mubr.f32.mxu0 0.0
      %2027 = vmatmul.mubr.f32.gmra.mrb[0].mxu0 %v679
      %v2028 = vpop.f32.mrb[0].mxu0
      %v2029 = vadd.f32 0.0, %v2028
      %v2030 = vpop.f32.mrb[0].mxu0
      %2031 = vmatprep.mubr.f32.mxu0 0.0
      %2032 = vmatmul.mubr.f32.gmra.mrb[0].mxu0 %v682
      %v2033 = vpop.f32.mrb[0].mxu0
      %v2034 = vadd.f32 0.0, %v2033
      %v2035 = vpop.f32.mrb[0].mxu0
      %2036 = vmatprep.mubr.f32.mxu0 0.0
      %2037 = vmatmul.mubr.f32.gmra.mrb[0].mxu0 %v685
      %v2038 = vpop.f32.mrb[0].mxu0
      %v2039 = vadd.f32 0.0, %v2038
      %v2040 = vpop.f32.mrb[0].mxu0
      %2041 = vmatprep.mubr.f32.mxu0 0.0
      %2042 = vmatmul.mubr.f32.gmra.mrb[0].mxu0 %v688
      %v2043 = vpop.f32.mrb[0].mxu0
      %v2044 = vadd.f32 0.0, %v2043
      %v2045 = vpop.f32.mrb[0].mxu0
      %2046 = vmatprep.mubr.f32.mxu0 0.0
      %2047 = vmatmul.mubr.f32.gmra.mrb[0].mxu0 %v691
      %v2048 = vpop.f32.mrb[0].mxu0
      %v2049 = vadd.f32 0.0, %v2048
      %v2050 = vpop.f32.mrb[0].mxu0
      %2051 = vmatprep.mubr.f32.mxu0 0.0
      %2052 = vmatmul.mubr.f32.gmra.mrb[0].mxu0 %v694
      %v2053 = vpop.f32.mrb[0].mxu0
      %v2054 = vadd.f32 0.0, %v2053
      %v2055 = vpop.f32.mrb[0].mxu0
      %2056 = vmatprep.mubr.f32.mxu0 0.0
      %2057 = vmatmul.mubr.f32.gmra.mrb[0].mxu0 %v697
      %v2058 = vpop.f32.mrb[0].mxu0
      %v2059 = vadd.f32 0.0, %v2058
      %v2060 = vpop.f32.mrb[0].mxu0
      %2061 = vmatprep.mubr.f32.mxu0 0.0
      %2062 = vmatmul.mubr.f32.gmra.mrb[0].mxu0 %v700
      %v2063 = vpop.f32.mrb[0].mxu0
      %v2064 = vadd.f32 0.0, %v2063
      %v2065 = vpop.f32.mrb[0].mxu0
      %2066 = vmatprep.mubr.f32.mxu0 0.0
      %2067 = vmatmul.mubr.f32.gmra.mrb[0].mxu0 %v703
      %v2068 = vpop.f32.mrb[0].mxu0
      %v2069 = vadd.f32 0.0, %v2068
      %v2070 = vpop.f32.mrb[0].mxu0
      %2071 = vmatprep.mubr.f32.mxu0 0.0
      %2072 = vmatmul.mubr.f32.gmra.mrb[0].mxu0 %v706
      %v2073 = vpop.f32.mrb[0].mxu0
      %v2074 = vadd.f32 0.0, %v2073
      %v2075 = vpop.f32.mrb[0].mxu0
      %2076 = vmatprep.mubr.f32.mxu0 0.0
      %2077 = vmatmul.mubr.f32.gmra.mrb[0].mxu0 %v709
      %v2078 = vpop.f32.mrb[0].mxu0
      %v2079 = vadd.f32 0.0, %v2078
      %v2080 = vpop.f32.mrb[0].mxu0
      %2081 = vmatprep.mubr.f32.mxu0 0.0
      %2082 = vmatmul.mubr.f32.gmra.mrb[0].mxu0 %v712
      %v2083 = vpop.f32.mrb[0].mxu0
      %v2084 = vadd.f32 0.0, %v2083
      %v2085 = vpop.f32.mrb[0].mxu0
      %2086 = vmatprep.mubr.f32.mxu0 0.0
      %2087 = vmatmul.mubr.f32.gmra.mrb[0].mxu0 %v715
      %v2088 = vpop.f32.mrb[0].mxu0
      %v2089 = vadd.f32 0.0, %v2088
      %v2090 = vpop.f32.mrb[0].mxu0
      %2091 = vmatprep.mubr.f32.mxu0 0.0
      %2092 = vmatmul.mubr.f32.gmra.mrb[0].mxu0 %v718
      %v2093 = vpop.f32.mrb[0].mxu0
      %v2094 = vadd.f32 0.0, %v2093
      %v2095 = vpop.f32.mrb[0].mxu0
      %2096 = vmatprep.mubr.f32.mxu0 0.0
      %2097 = vmatmul.mubr.f32.gmra.mrb[0].mxu0 %v721
      %v2098 = vpop.f32.mrb[0].mxu0
      %v2099 = vadd.f32 0.0, %v2098
      %v2100 = vpop.f32.mrb[0].mxu0
      %2101 = vmatprep.mubr.f32.mxu0 0.0
      %2102 = vmatmul.mubr.f32.gmra.mrb[0].mxu0 %v724
      %v2103 = vpop.f32.mrb[0].mxu0
      %v2104 = vadd.f32 0.0, %v2103
      %v2105 = vpop.f32.mrb[0].mxu0
      %2106 = vmatprep.mubr.f32.mxu0 0.0
      %2107 = vmatmul.mubr.f32.gmra.mrb[0].mxu0 %v727
      %v2108 = vpop.f32.mrb[0].mxu0
      %v2109 = vadd.f32 0.0, %v2108
      %v2110 = vpop.f32.mrb[0].mxu0
      %2111 = vmatprep.mubr.f32.mxu0 0.0
      %2112 = vmatmul.mubr.f32.gmra.mrb[0].mxu0 %v730
      %v2113 = vpop.f32.mrb[0].mxu0
      %v2114 = vadd.f32 0.0, %v2113
      %v2115 = vpop.f32.mrb[0].mxu0
      %2116 = vmatprep.mubr.f32.mxu0 0.0
      %2117 = vmatmul.mubr.f32.gmra.mrb[0].mxu0 %v733
      %v2118 = vpop.f32.mrb[0].mxu0
      %v2119 = vadd.f32 0.0, %v2118
      %v2120 = vpop.f32.mrb[0].mxu0
      %2121 = vmatprep.mubr.f32.mxu0 0.0
      %2122 = vmatmul.mubr.f32.gmra.mrb[0].mxu0 %v736
      %v2123 = vpop.f32.mrb[0].mxu0
      %v2124 = vadd.f32 0.0, %v2123
      %v2125 = vpop.f32.mrb[0].mxu0
      %2126 = vmatprep.mubr.f32.mxu0 0.0
      %2127 = vmatmul.mubr.f32.gmra.mrb[0].mxu0 %v1907
      %v2128 = vpop.f32.mrb[0].mxu0
      %v2129 = vadd.f32 0.0, %v2128
      %v2130 = vpop.f32.mrb[0].mxu0
      %2131 = vmatprep.mubr.f32.mxu0 0.0
      %2132 = vmatmul.mubr.f32.gmra.mrb[0].mxu0 %v1910
      %v2133 = vpop.f32.mrb[0].mxu0
      %v2134 = vadd.f32 0.0, %v2133
      %v2135 = vpop.f32.mrb[0].mxu0
      %2136 = vdwg.mxu0
      %v2137 = vadd.f32 %v1872, %v1979
      %v2138 = vadd.f32 %v1873, %v1984
      %v2139 = vadd.f32 %v1874, %v1989
      %v2140 = vadd.f32 %v1875, %v1994
      %v2141 = vadd.f32 %v1876, %v1999
      %v2142 = vadd.f32 %v1877, %v2004
      %v2143 = vadd.f32 %v1878, %v2009
      %v2144 = vadd.f32 %v1879, %v2014
      %v2145 = vadd.f32 %v1880, %v2019
      %v2146 = vadd.f32 %v1881, %v2024
      %v2147 = vadd.f32 %v1882, %v2029
      %v2148 = vadd.f32 %v1883, %v2034
      %v2149 = vadd.f32 %v1884, %v2039
      %v2150 = vadd.f32 %v1885, %v2044
      %v2151 = vadd.f32 %v1886, %v2049
      %v2152 = vadd.f32 %v1887, %v2054
      %v2153 = vadd.f32 %v1888, %v2059
      %v2154 = vadd.f32 %v1889, %v2064
      %v2155 = vadd.f32 %v1890, %v2069
      %v2156 = vadd.f32 %v1891, %v2074
      %v2157 = vadd.f32 %v1892, %v2079
      %v2158 = vadd.f32 %v1893, %v2084
      %v2159 = vadd.f32 %v1894, %v2089
      %v2160 = vadd.f32 %v1895, %v2094
      %v2161 = vadd.f32 %v1896, %v2099
      %v2162 = vadd.f32 %v1897, %v2104
      %v2163 = vadd.f32 %v1898, %v2109
      %v2164 = vadd.f32 %v1899, %v2114
      %v2165 = vadd.f32 %v1900, %v2119
      %v2166 = vadd.f32 %v1901, %v2124
      %v2167 = vadd.f32 %v1902, %v2129
      %v2168 = vadd.f32 %v1903, %v2134
      %s2169 = scalar_lea.vmem %s1, 40
      %v2170 = vld [vmem:[%s2169] sm:$0xff]
      %v2172 = vsel %vm348, %v635, 0
      %v2175 = vsel %vm348, %v636, 0
      %2177 = vmatprep.subr.mxu0 0.0
      %2178 = vmatpush1.msra.mxu0 %v2170
      %2179 = vmatprep.subr.mxu0 0.0
      %2180 = vmatpush1.msra.mxu0 0.0
      %2181 = vmatprep.subr.mxu0 0.0
      %2182 = vmatpush1.msra.mxu0 0.0
      %2183 = vmatprep.subr.mxu0 0.0
      %2184 = vmatpush1.msra.mxu0 0.0
      %2185 = vmatprep.subr.mxu0 0.0
      %2186 = vmatpush1.msra.mxu0 0.0
      %2187 = vmatprep.subr.mxu0 0.0
      %2188 = vmatpush1.msra.mxu0 0.0
      %2189 = vmatprep.subr.mxu0 0.0
      %2190 = vmatpush1.msra.mxu0 0.0
      %2191 = vmatprep.subr.mxu0 0.0
      %2192 = vmatpush1.msra.mxu0 0.0
      %2193 = vmatprep.subr.mxu0 0.0
      %2194 = vmatpush1.msra.mxu0 0.0
      %2195 = vmatprep.subr.mxu0 0.0
      %2196 = vmatpush1.msra.mxu0 0.0
      %2197 = vmatprep.subr.mxu0 0.0
      %2198 = vmatpush1.msra.mxu0 0.0
      %2199 = vmatprep.subr.mxu0 0.0
      %2200 = vmatpush1.msra.mxu0 0.0
      %2201 = vmatprep.subr.mxu0 0.0
      %2202 = vmatpush1.msra.mxu0 0.0
      %2203 = vmatprep.subr.mxu0 0.0
      %2204 = vmatpush1.msra.mxu0 0.0
      %2205 = vmatprep.subr.mxu0 0.0
      %2206 = vmatpush1.msra.mxu0 0.0
      %2207 = vmatprep.subr.mxu0 0.0
      %2208 = vmatpush1.msra.mxu0 0.0
      %2209 = vmatprep.subr.mxu0 0.0
      %2210 = vmatpush1.msra.mxu0 0.0
      %2211 = vmatprep.subr.mxu0 0.0
      %2212 = vmatpush1.msra.mxu0 0.0
      %2213 = vmatprep.subr.mxu0 0.0
      %2214 = vmatpush1.msra.mxu0 0.0
      %2215 = vmatprep.subr.mxu0 0.0
      %2216 = vmatpush1.msra.mxu0 0.0
      %2217 = vmatprep.subr.mxu0 0.0
      %2218 = vmatpush1.msra.mxu0 0.0
      %2219 = vmatprep.subr.mxu0 0.0
      %2220 = vmatpush1.msra.mxu0 0.0
      %2221 = vmatprep.subr.mxu0 0.0
      %2222 = vmatpush1.msra.mxu0 0.0
      %2223 = vmatprep.subr.mxu0 0.0
      %2224 = vmatpush1.msra.mxu0 0.0
      %2225 = vmatprep.subr.mxu0 0.0
      %2226 = vmatpush1.msra.mxu0 0.0
      %2227 = vmatprep.subr.mxu0 0.0
      %2228 = vmatpush1.msra.mxu0 0.0
      %2229 = vmatprep.subr.mxu0 0.0
      %2230 = vmatpush1.msra.mxu0 0.0
      %2231 = vmatprep.subr.mxu0 0.0
      %2232 = vmatpush1.msra.mxu0 0.0
      %2233 = vmatprep.subr.mxu0 0.0
      %2234 = vmatpush1.msra.mxu0 0.0
      %2235 = vmatprep.subr.mxu0 0.0
      %2236 = vmatpush1.msra.mxu0 0.0
      %2237 = vmatprep.subr.mxu0 0.0
      %2238 = vmatpush1.msra.mxu0 0.0
      %2239 = vmatprep.subr.mxu0 0.0
      %2240 = vmatpush1.msra.mxu0 0.0
      %2241 = vmatprep.mubr.f32.mxu0 0.0
      %2242 = vmatmul.mubr.f32.gmra.mrb[0].mxu0 %v1293
      %v2243 = vpop.f32.mrb[0].mxu0
      %v2244 = vadd.f32 0.0, %v2243
      %v2245 = vpop.f32.mrb[0].mxu0
      %2246 = vmatprep.mubr.f32.mxu0 0.0
      %2247 = vmatmul.mubr.f32.gmra.mrb[0].mxu0 %v1296
      %v2248 = vpop.f32.mrb[0].mxu0
      %v2249 = vadd.f32 0.0, %v2248
      %v2250 = vpop.f32.mrb[0].mxu0
      %2251 = vmatprep.mubr.f32.mxu0 0.0
      %2252 = vmatmul.mubr.f32.gmra.mrb[0].mxu0 %v1299
      %v2253 = vpop.f32.mrb[0].mxu0
      %v2254 = vadd.f32 0.0, %v2253
      %v2255 = vpop.f32.mrb[0].mxu0
      %2256 = vmatprep.mubr.f32.mxu0 0.0
      %2257 = vmatmul.mubr.f32.gmra.mrb[0].mxu0 %v1302
      %v2258 = vpop.f32.mrb[0].mxu0
      %v2259 = vadd.f32 0.0, %v2258
      %v2260 = vpop.f32.mrb[0].mxu0
      %2261 = vmatprep.mubr.f32.mxu0 0.0
      %2262 = vmatmul.mubr.f32.gmra.mrb[0].mxu0 %v1305
      %v2263 = vpop.f32.mrb[0].mxu0
      %v2264 = vadd.f32 0.0, %v2263
      %v2265 = vpop.f32.mrb[0].mxu0
      %2266 = vmatprep.mubr.f32.mxu0 0.0
      %2267 = vmatmul.mubr.f32.gmra.mrb[0].mxu0 %v1308
      %v2268 = vpop.f32.mrb[0].mxu0
      %v2269 = vadd.f32 0.0, %v2268
      %v2270 = vpop.f32.mrb[0].mxu0
      %2271 = vmatprep.mubr.f32.mxu0 0.0
      %2272 = vmatmul.mubr.f32.gmra.mrb[0].mxu0 %v1311
      %v2273 = vpop.f32.mrb[0].mxu0
      %v2274 = vadd.f32 0.0, %v2273
      %v2275 = vpop.f32.mrb[0].mxu0
      %2276 = vmatprep.mubr.f32.mxu0 0.0
      %2277 = vmatmul.mubr.f32.gmra.mrb[0].mxu0 %v1314
      %v2278 = vpop.f32.mrb[0].mxu0
      %v2279 = vadd.f32 0.0, %v2278
      %v2280 = vpop.f32.mrb[0].mxu0
      %2281 = vmatprep.mubr.f32.mxu0 0.0
      %2282 = vmatmul.mubr.f32.gmra.mrb[0].mxu0 %v1317
      %v2283 = vpop.f32.mrb[0].mxu0
      %v2284 = vadd.f32 0.0, %v2283
      %v2285 = vpop.f32.mrb[0].mxu0
      %2286 = vmatprep.mubr.f32.mxu0 0.0
      %2287 = vmatmul.mubr.f32.gmra.mrb[0].mxu0 %v1320
      %v2288 = vpop.f32.mrb[0].mxu0
      %v2289 = vadd.f32 0.0, %v2288
      %v2290 = vpop.f32.mrb[0].mxu0
      %2291 = vmatprep.mubr.f32.mxu0 0.0
      %2292 = vmatmul.mubr.f32.gmra.mrb[0].mxu0 %v1323
      %v2293 = vpop.f32.mrb[0].mxu0
      %v2294 = vadd.f32 0.0, %v2293
      %v2295 = vpop.f32.mrb[0].mxu0
      %2296 = vmatprep.mubr.f32.mxu0 0.0
      %2297 = vmatmul.mubr.f32.gmra.mrb[0].mxu0 %v1326
      %v2298 = vpop.f32.mrb[0].mxu0
      %v2299 = vadd.f32 0.0, %v2298
      %v2300 = vpop.f32.mrb[0].mxu0
      %2301 = vmatprep.mubr.f32.mxu0 0.0
      %2302 = vmatmul.mubr.f32.gmra.mrb[0].mxu0 %v1329
      %v2303 = vpop.f32.mrb[0].mxu0
      %v2304 = vadd.f32 0.0, %v2303
      %v2305 = vpop.f32.mrb[0].mxu0
      %2306 = vmatprep.mubr.f32.mxu0 0.0
      %2307 = vmatmul.mubr.f32.gmra.mrb[0].mxu0 %v1332
      %v2308 = vpop.f32.mrb[0].mxu0
      %v2309 = vadd.f32 0.0, %v2308
      %v2310 = vpop.f32.mrb[0].mxu0
      %2311 = vmatprep.mubr.f32.mxu0 0.0
      %2312 = vmatmul.mubr.f32.gmra.mrb[0].mxu0 %v1335
      %v2313 = vpop.f32.mrb[0].mxu0
      %v2314 = vadd.f32 0.0, %v2313
      %v2315 = vpop.f32.mrb[0].mxu0
      %2316 = vmatprep.mubr.f32.mxu0 0.0
      %2317 = vmatmul.mubr.f32.gmra.mrb[0].mxu0 %v1338
      %v2318 = vpop.f32.mrb[0].mxu0
      %v2319 = vadd.f32 0.0, %v2318
      %v2320 = vpop.f32.mrb[0].mxu0
      %2321 = vmatprep.mubr.f32.mxu0 0.0
      %2322 = vmatmul.mubr.f32.gmra.mrb[0].mxu0 %v1341
      %v2323 = vpop.f32.mrb[0].mxu0
      %v2324 = vadd.f32 0.0, %v2323
      %v2325 = vpop.f32.mrb[0].mxu0
      %2326 = vmatprep.mubr.f32.mxu0 0.0
      %2327 = vmatmul.mubr.f32.gmra.mrb[0].mxu0 %v1344
      %v2328 = vpop.f32.mrb[0].mxu0
      %v2329 = vadd.f32 0.0, %v2328
      %v2330 = vpop.f32.mrb[0].mxu0
      %2331 = vmatprep.mubr.f32.mxu0 0.0
      %2332 = vmatmul.mubr.f32.gmra.mrb[0].mxu0 %v1347
      %v2333 = vpop.f32.mrb[0].mxu0
      %v2334 = vadd.f32 0.0, %v2333
      %v2335 = vpop.f32.mrb[0].mxu0
      %2336 = vmatprep.mubr.f32.mxu0 0.0
      %2337 = vmatmul.mubr.f32.gmra.mrb[0].mxu0 %v1350
      %v2338 = vpop.f32.mrb[0].mxu0
      %v2339 = vadd.f32 0.0, %v2338
      %v2340 = vpop.f32.mrb[0].mxu0
      %2341 = vmatprep.mubr.f32.mxu0 0.0
      %2342 = vmatmul.mubr.f32.gmra.mrb[0].mxu0 %v1353
      %v2343 = vpop.f32.mrb[0].mxu0
      %v2344 = vadd.f32 0.0, %v2343
      %v2345 = vpop.f32.mrb[0].mxu0
      %2346 = vmatprep.mubr.f32.mxu0 0.0
      %2347 = vmatmul.mubr.f32.gmra.mrb[0].mxu0 %v1356
      %v2348 = vpop.f32.mrb[0].mxu0
      %v2349 = vadd.f32 0.0, %v2348
      %v2350 = vpop.f32.mrb[0].mxu0
      %2351 = vmatprep.mubr.f32.mxu0 0.0
      %2352 = vmatmul.mubr.f32.gmra.mrb[0].mxu0 %v1359
      %v2353 = vpop.f32.mrb[0].mxu0
      %v2354 = vadd.f32 0.0, %v2353
      %v2355 = vpop.f32.mrb[0].mxu0
      %2356 = vmatprep.mubr.f32.mxu0 0.0
      %2357 = vmatmul.mubr.f32.gmra.mrb[0].mxu0 %v1362
      %v2358 = vpop.f32.mrb[0].mxu0
      %v2359 = vadd.f32 0.0, %v2358
      %v2360 = vpop.f32.mrb[0].mxu0
      %2361 = vmatprep.mubr.f32.mxu0 0.0
      %2362 = vmatmul.mubr.f32.gmra.mrb[0].mxu0 %v1365
      %v2363 = vpop.f32.mrb[0].mxu0
      %v2364 = vadd.f32 0.0, %v2363
      %v2365 = vpop.f32.mrb[0].mxu0
      %2366 = vmatprep.mubr.f32.mxu0 0.0
      %2367 = vmatmul.mubr.f32.gmra.mrb[0].mxu0 %v1368
      %v2368 = vpop.f32.mrb[0].mxu0
      %v2369 = vadd.f32 0.0, %v2368
      %v2370 = vpop.f32.mrb[0].mxu0
      %2371 = vmatprep.mubr.f32.mxu0 0.0
      %2372 = vmatmul.mubr.f32.gmra.mrb[0].mxu0 %v1371
      %v2373 = vpop.f32.mrb[0].mxu0
      %v2374 = vadd.f32 0.0, %v2373
      %v2375 = vpop.f32.mrb[0].mxu0
      %2376 = vmatprep.mubr.f32.mxu0 0.0
      %2377 = vmatmul.mubr.f32.gmra.mrb[0].mxu0 %v1374
      %v2378 = vpop.f32.mrb[0].mxu0
      %v2379 = vadd.f32 0.0, %v2378
      %v2380 = vpop.f32.mrb[0].mxu0
      %2381 = vmatprep.mubr.f32.mxu0 0.0
      %2382 = vmatmul.mubr.f32.gmra.mrb[0].mxu0 %v1377
      %v2383 = vpop.f32.mrb[0].mxu0
      %v2384 = vadd.f32 0.0, %v2383
      %v2385 = vpop.f32.mrb[0].mxu0
      %2386 = vmatprep.mubr.f32.mxu0 0.0
      %2387 = vmatmul.mubr.f32.gmra.mrb[0].mxu0 %v1380
      %v2388 = vpop.f32.mrb[0].mxu0
      %v2389 = vadd.f32 0.0, %v2388
      %v2390 = vpop.f32.mrb[0].mxu0
      %2391 = vmatprep.mubr.f32.mxu0 0.0
      %2392 = vmatmul.mubr.f32.gmra.mrb[0].mxu0 %v2172
      %v2393 = vpop.f32.mrb[0].mxu0
      %v2394 = vadd.f32 0.0, %v2393
      %v2395 = vpop.f32.mrb[0].mxu0
      %2396 = vmatprep.mubr.f32.mxu0 0.0
      %2397 = vmatmul.mubr.f32.gmra.mrb[0].mxu0 %v2175
      %v2398 = vpop.f32.mrb[0].mxu0
      %v2399 = vadd.f32 0.0, %v2398
      %v2400 = vpop.f32.mrb[0].mxu0
      %2401 = vdwg.mxu0
      %v2402 = vadd.f32 %v2137, %v2244
      %v2403 = vadd.f32 %v2138, %v2249
      %v2404 = vadd.f32 %v2139, %v2254
      %v2405 = vadd.f32 %v2140, %v2259
      %v2406 = vadd.f32 %v2141, %v2264
      %v2407 = vadd.f32 %v2142, %v2269
      %v2408 = vadd.f32 %v2143, %v2274
      %v2409 = vadd.f32 %v2144, %v2279
      %v2410 = vadd.f32 %v2145, %v2284
      %v2411 = vadd.f32 %v2146, %v2289
      %v2412 = vadd.f32 %v2147, %v2294
      %v2413 = vadd.f32 %v2148, %v2299
      %v2414 = vadd.f32 %v2149, %v2304
      %v2415 = vadd.f32 %v2150, %v2309
      %v2416 = vadd.f32 %v2151, %v2314
      %v2417 = vadd.f32 %v2152, %v2319
      %v2418 = vadd.f32 %v2153, %v2324
      %v2419 = vadd.f32 %v2154, %v2329
      %v2420 = vadd.f32 %v2155, %v2334
      %v2421 = vadd.f32 %v2156, %v2339
      %v2422 = vadd.f32 %v2157, %v2344
      %v2423 = vadd.f32 %v2158, %v2349
      %v2424 = vadd.f32 %v2159, %v2354
      %v2425 = vadd.f32 %v2160, %v2359
      %v2426 = vadd.f32 %v2161, %v2364
      %v2427 = vadd.f32 %v2162, %v2369
      %v2428 = vadd.f32 %v2163, %v2374
      %v2429 = vadd.f32 %v2164, %v2379
      %v2430 = vadd.f32 %v2165, %v2384
      %v2431 = vadd.f32 %v2166, %v2389
      %v2432 = vadd.f32 %v2167, %v2394
      %v2433 = vadd.f32 %v2168, %v2399
      %s2434 = scalar_lea.vmem %s1, 48
      %v2435 = vld [vmem:[%s2434] sm:$0xff]
      %v2437 = vsel %vm348, %v601, 0
      %v2440 = vsel %vm348, %v602, 0
      %2442 = vmatprep.subr.mxu0 0.0
      %2443 = vmatpush1.msra.mxu0 %v2435
      %2444 = vmatprep.subr.mxu0 0.0
      %2445 = vmatpush1.msra.mxu0 0.0
      %2446 = vmatprep.subr.mxu0 0.0
      %2447 = vmatpush1.msra.mxu0 0.0
      %2448 = vmatprep.subr.mxu0 0.0
      %2449 = vmatpush1.msra.mxu0 0.0
      %2450 = vmatprep.subr.mxu0 0.0
      %2451 = vmatpush1.msra.mxu0 0.0
      %2452 = vmatprep.subr.mxu0 0.0
      %2453 = vmatpush1.msra.mxu0 0.0
      %2454 = vmatprep.subr.mxu0 0.0
      %2455 = vmatpush1.msra.mxu0 0.0
      %2456 = vmatprep.subr.mxu0 0.0
      %2457 = vmatpush1.msra.mxu0 0.0
      %2458 = vmatprep.subr.mxu0 0.0
      %2459 = vmatpush1.msra.mxu0 0.0
      %2460 = vmatprep.subr.mxu0 0.0
      %2461 = vmatpush1.msra.mxu0 0.0
      %2462 = vmatprep.subr.mxu0 0.0
      %2463 = vmatpush1.msra.mxu0 0.0
      %2464 = vmatprep.subr.mxu0 0.0
      %2465 = vmatpush1.msra.mxu0 0.0
      %2466 = vmatprep.subr.mxu0 0.0
      %2467 = vmatpush1.msra.mxu0 0.0
      %2468 = vmatprep.subr.mxu0 0.0
      %2469 = vmatpush1.msra.mxu0 0.0
      %2470 = vmatprep.subr.mxu0 0.0
      %2471 = vmatpush1.msra.mxu0 0.0
      %2472 = vmatprep.subr.mxu0 0.0
      %2473 = vmatpush1.msra.mxu0 0.0
      %2474 = vmatprep.subr.mxu0 0.0
      %2475 = vmatpush1.msra.mxu0 0.0
      %2476 = vmatprep.subr.mxu0 0.0
      %2477 = vmatpush1.msra.mxu0 0.0
      %2478 = vmatprep.subr.mxu0 0.0
      %2479 = vmatpush1.msra.mxu0 0.0
      %2480 = vmatprep.subr.mxu0 0.0
      %2481 = vmatpush1.msra.mxu0 0.0
      %2482 = vmatprep.subr.mxu0 0.0
      %2483 = vmatpush1.msra.mxu0 0.0
      %2484 = vmatprep.subr.mxu0 0.0
      %2485 = vmatpush1.msra.mxu0 0.0
      %2486 = vmatprep.subr.mxu0 0.0
      %2487 = vmatpush1.msra.mxu0 0.0
      %2488 = vmatprep.subr.mxu0 0.0
      %2489 = vmatpush1.msra.mxu0 0.0
      %2490 = vmatprep.subr.mxu0 0.0
      %2491 = vmatpush1.msra.mxu0 0.0
      %2492 = vmatprep.subr.mxu0 0.0
      %2493 = vmatpush1.msra.mxu0 0.0
      %2494 = vmatprep.subr.mxu0 0.0
      %2495 = vmatpush1.msra.mxu0 0.0
      %2496 = vmatprep.subr.mxu0 0.0
      %2497 = vmatpush1.msra.mxu0 0.0
      %2498 = vmatprep.subr.mxu0 0.0
      %2499 = vmatpush1.msra.mxu0 0.0
      %2500 = vmatprep.subr.mxu0 0.0
      %2501 = vmatpush1.msra.mxu0 0.0
      %2502 = vmatprep.subr.mxu0 0.0
      %2503 = vmatpush1.msra.mxu0 0.0
      %2504 = vmatprep.subr.mxu0 0.0
      %2505 = vmatpush1.msra.mxu0 0.0
      %2506 = vmatprep.mubr.f32.mxu0 0.0
      %2507 = vmatmul.mubr.f32.gmra.mrb[0].mxu0 %v976
      %v2508 = vpop.f32.mrb[0].mxu0
      %v2509 = vadd.f32 0.0, %v2508
      %v2510 = vpop.f32.mrb[0].mxu0
      %2511 = vmatprep.mubr.f32.mxu0 0.0
      %2512 = vmatmul.mubr.f32.gmra.mrb[0].mxu0 %v979
      %v2513 = vpop.f32.mrb[0].mxu0
      %v2514 = vadd.f32 0.0, %v2513
      %v2515 = vpop.f32.mrb[0].mxu0
      %2516 = vmatprep.mubr.f32.mxu0 0.0
      %2517 = vmatmul.mubr.f32.gmra.mrb[0].mxu0 %v982
      %v2518 = vpop.f32.mrb[0].mxu0
      %v2519 = vadd.f32 0.0, %v2518
      %v2520 = vpop.f32.mrb[0].mxu0
      %2521 = vmatprep.mubr.f32.mxu0 0.0
      %2522 = vmatmul.mubr.f32.gmra.mrb[0].mxu0 %v985
      %v2523 = vpop.f32.mrb[0].mxu0
      %v2524 = vadd.f32 0.0, %v2523
      %v2525 = vpop.f32.mrb[0].mxu0
      %2526 = vmatprep.mubr.f32.mxu0 0.0
      %2527 = vmatmul.mubr.f32.gmra.mrb[0].mxu0 %v988
      %v2528 = vpop.f32.mrb[0].mxu0
      %v2529 = vadd.f32 0.0, %v2528
      %v2530 = vpop.f32.mrb[0].mxu0
      %2531 = vmatprep.mubr.f32.mxu0 0.0
      %2532 = vmatmul.mubr.f32.gmra.mrb[0].mxu0 %v991
      %v2533 = vpop.f32.mrb[0].mxu0
      %v2534 = vadd.f32 0.0, %v2533
      %v2535 = vpop.f32.mrb[0].mxu0
      %2536 = vmatprep.mubr.f32.mxu0 0.0
      %2537 = vmatmul.mubr.f32.gmra.mrb[0].mxu0 %v994
      %v2538 = vpop.f32.mrb[0].mxu0
      %v2539 = vadd.f32 0.0, %v2538
      %v2540 = vpop.f32.mrb[0].mxu0
      %2541 = vmatprep.mubr.f32.mxu0 0.0
      %2542 = vmatmul.mubr.f32.gmra.mrb[0].mxu0 %v997
      %v2543 = vpop.f32.mrb[0].mxu0
      %v2544 = vadd.f32 0.0, %v2543
      %v2545 = vpop.f32.mrb[0].mxu0
      %2546 = vmatprep.mubr.f32.mxu0 0.0
      %2547 = vmatmul.mubr.f32.gmra.mrb[0].mxu0 %v1000
      %v2548 = vpop.f32.mrb[0].mxu0
      %v2549 = vadd.f32 0.0, %v2548
      %v2550 = vpop.f32.mrb[0].mxu0
      %2551 = vmatprep.mubr.f32.mxu0 0.0
      %2552 = vmatmul.mubr.f32.gmra.mrb[0].mxu0 %v1003
      %v2553 = vpop.f32.mrb[0].mxu0
      %v2554 = vadd.f32 0.0, %v2553
      %v2555 = vpop.f32.mrb[0].mxu0
      %2556 = vmatprep.mubr.f32.mxu0 0.0
      %2557 = vmatmul.mubr.f32.gmra.mrb[0].mxu0 %v1006
      %v2558 = vpop.f32.mrb[0].mxu0
      %v2559 = vadd.f32 0.0, %v2558
      %v2560 = vpop.f32.mrb[0].mxu0
      %2561 = vmatprep.mubr.f32.mxu0 0.0
      %2562 = vmatmul.mubr.f32.gmra.mrb[0].mxu0 %v1009
      %v2563 = vpop.f32.mrb[0].mxu0
      %v2564 = vadd.f32 0.0, %v2563
      %v2565 = vpop.f32.mrb[0].mxu0
      %2566 = vmatprep.mubr.f32.mxu0 0.0
      %2567 = vmatmul.mubr.f32.gmra.mrb[0].mxu0 %v1012
      %v2568 = vpop.f32.mrb[0].mxu0
      %v2569 = vadd.f32 0.0, %v2568
      %v2570 = vpop.f32.mrb[0].mxu0
      %2571 = vmatprep.mubr.f32.mxu0 0.0
      %2572 = vmatmul.mubr.f32.gmra.mrb[0].mxu0 %v1015
      %v2573 = vpop.f32.mrb[0].mxu0
      %v2574 = vadd.f32 0.0, %v2573
      %v2575 = vpop.f32.mrb[0].mxu0
      %2576 = vmatprep.mubr.f32.mxu0 0.0
      %2577 = vmatmul.mubr.f32.gmra.mrb[0].mxu0 %v1018
      %v2578 = vpop.f32.mrb[0].mxu0
      %v2579 = vadd.f32 0.0, %v2578
      %v2580 = vpop.f32.mrb[0].mxu0
      %2581 = vmatprep.mubr.f32.mxu0 0.0
      %2582 = vmatmul.mubr.f32.gmra.mrb[0].mxu0 %v1021
      %v2583 = vpop.f32.mrb[0].mxu0
      %v2584 = vadd.f32 0.0, %v2583
      %v2585 = vpop.f32.mrb[0].mxu0
      %2586 = vmatprep.mubr.f32.mxu0 0.0
      %2587 = vmatmul.mubr.f32.gmra.mrb[0].mxu0 %v1024
      %v2588 = vpop.f32.mrb[0].mxu0
      %v2589 = vadd.f32 0.0, %v2588
      %v2590 = vpop.f32.mrb[0].mxu0
      %2591 = vmatprep.mubr.f32.mxu0 0.0
      %2592 = vmatmul.mubr.f32.gmra.mrb[0].mxu0 %v1027
      %v2593 = vpop.f32.mrb[0].mxu0
      %v2594 = vadd.f32 0.0, %v2593
      %v2595 = vpop.f32.mrb[0].mxu0
      %2596 = vmatprep.mubr.f32.mxu0 0.0
      %2597 = vmatmul.mubr.f32.gmra.mrb[0].mxu0 %v1030
      %v2598 = vpop.f32.mrb[0].mxu0
      %v2599 = vadd.f32 0.0, %v2598
      %v2600 = vpop.f32.mrb[0].mxu0
      %2601 = vmatprep.mubr.f32.mxu0 0.0
      %2602 = vmatmul.mubr.f32.gmra.mrb[0].mxu0 %v1033
      %v2603 = vpop.f32.mrb[0].mxu0
      %v2604 = vadd.f32 0.0, %v2603
      %v2605 = vpop.f32.mrb[0].mxu0
      %2606 = vmatprep.mubr.f32.mxu0 0.0
      %2607 = vmatmul.mubr.f32.gmra.mrb[0].mxu0 %v1036
      %v2608 = vpop.f32.mrb[0].mxu0
      %v2609 = vadd.f32 0.0, %v2608
      %v2610 = vpop.f32.mrb[0].mxu0
      %2611 = vmatprep.mubr.f32.mxu0 0.0
      %2612 = vmatmul.mubr.f32.gmra.mrb[0].mxu0 %v1039
      %v2613 = vpop.f32.mrb[0].mxu0
      %v2614 = vadd.f32 0.0, %v2613
      %v2615 = vpop.f32.mrb[0].mxu0
      %2616 = vmatprep.mubr.f32.mxu0 0.0
      %2617 = vmatmul.mubr.f32.gmra.mrb[0].mxu0 %v1042
      %v2618 = vpop.f32.mrb[0].mxu0
      %v2619 = vadd.f32 0.0, %v2618
      %v2620 = vpop.f32.mrb[0].mxu0
      %2621 = vmatprep.mubr.f32.mxu0 0.0
      %2622 = vmatmul.mubr.f32.gmra.mrb[0].mxu0 %v1045
      %v2623 = vpop.f32.mrb[0].mxu0
      %v2624 = vadd.f32 0.0, %v2623
      %v2625 = vpop.f32.mrb[0].mxu0
      %2626 = vmatprep.mubr.f32.mxu0 0.0
      %2627 = vmatmul.mubr.f32.gmra.mrb[0].mxu0 %v1048
      %v2628 = vpop.f32.mrb[0].mxu0
      %v2629 = vadd.f32 0.0, %v2628
      %v2630 = vpop.f32.mrb[0].mxu0
      %2631 = vmatprep.mubr.f32.mxu0 0.0
      %2632 = vmatmul.mubr.f32.gmra.mrb[0].mxu0 %v1051
      %v2633 = vpop.f32.mrb[0].mxu0
      %v2634 = vadd.f32 0.0, %v2633
      %v2635 = vpop.f32.mrb[0].mxu0
      %2636 = vmatprep.mubr.f32.mxu0 0.0
      %2637 = vmatmul.mubr.f32.gmra.mrb[0].mxu0 %v1054
      %v2638 = vpop.f32.mrb[0].mxu0
      %v2639 = vadd.f32 0.0, %v2638
      %v2640 = vpop.f32.mrb[0].mxu0
      %2641 = vmatprep.mubr.f32.mxu0 0.0
      %2642 = vmatmul.mubr.f32.gmra.mrb[0].mxu0 %v1057
      %v2643 = vpop.f32.mrb[0].mxu0
      %v2644 = vadd.f32 0.0, %v2643
      %v2645 = vpop.f32.mrb[0].mxu0
      %2646 = vmatprep.mubr.f32.mxu0 0.0
      %2647 = vmatmul.mubr.f32.gmra.mrb[0].mxu0 %v1642
      %v2648 = vpop.f32.mrb[0].mxu0
      %v2649 = vadd.f32 0.0, %v2648
      %v2650 = vpop.f32.mrb[0].mxu0
      %2651 = vmatprep.mubr.f32.mxu0 0.0
      %2652 = vmatmul.mubr.f32.gmra.mrb[0].mxu0 %v1645
      %v2653 = vpop.f32.mrb[0].mxu0
      %v2654 = vadd.f32 0.0, %v2653
      %v2655 = vpop.f32.mrb[0].mxu0
      %2656 = vmatprep.mubr.f32.mxu0 0.0
      %2657 = vmatmul.mubr.f32.gmra.mrb[0].mxu0 %v2437
      %v2658 = vpop.f32.mrb[0].mxu0
      %v2659 = vadd.f32 0.0, %v2658
      %v2660 = vpop.f32.mrb[0].mxu0
      %2661 = vmatprep.mubr.f32.mxu0 0.0
      %2662 = vmatmul.mubr.f32.gmra.mrb[0].mxu0 %v2440
      %v2663 = vpop.f32.mrb[0].mxu0
      %v2664 = vadd.f32 0.0, %v2663
      %v2665 = vpop.f32.mrb[0].mxu0
      %2666 = vdwg.mxu0
      %v2667 = vadd.f32 %v2402, %v2509
      %v2668 = vadd.f32 %v2403, %v2514
      %v2669 = vadd.f32 %v2404, %v2519
      %v2670 = vadd.f32 %v2405, %v2524
      %v2671 = vadd.f32 %v2406, %v2529
      %v2672 = vadd.f32 %v2407, %v2534
      %v2673 = vadd.f32 %v2408, %v2539
      %v2674 = vadd.f32 %v2409, %v2544
      %v2675 = vadd.f32 %v2410, %v2549
      %v2676 = vadd.f32 %v2411, %v2554
      %v2677 = vadd.f32 %v2412, %v2559
      %v2678 = vadd.f32 %v2413, %v2564
      %v2679 = vadd.f32 %v2414, %v2569
      %v2680 = vadd.f32 %v2415, %v2574
      %v2681 = vadd.f32 %v2416, %v2579
      %v2682 = vadd.f32 %v2417, %v2584
      %v2683 = vadd.f32 %v2418, %v2589
      %v2684 = vadd.f32 %v2419, %v2594
      %v2685 = vadd.f32 %v2420, %v2599
      %v2686 = vadd.f32 %v2421, %v2604
      %v2687 = vadd.f32 %v2422, %v2609
      %v2688 = vadd.f32 %v2423, %v2614
      %v2689 = vadd.f32 %v2424, %v2619
      %v2690 = vadd.f32 %v2425, %v2624
      %v2691 = vadd.f32 %v2426, %v2629
      %v2692 = vadd.f32 %v2427, %v2634
      %v2693 = vadd.f32 %v2428, %v2639
      %v2694 = vadd.f32 %v2429, %v2644
      %v2695 = vadd.f32 %v2430, %v2649
      %v2696 = vadd.f32 %v2431, %v2654
      %v2697 = vadd.f32 %v2432, %v2659
      %v2698 = vadd.f32 %v2433, %v2664
      %s2699 = scalar_lea.vmem %s1, 56
      %v2700 = vld [vmem:[%s2699] sm:$0xff]
      %v2702 = vsel %vm348, %v419, 0
      %v2705 = vsel %vm348, %v420, 0
      %2707 = vmatprep.subr.mxu0 0.0
      %2708 = vmatpush1.msra.mxu0 %v2700
      %2709 = vmatprep.subr.mxu0 0.0
      %2710 = vmatpush1.msra.mxu0 0.0
      %2711 = vmatprep.subr.mxu0 0.0
      %2712 = vmatpush1.msra.mxu0 0.0
      %2713 = vmatprep.subr.mxu0 0.0
      %2714 = vmatpush1.msra.mxu0 0.0
      %2715 = vmatprep.subr.mxu0 0.0
      %2716 = vmatpush1.msra.mxu0 0.0
      %2717 = vmatprep.subr.mxu0 0.0
      %2718 = vmatpush1.msra.mxu0 0.0
      %2719 = vmatprep.subr.mxu0 0.0
      %2720 = vmatpush1.msra.mxu0 0.0
      %2721 = vmatprep.subr.mxu0 0.0
      %2722 = vmatpush1.msra.mxu0 0.0
      %2723 = vmatprep.subr.mxu0 0.0
      %2724 = vmatpush1.msra.mxu0 0.0
      %2725 = vmatprep.subr.mxu0 0.0
      %2726 = vmatpush1.msra.mxu0 0.0
      %2727 = vmatprep.subr.mxu0 0.0
      %2728 = vmatpush1.msra.mxu0 0.0
      %2729 = vmatprep.subr.mxu0 0.0
      %2730 = vmatpush1.msra.mxu0 0.0
      %2731 = vmatprep.subr.mxu0 0.0
      %2732 = vmatpush1.msra.mxu0 0.0
      %2733 = vmatprep.subr.mxu0 0.0
      %2734 = vmatpush1.msra.mxu0 0.0
      %2735 = vmatprep.subr.mxu0 0.0
      %2736 = vmatpush1.msra.mxu0 0.0
      %2737 = vmatprep.subr.mxu0 0.0
      %2738 = vmatpush1.msra.mxu0 0.0
      %2739 = vmatprep.subr.mxu0 0.0
      %2740 = vmatpush1.msra.mxu0 0.0
      %2741 = vmatprep.subr.mxu0 0.0
      %2742 = vmatpush1.msra.mxu0 0.0
      %2743 = vmatprep.subr.mxu0 0.0
      %2744 = vmatpush1.msra.mxu0 0.0
      %2745 = vmatprep.subr.mxu0 0.0
      %2746 = vmatpush1.msra.mxu0 0.0
      %2747 = vmatprep.subr.mxu0 0.0
      %2748 = vmatpush1.msra.mxu0 0.0
      %2749 = vmatprep.subr.mxu0 0.0
      %2750 = vmatpush1.msra.mxu0 0.0
      %2751 = vmatprep.subr.mxu0 0.0
      %2752 = vmatpush1.msra.mxu0 0.0
      %2753 = vmatprep.subr.mxu0 0.0
      %2754 = vmatpush1.msra.mxu0 0.0
      %2755 = vmatprep.subr.mxu0 0.0
      %2756 = vmatpush1.msra.mxu0 0.0
      %2757 = vmatprep.subr.mxu0 0.0
      %2758 = vmatpush1.msra.mxu0 0.0
      %2759 = vmatprep.subr.mxu0 0.0
      %2760 = vmatpush1.msra.mxu0 0.0
      %2761 = vmatprep.subr.mxu0 0.0
      %2762 = vmatpush1.msra.mxu0 0.0
      %2763 = vmatprep.subr.mxu0 0.0
      %2764 = vmatpush1.msra.mxu0 0.0
      %2765 = vmatprep.subr.mxu0 0.0
      %2766 = vmatpush1.msra.mxu0 0.0
      %2767 = vmatprep.subr.mxu0 0.0
      %2768 = vmatpush1.msra.mxu0 0.0
      %2769 = vmatprep.subr.mxu0 0.0
      %2770 = vmatpush1.msra.mxu0 0.0
      %2771 = vmatprep.mubr.f32.mxu0 0.0
      %2772 = vmatmul.mubr.f32.gmra.mrb[0].mxu0 %v655
      %v2773 = vpop.f32.mrb[0].mxu0
      %v2774 = vadd.f32 0.0, %v2773
      %v2775 = vpop.f32.mrb[0].mxu0
      %2776 = vmatprep.mubr.f32.mxu0 0.0
      %2777 = vmatmul.mubr.f32.gmra.mrb[0].mxu0 %v658
      %v2778 = vpop.f32.mrb[0].mxu0
      %v2779 = vadd.f32 0.0, %v2778
      %v2780 = vpop.f32.mrb[0].mxu0
      %2781 = vmatprep.mubr.f32.mxu0 0.0
      %2782 = vmatmul.mubr.f32.gmra.mrb[0].mxu0 %v661
      %v2783 = vpop.f32.mrb[0].mxu0
      %v2784 = vadd.f32 0.0, %v2783
      %v2785 = vpop.f32.mrb[0].mxu0
      %2786 = vmatprep.mubr.f32.mxu0 0.0
      %2787 = vmatmul.mubr.f32.gmra.mrb[0].mxu0 %v664
      %v2788 = vpop.f32.mrb[0].mxu0
      %v2789 = vadd.f32 0.0, %v2788
      %v2790 = vpop.f32.mrb[0].mxu0
      %2791 = vmatprep.mubr.f32.mxu0 0.0
      %2792 = vmatmul.mubr.f32.gmra.mrb[0].mxu0 %v667
      %v2793 = vpop.f32.mrb[0].mxu0
      %v2794 = vadd.f32 0.0, %v2793
      %v2795 = vpop.f32.mrb[0].mxu0
      %2796 = vmatprep.mubr.f32.mxu0 0.0
      %2797 = vmatmul.mubr.f32.gmra.mrb[0].mxu0 %v670
      %v2798 = vpop.f32.mrb[0].mxu0
      %v2799 = vadd.f32 0.0, %v2798
      %v2800 = vpop.f32.mrb[0].mxu0
      %2801 = vmatprep.mubr.f32.mxu0 0.0
      %2802 = vmatmul.mubr.f32.gmra.mrb[0].mxu0 %v673
      %v2803 = vpop.f32.mrb[0].mxu0
      %v2804 = vadd.f32 0.0, %v2803
      %v2805 = vpop.f32.mrb[0].mxu0
      %2806 = vmatprep.mubr.f32.mxu0 0.0
      %2807 = vmatmul.mubr.f32.gmra.mrb[0].mxu0 %v676
      %v2808 = vpop.f32.mrb[0].mxu0
      %v2809 = vadd.f32 0.0, %v2808
      %v2810 = vpop.f32.mrb[0].mxu0
      %2811 = vmatprep.mubr.f32.mxu0 0.0
      %2812 = vmatmul.mubr.f32.gmra.mrb[0].mxu0 %v679
      %v2813 = vpop.f32.mrb[0].mxu0
      %v2814 = vadd.f32 0.0, %v2813
      %v2815 = vpop.f32.mrb[0].mxu0
      %2816 = vmatprep.mubr.f32.mxu0 0.0
      %2817 = vmatmul.mubr.f32.gmra.mrb[0].mxu0 %v682
      %v2818 = vpop.f32.mrb[0].mxu0
      %v2819 = vadd.f32 0.0, %v2818
      %v2820 = vpop.f32.mrb[0].mxu0
      %2821 = vmatprep.mubr.f32.mxu0 0.0
      %2822 = vmatmul.mubr.f32.gmra.mrb[0].mxu0 %v685
      %v2823 = vpop.f32.mrb[0].mxu0
      %v2824 = vadd.f32 0.0, %v2823
      %v2825 = vpop.f32.mrb[0].mxu0
      %2826 = vmatprep.mubr.f32.mxu0 0.0
      %2827 = vmatmul.mubr.f32.gmra.mrb[0].mxu0 %v688
      %v2828 = vpop.f32.mrb[0].mxu0
      %v2829 = vadd.f32 0.0, %v2828
      %v2830 = vpop.f32.mrb[0].mxu0
      %2831 = vmatprep.mubr.f32.mxu0 0.0
      %2832 = vmatmul.mubr.f32.gmra.mrb[0].mxu0 %v691
      %v2833 = vpop.f32.mrb[0].mxu0
      %v2834 = vadd.f32 0.0, %v2833
      %v2835 = vpop.f32.mrb[0].mxu0
      %2836 = vmatprep.mubr.f32.mxu0 0.0
      %2837 = vmatmul.mubr.f32.gmra.mrb[0].mxu0 %v694
      %v2838 = vpop.f32.mrb[0].mxu0
      %v2839 = vadd.f32 0.0, %v2838
      %v2840 = vpop.f32.mrb[0].mxu0
      %2841 = vmatprep.mubr.f32.mxu0 0.0
      %2842 = vmatmul.mubr.f32.gmra.mrb[0].mxu0 %v697
      %v2843 = vpop.f32.mrb[0].mxu0
      %v2844 = vadd.f32 0.0, %v2843
      %v2845 = vpop.f32.mrb[0].mxu0
      %2846 = vmatprep.mubr.f32.mxu0 0.0
      %2847 = vmatmul.mubr.f32.gmra.mrb[0].mxu0 %v700
      %v2848 = vpop.f32.mrb[0].mxu0
      %v2849 = vadd.f32 0.0, %v2848
      %v2850 = vpop.f32.mrb[0].mxu0
      %2851 = vmatprep.mubr.f32.mxu0 0.0
      %2852 = vmatmul.mubr.f32.gmra.mrb[0].mxu0 %v703
      %v2853 = vpop.f32.mrb[0].mxu0
      %v2854 = vadd.f32 0.0, %v2853
      %v2855 = vpop.f32.mrb[0].mxu0
      %2856 = vmatprep.mubr.f32.mxu0 0.0
      %2857 = vmatmul.mubr.f32.gmra.mrb[0].mxu0 %v706
      %v2858 = vpop.f32.mrb[0].mxu0
      %v2859 = vadd.f32 0.0, %v2858
      %v2860 = vpop.f32.mrb[0].mxu0
      %2861 = vmatprep.mubr.f32.mxu0 0.0
      %2862 = vmatmul.mubr.f32.gmra.mrb[0].mxu0 %v709
      %v2863 = vpop.f32.mrb[0].mxu0
      %v2864 = vadd.f32 0.0, %v2863
      %v2865 = vpop.f32.mrb[0].mxu0
      %2866 = vmatprep.mubr.f32.mxu0 0.0
      %2867 = vmatmul.mubr.f32.gmra.mrb[0].mxu0 %v712
      %v2868 = vpop.f32.mrb[0].mxu0
      %v2869 = vadd.f32 0.0, %v2868
      %v2870 = vpop.f32.mrb[0].mxu0
      %2871 = vmatprep.mubr.f32.mxu0 0.0
      %2872 = vmatmul.mubr.f32.gmra.mrb[0].mxu0 %v715
      %v2873 = vpop.f32.mrb[0].mxu0
      %v2874 = vadd.f32 0.0, %v2873
      %v2875 = vpop.f32.mrb[0].mxu0
      %2876 = vmatprep.mubr.f32.mxu0 0.0
      %2877 = vmatmul.mubr.f32.gmra.mrb[0].mxu0 %v718
      %v2878 = vpop.f32.mrb[0].mxu0
      %v2879 = vadd.f32 0.0, %v2878
      %v2880 = vpop.f32.mrb[0].mxu0
      %2881 = vmatprep.mubr.f32.mxu0 0.0
      %2882 = vmatmul.mubr.f32.gmra.mrb[0].mxu0 %v721
      %v2883 = vpop.f32.mrb[0].mxu0
      %v2884 = vadd.f32 0.0, %v2883
      %v2885 = vpop.f32.mrb[0].mxu0
      %2886 = vmatprep.mubr.f32.mxu0 0.0
      %2887 = vmatmul.mubr.f32.gmra.mrb[0].mxu0 %v724
      %v2888 = vpop.f32.mrb[0].mxu0
      %v2889 = vadd.f32 0.0, %v2888
      %v2890 = vpop.f32.mrb[0].mxu0
      %2891 = vmatprep.mubr.f32.mxu0 0.0
      %2892 = vmatmul.mubr.f32.gmra.mrb[0].mxu0 %v727
      %v2893 = vpop.f32.mrb[0].mxu0
      %v2894 = vadd.f32 0.0, %v2893
      %v2895 = vpop.f32.mrb[0].mxu0
      %2896 = vmatprep.mubr.f32.mxu0 0.0
      %2897 = vmatmul.mubr.f32.gmra.mrb[0].mxu0 %v730
      %v2898 = vpop.f32.mrb[0].mxu0
      %v2899 = vadd.f32 0.0, %v2898
      %v2900 = vpop.f32.mrb[0].mxu0
      %2901 = vmatprep.mubr.f32.mxu0 0.0
      %2902 = vmatmul.mubr.f32.gmra.mrb[0].mxu0 %v733
      %v2903 = vpop.f32.mrb[0].mxu0
      %v2904 = vadd.f32 0.0, %v2903
      %v2905 = vpop.f32.mrb[0].mxu0
      %2906 = vmatprep.mubr.f32.mxu0 0.0
      %2907 = vmatmul.mubr.f32.gmra.mrb[0].mxu0 %v736
      %v2908 = vpop.f32.mrb[0].mxu0
      %v2909 = vadd.f32 0.0, %v2908
      %v2910 = vpop.f32.mrb[0].mxu0
      %2911 = vmatprep.mubr.f32.mxu0 0.0
      %2912 = vmatmul.mubr.f32.gmra.mrb[0].mxu0 %v1907
      %v2913 = vpop.f32.mrb[0].mxu0
      %v2914 = vadd.f32 0.0, %v2913
      %v2915 = vpop.f32.mrb[0].mxu0
      %2916 = vmatprep.mubr.f32.mxu0 0.0
      %2917 = vmatmul.mubr.f32.gmra.mrb[0].mxu0 %v1910
      %v2918 = vpop.f32.mrb[0].mxu0
      %v2919 = vadd.f32 0.0, %v2918
      %v2920 = vpop.f32.mrb[0].mxu0
      %2921 = vmatprep.mubr.f32.mxu0 0.0
      %2922 = vmatmul.mubr.f32.gmra.mrb[0].mxu0 %v2702
      %v2923 = vpop.f32.mrb[0].mxu0
      %v2924 = vadd.f32 0.0, %v2923
      %v2925 = vpop.f32.mrb[0].mxu0
      %2926 = vmatprep.mubr.f32.mxu0 0.0
      %2927 = vmatmul.mubr.f32.gmra.mrb[0].mxu0 %v2705
      %v2928 = vpop.f32.mrb[0].mxu0
      %v2929 = vadd.f32 0.0, %v2928
      %v2930 = vpop.f32.mrb[0].mxu0
      %2931 = vdwg.mxu0
      %v2932 = vadd.f32 %v2667, %v2774
      %v2933 = vadd.f32 %v2668, %v2779
      %v2934 = vadd.f32 %v2669, %v2784
      %v2935 = vadd.f32 %v2670, %v2789
      %v2936 = vadd.f32 %v2671, %v2794
      %v2937 = vadd.f32 %v2672, %v2799
      %v2938 = vadd.f32 %v2673, %v2804
      %v2939 = vadd.f32 %v2674, %v2809
      %v2940 = vadd.f32 %v2675, %v2814
      %v2941 = vadd.f32 %v2676, %v2819
      %v2942 = vadd.f32 %v2677, %v2824
      %v2943 = vadd.f32 %v2678, %v2829
      %v2944 = vadd.f32 %v2679, %v2834
      %v2945 = vadd.f32 %v2680, %v2839
      %v2946 = vadd.f32 %v2681, %v2844
      %v2947 = vadd.f32 %v2682, %v2849
      %v2948 = vadd.f32 %v2683, %v2854
      %v2949 = vadd.f32 %v2684, %v2859
      %v2950 = vadd.f32 %v2685, %v2864
      %v2951 = vadd.f32 %v2686, %v2869
      %v2952 = vadd.f32 %v2687, %v2874
      %v2953 = vadd.f32 %v2688, %v2879
      %v2954 = vadd.f32 %v2689, %v2884
      %v2955 = vadd.f32 %v2690, %v2889
      %v2956 = vadd.f32 %v2691, %v2894
      %v2957 = vadd.f32 %v2692, %v2899
      %v2958 = vadd.f32 %v2693, %v2904
      %v2959 = vadd.f32 %v2694, %v2909
      %v2960 = vadd.f32 %v2695, %v2914
      %v2961 = vadd.f32 %v2696, %v2919
      %v2962 = vadd.f32 %v2697, %v2924
      %v2963 = vadd.f32 %v2698, %v2929
      %s2964 = scalar_lea.vmem %s1, 64
      %v2965 = vld [vmem:[%s2964] sm:$0xff]
      %v2967 = vsel %vm348, %v637, 0
      %v2970 = vsel %vm348, %v638, 0
      %2972 = vmatprep.subr.mxu0 0.0
      %2973 = vmatpush1.msra.mxu0 %v2965
      %2974 = vmatprep.subr.mxu0 0.0
      %2975 = vmatpush1.msra.mxu0 0.0
      %2976 = vmatprep.subr.mxu0 0.0
      %2977 = vmatpush1.msra.mxu0 0.0
      %2978 = vmatprep.subr.mxu0 0.0
      %2979 = vmatpush1.msra.mxu0 0.0
      %2980 = vmatprep.subr.mxu0 0.0
      %2981 = vmatpush1.msra.mxu0 0.0
      %2982 = vmatprep.subr.mxu0 0.0
      %2983 = vmatpush1.msra.mxu0 0.0
      %2984 = vmatprep.subr.mxu0 0.0
      %2985 = vmatpush1.msra.mxu0 0.0
      %2986 = vmatprep.subr.mxu0 0.0
      %2987 = vmatpush1.msra.mxu0 0.0
      %2988 = vmatprep.subr.mxu0 0.0
      %2989 = vmatpush1.msra.mxu0 0.0
      %2990 = vmatprep.subr.mxu0 0.0
      %2991 = vmatpush1.msra.mxu0 0.0
      %2992 = vmatprep.subr.mxu0 0.0
      %2993 = vmatpush1.msra.mxu0 0.0
      %2994 = vmatprep.subr.mxu0 0.0
      %2995 = vmatpush1.msra.mxu0 0.0
      %2996 = vmatprep.subr.mxu0 0.0
      %2997 = vmatpush1.msra.mxu0 0.0
      %2998 = vmatprep.subr.mxu0 0.0
      %2999 = vmatpush1.msra.mxu0 0.0
      %3000 = vmatprep.subr.mxu0 0.0
      %3001 = vmatpush1.msra.mxu0 0.0
      %3002 = vmatprep.subr.mxu0 0.0
      %3003 = vmatpush1.msra.mxu0 0.0
      %3004 = vmatprep.subr.mxu0 0.0
      %3005 = vmatpush1.msra.mxu0 0.0
      %3006 = vmatprep.subr.mxu0 0.0
      %3007 = vmatpush1.msra.mxu0 0.0
      %3008 = vmatprep.subr.mxu0 0.0
      %3009 = vmatpush1.msra.mxu0 0.0
      %3010 = vmatprep.subr.mxu0 0.0
      %3011 = vmatpush1.msra.mxu0 0.0
      %3012 = vmatprep.subr.mxu0 0.0
      %3013 = vmatpush1.msra.mxu0 0.0
      %3014 = vmatprep.subr.mxu0 0.0
      %3015 = vmatpush1.msra.mxu0 0.0
      %3016 = vmatprep.subr.mxu0 0.0
      %3017 = vmatpush1.msra.mxu0 0.0
      %3018 = vmatprep.subr.mxu0 0.0
      %3019 = vmatpush1.msra.mxu0 0.0
      %3020 = vmatprep.subr.mxu0 0.0
      %3021 = vmatpush1.msra.mxu0 0.0
      %3022 = vmatprep.subr.mxu0 0.0
      %3023 = vmatpush1.msra.mxu0 0.0
      %3024 = vmatprep.subr.mxu0 0.0
      %3025 = vmatpush1.msra.mxu0 0.0
      %3026 = vmatprep.subr.mxu0 0.0
      %3027 = vmatpush1.msra.mxu0 0.0
      %3028 = vmatprep.subr.mxu0 0.0
      %3029 = vmatpush1.msra.mxu0 0.0
      %3030 = vmatprep.subr.mxu0 0.0
      %3031 = vmatpush1.msra.mxu0 0.0
      %3032 = vmatprep.subr.mxu0 0.0
      %3033 = vmatpush1.msra.mxu0 0.0
      %3034 = vmatprep.subr.mxu0 0.0
      %3035 = vmatpush1.msra.mxu0 0.0
      %3036 = vmatprep.mubr.f32.mxu0 0.0
      %3037 = vmatmul.mubr.f32.gmra.mrb[0].mxu0 %v1299
      %v3038 = vpop.f32.mrb[0].mxu0
      %v3039 = vadd.f32 0.0, %v3038
      %v3040 = vpop.f32.mrb[0].mxu0
      %3041 = vmatprep.mubr.f32.mxu0 0.0
      %3042 = vmatmul.mubr.f32.gmra.mrb[0].mxu0 %v1302
      %v3043 = vpop.f32.mrb[0].mxu0
      %v3044 = vadd.f32 0.0, %v3043
      %v3045 = vpop.f32.mrb[0].mxu0
      %3046 = vmatprep.mubr.f32.mxu0 0.0
      %3047 = vmatmul.mubr.f32.gmra.mrb[0].mxu0 %v1305
      %v3048 = vpop.f32.mrb[0].mxu0
      %v3049 = vadd.f32 0.0, %v3048
      %v3050 = vpop.f32.mrb[0].mxu0
      %3051 = vmatprep.mubr.f32.mxu0 0.0
      %3052 = vmatmul.mubr.f32.gmra.mrb[0].mxu0 %v1308
      %v3053 = vpop.f32.mrb[0].mxu0
      %v3054 = vadd.f32 0.0, %v3053
      %v3055 = vpop.f32.mrb[0].mxu0
      %3056 = vmatprep.mubr.f32.mxu0 0.0
      %3057 = vmatmul.mubr.f32.gmra.mrb[0].mxu0 %v1311
      %v3058 = vpop.f32.mrb[0].mxu0
      %v3059 = vadd.f32 0.0, %v3058
      %v3060 = vpop.f32.mrb[0].mxu0
      %3061 = vmatprep.mubr.f32.mxu0 0.0
      %3062 = vmatmul.mubr.f32.gmra.mrb[0].mxu0 %v1314
      %v3063 = vpop.f32.mrb[0].mxu0
      %v3064 = vadd.f32 0.0, %v3063
      %v3065 = vpop.f32.mrb[0].mxu0
      %3066 = vmatprep.mubr.f32.mxu0 0.0
      %3067 = vmatmul.mubr.f32.gmra.mrb[0].mxu0 %v1317
      %v3068 = vpop.f32.mrb[0].mxu0
      %v3069 = vadd.f32 0.0, %v3068
      %v3070 = vpop.f32.mrb[0].mxu0
      %3071 = vmatprep.mubr.f32.mxu0 0.0
      %3072 = vmatmul.mubr.f32.gmra.mrb[0].mxu0 %v1320
      %v3073 = vpop.f32.mrb[0].mxu0
      %v3074 = vadd.f32 0.0, %v3073
      %v3075 = vpop.f32.mrb[0].mxu0
      %3076 = vmatprep.mubr.f32.mxu0 0.0
      %3077 = vmatmul.mubr.f32.gmra.mrb[0].mxu0 %v1323
      %v3078 = vpop.f32.mrb[0].mxu0
      %v3079 = vadd.f32 0.0, %v3078
      %v3080 = vpop.f32.mrb[0].mxu0
      %3081 = vmatprep.mubr.f32.mxu0 0.0
      %3082 = vmatmul.mubr.f32.gmra.mrb[0].mxu0 %v1326
      %v3083 = vpop.f32.mrb[0].mxu0
      %v3084 = vadd.f32 0.0, %v3083
      %v3085 = vpop.f32.mrb[0].mxu0
      %3086 = vmatprep.mubr.f32.mxu0 0.0
      %3087 = vmatmul.mubr.f32.gmra.mrb[0].mxu0 %v1329
      %v3088 = vpop.f32.mrb[0].mxu0
      %v3089 = vadd.f32 0.0, %v3088
      %v3090 = vpop.f32.mrb[0].mxu0
      %3091 = vmatprep.mubr.f32.mxu0 0.0
      %3092 = vmatmul.mubr.f32.gmra.mrb[0].mxu0 %v1332
      %v3093 = vpop.f32.mrb[0].mxu0
      %v3094 = vadd.f32 0.0, %v3093
      %v3095 = vpop.f32.mrb[0].mxu0
      %3096 = vmatprep.mubr.f32.mxu0 0.0
      %3097 = vmatmul.mubr.f32.gmra.mrb[0].mxu0 %v1335
      %v3098 = vpop.f32.mrb[0].mxu0
      %v3099 = vadd.f32 0.0, %v3098
      %v3100 = vpop.f32.mrb[0].mxu0
      %3101 = vmatprep.mubr.f32.mxu0 0.0
      %3102 = vmatmul.mubr.f32.gmra.mrb[0].mxu0 %v1338
      %v3103 = vpop.f32.mrb[0].mxu0
      %v3104 = vadd.f32 0.0, %v3103
      %v3105 = vpop.f32.mrb[0].mxu0
      %3106 = vmatprep.mubr.f32.mxu0 0.0
      %3107 = vmatmul.mubr.f32.gmra.mrb[0].mxu0 %v1341
      %v3108 = vpop.f32.mrb[0].mxu0
      %v3109 = vadd.f32 0.0, %v3108
      %v3110 = vpop.f32.mrb[0].mxu0
      %3111 = vmatprep.mubr.f32.mxu0 0.0
      %3112 = vmatmul.mubr.f32.gmra.mrb[0].mxu0 %v1344
      %v3113 = vpop.f32.mrb[0].mxu0
      %v3114 = vadd.f32 0.0, %v3113
      %v3115 = vpop.f32.mrb[0].mxu0
      %3116 = vmatprep.mubr.f32.mxu0 0.0
      %3117 = vmatmul.mubr.f32.gmra.mrb[0].mxu0 %v1347
      %v3118 = vpop.f32.mrb[0].mxu0
      %v3119 = vadd.f32 0.0, %v3118
      %v3120 = vpop.f32.mrb[0].mxu0
      %3121 = vmatprep.mubr.f32.mxu0 0.0
      %3122 = vmatmul.mubr.f32.gmra.mrb[0].mxu0 %v1350
      %v3123 = vpop.f32.mrb[0].mxu0
      %v3124 = vadd.f32 0.0, %v3123
      %v3125 = vpop.f32.mrb[0].mxu0
      %3126 = vmatprep.mubr.f32.mxu0 0.0
      %3127 = vmatmul.mubr.f32.gmra.mrb[0].mxu0 %v1353
      %v3128 = vpop.f32.mrb[0].mxu0
      %v3129 = vadd.f32 0.0, %v3128
      %v3130 = vpop.f32.mrb[0].mxu0
      %3131 = vmatprep.mubr.f32.mxu0 0.0
      %3132 = vmatmul.mubr.f32.gmra.mrb[0].mxu0 %v1356
      %v3133 = vpop.f32.mrb[0].mxu0
      %v3134 = vadd.f32 0.0, %v3133
      %v3135 = vpop.f32.mrb[0].mxu0
      %3136 = vmatprep.mubr.f32.mxu0 0.0
      %3137 = vmatmul.mubr.f32.gmra.mrb[0].mxu0 %v1359
      %v3138 = vpop.f32.mrb[0].mxu0
      %v3139 = vadd.f32 0.0, %v3138
      %v3140 = vpop.f32.mrb[0].mxu0
      %3141 = vmatprep.mubr.f32.mxu0 0.0
      %3142 = vmatmul.mubr.f32.gmra.mrb[0].mxu0 %v1362
      %v3143 = vpop.f32.mrb[0].mxu0
      %v3144 = vadd.f32 0.0, %v3143
      %v3145 = vpop.f32.mrb[0].mxu0
      %3146 = vmatprep.mubr.f32.mxu0 0.0
      %3147 = vmatmul.mubr.f32.gmra.mrb[0].mxu0 %v1365
      %v3148 = vpop.f32.mrb[0].mxu0
      %v3149 = vadd.f32 0.0, %v3148
      %v3150 = vpop.f32.mrb[0].mxu0
      %3151 = vmatprep.mubr.f32.mxu0 0.0
      %3152 = vmatmul.mubr.f32.gmra.mrb[0].mxu0 %v1368
      %v3153 = vpop.f32.mrb[0].mxu0
      %v3154 = vadd.f32 0.0, %v3153
      %v3155 = vpop.f32.mrb[0].mxu0
      %3156 = vmatprep.mubr.f32.mxu0 0.0
      %3157 = vmatmul.mubr.f32.gmra.mrb[0].mxu0 %v1371
      %v3158 = vpop.f32.mrb[0].mxu0
      %v3159 = vadd.f32 0.0, %v3158
      %v3160 = vpop.f32.mrb[0].mxu0
      %3161 = vmatprep.mubr.f32.mxu0 0.0
      %3162 = vmatmul.mubr.f32.gmra.mrb[0].mxu0 %v1374
      %v3163 = vpop.f32.mrb[0].mxu0
      %v3164 = vadd.f32 0.0, %v3163
      %v3165 = vpop.f32.mrb[0].mxu0
      %3166 = vmatprep.mubr.f32.mxu0 0.0
      %3167 = vmatmul.mubr.f32.gmra.mrb[0].mxu0 %v1377
      %v3168 = vpop.f32.mrb[0].mxu0
      %v3169 = vadd.f32 0.0, %v3168
      %v3170 = vpop.f32.mrb[0].mxu0
      %3171 = vmatprep.mubr.f32.mxu0 0.0
      %3172 = vmatmul.mubr.f32.gmra.mrb[0].mxu0 %v1380
      %v3173 = vpop.f32.mrb[0].mxu0
      %v3174 = vadd.f32 0.0, %v3173
      %v3175 = vpop.f32.mrb[0].mxu0
      %3176 = vmatprep.mubr.f32.mxu0 0.0
      %3177 = vmatmul.mubr.f32.gmra.mrb[0].mxu0 %v2172
      %v3178 = vpop.f32.mrb[0].mxu0
      %v3179 = vadd.f32 0.0, %v3178
      %v3180 = vpop.f32.mrb[0].mxu0
      %3181 = vmatprep.mubr.f32.mxu0 0.0
      %3182 = vmatmul.mubr.f32.gmra.mrb[0].mxu0 %v2175
      %v3183 = vpop.f32.mrb[0].mxu0
      %v3184 = vadd.f32 0.0, %v3183
      %v3185 = vpop.f32.mrb[0].mxu0
      %3186 = vmatprep.mubr.f32.mxu0 0.0
      %3187 = vmatmul.mubr.f32.gmra.mrb[0].mxu0 %v2967
      %v3188 = vpop.f32.mrb[0].mxu0
      %v3189 = vadd.f32 0.0, %v3188
      %v3190 = vpop.f32.mrb[0].mxu0
      %3191 = vmatprep.mubr.f32.mxu0 0.0
      %3192 = vmatmul.mubr.f32.gmra.mrb[0].mxu0 %v2970
      %v3193 = vpop.f32.mrb[0].mxu0
      %v3194 = vadd.f32 0.0, %v3193
      %v3195 = vpop.f32.mrb[0].mxu0
      %3196 = vdwg.mxu0
      %v3197 = vadd.f32 %v2932, %v3039
      %v3198 = vadd.f32 %v2933, %v3044
      %v3199 = vadd.f32 %v2934, %v3049
      %v3200 = vadd.f32 %v2935, %v3054
      %v3201 = vadd.f32 %v2936, %v3059
      %v3202 = vadd.f32 %v2937, %v3064
      %v3203 = vadd.f32 %v2938, %v3069
      %v3204 = vadd.f32 %v2939, %v3074
      %v3205 = vadd.f32 %v2940, %v3079
      %v3206 = vadd.f32 %v2941, %v3084
      %v3207 = vadd.f32 %v2942, %v3089
      %v3208 = vadd.f32 %v2943, %v3094
      %v3209 = vadd.f32 %v2944, %v3099
      %v3210 = vadd.f32 %v2945, %v3104
      %v3211 = vadd.f32 %v2946, %v3109
      %v3212 = vadd.f32 %v2947, %v3114
      %v3213 = vadd.f32 %v2948, %v3119
      %v3214 = vadd.f32 %v2949, %v3124
      %v3215 = vadd.f32 %v2950, %v3129
      %v3216 = vadd.f32 %v2951, %v3134
      %v3217 = vadd.f32 %v2952, %v3139
      %v3218 = vadd.f32 %v2953, %v3144
      %v3219 = vadd.f32 %v2954, %v3149
      %v3220 = vadd.f32 %v2955, %v3154
      %v3221 = vadd.f32 %v2956, %v3159
      %v3222 = vadd.f32 %v2957, %v3164
      %v3223 = vadd.f32 %v2958, %v3169
      %v3224 = vadd.f32 %v2959, %v3174
      %v3225 = vadd.f32 %v2960, %v3179
      %v3226 = vadd.f32 %v2961, %v3184
      %v3227 = vadd.f32 %v2962, %v3189
      %v3228 = vadd.f32 %v2963, %v3194
      %v3229 = vsel %vm348, %v3197, 0.0
      %v3230 = vsel %vm348, %v3198, 0.0
      %v3231 = vadd.f32 %v3229, %v3230
      %v3232 = vsel %vm348, %v3199, 0.0
      %v3233 = vadd.f32 %v3231, %v3232
      %v3234 = vsel %vm348, %v3200, 0.0
      %v3235 = vadd.f32 %v3233, %v3234
      %v3236 = vsel %vm348, %v3201, 0.0
      %v3237 = vadd.f32 %v3235, %v3236
      %v3238 = vsel %vm348, %v3202, 0.0
      %v3239 = vadd.f32 %v3237, %v3238
      %v3240 = vsel %vm348, %v3203, 0.0
      %v3241 = vadd.f32 %v3239, %v3240
      %v3242 = vsel %vm348, %v3204, 0.0
      %v3243 = vadd.f32 %v3241, %v3242
      %v3244 = vsel %vm348, %v3205, 0.0
      %v3245 = vadd.f32 %v3243, %v3244
      %v3246 = vsel %vm348, %v3206, 0.0
      %v3247 = vadd.f32 %v3245, %v3246
      %v3248 = vsel %vm348, %v3207, 0.0
      %v3249 = vadd.f32 %v3247, %v3248
      %v3250 = vsel %vm348, %v3208, 0.0
      %v3251 = vadd.f32 %v3249, %v3250
      %v3252 = vsel %vm348, %v3209, 0.0
      %v3253 = vadd.f32 %v3251, %v3252
      %v3254 = vsel %vm348, %v3210, 0.0
      %v3255 = vadd.f32 %v3253, %v3254
      %v3256 = vsel %vm348, %v3211, 0.0
      %v3257 = vadd.f32 %v3255, %v3256
      %v3258 = vsel %vm348, %v3212, 0.0
      %v3259 = vadd.f32 %v3257, %v3258
      %v3260 = vsel %vm348, %v3213, 0.0
      %v3261 = vadd.f32 %v3259, %v3260
      %v3262 = vsel %vm348, %v3214, 0.0
      %v3263 = vadd.f32 %v3261, %v3262
      %v3264 = vsel %vm348, %v3215, 0.0
      %v3265 = vadd.f32 %v3263, %v3264
      %v3266 = vsel %vm348, %v3216, 0.0
      %v3267 = vadd.f32 %v3265, %v3266
      %v3268 = vsel %vm348, %v3217, 0.0
      %v3269 = vadd.f32 %v3267, %v3268
      %v3270 = vsel %vm348, %v3218, 0.0
      %v3271 = vadd.f32 %v3269, %v3270
      %v3272 = vsel %vm348, %v3219, 0.0
      %v3273 = vadd.f32 %v3271, %v3272
      %v3274 = vsel %vm348, %v3220, 0.0
      %v3275 = vadd.f32 %v3273, %v3274
      %v3276 = vsel %vm348, %v3221, 0.0
      %v3277 = vadd.f32 %v3275, %v3276
      %v3278 = vsel %vm348, %v3222, 0.0
      %v3279 = vadd.f32 %v3277, %v3278
      %v3280 = vsel %vm348, %v3223, 0.0
      %v3281 = vadd.f32 %v3279, %v3280
      %v3282 = vsel %vm348, %v3224, 0.0
      %v3283 = vadd.f32 %v3281, %v3282
      %v3284 = vsel %vm348, %v3225, 0.0
      %v3285 = vadd.f32 %v3283, %v3284
      %v3286 = vsel %vm348, %v3226, 0.0
      %v3287 = vadd.f32 %v3285, %v3286
      %v3288 = vsel %vm348, %v3227, 0.0
      %v3289 = vadd.f32 %v3287, %v3288
      %v3290 = vsel %vm348, %v3228, 0.0
      %v3291 = vadd.f32 %v3289, %v3290
      %v3292 = vrot.slane %v3291, 4
      %v3293 = vadd.f32 %v3291, %v3292
      %v3294 = vrot.slane %v3293, 2
      %v3295 = vadd.f32 %v3293, %v3294
      %v3296 = vrot.slane %v3295, 1
      %v3297 = vadd.f32 %v3295, %v3296
      %v3298 = vmul.f32 %v3297, 0.00390625
      %v3299 = vmul.f32 %v3197, %v3197
      %v3300 = vmul.f32 %v3198, %v3198
      %v3301 = vmul.f32 %v3199, %v3199
      %v3302 = vmul.f32 %v3200, %v3200
      %v3303 = vmul.f32 %v3201, %v3201
      %v3304 = vmul.f32 %v3202, %v3202
      %v3305 = vmul.f32 %v3203, %v3203
      %v3306 = vmul.f32 %v3204, %v3204
      %v3307 = vmul.f32 %v3205, %v3205
      %v3308 = vmul.f32 %v3206, %v3206
      %v3309 = vmul.f32 %v3207, %v3207
      %v3310 = vmul.f32 %v3208, %v3208
      %v3311 = vmul.f32 %v3209, %v3209
      %v3312 = vmul.f32 %v3210, %v3210
      %v3313 = vmul.f32 %v3211, %v3211
      %v3314 = vmul.f32 %v3212, %v3212
      %v3315 = vmul.f32 %v3213, %v3213
      %v3316 = vmul.f32 %v3214, %v3214
      %v3317 = vmul.f32 %v3215, %v3215
      %v3318 = vmul.f32 %v3216, %v3216
      %v3319 = vmul.f32 %v3217, %v3217
      %v3320 = vmul.f32 %v3218, %v3218
      %v3321 = vmul.f32 %v3219, %v3219
      %v3322 = vmul.f32 %v3220, %v3220
      %v3323 = vmul.f32 %v3221, %v3221
      %v3324 = vmul.f32 %v3222, %v3222
      %v3325 = vmul.f32 %v3223, %v3223
      %v3326 = vmul.f32 %v3224, %v3224
      %v3327 = vmul.f32 %v3225, %v3225
      %v3328 = vmul.f32 %v3226, %v3226
      %v3329 = vmul.f32 %v3227, %v3227
      %v3330 = vmul.f32 %v3228, %v3228
      %v3331 = vsel %vm348, %v3299, 0.0
      %v3332 = vsel %vm348, %v3300, 0.0
      %v3333 = vadd.f32 %v3331, %v3332
      %v3334 = vsel %vm348, %v3301, 0.0
      %v3335 = vadd.f32 %v3333, %v3334
      %v3336 = vsel %vm348, %v3302, 0.0
      %v3337 = vadd.f32 %v3335, %v3336
      %v3338 = vsel %vm348, %v3303, 0.0
      %v3339 = vadd.f32 %v3337, %v3338
      %v3340 = vsel %vm348, %v3304, 0.0
      %v3341 = vadd.f32 %v3339, %v3340
      %v3342 = vsel %vm348, %v3305, 0.0
      %v3343 = vadd.f32 %v3341, %v3342
      %v3344 = vsel %vm348, %v3306, 0.0
      %v3345 = vadd.f32 %v3343, %v3344
      %v3346 = vsel %vm348, %v3307, 0.0
      %v3347 = vadd.f32 %v3345, %v3346
      %v3348 = vsel %vm348, %v3308, 0.0
      %v3349 = vadd.f32 %v3347, %v3348
      %v3350 = vsel %vm348, %v3309, 0.0
      %v3351 = vadd.f32 %v3349, %v3350
      %v3352 = vsel %vm348, %v3310, 0.0
      %v3353 = vadd.f32 %v3351, %v3352
      %v3354 = vsel %vm348, %v3311, 0.0
      %v3355 = vadd.f32 %v3353, %v3354
      %v3356 = vsel %vm348, %v3312, 0.0
      %v3357 = vadd.f32 %v3355, %v3356
      %v3358 = vsel %vm348, %v3313, 0.0
      %v3359 = vadd.f32 %v3357, %v3358
      %v3360 = vsel %vm348, %v3314, 0.0
      %v3361 = vadd.f32 %v3359, %v3360
      %v3362 = vsel %vm348, %v3315, 0.0
      %v3363 = vadd.f32 %v3361, %v3362
      %v3364 = vsel %vm348, %v3316, 0.0
      %v3365 = vadd.f32 %v3363, %v3364
      %v3366 = vsel %vm348, %v3317, 0.0
      %v3367 = vadd.f32 %v3365, %v3366
      %v3368 = vsel %vm348, %v3318, 0.0
      %v3369 = vadd.f32 %v3367, %v3368
      %v3370 = vsel %vm348, %v3319, 0.0
      %v3371 = vadd.f32 %v3369, %v3370
      %v3372 = vsel %vm348, %v3320, 0.0
      %v3373 = vadd.f32 %v3371, %v3372
      %v3374 = vsel %vm348, %v3321, 0.0
      %v3375 = vadd.f32 %v3373, %v3374
      %v3376 = vsel %vm348, %v3322, 0.0
      %v3377 = vadd.f32 %v3375, %v3376
      %v3378 = vsel %vm348, %v3323, 0.0
      %v3379 = vadd.f32 %v3377, %v3378
      %v3380 = vsel %vm348, %v3324, 0.0
      %v3381 = vadd.f32 %v3379, %v3380
      %v3382 = vsel %vm348, %v3325, 0.0
      %v3383 = vadd.f32 %v3381, %v3382
      %v3384 = vsel %vm348, %v3326, 0.0
      %v3385 = vadd.f32 %v3383, %v3384
      %v3386 = vsel %vm348, %v3327, 0.0
      %v3387 = vadd.f32 %v3385, %v3386
      %v3388 = vsel %vm348, %v3328, 0.0
      %v3389 = vadd.f32 %v3387, %v3388
      %v3390 = vsel %vm348, %v3329, 0.0
      %v3391 = vadd.f32 %v3389, %v3390
      %v3392 = vsel %vm348, %v3330, 0.0
      %v3393 = vadd.f32 %v3391, %v3392
      %v3394 = vrot.slane %v3393, 4
      %v3395 = vadd.f32 %v3393, %v3394
      %v3396 = vrot.slane %v3395, 2
      %v3397 = vadd.f32 %v3395, %v3396
      %v3398 = vrot.slane %v3397, 1
      %v3399 = vadd.f32 %v3397, %v3398
      %v3400 = vmul.f32 %v3399, 0.00390625
      %v3401 = vmul.f32 %v3298, %v3298
      %v3402 = vsub.f32 %v3400, %v3401
      %v3403 = vmax.f32 %v3402, 0.0
      %v3404 = vsub.f32 %v3197, %v3298
      %v3405 = vsub.f32 %v3198, %v3298
      %v3406 = vsub.f32 %v3199, %v3298
      %v3407 = vsub.f32 %v3200, %v3298
      %v3408 = vsub.f32 %v3201, %v3298
      %v3409 = vsub.f32 %v3202, %v3298
      %v3410 = vsub.f32 %v3203, %v3298
      %v3411 = vsub.f32 %v3204, %v3298
      %v3412 = vsub.f32 %v3205, %v3298
      %v3413 = vsub.f32 %v3206, %v3298
      %v3414 = vsub.f32 %v3207, %v3298
      %v3415 = vsub.f32 %v3208, %v3298
      %v3416 = vsub.f32 %v3209, %v3298
      %v3417 = vsub.f32 %v3210, %v3298
      %v3418 = vsub.f32 %v3211, %v3298
      %v3419 = vsub.f32 %v3212, %v3298
      %v3420 = vsub.f32 %v3213, %v3298
      %v3421 = vsub.f32 %v3214, %v3298
      %v3422 = vsub.f32 %v3215, %v3298
      %v3423 = vsub.f32 %v3216, %v3298
      %v3424 = vsub.f32 %v3217, %v3298
      %v3425 = vsub.f32 %v3218, %v3298
      %v3426 = vsub.f32 %v3219, %v3298
      %v3427 = vsub.f32 %v3220, %v3298
      %v3428 = vsub.f32 %v3221, %v3298
      %v3429 = vsub.f32 %v3222, %v3298
      %v3430 = vsub.f32 %v3223, %v3298
      %v3431 = vsub.f32 %v3224, %v3298
      %v3432 = vsub.f32 %v3225, %v3298
      %v3433 = vsub.f32 %v3226, %v3298
      %v3434 = vsub.f32 %v3227, %v3298
      %v3435 = vsub.f32 %v3228, %v3298
      %v3436 = vadd.f32 %v3403, 1e-05
      %v3437 = vrsqrt.pop %v3436
      %v3438 = vmul.f32 %v3404, %v3437
      %v3439 = vmul.f32 %v3405, %v3437
      %v3440 = vmul.f32 %v3406, %v3437
      %v3441 = vmul.f32 %v3407, %v3437
      %v3442 = vmul.f32 %v3408, %v3437
      %v3443 = vmul.f32 %v3409, %v3437
      %v3444 = vmul.f32 %v3410, %v3437
      %v3445 = vmul.f32 %v3411, %v3437
      %v3446 = vmul.f32 %v3412, %v3437
      %v3447 = vmul.f32 %v3413, %v3437
      %v3448 = vmul.f32 %v3414, %v3437
      %v3449 = vmul.f32 %v3415, %v3437
      %v3450 = vmul.f32 %v3416, %v3437
      %v3451 = vmul.f32 %v3417, %v3437
      %v3452 = vmul.f32 %v3418, %v3437
      %v3453 = vmul.f32 %v3419, %v3437
      %v3454 = vmul.f32 %v3420, %v3437
      %v3455 = vmul.f32 %v3421, %v3437
      %v3456 = vmul.f32 %v3422, %v3437
      %v3457 = vmul.f32 %v3423, %v3437
      %v3458 = vmul.f32 %v3424, %v3437
      %v3459 = vmul.f32 %v3425, %v3437
      %v3460 = vmul.f32 %v3426, %v3437
      %v3461 = vmul.f32 %v3427, %v3437
      %v3462 = vmul.f32 %v3428, %v3437
      %v3463 = vmul.f32 %v3429, %v3437
      %v3464 = vmul.f32 %v3430, %v3437
      %v3465 = vmul.f32 %v3431, %v3437
      %v3466 = vmul.f32 %v3432, %v3437
      %v3467 = vmul.f32 %v3433, %v3437
      %v3468 = vmul.f32 %v3434, %v3437
      %v3469 = vmul.f32 %v3435, %v3437
      %v3470 = vmax.f32 %v3438, 0.0
      %v3471 = vmax.f32 %v3439, 0.0
      %v3472 = vmax.f32 %v3440, 0.0
      %v3473 = vmax.f32 %v3441, 0.0
      %v3474 = vmax.f32 %v3442, 0.0
      %v3475 = vmax.f32 %v3443, 0.0
      %v3476 = vmax.f32 %v3444, 0.0
      %v3477 = vmax.f32 %v3445, 0.0
      %v3478 = vmax.f32 %v3446, 0.0
      %v3479 = vmax.f32 %v3447, 0.0
      %v3480 = vmax.f32 %v3448, 0.0
      %v3481 = vmax.f32 %v3449, 0.0
      %v3482 = vmax.f32 %v3450, 0.0
      %v3483 = vmax.f32 %v3451, 0.0
      %v3484 = vmax.f32 %v3452, 0.0
      %v3485 = vmax.f32 %v3453, 0.0
      %v3486 = vmax.f32 %v3454, 0.0
      %v3487 = vmax.f32 %v3455, 0.0
      %v3488 = vmax.f32 %v3456, 0.0
      %v3489 = vmax.f32 %v3457, 0.0
      %v3490 = vmax.f32 %v3458, 0.0
      %v3491 = vmax.f32 %v3459, 0.0
      %v3492 = vmax.f32 %v3460, 0.0
      %v3493 = vmax.f32 %v3461, 0.0
      %v3494 = vmax.f32 %v3462, 0.0
      %v3495 = vmax.f32 %v3463, 0.0
      %v3496 = vmax.f32 %v3464, 0.0
      %v3497 = vmax.f32 %v3465, 0.0
      %v3498 = vmax.f32 %v3466, 0.0
      %v3499 = vmax.f32 %v3467, 0.0
      %v3500 = vmax.f32 %v3468, 0.0
      %v3501 = vmax.f32 %v3469, 0.0
      %3502 = vst.msk [vmem:[#allocation2 + $0x10] sm:$0xff] %vm348, %v3470
      %3503 = vst.msk [vmem:[#allocation2 + $0x18] sm:$0xff] %vm348, %v3471
      %3504 = vst.msk [vmem:[#allocation2 + $0x20] sm:$0xff] %vm348, %v3472
      %3505 = vst.msk [vmem:[#allocation2 + $0x28] sm:$0xff] %vm348, %v3473
      %3506 = vst.msk [vmem:[#allocation2 + $0x30] sm:$0xff] %vm348, %v3474
      %3507 = vst.msk [vmem:[#allocation2 + $0x38] sm:$0xff] %vm348, %v3475
      %3508 = vst.msk [vmem:[#allocation2 + $0x40] sm:$0xff] %vm348, %v3476
      %3509 = vst.msk [vmem:[#allocation2 + $0x48] sm:$0xff] %vm348, %v3477
      %3510 = vst.msk [vmem:[#allocation2 + $0x50] sm:$0xff] %vm348, %v3478
      %3511 = vst.msk [vmem:[#allocation2 + $0x58] sm:$0xff] %vm348, %v3479
      %3512 = vst.msk [vmem:[#allocation2 + $0x60] sm:$0xff] %vm348, %v3480
      %3513 = vst.msk [vmem:[#allocation2 + $0x68] sm:$0xff] %vm348, %v3481
      %3514 = vst.msk [vmem:[#allocation2 + $0x70] sm:$0xff] %vm348, %v3482
      %3515 = vst.msk [vmem:[#allocation2 + $0x78] sm:$0xff] %vm348, %v3483
      %3516 = vst.msk [vmem:[#allocation2 + $0x80] sm:$0xff] %vm348, %v3484
      %3517 = vst.msk [vmem:[#allocation2 + $0x88] sm:$0xff] %vm348, %v3485
      %3518 = vst.msk [vmem:[#allocation2 + $0x90] sm:$0xff] %vm348, %v3486
      %3519 = vst.msk [vmem:[#allocation2 + $0x98] sm:$0xff] %vm348, %v3487
      %3520 = vst.msk [vmem:[#allocation2 + $0xa0] sm:$0xff] %vm348, %v3488
      %3521 = vst.msk [vmem:[#allocation2 + $0xa8] sm:$0xff] %vm348, %v3489
      %3522 = vst.msk [vmem:[#allocation2 + $0xb0] sm:$0xff] %vm348, %v3490
      %3523 = vst.msk [vmem:[#allocation2 + $0xb8] sm:$0xff] %vm348, %v3491
      %3524 = vst.msk [vmem:[#allocation2 + $0xc0] sm:$0xff] %vm348, %v3492
      %3525 = vst.msk [vmem:[#allocation2 + $0xc8] sm:$0xff] %vm348, %v3493
      %3526 = vst.msk [vmem:[#allocation2 + $0xd0] sm:$0xff] %vm348, %v3494
      %3527 = vst.msk [vmem:[#allocation2 + $0xd8] sm:$0xff] %vm348, %v3495
      %3528 = vst.msk [vmem:[#allocation2 + $0xe0] sm:$0xff] %vm348, %v3496
      %3529 = vst.msk [vmem:[#allocation2 + $0xe8] sm:$0xff] %vm348, %v3497
      %3530 = vst.msk [vmem:[#allocation2 + $0xf0] sm:$0xff] %vm348, %v3498
      %3531 = vst.msk [vmem:[#allocation2 + $0xf8] sm:$0xff] %vm348, %v3499
      %3532 = vst.msk [vmem:[#allocation2 + $0x100] sm:$0xff] %vm348, %v3500
      %3533 = vst.msk [vmem:[#allocation2 + $0x108] sm:$0xff] %vm348, %v3501
      %3534 = vst.msk [vmem:[#allocation2] sm:$0xff] %vm348, %v3472
      %3535 = vst.msk [vmem:[#allocation2 + $0x8] sm:$0xff] %vm348, %v3473
      %3536 = vst.msk [vmem:[#allocation2 + $0x110] sm:$0xff] %vm348, %v3498
      %3537 = vst.msk [vmem:[#allocation2 + $0x118] sm:$0xff] %vm348, %v3499
      %v3538 = vld [vmem:[#allocation2] sm:$0xff]
      %v3539 = vld [vmem:[#allocation2 + $0x8] sm:$0xff]
      %v3540 = vld [vmem:[#allocation2 + $0x10] sm:$0xff]
      %v3541 = vld [vmem:[#allocation2 + $0x18] sm:$0xff]
      %v3542 = vld [vmem:[#allocation2 + $0x20] sm:$0xff]
      %v3543 = vld [vmem:[#allocation2 + $0x28] sm:$0xff]
      %v3544 = vld [vmem:[#allocation2 + $0x30] sm:$0xff]
      %v3545 = vld [vmem:[#allocation2 + $0x38] sm:$0xff]
      %v3546 = vld [vmem:[#allocation2 + $0x40] sm:$0xff]
      %v3547 = vld [vmem:[#allocation2 + $0x48] sm:$0xff]
      %v3548 = vld [vmem:[#allocation2 + $0x50] sm:$0xff]
      %v3549 = vld [vmem:[#allocation2 + $0x58] sm:$0xff]
      %v3550 = vld [vmem:[#allocation2 + $0x60] sm:$0xff]
      %v3551 = vld [vmem:[#allocation2 + $0x68] sm:$0xff]
      %v3552 = vld [vmem:[#allocation2 + $0x70] sm:$0xff]
      %v3553 = vld [vmem:[#allocation2 + $0x78] sm:$0xff]
      %v3554 = vld [vmem:[#allocation2 + $0x80] sm:$0xff]
      %v3555 = vld [vmem:[#allocation2 + $0x88] sm:$0xff]
      %v3556 = vld [vmem:[#allocation2 + $0x90] sm:$0xff]
      %v3557 = vld [vmem:[#allocation2 + $0x98] sm:$0xff]
      %v3558 = vld [vmem:[#allocation2 + $0xa0] sm:$0xff]
      %v3559 = vld [vmem:[#allocation2 + $0xa8] sm:$0xff]
      %v3560 = vld [vmem:[#allocation2 + $0xb0] sm:$0xff]
      %v3561 = vld [vmem:[#allocation2 + $0xb8] sm:$0xff]
      %v3562 = vld [vmem:[#allocation2 + $0xc0] sm:$0xff]
      %v3563 = vld [vmem:[#allocation2 + $0xc8] sm:$0xff]
      %v3564 = vld [vmem:[#allocation2 + $0xd0] sm:$0xff]
      %v3565 = vld [vmem:[#allocation2 + $0xd8] sm:$0xff]
      %v3566 = vld [vmem:[#allocation2 + $0xe0] sm:$0xff]
      %v3567 = vld [vmem:[#allocation2 + $0xe8] sm:$0xff]
      %v3568 = vld [vmem:[#allocation2 + $0xf0] sm:$0xff]
      %v3569 = vld [vmem:[#allocation2 + $0xf8] sm:$0xff]
      %v3570 = vld [vmem:[#allocation2 + $0x100] sm:$0xff]
      %v3571 = vld [vmem:[#allocation2 + $0x108] sm:$0xff]
      %v3572 = vld [vmem:[#allocation2 + $0x110] sm:$0xff]
      %v3573 = vld [vmem:[#allocation2 + $0x118] sm:$0xff]
      %v3574 = vrot.slane %v3538, 7
      %v3575 = vrot.slane %v3539, 7
      %v3576 = vrot.slane %v3540, 7
      %v3577 = vrot.slane %v3541, 7
      %v3578 = vrot.slane %v3542, 7
      %v3579 = vrot.slane %v3543, 7
      %v3580 = vrot.slane %v3544, 7
      %v3581 = vrot.slane %v3545, 7
      %v3582 = vrot.slane %v3546, 7
      %v3583 = vrot.slane %v3547, 7
      %v3584 = vrot.slane %v3548, 7
      %v3585 = vrot.slane %v3549, 7
      %v3586 = vrot.slane %v3550, 7
      %v3587 = vrot.slane %v3551, 7
      %v3588 = vrot.slane %v3552, 7
      %v3589 = vrot.slane %v3553, 7
      %v3590 = vrot.slane %v3554, 7
      %v3591 = vrot.slane %v3555, 7
      %v3592 = vrot.slane %v3556, 7
      %v3593 = vrot.slane %v3557, 7
      %v3594 = vrot.slane %v3558, 7
      %v3595 = vrot.slane %v3559, 7
      %v3596 = vrot.slane %v3560, 7
      %v3597 = vrot.slane %v3561, 7
      %v3598 = vrot.slane %v3562, 7
      %v3599 = vrot.slane %v3563, 7
      %v3600 = vrot.slane %v3564, 7
      %v3601 = vrot.slane %v3565, 7
      %v3602 = vrot.slane %v3566, 7
      %v3603 = vrot.slane %v3567, 7
      %v3604 = vrot.slane %v3568, 7
      %v3605 = vrot.slane %v3569, 7
      %v3606 = vrot.slane %v3570, 7
      %v3607 = vrot.slane %v3571, 7
      %v3608 = vrot.slane %v3572, 7
      %v3609 = vrot.slane %v3573, 7
      %v3610 = vsel %vm457, %v3608, %v3609
      %v3611 = vsel %vm457, %v3607, %v3608
      %v3612 = vsel %vm457, %v3606, %v3607
      %v3613 = vsel %vm457, %v3605, %v3606
      %v3614 = vsel %vm457, %v3604, %v3605
      %v3615 = vsel %vm457, %v3603, %v3604
      %v3616 = vsel %vm457, %v3602, %v3603
      %v3617 = vsel %vm457, %v3601, %v3602
      %v3618 = vsel %vm457, %v3600, %v3601
      %v3619 = vsel %vm457, %v3599, %v3600
      %v3620 = vsel %vm457, %v3598, %v3599
      %v3621 = vsel %vm457, %v3597, %v3598
      %v3622 = vsel %vm457, %v3596, %v3597
      %v3623 = vsel %vm457, %v3595, %v3596
      %v3624 = vsel %vm457, %v3594, %v3595
      %v3625 = vsel %vm457, %v3593, %v3594
      %v3626 = vsel %vm457, %v3592, %v3593
      %v3627 = vsel %vm457, %v3591, %v3592
      %v3628 = vsel %vm457, %v3590, %v3591
      %v3629 = vsel %vm457, %v3589, %v3590
      %v3630 = vsel %vm457, %v3588, %v3589
      %v3631 = vsel %vm457, %v3587, %v3588
      %v3632 = vsel %vm457, %v3586, %v3587
      %v3633 = vsel %vm457, %v3585, %v3586
      %v3634 = vsel %vm457, %v3584, %v3585
      %v3635 = vsel %vm457, %v3583, %v3584
      %v3636 = vsel %vm457, %v3582, %v3583
      %v3637 = vsel %vm457, %v3581, %v3582
      %v3638 = vsel %vm457, %v3580, %v3581
      %v3639 = vsel %vm457, %v3579, %v3580
      %v3640 = vsel %vm457, %v3578, %v3579
      %v3641 = vsel %vm457, %v3577, %v3578
      %v3642 = vsel %vm457, %v3576, %v3577
      %v3643 = vsel %vm457, %v3575, %v3576
      %v3644 = vsel %vm457, %v3574, %v3575
      %v3645 = vsel %vm457, %v3609, %v3574
      %v3646 = vrot.slane %v3538, 1
      %v3647 = vrot.slane %v3539, 1
      %v3648 = vrot.slane %v3540, 1
      %v3649 = vrot.slane %v3541, 1
      %v3650 = vrot.slane %v3542, 1
      %v3651 = vrot.slane %v3543, 1
      %v3652 = vrot.slane %v3544, 1
      %v3653 = vrot.slane %v3545, 1
      %v3654 = vrot.slane %v3546, 1
      %v3655 = vrot.slane %v3547, 1
      %v3656 = vrot.slane %v3548, 1
      %v3657 = vrot.slane %v3549, 1
      %v3658 = vrot.slane %v3550, 1
      %v3659 = vrot.slane %v3551, 1
      %v3660 = vrot.slane %v3552, 1
      %v3661 = vrot.slane %v3553, 1
      %v3662 = vrot.slane %v3554, 1
      %v3663 = vrot.slane %v3555, 1
      %v3664 = vrot.slane %v3556, 1
      %v3665 = vrot.slane %v3557, 1
      %v3666 = vrot.slane %v3558, 1
      %v3667 = vrot.slane %v3559, 1
      %v3668 = vrot.slane %v3560, 1
      %v3669 = vrot.slane %v3561, 1
      %v3670 = vrot.slane %v3562, 1
      %v3671 = vrot.slane %v3563, 1
      %v3672 = vrot.slane %v3564, 1
      %v3673 = vrot.slane %v3565, 1
      %v3674 = vrot.slane %v3566, 1
      %v3675 = vrot.slane %v3567, 1
      %v3676 = vrot.slane %v3568, 1
      %v3677 = vrot.slane %v3569, 1
      %v3678 = vrot.slane %v3570, 1
      %v3679 = vrot.slane %v3571, 1
      %v3680 = vrot.slane %v3572, 1
      %v3681 = vrot.slane %v3573, 1
      %v3682 = vsel %vm530, %v3680, %v3681
      %v3683 = vsel %vm530, %v3679, %v3680
      %v3684 = vsel %vm530, %v3678, %v3679
      %v3685 = vsel %vm530, %v3677, %v3678
      %v3686 = vsel %vm530, %v3676, %v3677
      %v3687 = vsel %vm530, %v3675, %v3676
      %v3688 = vsel %vm530, %v3674, %v3675
      %v3689 = vsel %vm530, %v3673, %v3674
      %v3690 = vsel %vm530, %v3672, %v3673
      %v3691 = vsel %vm530, %v3671, %v3672
      %v3692 = vsel %vm530, %v3670, %v3671
      %v3693 = vsel %vm530, %v3669, %v3670
      %v3694 = vsel %vm530, %v3668, %v3669
      %v3695 = vsel %vm530, %v3667, %v3668
      %v3696 = vsel %vm530, %v3666, %v3667
      %v3697 = vsel %vm530, %v3665, %v3666
      %v3698 = vsel %vm530, %v3664, %v3665
      %v3699 = vsel %vm530, %v3663, %v3664
      %v3700 = vsel %vm530, %v3662, %v3663
      %v3701 = vsel %vm530, %v3661, %v3662
      %v3702 = vsel %vm530, %v3660, %v3661
      %v3703 = vsel %vm530, %v3659, %v3660
      %v3704 = vsel %vm530, %v3658, %v3659
      %v3705 = vsel %vm530, %v3657, %v3658
      %v3706 = vsel %vm530, %v3656, %v3657
      %v3707 = vsel %vm530, %v3655, %v3656
      %v3708 = vsel %vm530, %v3654, %v3655
      %v3709 = vsel %vm530, %v3653, %v3654
      %v3710 = vsel %vm530, %v3652, %v3653
      %v3711 = vsel %vm530, %v3651, %v3652
      %v3712 = vsel %vm530, %v3650, %v3651
      %v3713 = vsel %vm530, %v3649, %v3650
      %v3714 = vsel %vm530, %v3648, %v3649
      %v3715 = vsel %vm530, %v3647, %v3648
      %v3716 = vsel %vm530, %v3646, %v3647
      %v3717 = vsel %vm530, %v3681, %v3646
      %v3718 = vsel %vm244, %v3716, %v3645
      %v3719 = vsel %vm245, %v3715, %v3644
      %v3720 = vsel %vm246, %v3714, %v3643
      %v3721 = vsel %vm247, %v3713, %v3642
      %v3722 = vsel %vm248, %v3712, %v3641
      %v3723 = vsel %vm249, %v3711, %v3640
      %v3724 = vsel %vm250, %v3710, %v3639
      %v3725 = vsel %vm251, %v3709, %v3638
      %v3726 = vsel %vm252, %v3708, %v3637
      %v3727 = vsel %vm253, %v3707, %v3636
      %v3728 = vsel %vm254, %v3706, %v3635
      %v3729 = vsel %vm255, %v3705, %v3634
      %v3730 = vsel %vm256, %v3704, %v3633
      %v3731 = vsel %vm257, %v3703, %v3632
      %v3732 = vsel %vm258, %v3702, %v3631
      %v3733 = vsel %vm259, %v3701, %v3630
      %v3734 = vsel %vm260, %v3700, %v3629
      %v3735 = vsel %vm261, %v3699, %v3628
      %v3736 = vsel %vm262, %v3698, %v3627
      %v3737 = vsel %vm263, %v3697, %v3626
      %v3738 = vsel %vm264, %v3696, %v3625
      %v3739 = vsel %vm265, %v3695, %v3624
      %v3740 = vsel %vm266, %v3694, %v3623
      %v3741 = vsel %vm267, %v3693, %v3622
      %v3742 = vsel %vm268, %v3692, %v3621
      %v3743 = vsel %vm269, %v3691, %v3620
      %v3744 = vsel %vm270, %v3690, %v3619
      %v3745 = vsel %vm271, %v3689, %v3618
      %v3746 = vsel %vm272, %v3688, %v3617
      %v3747 = vsel %vm273, %v3687, %v3616
      %v3748 = vsel %vm274, %v3686, %v3615
      %v3749 = vsel %vm275, %v3685, %v3614
      %v3750 = vsel %vm276, %v3684, %v3613
      %v3751 = vsel %vm277, %v3683, %v3612
      %v3752 = vsel %vm278, %v3682, %v3611
      %v3753 = vsel %vm279, %v3717, %v3610
      %v3754 = vsel %vm280, %v3645, %v3716
      %v3755 = vsel %vm281, %v3644, %v3715
      %v3756 = vsel %vm282, %v3643, %v3714
      %v3757 = vsel %vm283, %v3642, %v3713
      %v3758 = vsel %vm284, %v3641, %v3712
      %v3759 = vsel %vm285, %v3640, %v3711
      %v3760 = vsel %vm286, %v3639, %v3710
      %v3761 = vsel %vm287, %v3638, %v3709
      %v3762 = vsel %vm288, %v3637, %v3708
      %v3763 = vsel %vm289, %v3636, %v3707
      %v3764 = vsel %vm290, %v3635, %v3706
      %v3765 = vsel %vm291, %v3634, %v3705
      %v3766 = vsel %vm292, %v3633, %v3704
      %v3767 = vsel %vm293, %v3632, %v3703
      %v3768 = vsel %vm294, %v3631, %v3702
      %v3769 = vsel %vm295, %v3630, %v3701
      %v3770 = vsel %vm296, %v3629, %v3700
      %v3771 = vsel %vm297, %v3628, %v3699
      %v3772 = vsel %vm298, %v3627, %v3698
      %v3773 = vsel %vm299, %v3626, %v3697
      %v3774 = vsel %vm300, %v3625, %v3696
      %v3775 = vsel %vm301, %v3624, %v3695
      %v3776 = vsel %vm302, %v3623, %v3694
      %v3777 = vsel %vm303, %v3622, %v3693
      %v3778 = vsel %vm304, %v3621, %v3692
      %v3779 = vsel %vm305, %v3620, %v3691
      %v3780 = vsel %vm306, %v3619, %v3690
      %v3781 = vsel %vm307, %v3618, %v3689
      %v3782 = vsel %vm308, %v3617, %v3688
      %v3783 = vsel %vm309, %v3616, %v3687
      %v3784 = vsel %vm310, %v3615, %v3686
      %v3785 = vsel %vm311, %v3614, %v3685
      %v3786 = vsel %vm312, %v3613, %v3684
      %v3787 = vsel %vm313, %v3612, %v3683
      %v3788 = vsel %vm314, %v3611, %v3682
      %v3789 = vsel %vm315, %v3610, %v3717
      %v3790 = vld [vmem:[%s2] sm:$0xff]
      %s3791 = scalar_lea.vmem %s2, 8
      %v3792 = vld [vmem:[%s3791] sm:$0xff]
      %v3794 = vsel %vm348, %v3538, 0
      %v3797 = vsel %vm348, %v3539, 0
      %v3800 = vsel %vm348, %v3540, 0
      %v3803 = vsel %vm348, %v3541, 0
      %v3806 = vsel %vm348, %v3542, 0
      %v3809 = vsel %vm348, %v3543, 0
      %v3812 = vsel %vm348, %v3544, 0
      %v3815 = vsel %vm348, %v3545, 0
      %v3818 = vsel %vm348, %v3546, 0
      %v3821 = vsel %vm348, %v3547, 0
      %v3824 = vsel %vm348, %v3548, 0
      %v3827 = vsel %vm348, %v3549, 0
      %v3830 = vsel %vm348, %v3550, 0
      %v3833 = vsel %vm348, %v3551, 0
      %v3836 = vsel %vm348, %v3552, 0
      %v3839 = vsel %vm348, %v3553, 0
      %v3842 = vsel %vm348, %v3554, 0
      %v3845 = vsel %vm348, %v3555, 0
      %v3848 = vsel %vm348, %v3556, 0
      %v3851 = vsel %vm348, %v3557, 0
      %v3854 = vsel %vm348, %v3558, 0
      %v3857 = vsel %vm348, %v3559, 0
      %v3860 = vsel %vm348, %v3560, 0
      %v3863 = vsel %vm348, %v3561, 0
      %v3866 = vsel %vm348, %v3562, 0
      %v3869 = vsel %vm348, %v3563, 0
      %v3872 = vsel %vm348, %v3564, 0
      %v3875 = vsel %vm348, %v3565, 0
      %v3878 = vsel %vm348, %v3566, 0
      %v3881 = vsel %vm348, %v3567, 0
      %v3884 = vsel %vm348, %v3568, 0
      %v3887 = vsel %vm348, %v3569, 0
      %3889 = vmatprep.subr.mxu0 0.0
      %3890 = vmatpush1.msra.mxu0 %v3792
      %3891 = vmatprep.subr.mxu0 0.0
      %3892 = vmatpush1.msra.mxu0 0.0
      %3893 = vmatprep.subr.mxu0 0.0
      %3894 = vmatpush1.msra.mxu0 0.0
      %3895 = vmatprep.subr.mxu0 0.0
      %3896 = vmatpush1.msra.mxu0 0.0
      %3897 = vmatprep.subr.mxu0 0.0
      %3898 = vmatpush1.msra.mxu0 0.0
      %3899 = vmatprep.subr.mxu0 0.0
      %3900 = vmatpush1.msra.mxu0 0.0
      %3901 = vmatprep.subr.mxu0 0.0
      %3902 = vmatpush1.msra.mxu0 0.0
      %3903 = vmatprep.subr.mxu0 0.0
      %3904 = vmatpush1.msra.mxu0 0.0
      %3905 = vmatprep.subr.mxu0 0.0
      %3906 = vmatpush1.msra.mxu0 0.0
      %3907 = vmatprep.subr.mxu0 0.0
      %3908 = vmatpush1.msra.mxu0 0.0
      %3909 = vmatprep.subr.mxu0 0.0
      %3910 = vmatpush1.msra.mxu0 0.0
      %3911 = vmatprep.subr.mxu0 0.0
      %3912 = vmatpush1.msra.mxu0 0.0
      %3913 = vmatprep.subr.mxu0 0.0
      %3914 = vmatpush1.msra.mxu0 0.0
      %3915 = vmatprep.subr.mxu0 0.0
      %3916 = vmatpush1.msra.mxu0 0.0
      %3917 = vmatprep.subr.mxu0 0.0
      %3918 = vmatpush1.msra.mxu0 0.0
      %3919 = vmatprep.subr.mxu0 0.0
      %3920 = vmatpush1.msra.mxu0 0.0
      %3921 = vmatprep.subr.mxu0 0.0
      %3922 = vmatpush1.msra.mxu0 0.0
      %3923 = vmatprep.subr.mxu0 0.0
      %3924 = vmatpush1.msra.mxu0 0.0
      %3925 = vmatprep.subr.mxu0 0.0
      %3926 = vmatpush1.msra.mxu0 0.0
      %3927 = vmatprep.subr.mxu0 0.0
      %3928 = vmatpush1.msra.mxu0 0.0
      %3929 = vmatprep.subr.mxu0 0.0
      %3930 = vmatpush1.msra.mxu0 0.0
      %3931 = vmatprep.subr.mxu0 0.0
      %3932 = vmatpush1.msra.mxu0 0.0
      %3933 = vmatprep.subr.mxu0 0.0
      %3934 = vmatpush1.msra.mxu0 0.0
      %3935 = vmatprep.subr.mxu0 0.0
      %3936 = vmatpush1.msra.mxu0 0.0
      %3937 = vmatprep.subr.mxu0 0.0
      %3938 = vmatpush1.msra.mxu0 0.0
      %3939 = vmatprep.subr.mxu0 0.0
      %3940 = vmatpush1.msra.mxu0 0.0
      %3941 = vmatprep.subr.mxu0 0.0
      %3942 = vmatpush1.msra.mxu0 0.0
      %3943 = vmatprep.subr.mxu0 0.0
      %3944 = vmatpush1.msra.mxu0 0.0
      %3945 = vmatprep.subr.mxu0 0.0
      %3946 = vmatpush1.msra.mxu0 0.0
      %3947 = vmatprep.subr.mxu0 0.0
      %3948 = vmatpush1.msra.mxu0 0.0
      %3949 = vmatprep.subr.mxu0 0.0
      %3950 = vmatpush1.msra.mxu0 0.0
      %3951 = vmatprep.subr.mxu0 0.0
      %3952 = vmatpush1.msra.mxu0 0.0
      %3953 = vmatprep.mubr.f32.mxu0 0.0
      %3954 = vmatmul.mubr.f32.gmra.mrb[0].mxu0 %v3794
      %v3955 = vpop.f32.mrb[0].mxu0
      %v3956 = vadd.f32 0.0, %v3955
      %v3957 = vpop.f32.mrb[0].mxu0
      %3958 = vmatprep.mubr.f32.mxu0 0.0
      %3959 = vmatmul.mubr.f32.gmra.mrb[0].mxu0 %v3797
      %v3960 = vpop.f32.mrb[0].mxu0
      %v3961 = vadd.f32 0.0, %v3960
      %v3962 = vpop.f32.mrb[0].mxu0
      %3963 = vmatprep.mubr.f32.mxu0 0.0
      %3964 = vmatmul.mubr.f32.gmra.mrb[0].mxu0 %v3800
      %v3965 = vpop.f32.mrb[0].mxu0
      %v3966 = vadd.f32 0.0, %v3965
      %v3967 = vpop.f32.mrb[0].mxu0
      %3968 = vmatprep.mubr.f32.mxu0 0.0
      %3969 = vmatmul.mubr.f32.gmra.mrb[0].mxu0 %v3803
      %v3970 = vpop.f32.mrb[0].mxu0
      %v3971 = vadd.f32 0.0, %v3970
      %v3972 = vpop.f32.mrb[0].mxu0
      %3973 = vmatprep.mubr.f32.mxu0 0.0
      %3974 = vmatmul.mubr.f32.gmra.mrb[0].mxu0 %v3806
      %v3975 = vpop.f32.mrb[0].mxu0
      %v3976 = vadd.f32 0.0, %v3975
      %v3977 = vpop.f32.mrb[0].mxu0
      %3978 = vmatprep.mubr.f32.mxu0 0.0
      %3979 = vmatmul.mubr.f32.gmra.mrb[0].mxu0 %v3809
      %v3980 = vpop.f32.mrb[0].mxu0
      %v3981 = vadd.f32 0.0, %v3980
      %v3982 = vpop.f32.mrb[0].mxu0
      %3983 = vmatprep.mubr.f32.mxu0 0.0
      %3984 = vmatmul.mubr.f32.gmra.mrb[0].mxu0 %v3812
      %v3985 = vpop.f32.mrb[0].mxu0
      %v3986 = vadd.f32 0.0, %v3985
      %v3987 = vpop.f32.mrb[0].mxu0
      %3988 = vmatprep.mubr.f32.mxu0 0.0
      %3989 = vmatmul.mubr.f32.gmra.mrb[0].mxu0 %v3815
      %v3990 = vpop.f32.mrb[0].mxu0
      %v3991 = vadd.f32 0.0, %v3990
      %v3992 = vpop.f32.mrb[0].mxu0
      %3993 = vmatprep.mubr.f32.mxu0 0.0
      %3994 = vmatmul.mubr.f32.gmra.mrb[0].mxu0 %v3818
      %v3995 = vpop.f32.mrb[0].mxu0
      %v3996 = vadd.f32 0.0, %v3995
      %v3997 = vpop.f32.mrb[0].mxu0
      %3998 = vmatprep.mubr.f32.mxu0 0.0
      %3999 = vmatmul.mubr.f32.gmra.mrb[0].mxu0 %v3821
      %v4000 = vpop.f32.mrb[0].mxu0
      %v4001 = vadd.f32 0.0, %v4000
      %v4002 = vpop.f32.mrb[0].mxu0
      %4003 = vmatprep.mubr.f32.mxu0 0.0
      %4004 = vmatmul.mubr.f32.gmra.mrb[0].mxu0 %v3824
      %v4005 = vpop.f32.mrb[0].mxu0
      %v4006 = vadd.f32 0.0, %v4005
      %v4007 = vpop.f32.mrb[0].mxu0
      %4008 = vmatprep.mubr.f32.mxu0 0.0
      %4009 = vmatmul.mubr.f32.gmra.mrb[0].mxu0 %v3827
      %v4010 = vpop.f32.mrb[0].mxu0
      %v4011 = vadd.f32 0.0, %v4010
      %v4012 = vpop.f32.mrb[0].mxu0
      %4013 = vmatprep.mubr.f32.mxu0 0.0
      %4014 = vmatmul.mubr.f32.gmra.mrb[0].mxu0 %v3830
      %v4015 = vpop.f32.mrb[0].mxu0
      %v4016 = vadd.f32 0.0, %v4015
      %v4017 = vpop.f32.mrb[0].mxu0
      %4018 = vmatprep.mubr.f32.mxu0 0.0
      %4019 = vmatmul.mubr.f32.gmra.mrb[0].mxu0 %v3833
      %v4020 = vpop.f32.mrb[0].mxu0
      %v4021 = vadd.f32 0.0, %v4020
      %v4022 = vpop.f32.mrb[0].mxu0
      %4023 = vmatprep.mubr.f32.mxu0 0.0
      %4024 = vmatmul.mubr.f32.gmra.mrb[0].mxu0 %v3836
      %v4025 = vpop.f32.mrb[0].mxu0
      %v4026 = vadd.f32 0.0, %v4025
      %v4027 = vpop.f32.mrb[0].mxu0
      %4028 = vmatprep.mubr.f32.mxu0 0.0
      %4029 = vmatmul.mubr.f32.gmra.mrb[0].mxu0 %v3839
      %v4030 = vpop.f32.mrb[0].mxu0
      %v4031 = vadd.f32 0.0, %v4030
      %v4032 = vpop.f32.mrb[0].mxu0
      %4033 = vmatprep.mubr.f32.mxu0 0.0
      %4034 = vmatmul.mubr.f32.gmra.mrb[0].mxu0 %v3842
      %v4035 = vpop.f32.mrb[0].mxu0
      %v4036 = vadd.f32 0.0, %v4035
      %v4037 = vpop.f32.mrb[0].mxu0
      %4038 = vmatprep.mubr.f32.mxu0 0.0
      %4039 = vmatmul.mubr.f32.gmra.mrb[0].mxu0 %v3845
      %v4040 = vpop.f32.mrb[0].mxu0
      %v4041 = vadd.f32 0.0, %v4040
      %v4042 = vpop.f32.mrb[0].mxu0
      %4043 = vmatprep.mubr.f32.mxu0 0.0
      %4044 = vmatmul.mubr.f32.gmra.mrb[0].mxu0 %v3848
      %v4045 = vpop.f32.mrb[0].mxu0
      %v4046 = vadd.f32 0.0, %v4045
      %v4047 = vpop.f32.mrb[0].mxu0
      %4048 = vmatprep.mubr.f32.mxu0 0.0
      %4049 = vmatmul.mubr.f32.gmra.mrb[0].mxu0 %v3851
      %v4050 = vpop.f32.mrb[0].mxu0
      %v4051 = vadd.f32 0.0, %v4050
      %v4052 = vpop.f32.mrb[0].mxu0
      %4053 = vmatprep.mubr.f32.mxu0 0.0
      %4054 = vmatmul.mubr.f32.gmra.mrb[0].mxu0 %v3854
      %v4055 = vpop.f32.mrb[0].mxu0
      %v4056 = vadd.f32 0.0, %v4055
      %v4057 = vpop.f32.mrb[0].mxu0
      %4058 = vmatprep.mubr.f32.mxu0 0.0
      %4059 = vmatmul.mubr.f32.gmra.mrb[0].mxu0 %v3857
      %v4060 = vpop.f32.mrb[0].mxu0
      %v4061 = vadd.f32 0.0, %v4060
      %v4062 = vpop.f32.mrb[0].mxu0
      %4063 = vmatprep.mubr.f32.mxu0 0.0
      %4064 = vmatmul.mubr.f32.gmra.mrb[0].mxu0 %v3860
      %v4065 = vpop.f32.mrb[0].mxu0
      %v4066 = vadd.f32 0.0, %v4065
      %v4067 = vpop.f32.mrb[0].mxu0
      %4068 = vmatprep.mubr.f32.mxu0 0.0
      %4069 = vmatmul.mubr.f32.gmra.mrb[0].mxu0 %v3863
      %v4070 = vpop.f32.mrb[0].mxu0
      %v4071 = vadd.f32 0.0, %v4070
      %v4072 = vpop.f32.mrb[0].mxu0
      %4073 = vmatprep.mubr.f32.mxu0 0.0
      %4074 = vmatmul.mubr.f32.gmra.mrb[0].mxu0 %v3866
      %v4075 = vpop.f32.mrb[0].mxu0
      %v4076 = vadd.f32 0.0, %v4075
      %v4077 = vpop.f32.mrb[0].mxu0
      %4078 = vmatprep.mubr.f32.mxu0 0.0
      %4079 = vmatmul.mubr.f32.gmra.mrb[0].mxu0 %v3869
      %v4080 = vpop.f32.mrb[0].mxu0
      %v4081 = vadd.f32 0.0, %v4080
      %v4082 = vpop.f32.mrb[0].mxu0
      %4083 = vmatprep.mubr.f32.mxu0 0.0
      %4084 = vmatmul.mubr.f32.gmra.mrb[0].mxu0 %v3872
      %v4085 = vpop.f32.mrb[0].mxu0
      %v4086 = vadd.f32 0.0, %v4085
      %v4087 = vpop.f32.mrb[0].mxu0
      %4088 = vmatprep.mubr.f32.mxu0 0.0
      %4089 = vmatmul.mubr.f32.gmra.mrb[0].mxu0 %v3875
      %v4090 = vpop.f32.mrb[0].mxu0
      %v4091 = vadd.f32 0.0, %v4090
      %v4092 = vpop.f32.mrb[0].mxu0
      %4093 = vmatprep.mubr.f32.mxu0 0.0
      %4094 = vmatmul.mubr.f32.gmra.mrb[0].mxu0 %v3878
      %v4095 = vpop.f32.mrb[0].mxu0
      %v4096 = vadd.f32 0.0, %v4095
      %v4097 = vpop.f32.mrb[0].mxu0
      %4098 = vmatprep.mubr.f32.mxu0 0.0
      %4099 = vmatmul.mubr.f32.gmra.mrb[0].mxu0 %v3881
      %v4100 = vpop.f32.mrb[0].mxu0
      %v4101 = vadd.f32 0.0, %v4100
      %v4102 = vpop.f32.mrb[0].mxu0
      %4103 = vmatprep.mubr.f32.mxu0 0.0
      %4104 = vmatmul.mubr.f32.gmra.mrb[0].mxu0 %v3884
      %v4105 = vpop.f32.mrb[0].mxu0
      %v4106 = vadd.f32 0.0, %v4105
      %v4107 = vpop.f32.mrb[0].mxu0
      %4108 = vmatprep.mubr.f32.mxu0 0.0
      %4109 = vmatmul.mubr.f32.gmra.mrb[0].mxu0 %v3887
      %v4110 = vpop.f32.mrb[0].mxu0
      %v4111 = vadd.f32 0.0, %v4110
      %v4112 = vpop.f32.mrb[0].mxu0
      %4113 = vdwg.mxu0
      %v4115 = vsel %vm348, %v3718, 0
      %v4118 = vsel %vm348, %v3719, 0
      %v4121 = vsel %vm348, %v3720, 0
      %v4124 = vsel %vm348, %v3721, 0
      %v4127 = vsel %vm348, %v3722, 0
      %v4130 = vsel %vm348, %v3723, 0
      %v4133 = vsel %vm348, %v3724, 0
      %v4136 = vsel %vm348, %v3725, 0
      %v4139 = vsel %vm348, %v3726, 0
      %v4142 = vsel %vm348, %v3727, 0
      %v4145 = vsel %vm348, %v3728, 0
      %v4148 = vsel %vm348, %v3729, 0
      %v4151 = vsel %vm348, %v3730, 0
      %v4154 = vsel %vm348, %v3731, 0
      %v4157 = vsel %vm348, %v3732, 0
      %v4160 = vsel %vm348, %v3733, 0
      %v4163 = vsel %vm348, %v3734, 0
      %v4166 = vsel %vm348, %v3735, 0
      %v4169 = vsel %vm348, %v3736, 0
      %v4172 = vsel %vm348, %v3737, 0
      %v4175 = vsel %vm348, %v3738, 0
      %v4178 = vsel %vm348, %v3739, 0
      %v4181 = vsel %vm348, %v3740, 0
      %v4184 = vsel %vm348, %v3741, 0
      %v4187 = vsel %vm348, %v3742, 0
      %v4190 = vsel %vm348, %v3743, 0
      %v4193 = vsel %vm348, %v3744, 0
      %v4196 = vsel %vm348, %v3745, 0
      %v4199 = vsel %vm348, %v3746, 0
      %v4202 = vsel %vm348, %v3747, 0
      %v4205 = vsel %vm348, %v3748, 0
      %v4208 = vsel %vm348, %v3749, 0
      %4210 = vmatprep.subr.mxu0 0.0
      %4211 = vmatpush1.msra.mxu0 %v3790
      %4212 = vmatprep.subr.mxu0 0.0
      %4213 = vmatpush1.msra.mxu0 0.0
      %4214 = vmatprep.subr.mxu0 0.0
      %4215 = vmatpush1.msra.mxu0 0.0
      %4216 = vmatprep.subr.mxu0 0.0
      %4217 = vmatpush1.msra.mxu0 0.0
      %4218 = vmatprep.subr.mxu0 0.0
      %4219 = vmatpush1.msra.mxu0 0.0
      %4220 = vmatprep.subr.mxu0 0.0
      %4221 = vmatpush1.msra.mxu0 0.0
      %4222 = vmatprep.subr.mxu0 0.0
      %4223 = vmatpush1.msra.mxu0 0.0
      %4224 = vmatprep.subr.mxu0 0.0
      %4225 = vmatpush1.msra.mxu0 0.0
      %4226 = vmatprep.subr.mxu0 0.0
      %4227 = vmatpush1.msra.mxu0 0.0
      %4228 = vmatprep.subr.mxu0 0.0
      %4229 = vmatpush1.msra.mxu0 0.0
      %4230 = vmatprep.subr.mxu0 0.0
      %4231 = vmatpush1.msra.mxu0 0.0
      %4232 = vmatprep.subr.mxu0 0.0
      %4233 = vmatpush1.msra.mxu0 0.0
      %4234 = vmatprep.subr.mxu0 0.0
      %4235 = vmatpush1.msra.mxu0 0.0
      %4236 = vmatprep.subr.mxu0 0.0
      %4237 = vmatpush1.msra.mxu0 0.0
      %4238 = vmatprep.subr.mxu0 0.0
      %4239 = vmatpush1.msra.mxu0 0.0
      %4240 = vmatprep.subr.mxu0 0.0
      %4241 = vmatpush1.msra.mxu0 0.0
      %4242 = vmatprep.subr.mxu0 0.0
      %4243 = vmatpush1.msra.mxu0 0.0
      %4244 = vmatprep.subr.mxu0 0.0
      %4245 = vmatpush1.msra.mxu0 0.0
      %4246 = vmatprep.subr.mxu0 0.0
      %4247 = vmatpush1.msra.mxu0 0.0
      %4248 = vmatprep.subr.mxu0 0.0
      %4249 = vmatpush1.msra.mxu0 0.0
      %4250 = vmatprep.subr.mxu0 0.0
      %4251 = vmatpush1.msra.mxu0 0.0
      %4252 = vmatprep.subr.mxu0 0.0
      %4253 = vmatpush1.msra.mxu0 0.0
      %4254 = vmatprep.subr.mxu0 0.0
      %4255 = vmatpush1.msra.mxu0 0.0
      %4256 = vmatprep.subr.mxu0 0.0
      %4257 = vmatpush1.msra.mxu0 0.0
      %4258 = vmatprep.subr.mxu0 0.0
      %4259 = vmatpush1.msra.mxu0 0.0
      %4260 = vmatprep.subr.mxu0 0.0
      %4261 = vmatpush1.msra.mxu0 0.0
      %4262 = vmatprep.subr.mxu0 0.0
      %4263 = vmatpush1.msra.mxu0 0.0
      %4264 = vmatprep.subr.mxu0 0.0
      %4265 = vmatpush1.msra.mxu0 0.0
      %4266 = vmatprep.subr.mxu0 0.0
      %4267 = vmatpush1.msra.mxu0 0.0
      %4268 = vmatprep.subr.mxu0 0.0
      %4269 = vmatpush1.msra.mxu0 0.0
      %4270 = vmatprep.subr.mxu0 0.0
      %4271 = vmatpush1.msra.mxu0 0.0
      %4272 = vmatprep.subr.mxu0 0.0
      %4273 = vmatpush1.msra.mxu0 0.0
      %4274 = vmatprep.mubr.f32.mxu0 0.0
      %4275 = vmatmul.mubr.f32.gmra.mrb[0].mxu0 %v4115
      %v4276 = vpop.f32.mrb[0].mxu0
      %v4277 = vadd.f32 %v3956, %v4276
      %v4278 = vpop.f32.mrb[0].mxu0
      %4279 = vmatprep.mubr.f32.mxu0 0.0
      %4280 = vmatmul.mubr.f32.gmra.mrb[0].mxu0 %v4118
      %v4281 = vpop.f32.mrb[0].mxu0
      %v4282 = vadd.f32 %v3961, %v4281
      %v4283 = vpop.f32.mrb[0].mxu0
      %4284 = vmatprep.mubr.f32.mxu0 0.0
      %4285 = vmatmul.mubr.f32.gmra.mrb[0].mxu0 %v4121
      %v4286 = vpop.f32.mrb[0].mxu0
      %v4287 = vadd.f32 %v3966, %v4286
      %v4288 = vpop.f32.mrb[0].mxu0
      %4289 = vmatprep.mubr.f32.mxu0 0.0
      %4290 = vmatmul.mubr.f32.gmra.mrb[0].mxu0 %v4124
      %v4291 = vpop.f32.mrb[0].mxu0
      %v4292 = vadd.f32 %v3971, %v4291
      %v4293 = vpop.f32.mrb[0].mxu0
      %4294 = vmatprep.mubr.f32.mxu0 0.0
      %4295 = vmatmul.mubr.f32.gmra.mrb[0].mxu0 %v4127
      %v4296 = vpop.f32.mrb[0].mxu0
      %v4297 = vadd.f32 %v3976, %v4296
      %v4298 = vpop.f32.mrb[0].mxu0
      %4299 = vmatprep.mubr.f32.mxu0 0.0
      %4300 = vmatmul.mubr.f32.gmra.mrb[0].mxu0 %v4130
      %v4301 = vpop.f32.mrb[0].mxu0
      %v4302 = vadd.f32 %v3981, %v4301
      %v4303 = vpop.f32.mrb[0].mxu0
      %4304 = vmatprep.mubr.f32.mxu0 0.0
      %4305 = vmatmul.mubr.f32.gmra.mrb[0].mxu0 %v4133
      %v4306 = vpop.f32.mrb[0].mxu0
      %v4307 = vadd.f32 %v3986, %v4306
      %v4308 = vpop.f32.mrb[0].mxu0
      %4309 = vmatprep.mubr.f32.mxu0 0.0
      %4310 = vmatmul.mubr.f32.gmra.mrb[0].mxu0 %v4136
      %v4311 = vpop.f32.mrb[0].mxu0
      %v4312 = vadd.f32 %v3991, %v4311
      %v4313 = vpop.f32.mrb[0].mxu0
      %4314 = vmatprep.mubr.f32.mxu0 0.0
      %4315 = vmatmul.mubr.f32.gmra.mrb[0].mxu0 %v4139
      %v4316 = vpop.f32.mrb[0].mxu0
      %v4317 = vadd.f32 %v3996, %v4316
      %v4318 = vpop.f32.mrb[0].mxu0
      %4319 = vmatprep.mubr.f32.mxu0 0.0
      %4320 = vmatmul.mubr.f32.gmra.mrb[0].mxu0 %v4142
      %v4321 = vpop.f32.mrb[0].mxu0
      %v4322 = vadd.f32 %v4001, %v4321
      %v4323 = vpop.f32.mrb[0].mxu0
      %4324 = vmatprep.mubr.f32.mxu0 0.0
      %4325 = vmatmul.mubr.f32.gmra.mrb[0].mxu0 %v4145
      %v4326 = vpop.f32.mrb[0].mxu0
      %v4327 = vadd.f32 %v4006, %v4326
      %v4328 = vpop.f32.mrb[0].mxu0
      %4329 = vmatprep.mubr.f32.mxu0 0.0
      %4330 = vmatmul.mubr.f32.gmra.mrb[0].mxu0 %v4148
      %v4331 = vpop.f32.mrb[0].mxu0
      %v4332 = vadd.f32 %v4011, %v4331
      %v4333 = vpop.f32.mrb[0].mxu0
      %4334 = vmatprep.mubr.f32.mxu0 0.0
      %4335 = vmatmul.mubr.f32.gmra.mrb[0].mxu0 %v4151
      %v4336 = vpop.f32.mrb[0].mxu0
      %v4337 = vadd.f32 %v4016, %v4336
      %v4338 = vpop.f32.mrb[0].mxu0
      %4339 = vmatprep.mubr.f32.mxu0 0.0
      %4340 = vmatmul.mubr.f32.gmra.mrb[0].mxu0 %v4154
      %v4341 = vpop.f32.mrb[0].mxu0
      %v4342 = vadd.f32 %v4021, %v4341
      %v4343 = vpop.f32.mrb[0].mxu0
      %4344 = vmatprep.mubr.f32.mxu0 0.0
      %4345 = vmatmul.mubr.f32.gmra.mrb[0].mxu0 %v4157
      %v4346 = vpop.f32.mrb[0].mxu0
      %v4347 = vadd.f32 %v4026, %v4346
      %v4348 = vpop.f32.mrb[0].mxu0
      %4349 = vmatprep.mubr.f32.mxu0 0.0
      %4350 = vmatmul.mubr.f32.gmra.mrb[0].mxu0 %v4160
      %v4351 = vpop.f32.mrb[0].mxu0
      %v4352 = vadd.f32 %v4031, %v4351
      %v4353 = vpop.f32.mrb[0].mxu0
      %4354 = vmatprep.mubr.f32.mxu0 0.0
      %4355 = vmatmul.mubr.f32.gmra.mrb[0].mxu0 %v4163
      %v4356 = vpop.f32.mrb[0].mxu0
      %v4357 = vadd.f32 %v4036, %v4356
      %v4358 = vpop.f32.mrb[0].mxu0
      %4359 = vmatprep.mubr.f32.mxu0 0.0
      %4360 = vmatmul.mubr.f32.gmra.mrb[0].mxu0 %v4166
      %v4361 = vpop.f32.mrb[0].mxu0
      %v4362 = vadd.f32 %v4041, %v4361
      %v4363 = vpop.f32.mrb[0].mxu0
      %4364 = vmatprep.mubr.f32.mxu0 0.0
      %4365 = vmatmul.mubr.f32.gmra.mrb[0].mxu0 %v4169
      %v4366 = vpop.f32.mrb[0].mxu0
      %v4367 = vadd.f32 %v4046, %v4366
      %v4368 = vpop.f32.mrb[0].mxu0
      %4369 = vmatprep.mubr.f32.mxu0 0.0
      %4370 = vmatmul.mubr.f32.gmra.mrb[0].mxu0 %v4172
      %v4371 = vpop.f32.mrb[0].mxu0
      %v4372 = vadd.f32 %v4051, %v4371
      %v4373 = vpop.f32.mrb[0].mxu0
      %4374 = vmatprep.mubr.f32.mxu0 0.0
      %4375 = vmatmul.mubr.f32.gmra.mrb[0].mxu0 %v4175
      %v4376 = vpop.f32.mrb[0].mxu0
      %v4377 = vadd.f32 %v4056, %v4376
      %v4378 = vpop.f32.mrb[0].mxu0
      %4379 = vmatprep.mubr.f32.mxu0 0.0
      %4380 = vmatmul.mubr.f32.gmra.mrb[0].mxu0 %v4178
      %v4381 = vpop.f32.mrb[0].mxu0
      %v4382 = vadd.f32 %v4061, %v4381
      %v4383 = vpop.f32.mrb[0].mxu0
      %4384 = vmatprep.mubr.f32.mxu0 0.0
      %4385 = vmatmul.mubr.f32.gmra.mrb[0].mxu0 %v4181
      %v4386 = vpop.f32.mrb[0].mxu0
      %v4387 = vadd.f32 %v4066, %v4386
      %v4388 = vpop.f32.mrb[0].mxu0
      %4389 = vmatprep.mubr.f32.mxu0 0.0
      %4390 = vmatmul.mubr.f32.gmra.mrb[0].mxu0 %v4184
      %v4391 = vpop.f32.mrb[0].mxu0
      %v4392 = vadd.f32 %v4071, %v4391
      %v4393 = vpop.f32.mrb[0].mxu0
      %4394 = vmatprep.mubr.f32.mxu0 0.0
      %4395 = vmatmul.mubr.f32.gmra.mrb[0].mxu0 %v4187
      %v4396 = vpop.f32.mrb[0].mxu0
      %v4397 = vadd.f32 %v4076, %v4396
      %v4398 = vpop.f32.mrb[0].mxu0
      %4399 = vmatprep.mubr.f32.mxu0 0.0
      %4400 = vmatmul.mubr.f32.gmra.mrb[0].mxu0 %v4190
      %v4401 = vpop.f32.mrb[0].mxu0
      %v4402 = vadd.f32 %v4081, %v4401
      %v4403 = vpop.f32.mrb[0].mxu0
      %4404 = vmatprep.mubr.f32.mxu0 0.0
      %4405 = vmatmul.mubr.f32.gmra.mrb[0].mxu0 %v4193
      %v4406 = vpop.f32.mrb[0].mxu0
      %v4407 = vadd.f32 %v4086, %v4406
      %v4408 = vpop.f32.mrb[0].mxu0
      %4409 = vmatprep.mubr.f32.mxu0 0.0
      %4410 = vmatmul.mubr.f32.gmra.mrb[0].mxu0 %v4196
      %v4411 = vpop.f32.mrb[0].mxu0
      %v4412 = vadd.f32 %v4091, %v4411
      %v4413 = vpop.f32.mrb[0].mxu0
      %4414 = vmatprep.mubr.f32.mxu0 0.0
      %4415 = vmatmul.mubr.f32.gmra.mrb[0].mxu0 %v4199
      %v4416 = vpop.f32.mrb[0].mxu0
      %v4417 = vadd.f32 %v4096, %v4416
      %v4418 = vpop.f32.mrb[0].mxu0
      %4419 = vmatprep.mubr.f32.mxu0 0.0
      %4420 = vmatmul.mubr.f32.gmra.mrb[0].mxu0 %v4202
      %v4421 = vpop.f32.mrb[0].mxu0
      %v4422 = vadd.f32 %v4101, %v4421
      %v4423 = vpop.f32.mrb[0].mxu0
      %4424 = vmatprep.mubr.f32.mxu0 0.0
      %4425 = vmatmul.mubr.f32.gmra.mrb[0].mxu0 %v4205
      %v4426 = vpop.f32.mrb[0].mxu0
      %v4427 = vadd.f32 %v4106, %v4426
      %v4428 = vpop.f32.mrb[0].mxu0
      %4429 = vmatprep.mubr.f32.mxu0 0.0
      %4430 = vmatmul.mubr.f32.gmra.mrb[0].mxu0 %v4208
      %v4431 = vpop.f32.mrb[0].mxu0
      %v4432 = vadd.f32 %v4111, %v4431
      %v4433 = vpop.f32.mrb[0].mxu0
      %4434 = vdwg.mxu0
      %s4435 = scalar_lea.vmem %s2, 16
      %v4436 = vld [vmem:[%s4435] sm:$0xff]
      %v4438 = vsel %vm348, %v3754, 0
      %v4441 = vsel %vm348, %v3755, 0
      %v4444 = vsel %vm348, %v3756, 0
      %v4447 = vsel %vm348, %v3757, 0
      %v4450 = vsel %vm348, %v3758, 0
      %v4453 = vsel %vm348, %v3759, 0
      %v4456 = vsel %vm348, %v3760, 0
      %v4459 = vsel %vm348, %v3761, 0
      %v4462 = vsel %vm348, %v3762, 0
      %v4465 = vsel %vm348, %v3763, 0
      %v4468 = vsel %vm348, %v3764, 0
      %v4471 = vsel %vm348, %v3765, 0
      %v4474 = vsel %vm348, %v3766, 0
      %v4477 = vsel %vm348, %v3767, 0
      %v4480 = vsel %vm348, %v3768, 0
      %v4483 = vsel %vm348, %v3769, 0
      %v4486 = vsel %vm348, %v3770, 0
      %v4489 = vsel %vm348, %v3771, 0
      %v4492 = vsel %vm348, %v3772, 0
      %v4495 = vsel %vm348, %v3773, 0
      %v4498 = vsel %vm348, %v3774, 0
      %v4501 = vsel %vm348, %v3775, 0
      %v4504 = vsel %vm348, %v3776, 0
      %v4507 = vsel %vm348, %v3777, 0
      %v4510 = vsel %vm348, %v3778, 0
      %v4513 = vsel %vm348, %v3779, 0
      %v4516 = vsel %vm348, %v3780, 0
      %v4519 = vsel %vm348, %v3781, 0
      %v4522 = vsel %vm348, %v3782, 0
      %v4525 = vsel %vm348, %v3783, 0
      %v4528 = vsel %vm348, %v3784, 0
      %v4531 = vsel %vm348, %v3785, 0
      %4533 = vmatprep.subr.mxu0 0.0
      %4534 = vmatpush1.msra.mxu0 %v4436
      %4535 = vmatprep.subr.mxu0 0.0
      %4536 = vmatpush1.msra.mxu0 0.0
      %4537 = vmatprep.subr.mxu0 0.0
      %4538 = vmatpush1.msra.mxu0 0.0
      %4539 = vmatprep.subr.mxu0 0.0
      %4540 = vmatpush1.msra.mxu0 0.0
      %4541 = vmatprep.subr.mxu0 0.0
      %4542 = vmatpush1.msra.mxu0 0.0
      %4543 = vmatprep.subr.mxu0 0.0
      %4544 = vmatpush1.msra.mxu0 0.0
      %4545 = vmatprep.subr.mxu0 0.0
      %4546 = vmatpush1.msra.mxu0 0.0
      %4547 = vmatprep.subr.mxu0 0.0
      %4548 = vmatpush1.msra.mxu0 0.0
      %4549 = vmatprep.subr.mxu0 0.0
      %4550 = vmatpush1.msra.mxu0 0.0
      %4551 = vmatprep.subr.mxu0 0.0
      %4552 = vmatpush1.msra.mxu0 0.0
      %4553 = vmatprep.subr.mxu0 0.0
      %4554 = vmatpush1.msra.mxu0 0.0
      %4555 = vmatprep.subr.mxu0 0.0
      %4556 = vmatpush1.msra.mxu0 0.0
      %4557 = vmatprep.subr.mxu0 0.0
      %4558 = vmatpush1.msra.mxu0 0.0
      %4559 = vmatprep.subr.mxu0 0.0
      %4560 = vmatpush1.msra.mxu0 0.0
      %4561 = vmatprep.subr.mxu0 0.0
      %4562 = vmatpush1.msra.mxu0 0.0
      %4563 = vmatprep.subr.mxu0 0.0
      %4564 = vmatpush1.msra.mxu0 0.0
      %4565 = vmatprep.subr.mxu0 0.0
      %4566 = vmatpush1.msra.mxu0 0.0
      %4567 = vmatprep.subr.mxu0 0.0
      %4568 = vmatpush1.msra.mxu0 0.0
      %4569 = vmatprep.subr.mxu0 0.0
      %4570 = vmatpush1.msra.mxu0 0.0
      %4571 = vmatprep.subr.mxu0 0.0
      %4572 = vmatpush1.msra.mxu0 0.0
      %4573 = vmatprep.subr.mxu0 0.0
      %4574 = vmatpush1.msra.mxu0 0.0
      %4575 = vmatprep.subr.mxu0 0.0
      %4576 = vmatpush1.msra.mxu0 0.0
      %4577 = vmatprep.subr.mxu0 0.0
      %4578 = vmatpush1.msra.mxu0 0.0
      %4579 = vmatprep.subr.mxu0 0.0
      %4580 = vmatpush1.msra.mxu0 0.0
      %4581 = vmatprep.subr.mxu0 0.0
      %4582 = vmatpush1.msra.mxu0 0.0
      %4583 = vmatprep.subr.mxu0 0.0
      %4584 = vmatpush1.msra.mxu0 0.0
      %4585 = vmatprep.subr.mxu0 0.0
      %4586 = vmatpush1.msra.mxu0 0.0
      %4587 = vmatprep.subr.mxu0 0.0
      %4588 = vmatpush1.msra.mxu0 0.0
      %4589 = vmatprep.subr.mxu0 0.0
      %4590 = vmatpush1.msra.mxu0 0.0
      %4591 = vmatprep.subr.mxu0 0.0
      %4592 = vmatpush1.msra.mxu0 0.0
      %4593 = vmatprep.subr.mxu0 0.0
      %4594 = vmatpush1.msra.mxu0 0.0
      %4595 = vmatprep.subr.mxu0 0.0
      %4596 = vmatpush1.msra.mxu0 0.0
      %4597 = vmatprep.mubr.f32.mxu0 0.0
      %4598 = vmatmul.mubr.f32.gmra.mrb[0].mxu0 %v4438
      %v4599 = vpop.f32.mrb[0].mxu0
      %v4600 = vadd.f32 0.0, %v4599
      %v4601 = vpop.f32.mrb[0].mxu0
      %4602 = vmatprep.mubr.f32.mxu0 0.0
      %4603 = vmatmul.mubr.f32.gmra.mrb[0].mxu0 %v4441
      %v4604 = vpop.f32.mrb[0].mxu0
      %v4605 = vadd.f32 0.0, %v4604
      %v4606 = vpop.f32.mrb[0].mxu0
      %4607 = vmatprep.mubr.f32.mxu0 0.0
      %4608 = vmatmul.mubr.f32.gmra.mrb[0].mxu0 %v4444
      %v4609 = vpop.f32.mrb[0].mxu0
      %v4610 = vadd.f32 0.0, %v4609
      %v4611 = vpop.f32.mrb[0].mxu0
      %4612 = vmatprep.mubr.f32.mxu0 0.0
      %4613 = vmatmul.mubr.f32.gmra.mrb[0].mxu0 %v4447
      %v4614 = vpop.f32.mrb[0].mxu0
      %v4615 = vadd.f32 0.0, %v4614
      %v4616 = vpop.f32.mrb[0].mxu0
      %4617 = vmatprep.mubr.f32.mxu0 0.0
      %4618 = vmatmul.mubr.f32.gmra.mrb[0].mxu0 %v4450
      %v4619 = vpop.f32.mrb[0].mxu0
      %v4620 = vadd.f32 0.0, %v4619
      %v4621 = vpop.f32.mrb[0].mxu0
      %4622 = vmatprep.mubr.f32.mxu0 0.0
      %4623 = vmatmul.mubr.f32.gmra.mrb[0].mxu0 %v4453
      %v4624 = vpop.f32.mrb[0].mxu0
      %v4625 = vadd.f32 0.0, %v4624
      %v4626 = vpop.f32.mrb[0].mxu0
      %4627 = vmatprep.mubr.f32.mxu0 0.0
      %4628 = vmatmul.mubr.f32.gmra.mrb[0].mxu0 %v4456
      %v4629 = vpop.f32.mrb[0].mxu0
      %v4630 = vadd.f32 0.0, %v4629
      %v4631 = vpop.f32.mrb[0].mxu0
      %4632 = vmatprep.mubr.f32.mxu0 0.0
      %4633 = vmatmul.mubr.f32.gmra.mrb[0].mxu0 %v4459
      %v4634 = vpop.f32.mrb[0].mxu0
      %v4635 = vadd.f32 0.0, %v4634
      %v4636 = vpop.f32.mrb[0].mxu0
      %4637 = vmatprep.mubr.f32.mxu0 0.0
      %4638 = vmatmul.mubr.f32.gmra.mrb[0].mxu0 %v4462
      %v4639 = vpop.f32.mrb[0].mxu0
      %v4640 = vadd.f32 0.0, %v4639
      %v4641 = vpop.f32.mrb[0].mxu0
      %4642 = vmatprep.mubr.f32.mxu0 0.0
      %4643 = vmatmul.mubr.f32.gmra.mrb[0].mxu0 %v4465
      %v4644 = vpop.f32.mrb[0].mxu0
      %v4645 = vadd.f32 0.0, %v4644
      %v4646 = vpop.f32.mrb[0].mxu0
      %4647 = vmatprep.mubr.f32.mxu0 0.0
      %4648 = vmatmul.mubr.f32.gmra.mrb[0].mxu0 %v4468
      %v4649 = vpop.f32.mrb[0].mxu0
      %v4650 = vadd.f32 0.0, %v4649
      %v4651 = vpop.f32.mrb[0].mxu0
      %4652 = vmatprep.mubr.f32.mxu0 0.0
      %4653 = vmatmul.mubr.f32.gmra.mrb[0].mxu0 %v4471
      %v4654 = vpop.f32.mrb[0].mxu0
      %v4655 = vadd.f32 0.0, %v4654
      %v4656 = vpop.f32.mrb[0].mxu0
      %4657 = vmatprep.mubr.f32.mxu0 0.0
      %4658 = vmatmul.mubr.f32.gmra.mrb[0].mxu0 %v4474
      %v4659 = vpop.f32.mrb[0].mxu0
      %v4660 = vadd.f32 0.0, %v4659
      %v4661 = vpop.f32.mrb[0].mxu0
      %4662 = vmatprep.mubr.f32.mxu0 0.0
      %4663 = vmatmul.mubr.f32.gmra.mrb[0].mxu0 %v4477
      %v4664 = vpop.f32.mrb[0].mxu0
      %v4665 = vadd.f32 0.0, %v4664
      %v4666 = vpop.f32.mrb[0].mxu0
      %4667 = vmatprep.mubr.f32.mxu0 0.0
      %4668 = vmatmul.mubr.f32.gmra.mrb[0].mxu0 %v4480
      %v4669 = vpop.f32.mrb[0].mxu0
      %v4670 = vadd.f32 0.0, %v4669
      %v4671 = vpop.f32.mrb[0].mxu0
      %4672 = vmatprep.mubr.f32.mxu0 0.0
      %4673 = vmatmul.mubr.f32.gmra.mrb[0].mxu0 %v4483
      %v4674 = vpop.f32.mrb[0].mxu0
      %v4675 = vadd.f32 0.0, %v4674
      %v4676 = vpop.f32.mrb[0].mxu0
      %4677 = vmatprep.mubr.f32.mxu0 0.0
      %4678 = vmatmul.mubr.f32.gmra.mrb[0].mxu0 %v4486
      %v4679 = vpop.f32.mrb[0].mxu0
      %v4680 = vadd.f32 0.0, %v4679
      %v4681 = vpop.f32.mrb[0].mxu0
      %4682 = vmatprep.mubr.f32.mxu0 0.0
      %4683 = vmatmul.mubr.f32.gmra.mrb[0].mxu0 %v4489
      %v4684 = vpop.f32.mrb[0].mxu0
      %v4685 = vadd.f32 0.0, %v4684
      %v4686 = vpop.f32.mrb[0].mxu0
      %4687 = vmatprep.mubr.f32.mxu0 0.0
      %4688 = vmatmul.mubr.f32.gmra.mrb[0].mxu0 %v4492
      %v4689 = vpop.f32.mrb[0].mxu0
      %v4690 = vadd.f32 0.0, %v4689
      %v4691 = vpop.f32.mrb[0].mxu0
      %4692 = vmatprep.mubr.f32.mxu0 0.0
      %4693 = vmatmul.mubr.f32.gmra.mrb[0].mxu0 %v4495
      %v4694 = vpop.f32.mrb[0].mxu0
      %v4695 = vadd.f32 0.0, %v4694
      %v4696 = vpop.f32.mrb[0].mxu0
      %4697 = vmatprep.mubr.f32.mxu0 0.0
      %4698 = vmatmul.mubr.f32.gmra.mrb[0].mxu0 %v4498
      %v4699 = vpop.f32.mrb[0].mxu0
      %v4700 = vadd.f32 0.0, %v4699
      %v4701 = vpop.f32.mrb[0].mxu0
      %4702 = vmatprep.mubr.f32.mxu0 0.0
      %4703 = vmatmul.mubr.f32.gmra.mrb[0].mxu0 %v4501
      %v4704 = vpop.f32.mrb[0].mxu0
      %v4705 = vadd.f32 0.0, %v4704
      %v4706 = vpop.f32.mrb[0].mxu0
      %4707 = vmatprep.mubr.f32.mxu0 0.0
      %4708 = vmatmul.mubr.f32.gmra.mrb[0].mxu0 %v4504
      %v4709 = vpop.f32.mrb[0].mxu0
      %v4710 = vadd.f32 0.0, %v4709
      %v4711 = vpop.f32.mrb[0].mxu0
      %4712 = vmatprep.mubr.f32.mxu0 0.0
      %4713 = vmatmul.mubr.f32.gmra.mrb[0].mxu0 %v4507
      %v4714 = vpop.f32.mrb[0].mxu0
      %v4715 = vadd.f32 0.0, %v4714
      %v4716 = vpop.f32.mrb[0].mxu0
      %4717 = vmatprep.mubr.f32.mxu0 0.0
      %4718 = vmatmul.mubr.f32.gmra.mrb[0].mxu0 %v4510
      %v4719 = vpop.f32.mrb[0].mxu0
      %v4720 = vadd.f32 0.0, %v4719
      %v4721 = vpop.f32.mrb[0].mxu0
      %4722 = vmatprep.mubr.f32.mxu0 0.0
      %4723 = vmatmul.mubr.f32.gmra.mrb[0].mxu0 %v4513
      %v4724 = vpop.f32.mrb[0].mxu0
      %v4725 = vadd.f32 0.0, %v4724
      %v4726 = vpop.f32.mrb[0].mxu0
      %4727 = vmatprep.mubr.f32.mxu0 0.0
      %4728 = vmatmul.mubr.f32.gmra.mrb[0].mxu0 %v4516
      %v4729 = vpop.f32.mrb[0].mxu0
      %v4730 = vadd.f32 0.0, %v4729
      %v4731 = vpop.f32.mrb[0].mxu0
      %4732 = vmatprep.mubr.f32.mxu0 0.0
      %4733 = vmatmul.mubr.f32.gmra.mrb[0].mxu0 %v4519
      %v4734 = vpop.f32.mrb[0].mxu0
      %v4735 = vadd.f32 0.0, %v4734
      %v4736 = vpop.f32.mrb[0].mxu0
      %4737 = vmatprep.mubr.f32.mxu0 0.0
      %4738 = vmatmul.mubr.f32.gmra.mrb[0].mxu0 %v4522
      %v4739 = vpop.f32.mrb[0].mxu0
      %v4740 = vadd.f32 0.0, %v4739
      %v4741 = vpop.f32.mrb[0].mxu0
      %4742 = vmatprep.mubr.f32.mxu0 0.0
      %4743 = vmatmul.mubr.f32.gmra.mrb[0].mxu0 %v4525
      %v4744 = vpop.f32.mrb[0].mxu0
      %v4745 = vadd.f32 0.0, %v4744
      %v4746 = vpop.f32.mrb[0].mxu0
      %4747 = vmatprep.mubr.f32.mxu0 0.0
      %4748 = vmatmul.mubr.f32.gmra.mrb[0].mxu0 %v4528
      %v4749 = vpop.f32.mrb[0].mxu0
      %v4750 = vadd.f32 0.0, %v4749
      %v4751 = vpop.f32.mrb[0].mxu0
      %4752 = vmatprep.mubr.f32.mxu0 0.0
      %4753 = vmatmul.mubr.f32.gmra.mrb[0].mxu0 %v4531
      %v4754 = vpop.f32.mrb[0].mxu0
      %v4755 = vadd.f32 0.0, %v4754
      %v4756 = vpop.f32.mrb[0].mxu0
      %4757 = vdwg.mxu0
      %v4758 = vadd.f32 %v4277, %v4600
      %v4759 = vadd.f32 %v4282, %v4605
      %v4760 = vadd.f32 %v4287, %v4610
      %v4761 = vadd.f32 %v4292, %v4615
      %v4762 = vadd.f32 %v4297, %v4620
      %v4763 = vadd.f32 %v4302, %v4625
      %v4764 = vadd.f32 %v4307, %v4630
      %v4765 = vadd.f32 %v4312, %v4635
      %v4766 = vadd.f32 %v4317, %v4640
      %v4767 = vadd.f32 %v4322, %v4645
      %v4768 = vadd.f32 %v4327, %v4650
      %v4769 = vadd.f32 %v4332, %v4655
      %v4770 = vadd.f32 %v4337, %v4660
      %v4771 = vadd.f32 %v4342, %v4665
      %v4772 = vadd.f32 %v4347, %v4670
      %v4773 = vadd.f32 %v4352, %v4675
      %v4774 = vadd.f32 %v4357, %v4680
      %v4775 = vadd.f32 %v4362, %v4685
      %v4776 = vadd.f32 %v4367, %v4690
      %v4777 = vadd.f32 %v4372, %v4695
      %v4778 = vadd.f32 %v4377, %v4700
      %v4779 = vadd.f32 %v4382, %v4705
      %v4780 = vadd.f32 %v4387, %v4710
      %v4781 = vadd.f32 %v4392, %v4715
      %v4782 = vadd.f32 %v4397, %v4720
      %v4783 = vadd.f32 %v4402, %v4725
      %v4784 = vadd.f32 %v4407, %v4730
      %v4785 = vadd.f32 %v4412, %v4735
      %v4786 = vadd.f32 %v4417, %v4740
      %v4787 = vadd.f32 %v4422, %v4745
      %v4788 = vadd.f32 %v4427, %v4750
      %v4789 = vadd.f32 %v4432, %v4755
      %s4790 = scalar_lea.vmem %s2, 24
      %v4791 = vld [vmem:[%s4790] sm:$0xff]
      %v4793 = vsel %vm348, %v3750, 0
      %v4796 = vsel %vm348, %v3751, 0
      %4798 = vmatprep.subr.mxu0 0.0
      %4799 = vmatpush1.msra.mxu0 %v4791
      %4800 = vmatprep.subr.mxu0 0.0
      %4801 = vmatpush1.msra.mxu0 0.0
      %4802 = vmatprep.subr.mxu0 0.0
      %4803 = vmatpush1.msra.mxu0 0.0
      %4804 = vmatprep.subr.mxu0 0.0
      %4805 = vmatpush1.msra.mxu0 0.0
      %4806 = vmatprep.subr.mxu0 0.0
      %4807 = vmatpush1.msra.mxu0 0.0
      %4808 = vmatprep.subr.mxu0 0.0
      %4809 = vmatpush1.msra.mxu0 0.0
      %4810 = vmatprep.subr.mxu0 0.0
      %4811 = vmatpush1.msra.mxu0 0.0
      %4812 = vmatprep.subr.mxu0 0.0
      %4813 = vmatpush1.msra.mxu0 0.0
      %4814 = vmatprep.subr.mxu0 0.0
      %4815 = vmatpush1.msra.mxu0 0.0
      %4816 = vmatprep.subr.mxu0 0.0
      %4817 = vmatpush1.msra.mxu0 0.0
      %4818 = vmatprep.subr.mxu0 0.0
      %4819 = vmatpush1.msra.mxu0 0.0
      %4820 = vmatprep.subr.mxu0 0.0
      %4821 = vmatpush1.msra.mxu0 0.0
      %4822 = vmatprep.subr.mxu0 0.0
      %4823 = vmatpush1.msra.mxu0 0.0
      %4824 = vmatprep.subr.mxu0 0.0
      %4825 = vmatpush1.msra.mxu0 0.0
      %4826 = vmatprep.subr.mxu0 0.0
      %4827 = vmatpush1.msra.mxu0 0.0
      %4828 = vmatprep.subr.mxu0 0.0
      %4829 = vmatpush1.msra.mxu0 0.0
      %4830 = vmatprep.subr.mxu0 0.0
      %4831 = vmatpush1.msra.mxu0 0.0
      %4832 = vmatprep.subr.mxu0 0.0
      %4833 = vmatpush1.msra.mxu0 0.0
      %4834 = vmatprep.subr.mxu0 0.0
      %4835 = vmatpush1.msra.mxu0 0.0
      %4836 = vmatprep.subr.mxu0 0.0
      %4837 = vmatpush1.msra.mxu0 0.0
      %4838 = vmatprep.subr.mxu0 0.0
      %4839 = vmatpush1.msra.mxu0 0.0
      %4840 = vmatprep.subr.mxu0 0.0
      %4841 = vmatpush1.msra.mxu0 0.0
      %4842 = vmatprep.subr.mxu0 0.0
      %4843 = vmatpush1.msra.mxu0 0.0
      %4844 = vmatprep.subr.mxu0 0.0
      %4845 = vmatpush1.msra.mxu0 0.0
      %4846 = vmatprep.subr.mxu0 0.0
      %4847 = vmatpush1.msra.mxu0 0.0
      %4848 = vmatprep.subr.mxu0 0.0
      %4849 = vmatpush1.msra.mxu0 0.0
      %4850 = vmatprep.subr.mxu0 0.0
      %4851 = vmatpush1.msra.mxu0 0.0
      %4852 = vmatprep.subr.mxu0 0.0
      %4853 = vmatpush1.msra.mxu0 0.0
      %4854 = vmatprep.subr.mxu0 0.0
      %4855 = vmatpush1.msra.mxu0 0.0
      %4856 = vmatprep.subr.mxu0 0.0
      %4857 = vmatpush1.msra.mxu0 0.0
      %4858 = vmatprep.subr.mxu0 0.0
      %4859 = vmatpush1.msra.mxu0 0.0
      %4860 = vmatprep.subr.mxu0 0.0
      %4861 = vmatpush1.msra.mxu0 0.0
      %4862 = vmatprep.mubr.f32.mxu0 0.0
      %4863 = vmatmul.mubr.f32.gmra.mrb[0].mxu0 %v4121
      %v4864 = vpop.f32.mrb[0].mxu0
      %v4865 = vadd.f32 0.0, %v4864
      %v4866 = vpop.f32.mrb[0].mxu0
      %4867 = vmatprep.mubr.f32.mxu0 0.0
      %4868 = vmatmul.mubr.f32.gmra.mrb[0].mxu0 %v4124
      %v4869 = vpop.f32.mrb[0].mxu0
      %v4870 = vadd.f32 0.0, %v4869
      %v4871 = vpop.f32.mrb[0].mxu0
      %4872 = vmatprep.mubr.f32.mxu0 0.0
      %4873 = vmatmul.mubr.f32.gmra.mrb[0].mxu0 %v4127
      %v4874 = vpop.f32.mrb[0].mxu0
      %v4875 = vadd.f32 0.0, %v4874
      %v4876 = vpop.f32.mrb[0].mxu0
      %4877 = vmatprep.mubr.f32.mxu0 0.0
      %4878 = vmatmul.mubr.f32.gmra.mrb[0].mxu0 %v4130
      %v4879 = vpop.f32.mrb[0].mxu0
      %v4880 = vadd.f32 0.0, %v4879
      %v4881 = vpop.f32.mrb[0].mxu0
      %4882 = vmatprep.mubr.f32.mxu0 0.0
      %4883 = vmatmul.mubr.f32.gmra.mrb[0].mxu0 %v4133
      %v4884 = vpop.f32.mrb[0].mxu0
      %v4885 = vadd.f32 0.0, %v4884
      %v4886 = vpop.f32.mrb[0].mxu0
      %4887 = vmatprep.mubr.f32.mxu0 0.0
      %4888 = vmatmul.mubr.f32.gmra.mrb[0].mxu0 %v4136
      %v4889 = vpop.f32.mrb[0].mxu0
      %v4890 = vadd.f32 0.0, %v4889
      %v4891 = vpop.f32.mrb[0].mxu0
      %4892 = vmatprep.mubr.f32.mxu0 0.0
      %4893 = vmatmul.mubr.f32.gmra.mrb[0].mxu0 %v4139
      %v4894 = vpop.f32.mrb[0].mxu0
      %v4895 = vadd.f32 0.0, %v4894
      %v4896 = vpop.f32.mrb[0].mxu0
      %4897 = vmatprep.mubr.f32.mxu0 0.0
      %4898 = vmatmul.mubr.f32.gmra.mrb[0].mxu0 %v4142
      %v4899 = vpop.f32.mrb[0].mxu0
      %v4900 = vadd.f32 0.0, %v4899
      %v4901 = vpop.f32.mrb[0].mxu0
      %4902 = vmatprep.mubr.f32.mxu0 0.0
      %4903 = vmatmul.mubr.f32.gmra.mrb[0].mxu0 %v4145
      %v4904 = vpop.f32.mrb[0].mxu0
      %v4905 = vadd.f32 0.0, %v4904
      %v4906 = vpop.f32.mrb[0].mxu0
      %4907 = vmatprep.mubr.f32.mxu0 0.0
      %4908 = vmatmul.mubr.f32.gmra.mrb[0].mxu0 %v4148
      %v4909 = vpop.f32.mrb[0].mxu0
      %v4910 = vadd.f32 0.0, %v4909
      %v4911 = vpop.f32.mrb[0].mxu0
      %4912 = vmatprep.mubr.f32.mxu0 0.0
      %4913 = vmatmul.mubr.f32.gmra.mrb[0].mxu0 %v4151
      %v4914 = vpop.f32.mrb[0].mxu0
      %v4915 = vadd.f32 0.0, %v4914
      %v4916 = vpop.f32.mrb[0].mxu0
      %4917 = vmatprep.mubr.f32.mxu0 0.0
      %4918 = vmatmul.mubr.f32.gmra.mrb[0].mxu0 %v4154
      %v4919 = vpop.f32.mrb[0].mxu0
      %v4920 = vadd.f32 0.0, %v4919
      %v4921 = vpop.f32.mrb[0].mxu0
      %4922 = vmatprep.mubr.f32.mxu0 0.0
      %4923 = vmatmul.mubr.f32.gmra.mrb[0].mxu0 %v4157
      %v4924 = vpop.f32.mrb[0].mxu0
      %v4925 = vadd.f32 0.0, %v4924
      %v4926 = vpop.f32.mrb[0].mxu0
      %4927 = vmatprep.mubr.f32.mxu0 0.0
      %4928 = vmatmul.mubr.f32.gmra.mrb[0].mxu0 %v4160
      %v4929 = vpop.f32.mrb[0].mxu0
      %v4930 = vadd.f32 0.0, %v4929
      %v4931 = vpop.f32.mrb[0].mxu0
      %4932 = vmatprep.mubr.f32.mxu0 0.0
      %4933 = vmatmul.mubr.f32.gmra.mrb[0].mxu0 %v4163
      %v4934 = vpop.f32.mrb[0].mxu0
      %v4935 = vadd.f32 0.0, %v4934
      %v4936 = vpop.f32.mrb[0].mxu0
      %4937 = vmatprep.mubr.f32.mxu0 0.0
      %4938 = vmatmul.mubr.f32.gmra.mrb[0].mxu0 %v4166
      %v4939 = vpop.f32.mrb[0].mxu0
      %v4940 = vadd.f32 0.0, %v4939
      %v4941 = vpop.f32.mrb[0].mxu0
      %4942 = vmatprep.mubr.f32.mxu0 0.0
      %4943 = vmatmul.mubr.f32.gmra.mrb[0].mxu0 %v4169
      %v4944 = vpop.f32.mrb[0].mxu0
      %v4945 = vadd.f32 0.0, %v4944
      %v4946 = vpop.f32.mrb[0].mxu0
      %4947 = vmatprep.mubr.f32.mxu0 0.0
      %4948 = vmatmul.mubr.f32.gmra.mrb[0].mxu0 %v4172
      %v4949 = vpop.f32.mrb[0].mxu0
      %v4950 = vadd.f32 0.0, %v4949
      %v4951 = vpop.f32.mrb[0].mxu0
      %4952 = vmatprep.mubr.f32.mxu0 0.0
      %4953 = vmatmul.mubr.f32.gmra.mrb[0].mxu0 %v4175
      %v4954 = vpop.f32.mrb[0].mxu0
      %v4955 = vadd.f32 0.0, %v4954
      %v4956 = vpop.f32.mrb[0].mxu0
      %4957 = vmatprep.mubr.f32.mxu0 0.0
      %4958 = vmatmul.mubr.f32.gmra.mrb[0].mxu0 %v4178
      %v4959 = vpop.f32.mrb[0].mxu0
      %v4960 = vadd.f32 0.0, %v4959
      %v4961 = vpop.f32.mrb[0].mxu0
      %4962 = vmatprep.mubr.f32.mxu0 0.0
      %4963 = vmatmul.mubr.f32.gmra.mrb[0].mxu0 %v4181
      %v4964 = vpop.f32.mrb[0].mxu0
      %v4965 = vadd.f32 0.0, %v4964
      %v4966 = vpop.f32.mrb[0].mxu0
      %4967 = vmatprep.mubr.f32.mxu0 0.0
      %4968 = vmatmul.mubr.f32.gmra.mrb[0].mxu0 %v4184
      %v4969 = vpop.f32.mrb[0].mxu0
      %v4970 = vadd.f32 0.0, %v4969
      %v4971 = vpop.f32.mrb[0].mxu0
      %4972 = vmatprep.mubr.f32.mxu0 0.0
      %4973 = vmatmul.mubr.f32.gmra.mrb[0].mxu0 %v4187
      %v4974 = vpop.f32.mrb[0].mxu0
      %v4975 = vadd.f32 0.0, %v4974
      %v4976 = vpop.f32.mrb[0].mxu0
      %4977 = vmatprep.mubr.f32.mxu0 0.0
      %4978 = vmatmul.mubr.f32.gmra.mrb[0].mxu0 %v4190
      %v4979 = vpop.f32.mrb[0].mxu0
      %v4980 = vadd.f32 0.0, %v4979
      %v4981 = vpop.f32.mrb[0].mxu0
      %4982 = vmatprep.mubr.f32.mxu0 0.0
      %4983 = vmatmul.mubr.f32.gmra.mrb[0].mxu0 %v4193
      %v4984 = vpop.f32.mrb[0].mxu0
      %v4985 = vadd.f32 0.0, %v4984
      %v4986 = vpop.f32.mrb[0].mxu0
      %4987 = vmatprep.mubr.f32.mxu0 0.0
      %4988 = vmatmul.mubr.f32.gmra.mrb[0].mxu0 %v4196
      %v4989 = vpop.f32.mrb[0].mxu0
      %v4990 = vadd.f32 0.0, %v4989
      %v4991 = vpop.f32.mrb[0].mxu0
      %4992 = vmatprep.mubr.f32.mxu0 0.0
      %4993 = vmatmul.mubr.f32.gmra.mrb[0].mxu0 %v4199
      %v4994 = vpop.f32.mrb[0].mxu0
      %v4995 = vadd.f32 0.0, %v4994
      %v4996 = vpop.f32.mrb[0].mxu0
      %4997 = vmatprep.mubr.f32.mxu0 0.0
      %4998 = vmatmul.mubr.f32.gmra.mrb[0].mxu0 %v4202
      %v4999 = vpop.f32.mrb[0].mxu0
      %v5000 = vadd.f32 0.0, %v4999
      %v5001 = vpop.f32.mrb[0].mxu0
      %5002 = vmatprep.mubr.f32.mxu0 0.0
      %5003 = vmatmul.mubr.f32.gmra.mrb[0].mxu0 %v4205
      %v5004 = vpop.f32.mrb[0].mxu0
      %v5005 = vadd.f32 0.0, %v5004
      %v5006 = vpop.f32.mrb[0].mxu0
      %5007 = vmatprep.mubr.f32.mxu0 0.0
      %5008 = vmatmul.mubr.f32.gmra.mrb[0].mxu0 %v4208
      %v5009 = vpop.f32.mrb[0].mxu0
      %v5010 = vadd.f32 0.0, %v5009
      %v5011 = vpop.f32.mrb[0].mxu0
      %5012 = vmatprep.mubr.f32.mxu0 0.0
      %5013 = vmatmul.mubr.f32.gmra.mrb[0].mxu0 %v4793
      %v5014 = vpop.f32.mrb[0].mxu0
      %v5015 = vadd.f32 0.0, %v5014
      %v5016 = vpop.f32.mrb[0].mxu0
      %5017 = vmatprep.mubr.f32.mxu0 0.0
      %5018 = vmatmul.mubr.f32.gmra.mrb[0].mxu0 %v4796
      %v5019 = vpop.f32.mrb[0].mxu0
      %v5020 = vadd.f32 0.0, %v5019
      %v5021 = vpop.f32.mrb[0].mxu0
      %5022 = vdwg.mxu0
      %v5023 = vadd.f32 %v4758, %v4865
      %v5024 = vadd.f32 %v4759, %v4870
      %v5025 = vadd.f32 %v4760, %v4875
      %v5026 = vadd.f32 %v4761, %v4880
      %v5027 = vadd.f32 %v4762, %v4885
      %v5028 = vadd.f32 %v4763, %v4890
      %v5029 = vadd.f32 %v4764, %v4895
      %v5030 = vadd.f32 %v4765, %v4900
      %v5031 = vadd.f32 %v4766, %v4905
      %v5032 = vadd.f32 %v4767, %v4910
      %v5033 = vadd.f32 %v4768, %v4915
      %v5034 = vadd.f32 %v4769, %v4920
      %v5035 = vadd.f32 %v4770, %v4925
      %v5036 = vadd.f32 %v4771, %v4930
      %v5037 = vadd.f32 %v4772, %v4935
      %v5038 = vadd.f32 %v4773, %v4940
      %v5039 = vadd.f32 %v4774, %v4945
      %v5040 = vadd.f32 %v4775, %v4950
      %v5041 = vadd.f32 %v4776, %v4955
      %v5042 = vadd.f32 %v4777, %v4960
      %v5043 = vadd.f32 %v4778, %v4965
      %v5044 = vadd.f32 %v4779, %v4970
      %v5045 = vadd.f32 %v4780, %v4975
      %v5046 = vadd.f32 %v4781, %v4980
      %v5047 = vadd.f32 %v4782, %v4985
      %v5048 = vadd.f32 %v4783, %v4990
      %v5049 = vadd.f32 %v4784, %v4995
      %v5050 = vadd.f32 %v4785, %v5000
      %v5051 = vadd.f32 %v4786, %v5005
      %v5052 = vadd.f32 %v4787, %v5010
      %v5053 = vadd.f32 %v4788, %v5015
      %v5054 = vadd.f32 %v4789, %v5020
      %s5055 = scalar_lea.vmem %s2, 32
      %v5056 = vld [vmem:[%s5055] sm:$0xff]
      %v5058 = vsel %vm348, %v3570, 0
      %v5061 = vsel %vm348, %v3571, 0
      %5063 = vmatprep.subr.mxu0 0.0
      %5064 = vmatpush1.msra.mxu0 %v5056
      %5065 = vmatprep.subr.mxu0 0.0
      %5066 = vmatpush1.msra.mxu0 0.0
      %5067 = vmatprep.subr.mxu0 0.0
      %5068 = vmatpush1.msra.mxu0 0.0
      %5069 = vmatprep.subr.mxu0 0.0
      %5070 = vmatpush1.msra.mxu0 0.0
      %5071 = vmatprep.subr.mxu0 0.0
      %5072 = vmatpush1.msra.mxu0 0.0
      %5073 = vmatprep.subr.mxu0 0.0
      %5074 = vmatpush1.msra.mxu0 0.0
      %5075 = vmatprep.subr.mxu0 0.0
      %5076 = vmatpush1.msra.mxu0 0.0
      %5077 = vmatprep.subr.mxu0 0.0
      %5078 = vmatpush1.msra.mxu0 0.0
      %5079 = vmatprep.subr.mxu0 0.0
      %5080 = vmatpush1.msra.mxu0 0.0
      %5081 = vmatprep.subr.mxu0 0.0
      %5082 = vmatpush1.msra.mxu0 0.0
      %5083 = vmatprep.subr.mxu0 0.0
      %5084 = vmatpush1.msra.mxu0 0.0
      %5085 = vmatprep.subr.mxu0 0.0
      %5086 = vmatpush1.msra.mxu0 0.0
      %5087 = vmatprep.subr.mxu0 0.0
      %5088 = vmatpush1.msra.mxu0 0.0
      %5089 = vmatprep.subr.mxu0 0.0
      %5090 = vmatpush1.msra.mxu0 0.0
      %5091 = vmatprep.subr.mxu0 0.0
      %5092 = vmatpush1.msra.mxu0 0.0
      %5093 = vmatprep.subr.mxu0 0.0
      %5094 = vmatpush1.msra.mxu0 0.0
      %5095 = vmatprep.subr.mxu0 0.0
      %5096 = vmatpush1.msra.mxu0 0.0
      %5097 = vmatprep.subr.mxu0 0.0
      %5098 = vmatpush1.msra.mxu0 0.0
      %5099 = vmatprep.subr.mxu0 0.0
      %5100 = vmatpush1.msra.mxu0 0.0
      %5101 = vmatprep.subr.mxu0 0.0
      %5102 = vmatpush1.msra.mxu0 0.0
      %5103 = vmatprep.subr.mxu0 0.0
      %5104 = vmatpush1.msra.mxu0 0.0
      %5105 = vmatprep.subr.mxu0 0.0
      %5106 = vmatpush1.msra.mxu0 0.0
      %5107 = vmatprep.subr.mxu0 0.0
      %5108 = vmatpush1.msra.mxu0 0.0
      %5109 = vmatprep.subr.mxu0 0.0
      %5110 = vmatpush1.msra.mxu0 0.0
      %5111 = vmatprep.subr.mxu0 0.0
      %5112 = vmatpush1.msra.mxu0 0.0
      %5113 = vmatprep.subr.mxu0 0.0
      %5114 = vmatpush1.msra.mxu0 0.0
      %5115 = vmatprep.subr.mxu0 0.0
      %5116 = vmatpush1.msra.mxu0 0.0
      %5117 = vmatprep.subr.mxu0 0.0
      %5118 = vmatpush1.msra.mxu0 0.0
      %5119 = vmatprep.subr.mxu0 0.0
      %5120 = vmatpush1.msra.mxu0 0.0
      %5121 = vmatprep.subr.mxu0 0.0
      %5122 = vmatpush1.msra.mxu0 0.0
      %5123 = vmatprep.subr.mxu0 0.0
      %5124 = vmatpush1.msra.mxu0 0.0
      %5125 = vmatprep.subr.mxu0 0.0
      %5126 = vmatpush1.msra.mxu0 0.0
      %5127 = vmatprep.mubr.f32.mxu0 0.0
      %5128 = vmatmul.mubr.f32.gmra.mrb[0].mxu0 %v3800
      %v5129 = vpop.f32.mrb[0].mxu0
      %v5130 = vadd.f32 0.0, %v5129
      %v5131 = vpop.f32.mrb[0].mxu0
      %5132 = vmatprep.mubr.f32.mxu0 0.0
      %5133 = vmatmul.mubr.f32.gmra.mrb[0].mxu0 %v3803
      %v5134 = vpop.f32.mrb[0].mxu0
      %v5135 = vadd.f32 0.0, %v5134
      %v5136 = vpop.f32.mrb[0].mxu0
      %5137 = vmatprep.mubr.f32.mxu0 0.0
      %5138 = vmatmul.mubr.f32.gmra.mrb[0].mxu0 %v3806
      %v5139 = vpop.f32.mrb[0].mxu0
      %v5140 = vadd.f32 0.0, %v5139
      %v5141 = vpop.f32.mrb[0].mxu0
      %5142 = vmatprep.mubr.f32.mxu0 0.0
      %5143 = vmatmul.mubr.f32.gmra.mrb[0].mxu0 %v3809
      %v5144 = vpop.f32.mrb[0].mxu0
      %v5145 = vadd.f32 0.0, %v5144
      %v5146 = vpop.f32.mrb[0].mxu0
      %5147 = vmatprep.mubr.f32.mxu0 0.0
      %5148 = vmatmul.mubr.f32.gmra.mrb[0].mxu0 %v3812
      %v5149 = vpop.f32.mrb[0].mxu0
      %v5150 = vadd.f32 0.0, %v5149
      %v5151 = vpop.f32.mrb[0].mxu0
      %5152 = vmatprep.mubr.f32.mxu0 0.0
      %5153 = vmatmul.mubr.f32.gmra.mrb[0].mxu0 %v3815
      %v5154 = vpop.f32.mrb[0].mxu0
      %v5155 = vadd.f32 0.0, %v5154
      %v5156 = vpop.f32.mrb[0].mxu0
      %5157 = vmatprep.mubr.f32.mxu0 0.0
      %5158 = vmatmul.mubr.f32.gmra.mrb[0].mxu0 %v3818
      %v5159 = vpop.f32.mrb[0].mxu0
      %v5160 = vadd.f32 0.0, %v5159
      %v5161 = vpop.f32.mrb[0].mxu0
      %5162 = vmatprep.mubr.f32.mxu0 0.0
      %5163 = vmatmul.mubr.f32.gmra.mrb[0].mxu0 %v3821
      %v5164 = vpop.f32.mrb[0].mxu0
      %v5165 = vadd.f32 0.0, %v5164
      %v5166 = vpop.f32.mrb[0].mxu0
      %5167 = vmatprep.mubr.f32.mxu0 0.0
      %5168 = vmatmul.mubr.f32.gmra.mrb[0].mxu0 %v3824
      %v5169 = vpop.f32.mrb[0].mxu0
      %v5170 = vadd.f32 0.0, %v5169
      %v5171 = vpop.f32.mrb[0].mxu0
      %5172 = vmatprep.mubr.f32.mxu0 0.0
      %5173 = vmatmul.mubr.f32.gmra.mrb[0].mxu0 %v3827
      %v5174 = vpop.f32.mrb[0].mxu0
      %v5175 = vadd.f32 0.0, %v5174
      %v5176 = vpop.f32.mrb[0].mxu0
      %5177 = vmatprep.mubr.f32.mxu0 0.0
      %5178 = vmatmul.mubr.f32.gmra.mrb[0].mxu0 %v3830
      %v5179 = vpop.f32.mrb[0].mxu0
      %v5180 = vadd.f32 0.0, %v5179
      %v5181 = vpop.f32.mrb[0].mxu0
      %5182 = vmatprep.mubr.f32.mxu0 0.0
      %5183 = vmatmul.mubr.f32.gmra.mrb[0].mxu0 %v3833
      %v5184 = vpop.f32.mrb[0].mxu0
      %v5185 = vadd.f32 0.0, %v5184
      %v5186 = vpop.f32.mrb[0].mxu0
      %5187 = vmatprep.mubr.f32.mxu0 0.0
      %5188 = vmatmul.mubr.f32.gmra.mrb[0].mxu0 %v3836
      %v5189 = vpop.f32.mrb[0].mxu0
      %v5190 = vadd.f32 0.0, %v5189
      %v5191 = vpop.f32.mrb[0].mxu0
      %5192 = vmatprep.mubr.f32.mxu0 0.0
      %5193 = vmatmul.mubr.f32.gmra.mrb[0].mxu0 %v3839
      %v5194 = vpop.f32.mrb[0].mxu0
      %v5195 = vadd.f32 0.0, %v5194
      %v5196 = vpop.f32.mrb[0].mxu0
      %5197 = vmatprep.mubr.f32.mxu0 0.0
      %5198 = vmatmul.mubr.f32.gmra.mrb[0].mxu0 %v3842
      %v5199 = vpop.f32.mrb[0].mxu0
      %v5200 = vadd.f32 0.0, %v5199
      %v5201 = vpop.f32.mrb[0].mxu0
      %5202 = vmatprep.mubr.f32.mxu0 0.0
      %5203 = vmatmul.mubr.f32.gmra.mrb[0].mxu0 %v3845
      %v5204 = vpop.f32.mrb[0].mxu0
      %v5205 = vadd.f32 0.0, %v5204
      %v5206 = vpop.f32.mrb[0].mxu0
      %5207 = vmatprep.mubr.f32.mxu0 0.0
      %5208 = vmatmul.mubr.f32.gmra.mrb[0].mxu0 %v3848
      %v5209 = vpop.f32.mrb[0].mxu0
      %v5210 = vadd.f32 0.0, %v5209
      %v5211 = vpop.f32.mrb[0].mxu0
      %5212 = vmatprep.mubr.f32.mxu0 0.0
      %5213 = vmatmul.mubr.f32.gmra.mrb[0].mxu0 %v3851
      %v5214 = vpop.f32.mrb[0].mxu0
      %v5215 = vadd.f32 0.0, %v5214
      %v5216 = vpop.f32.mrb[0].mxu0
      %5217 = vmatprep.mubr.f32.mxu0 0.0
      %5218 = vmatmul.mubr.f32.gmra.mrb[0].mxu0 %v3854
      %v5219 = vpop.f32.mrb[0].mxu0
      %v5220 = vadd.f32 0.0, %v5219
      %v5221 = vpop.f32.mrb[0].mxu0
      %5222 = vmatprep.mubr.f32.mxu0 0.0
      %5223 = vmatmul.mubr.f32.gmra.mrb[0].mxu0 %v3857
      %v5224 = vpop.f32.mrb[0].mxu0
      %v5225 = vadd.f32 0.0, %v5224
      %v5226 = vpop.f32.mrb[0].mxu0
      %5227 = vmatprep.mubr.f32.mxu0 0.0
      %5228 = vmatmul.mubr.f32.gmra.mrb[0].mxu0 %v3860
      %v5229 = vpop.f32.mrb[0].mxu0
      %v5230 = vadd.f32 0.0, %v5229
      %v5231 = vpop.f32.mrb[0].mxu0
      %5232 = vmatprep.mubr.f32.mxu0 0.0
      %5233 = vmatmul.mubr.f32.gmra.mrb[0].mxu0 %v3863
      %v5234 = vpop.f32.mrb[0].mxu0
      %v5235 = vadd.f32 0.0, %v5234
      %v5236 = vpop.f32.mrb[0].mxu0
      %5237 = vmatprep.mubr.f32.mxu0 0.0
      %5238 = vmatmul.mubr.f32.gmra.mrb[0].mxu0 %v3866
      %v5239 = vpop.f32.mrb[0].mxu0
      %v5240 = vadd.f32 0.0, %v5239
      %v5241 = vpop.f32.mrb[0].mxu0
      %5242 = vmatprep.mubr.f32.mxu0 0.0
      %5243 = vmatmul.mubr.f32.gmra.mrb[0].mxu0 %v3869
      %v5244 = vpop.f32.mrb[0].mxu0
      %v5245 = vadd.f32 0.0, %v5244
      %v5246 = vpop.f32.mrb[0].mxu0
      %5247 = vmatprep.mubr.f32.mxu0 0.0
      %5248 = vmatmul.mubr.f32.gmra.mrb[0].mxu0 %v3872
      %v5249 = vpop.f32.mrb[0].mxu0
      %v5250 = vadd.f32 0.0, %v5249
      %v5251 = vpop.f32.mrb[0].mxu0
      %5252 = vmatprep.mubr.f32.mxu0 0.0
      %5253 = vmatmul.mubr.f32.gmra.mrb[0].mxu0 %v3875
      %v5254 = vpop.f32.mrb[0].mxu0
      %v5255 = vadd.f32 0.0, %v5254
      %v5256 = vpop.f32.mrb[0].mxu0
      %5257 = vmatprep.mubr.f32.mxu0 0.0
      %5258 = vmatmul.mubr.f32.gmra.mrb[0].mxu0 %v3878
      %v5259 = vpop.f32.mrb[0].mxu0
      %v5260 = vadd.f32 0.0, %v5259
      %v5261 = vpop.f32.mrb[0].mxu0
      %5262 = vmatprep.mubr.f32.mxu0 0.0
      %5263 = vmatmul.mubr.f32.gmra.mrb[0].mxu0 %v3881
      %v5264 = vpop.f32.mrb[0].mxu0
      %v5265 = vadd.f32 0.0, %v5264
      %v5266 = vpop.f32.mrb[0].mxu0
      %5267 = vmatprep.mubr.f32.mxu0 0.0
      %5268 = vmatmul.mubr.f32.gmra.mrb[0].mxu0 %v3884
      %v5269 = vpop.f32.mrb[0].mxu0
      %v5270 = vadd.f32 0.0, %v5269
      %v5271 = vpop.f32.mrb[0].mxu0
      %5272 = vmatprep.mubr.f32.mxu0 0.0
      %5273 = vmatmul.mubr.f32.gmra.mrb[0].mxu0 %v3887
      %v5274 = vpop.f32.mrb[0].mxu0
      %v5275 = vadd.f32 0.0, %v5274
      %v5276 = vpop.f32.mrb[0].mxu0
      %5277 = vmatprep.mubr.f32.mxu0 0.0
      %5278 = vmatmul.mubr.f32.gmra.mrb[0].mxu0 %v5058
      %v5279 = vpop.f32.mrb[0].mxu0
      %v5280 = vadd.f32 0.0, %v5279
      %v5281 = vpop.f32.mrb[0].mxu0
      %5282 = vmatprep.mubr.f32.mxu0 0.0
      %5283 = vmatmul.mubr.f32.gmra.mrb[0].mxu0 %v5061
      %v5284 = vpop.f32.mrb[0].mxu0
      %v5285 = vadd.f32 0.0, %v5284
      %v5286 = vpop.f32.mrb[0].mxu0
      %5287 = vdwg.mxu0
      %v5288 = vadd.f32 %v5023, %v5130
      %v5289 = vadd.f32 %v5024, %v5135
      %v5290 = vadd.f32 %v5025, %v5140
      %v5291 = vadd.f32 %v5026, %v5145
      %v5292 = vadd.f32 %v5027, %v5150
      %v5293 = vadd.f32 %v5028, %v5155
      %v5294 = vadd.f32 %v5029, %v5160
      %v5295 = vadd.f32 %v5030, %v5165
      %v5296 = vadd.f32 %v5031, %v5170
      %v5297 = vadd.f32 %v5032, %v5175
      %v5298 = vadd.f32 %v5033, %v5180
      %v5299 = vadd.f32 %v5034, %v5185
      %v5300 = vadd.f32 %v5035, %v5190
      %v5301 = vadd.f32 %v5036, %v5195
      %v5302 = vadd.f32 %v5037, %v5200
      %v5303 = vadd.f32 %v5038, %v5205
      %v5304 = vadd.f32 %v5039, %v5210
      %v5305 = vadd.f32 %v5040, %v5215
      %v5306 = vadd.f32 %v5041, %v5220
      %v5307 = vadd.f32 %v5042, %v5225
      %v5308 = vadd.f32 %v5043, %v5230
      %v5309 = vadd.f32 %v5044, %v5235
      %v5310 = vadd.f32 %v5045, %v5240
      %v5311 = vadd.f32 %v5046, %v5245
      %v5312 = vadd.f32 %v5047, %v5250
      %v5313 = vadd.f32 %v5048, %v5255
      %v5314 = vadd.f32 %v5049, %v5260
      %v5315 = vadd.f32 %v5050, %v5265
      %v5316 = vadd.f32 %v5051, %v5270
      %v5317 = vadd.f32 %v5052, %v5275
      %v5318 = vadd.f32 %v5053, %v5280
      %v5319 = vadd.f32 %v5054, %v5285
      %s5320 = scalar_lea.vmem %s2, 40
      %v5321 = vld [vmem:[%s5320] sm:$0xff]
      %v5323 = vsel %vm348, %v3786, 0
      %v5326 = vsel %vm348, %v3787, 0
      %5328 = vmatprep.subr.mxu0 0.0
      %5329 = vmatpush1.msra.mxu0 %v5321
      %5330 = vmatprep.subr.mxu0 0.0
      %5331 = vmatpush1.msra.mxu0 0.0
      %5332 = vmatprep.subr.mxu0 0.0
      %5333 = vmatpush1.msra.mxu0 0.0
      %5334 = vmatprep.subr.mxu0 0.0
      %5335 = vmatpush1.msra.mxu0 0.0
      %5336 = vmatprep.subr.mxu0 0.0
      %5337 = vmatpush1.msra.mxu0 0.0
      %5338 = vmatprep.subr.mxu0 0.0
      %5339 = vmatpush1.msra.mxu0 0.0
      %5340 = vmatprep.subr.mxu0 0.0
      %5341 = vmatpush1.msra.mxu0 0.0
      %5342 = vmatprep.subr.mxu0 0.0
      %5343 = vmatpush1.msra.mxu0 0.0
      %5344 = vmatprep.subr.mxu0 0.0
      %5345 = vmatpush1.msra.mxu0 0.0
      %5346 = vmatprep.subr.mxu0 0.0
      %5347 = vmatpush1.msra.mxu0 0.0
      %5348 = vmatprep.subr.mxu0 0.0
      %5349 = vmatpush1.msra.mxu0 0.0
      %5350 = vmatprep.subr.mxu0 0.0
      %5351 = vmatpush1.msra.mxu0 0.0
      %5352 = vmatprep.subr.mxu0 0.0
      %5353 = vmatpush1.msra.mxu0 0.0
      %5354 = vmatprep.subr.mxu0 0.0
      %5355 = vmatpush1.msra.mxu0 0.0
      %5356 = vmatprep.subr.mxu0 0.0
      %5357 = vmatpush1.msra.mxu0 0.0
      %5358 = vmatprep.subr.mxu0 0.0
      %5359 = vmatpush1.msra.mxu0 0.0
      %5360 = vmatprep.subr.mxu0 0.0
      %5361 = vmatpush1.msra.mxu0 0.0
      %5362 = vmatprep.subr.mxu0 0.0
      %5363 = vmatpush1.msra.mxu0 0.0
      %5364 = vmatprep.subr.mxu0 0.0
      %5365 = vmatpush1.msra.mxu0 0.0
      %5366 = vmatprep.subr.mxu0 0.0
      %5367 = vmatpush1.msra.mxu0 0.0
      %5368 = vmatprep.subr.mxu0 0.0
      %5369 = vmatpush1.msra.mxu0 0.0
      %5370 = vmatprep.subr.mxu0 0.0
      %5371 = vmatpush1.msra.mxu0 0.0
      %5372 = vmatprep.subr.mxu0 0.0
      %5373 = vmatpush1.msra.mxu0 0.0
      %5374 = vmatprep.subr.mxu0 0.0
      %5375 = vmatpush1.msra.mxu0 0.0
      %5376 = vmatprep.subr.mxu0 0.0
      %5377 = vmatpush1.msra.mxu0 0.0
      %5378 = vmatprep.subr.mxu0 0.0
      %5379 = vmatpush1.msra.mxu0 0.0
      %5380 = vmatprep.subr.mxu0 0.0
      %5381 = vmatpush1.msra.mxu0 0.0
      %5382 = vmatprep.subr.mxu0 0.0
      %5383 = vmatpush1.msra.mxu0 0.0
      %5384 = vmatprep.subr.mxu0 0.0
      %5385 = vmatpush1.msra.mxu0 0.0
      %5386 = vmatprep.subr.mxu0 0.0
      %5387 = vmatpush1.msra.mxu0 0.0
      %5388 = vmatprep.subr.mxu0 0.0
      %5389 = vmatpush1.msra.mxu0 0.0
      %5390 = vmatprep.subr.mxu0 0.0
      %5391 = vmatpush1.msra.mxu0 0.0
      %5392 = vmatprep.mubr.f32.mxu0 0.0
      %5393 = vmatmul.mubr.f32.gmra.mrb[0].mxu0 %v4444
      %v5394 = vpop.f32.mrb[0].mxu0
      %v5395 = vadd.f32 0.0, %v5394
      %v5396 = vpop.f32.mrb[0].mxu0
      %5397 = vmatprep.mubr.f32.mxu0 0.0
      %5398 = vmatmul.mubr.f32.gmra.mrb[0].mxu0 %v4447
      %v5399 = vpop.f32.mrb[0].mxu0
      %v5400 = vadd.f32 0.0, %v5399
      %v5401 = vpop.f32.mrb[0].mxu0
      %5402 = vmatprep.mubr.f32.mxu0 0.0
      %5403 = vmatmul.mubr.f32.gmra.mrb[0].mxu0 %v4450
      %v5404 = vpop.f32.mrb[0].mxu0
      %v5405 = vadd.f32 0.0, %v5404
      %v5406 = vpop.f32.mrb[0].mxu0
      %5407 = vmatprep.mubr.f32.mxu0 0.0
      %5408 = vmatmul.mubr.f32.gmra.mrb[0].mxu0 %v4453
      %v5409 = vpop.f32.mrb[0].mxu0
      %v5410 = vadd.f32 0.0, %v5409
      %v5411 = vpop.f32.mrb[0].mxu0
      %5412 = vmatprep.mubr.f32.mxu0 0.0
      %5413 = vmatmul.mubr.f32.gmra.mrb[0].mxu0 %v4456
      %v5414 = vpop.f32.mrb[0].mxu0
      %v5415 = vadd.f32 0.0, %v5414
      %v5416 = vpop.f32.mrb[0].mxu0
      %5417 = vmatprep.mubr.f32.mxu0 0.0
      %5418 = vmatmul.mubr.f32.gmra.mrb[0].mxu0 %v4459
      %v5419 = vpop.f32.mrb[0].mxu0
      %v5420 = vadd.f32 0.0, %v5419
      %v5421 = vpop.f32.mrb[0].mxu0
      %5422 = vmatprep.mubr.f32.mxu0 0.0
      %5423 = vmatmul.mubr.f32.gmra.mrb[0].mxu0 %v4462
      %v5424 = vpop.f32.mrb[0].mxu0
      %v5425 = vadd.f32 0.0, %v5424
      %v5426 = vpop.f32.mrb[0].mxu0
      %5427 = vmatprep.mubr.f32.mxu0 0.0
      %5428 = vmatmul.mubr.f32.gmra.mrb[0].mxu0 %v4465
      %v5429 = vpop.f32.mrb[0].mxu0
      %v5430 = vadd.f32 0.0, %v5429
      %v5431 = vpop.f32.mrb[0].mxu0
      %5432 = vmatprep.mubr.f32.mxu0 0.0
      %5433 = vmatmul.mubr.f32.gmra.mrb[0].mxu0 %v4468
      %v5434 = vpop.f32.mrb[0].mxu0
      %v5435 = vadd.f32 0.0, %v5434
      %v5436 = vpop.f32.mrb[0].mxu0
      %5437 = vmatprep.mubr.f32.mxu0 0.0
      %5438 = vmatmul.mubr.f32.gmra.mrb[0].mxu0 %v4471
      %v5439 = vpop.f32.mrb[0].mxu0
      %v5440 = vadd.f32 0.0, %v5439
      %v5441 = vpop.f32.mrb[0].mxu0
      %5442 = vmatprep.mubr.f32.mxu0 0.0
      %5443 = vmatmul.mubr.f32.gmra.mrb[0].mxu0 %v4474
      %v5444 = vpop.f32.mrb[0].mxu0
      %v5445 = vadd.f32 0.0, %v5444
      %v5446 = vpop.f32.mrb[0].mxu0
      %5447 = vmatprep.mubr.f32.mxu0 0.0
      %5448 = vmatmul.mubr.f32.gmra.mrb[0].mxu0 %v4477
      %v5449 = vpop.f32.mrb[0].mxu0
      %v5450 = vadd.f32 0.0, %v5449
      %v5451 = vpop.f32.mrb[0].mxu0
      %5452 = vmatprep.mubr.f32.mxu0 0.0
      %5453 = vmatmul.mubr.f32.gmra.mrb[0].mxu0 %v4480
      %v5454 = vpop.f32.mrb[0].mxu0
      %v5455 = vadd.f32 0.0, %v5454
      %v5456 = vpop.f32.mrb[0].mxu0
      %5457 = vmatprep.mubr.f32.mxu0 0.0
      %5458 = vmatmul.mubr.f32.gmra.mrb[0].mxu0 %v4483
      %v5459 = vpop.f32.mrb[0].mxu0
      %v5460 = vadd.f32 0.0, %v5459
      %v5461 = vpop.f32.mrb[0].mxu0
      %5462 = vmatprep.mubr.f32.mxu0 0.0
      %5463 = vmatmul.mubr.f32.gmra.mrb[0].mxu0 %v4486
      %v5464 = vpop.f32.mrb[0].mxu0
      %v5465 = vadd.f32 0.0, %v5464
      %v5466 = vpop.f32.mrb[0].mxu0
      %5467 = vmatprep.mubr.f32.mxu0 0.0
      %5468 = vmatmul.mubr.f32.gmra.mrb[0].mxu0 %v4489
      %v5469 = vpop.f32.mrb[0].mxu0
      %v5470 = vadd.f32 0.0, %v5469
      %v5471 = vpop.f32.mrb[0].mxu0
      %5472 = vmatprep.mubr.f32.mxu0 0.0
      %5473 = vmatmul.mubr.f32.gmra.mrb[0].mxu0 %v4492
      %v5474 = vpop.f32.mrb[0].mxu0
      %v5475 = vadd.f32 0.0, %v5474
      %v5476 = vpop.f32.mrb[0].mxu0
      %5477 = vmatprep.mubr.f32.mxu0 0.0
      %5478 = vmatmul.mubr.f32.gmra.mrb[0].mxu0 %v4495
      %v5479 = vpop.f32.mrb[0].mxu0
      %v5480 = vadd.f32 0.0, %v5479
      %v5481 = vpop.f32.mrb[0].mxu0
      %5482 = vmatprep.mubr.f32.mxu0 0.0
      %5483 = vmatmul.mubr.f32.gmra.mrb[0].mxu0 %v4498
      %v5484 = vpop.f32.mrb[0].mxu0
      %v5485 = vadd.f32 0.0, %v5484
      %v5486 = vpop.f32.mrb[0].mxu0
      %5487 = vmatprep.mubr.f32.mxu0 0.0
      %5488 = vmatmul.mubr.f32.gmra.mrb[0].mxu0 %v4501
      %v5489 = vpop.f32.mrb[0].mxu0
      %v5490 = vadd.f32 0.0, %v5489
      %v5491 = vpop.f32.mrb[0].mxu0
      %5492 = vmatprep.mubr.f32.mxu0 0.0
      %5493 = vmatmul.mubr.f32.gmra.mrb[0].mxu0 %v4504
      %v5494 = vpop.f32.mrb[0].mxu0
      %v5495 = vadd.f32 0.0, %v5494
      %v5496 = vpop.f32.mrb[0].mxu0
      %5497 = vmatprep.mubr.f32.mxu0 0.0
      %5498 = vmatmul.mubr.f32.gmra.mrb[0].mxu0 %v4507
      %v5499 = vpop.f32.mrb[0].mxu0
      %v5500 = vadd.f32 0.0, %v5499
      %v5501 = vpop.f32.mrb[0].mxu0
      %5502 = vmatprep.mubr.f32.mxu0 0.0
      %5503 = vmatmul.mubr.f32.gmra.mrb[0].mxu0 %v4510
      %v5504 = vpop.f32.mrb[0].mxu0
      %v5505 = vadd.f32 0.0, %v5504
      %v5506 = vpop.f32.mrb[0].mxu0
      %5507 = vmatprep.mubr.f32.mxu0 0.0
      %5508 = vmatmul.mubr.f32.gmra.mrb[0].mxu0 %v4513
      %v5509 = vpop.f32.mrb[0].mxu0
      %v5510 = vadd.f32 0.0, %v5509
      %v5511 = vpop.f32.mrb[0].mxu0
      %5512 = vmatprep.mubr.f32.mxu0 0.0
      %5513 = vmatmul.mubr.f32.gmra.mrb[0].mxu0 %v4516
      %v5514 = vpop.f32.mrb[0].mxu0
      %v5515 = vadd.f32 0.0, %v5514
      %v5516 = vpop.f32.mrb[0].mxu0
      %5517 = vmatprep.mubr.f32.mxu0 0.0
      %5518 = vmatmul.mubr.f32.gmra.mrb[0].mxu0 %v4519
      %v5519 = vpop.f32.mrb[0].mxu0
      %v5520 = vadd.f32 0.0, %v5519
      %v5521 = vpop.f32.mrb[0].mxu0
      %5522 = vmatprep.mubr.f32.mxu0 0.0
      %5523 = vmatmul.mubr.f32.gmra.mrb[0].mxu0 %v4522
      %v5524 = vpop.f32.mrb[0].mxu0
      %v5525 = vadd.f32 0.0, %v5524
      %v5526 = vpop.f32.mrb[0].mxu0
      %5527 = vmatprep.mubr.f32.mxu0 0.0
      %5528 = vmatmul.mubr.f32.gmra.mrb[0].mxu0 %v4525
      %v5529 = vpop.f32.mrb[0].mxu0
      %v5530 = vadd.f32 0.0, %v5529
      %v5531 = vpop.f32.mrb[0].mxu0
      %5532 = vmatprep.mubr.f32.mxu0 0.0
      %5533 = vmatmul.mubr.f32.gmra.mrb[0].mxu0 %v4528
      %v5534 = vpop.f32.mrb[0].mxu0
      %v5535 = vadd.f32 0.0, %v5534
      %v5536 = vpop.f32.mrb[0].mxu0
      %5537 = vmatprep.mubr.f32.mxu0 0.0
      %5538 = vmatmul.mubr.f32.gmra.mrb[0].mxu0 %v4531
      %v5539 = vpop.f32.mrb[0].mxu0
      %v5540 = vadd.f32 0.0, %v5539
      %v5541 = vpop.f32.mrb[0].mxu0
      %5542 = vmatprep.mubr.f32.mxu0 0.0
      %5543 = vmatmul.mubr.f32.gmra.mrb[0].mxu0 %v5323
      %v5544 = vpop.f32.mrb[0].mxu0
      %v5545 = vadd.f32 0.0, %v5544
      %v5546 = vpop.f32.mrb[0].mxu0
      %5547 = vmatprep.mubr.f32.mxu0 0.0
      %5548 = vmatmul.mubr.f32.gmra.mrb[0].mxu0 %v5326
      %v5549 = vpop.f32.mrb[0].mxu0
      %v5550 = vadd.f32 0.0, %v5549
      %v5551 = vpop.f32.mrb[0].mxu0
      %5552 = vdwg.mxu0
      %v5553 = vadd.f32 %v5288, %v5395
      %v5554 = vadd.f32 %v5289, %v5400
      %v5555 = vadd.f32 %v5290, %v5405
      %v5556 = vadd.f32 %v5291, %v5410
      %v5557 = vadd.f32 %v5292, %v5415
      %v5558 = vadd.f32 %v5293, %v5420
      %v5559 = vadd.f32 %v5294, %v5425
      %v5560 = vadd.f32 %v5295, %v5430
      %v5561 = vadd.f32 %v5296, %v5435
      %v5562 = vadd.f32 %v5297, %v5440
      %v5563 = vadd.f32 %v5298, %v5445
      %v5564 = vadd.f32 %v5299, %v5450
      %v5565 = vadd.f32 %v5300, %v5455
      %v5566 = vadd.f32 %v5301, %v5460
      %v5567 = vadd.f32 %v5302, %v5465
      %v5568 = vadd.f32 %v5303, %v5470
      %v5569 = vadd.f32 %v5304, %v5475
      %v5570 = vadd.f32 %v5305, %v5480
      %v5571 = vadd.f32 %v5306, %v5485
      %v5572 = vadd.f32 %v5307, %v5490
      %v5573 = vadd.f32 %v5308, %v5495
      %v5574 = vadd.f32 %v5309, %v5500
      %v5575 = vadd.f32 %v5310, %v5505
      %v5576 = vadd.f32 %v5311, %v5510
      %v5577 = vadd.f32 %v5312, %v5515
      %v5578 = vadd.f32 %v5313, %v5520
      %v5579 = vadd.f32 %v5314, %v5525
      %v5580 = vadd.f32 %v5315, %v5530
      %v5581 = vadd.f32 %v5316, %v5535
      %v5582 = vadd.f32 %v5317, %v5540
      %v5583 = vadd.f32 %v5318, %v5545
      %v5584 = vadd.f32 %v5319, %v5550
      %s5585 = scalar_lea.vmem %s2, 48
      %v5586 = vld [vmem:[%s5585] sm:$0xff]
      %v5588 = vsel %vm348, %v3752, 0
      %v5591 = vsel %vm348, %v3753, 0
      %5593 = vmatprep.subr.mxu0 0.0
      %5594 = vmatpush1.msra.mxu0 %v5586
      %5595 = vmatprep.subr.mxu0 0.0
      %5596 = vmatpush1.msra.mxu0 0.0
      %5597 = vmatprep.subr.mxu0 0.0
      %5598 = vmatpush1.msra.mxu0 0.0
      %5599 = vmatprep.subr.mxu0 0.0
      %5600 = vmatpush1.msra.mxu0 0.0
      %5601 = vmatprep.subr.mxu0 0.0
      %5602 = vmatpush1.msra.mxu0 0.0
      %5603 = vmatprep.subr.mxu0 0.0
      %5604 = vmatpush1.msra.mxu0 0.0
      %5605 = vmatprep.subr.mxu0 0.0
      %5606 = vmatpush1.msra.mxu0 0.0
      %5607 = vmatprep.subr.mxu0 0.0
      %5608 = vmatpush1.msra.mxu0 0.0
      %5609 = vmatprep.subr.mxu0 0.0
      %5610 = vmatpush1.msra.mxu0 0.0
      %5611 = vmatprep.subr.mxu0 0.0
      %5612 = vmatpush1.msra.mxu0 0.0
      %5613 = vmatprep.subr.mxu0 0.0
      %5614 = vmatpush1.msra.mxu0 0.0
      %5615 = vmatprep.subr.mxu0 0.0
      %5616 = vmatpush1.msra.mxu0 0.0
      %5617 = vmatprep.subr.mxu0 0.0
      %5618 = vmatpush1.msra.mxu0 0.0
      %5619 = vmatprep.subr.mxu0 0.0
      %5620 = vmatpush1.msra.mxu0 0.0
      %5621 = vmatprep.subr.mxu0 0.0
      %5622 = vmatpush1.msra.mxu0 0.0
      %5623 = vmatprep.subr.mxu0 0.0
      %5624 = vmatpush1.msra.mxu0 0.0
      %5625 = vmatprep.subr.mxu0 0.0
      %5626 = vmatpush1.msra.mxu0 0.0
      %5627 = vmatprep.subr.mxu0 0.0
      %5628 = vmatpush1.msra.mxu0 0.0
      %5629 = vmatprep.subr.mxu0 0.0
      %5630 = vmatpush1.msra.mxu0 0.0
      %5631 = vmatprep.subr.mxu0 0.0
      %5632 = vmatpush1.msra.mxu0 0.0
      %5633 = vmatprep.subr.mxu0 0.0
      %5634 = vmatpush1.msra.mxu0 0.0
      %5635 = vmatprep.subr.mxu0 0.0
      %5636 = vmatpush1.msra.mxu0 0.0
      %5637 = vmatprep.subr.mxu0 0.0
      %5638 = vmatpush1.msra.mxu0 0.0
      %5639 = vmatprep.subr.mxu0 0.0
      %5640 = vmatpush1.msra.mxu0 0.0
      %5641 = vmatprep.subr.mxu0 0.0
      %5642 = vmatpush1.msra.mxu0 0.0
      %5643 = vmatprep.subr.mxu0 0.0
      %5644 = vmatpush1.msra.mxu0 0.0
      %5645 = vmatprep.subr.mxu0 0.0
      %5646 = vmatpush1.msra.mxu0 0.0
      %5647 = vmatprep.subr.mxu0 0.0
      %5648 = vmatpush1.msra.mxu0 0.0
      %5649 = vmatprep.subr.mxu0 0.0
      %5650 = vmatpush1.msra.mxu0 0.0
      %5651 = vmatprep.subr.mxu0 0.0
      %5652 = vmatpush1.msra.mxu0 0.0
      %5653 = vmatprep.subr.mxu0 0.0
      %5654 = vmatpush1.msra.mxu0 0.0
      %5655 = vmatprep.subr.mxu0 0.0
      %5656 = vmatpush1.msra.mxu0 0.0
      %5657 = vmatprep.mubr.f32.mxu0 0.0
      %5658 = vmatmul.mubr.f32.gmra.mrb[0].mxu0 %v4127
      %v5659 = vpop.f32.mrb[0].mxu0
      %v5660 = vadd.f32 0.0, %v5659
      %v5661 = vpop.f32.mrb[0].mxu0
      %5662 = vmatprep.mubr.f32.mxu0 0.0
      %5663 = vmatmul.mubr.f32.gmra.mrb[0].mxu0 %v4130
      %v5664 = vpop.f32.mrb[0].mxu0
      %v5665 = vadd.f32 0.0, %v5664
      %v5666 = vpop.f32.mrb[0].mxu0
      %5667 = vmatprep.mubr.f32.mxu0 0.0
      %5668 = vmatmul.mubr.f32.gmra.mrb[0].mxu0 %v4133
      %v5669 = vpop.f32.mrb[0].mxu0
      %v5670 = vadd.f32 0.0, %v5669
      %v5671 = vpop.f32.mrb[0].mxu0
      %5672 = vmatprep.mubr.f32.mxu0 0.0
      %5673 = vmatmul.mubr.f32.gmra.mrb[0].mxu0 %v4136
      %v5674 = vpop.f32.mrb[0].mxu0
      %v5675 = vadd.f32 0.0, %v5674
      %v5676 = vpop.f32.mrb[0].mxu0
      %5677 = vmatprep.mubr.f32.mxu0 0.0
      %5678 = vmatmul.mubr.f32.gmra.mrb[0].mxu0 %v4139
      %v5679 = vpop.f32.mrb[0].mxu0
      %v5680 = vadd.f32 0.0, %v5679
      %v5681 = vpop.f32.mrb[0].mxu0
      %5682 = vmatprep.mubr.f32.mxu0 0.0
      %5683 = vmatmul.mubr.f32.gmra.mrb[0].mxu0 %v4142
      %v5684 = vpop.f32.mrb[0].mxu0
      %v5685 = vadd.f32 0.0, %v5684
      %v5686 = vpop.f32.mrb[0].mxu0
      %5687 = vmatprep.mubr.f32.mxu0 0.0
      %5688 = vmatmul.mubr.f32.gmra.mrb[0].mxu0 %v4145
      %v5689 = vpop.f32.mrb[0].mxu0
      %v5690 = vadd.f32 0.0, %v5689
      %v5691 = vpop.f32.mrb[0].mxu0
      %5692 = vmatprep.mubr.f32.mxu0 0.0
      %5693 = vmatmul.mubr.f32.gmra.mrb[0].mxu0 %v4148
      %v5694 = vpop.f32.mrb[0].mxu0
      %v5695 = vadd.f32 0.0, %v5694
      %v5696 = vpop.f32.mrb[0].mxu0
      %5697 = vmatprep.mubr.f32.mxu0 0.0
      %5698 = vmatmul.mubr.f32.gmra.mrb[0].mxu0 %v4151
      %v5699 = vpop.f32.mrb[0].mxu0
      %v5700 = vadd.f32 0.0, %v5699
      %v5701 = vpop.f32.mrb[0].mxu0
      %5702 = vmatprep.mubr.f32.mxu0 0.0
      %5703 = vmatmul.mubr.f32.gmra.mrb[0].mxu0 %v4154
      %v5704 = vpop.f32.mrb[0].mxu0
      %v5705 = vadd.f32 0.0, %v5704
      %v5706 = vpop.f32.mrb[0].mxu0
      %5707 = vmatprep.mubr.f32.mxu0 0.0
      %5708 = vmatmul.mubr.f32.gmra.mrb[0].mxu0 %v4157
      %v5709 = vpop.f32.mrb[0].mxu0
      %v5710 = vadd.f32 0.0, %v5709
      %v5711 = vpop.f32.mrb[0].mxu0
      %5712 = vmatprep.mubr.f32.mxu0 0.0
      %5713 = vmatmul.mubr.f32.gmra.mrb[0].mxu0 %v4160
      %v5714 = vpop.f32.mrb[0].mxu0
      %v5715 = vadd.f32 0.0, %v5714
      %v5716 = vpop.f32.mrb[0].mxu0
      %5717 = vmatprep.mubr.f32.mxu0 0.0
      %5718 = vmatmul.mubr.f32.gmra.mrb[0].mxu0 %v4163
      %v5719 = vpop.f32.mrb[0].mxu0
      %v5720 = vadd.f32 0.0, %v5719
      %v5721 = vpop.f32.mrb[0].mxu0
      %5722 = vmatprep.mubr.f32.mxu0 0.0
      %5723 = vmatmul.mubr.f32.gmra.mrb[0].mxu0 %v4166
      %v5724 = vpop.f32.mrb[0].mxu0
      %v5725 = vadd.f32 0.0, %v5724
      %v5726 = vpop.f32.mrb[0].mxu0
      %5727 = vmatprep.mubr.f32.mxu0 0.0
      %5728 = vmatmul.mubr.f32.gmra.mrb[0].mxu0 %v4169
      %v5729 = vpop.f32.mrb[0].mxu0
      %v5730 = vadd.f32 0.0, %v5729
      %v5731 = vpop.f32.mrb[0].mxu0
      %5732 = vmatprep.mubr.f32.mxu0 0.0
      %5733 = vmatmul.mubr.f32.gmra.mrb[0].mxu0 %v4172
      %v5734 = vpop.f32.mrb[0].mxu0
      %v5735 = vadd.f32 0.0, %v5734
      %v5736 = vpop.f32.mrb[0].mxu0
      %5737 = vmatprep.mubr.f32.mxu0 0.0
      %5738 = vmatmul.mubr.f32.gmra.mrb[0].mxu0 %v4175
      %v5739 = vpop.f32.mrb[0].mxu0
      %v5740 = vadd.f32 0.0, %v5739
      %v5741 = vpop.f32.mrb[0].mxu0
      %5742 = vmatprep.mubr.f32.mxu0 0.0
      %5743 = vmatmul.mubr.f32.gmra.mrb[0].mxu0 %v4178
      %v5744 = vpop.f32.mrb[0].mxu0
      %v5745 = vadd.f32 0.0, %v5744
      %v5746 = vpop.f32.mrb[0].mxu0
      %5747 = vmatprep.mubr.f32.mxu0 0.0
      %5748 = vmatmul.mubr.f32.gmra.mrb[0].mxu0 %v4181
      %v5749 = vpop.f32.mrb[0].mxu0
      %v5750 = vadd.f32 0.0, %v5749
      %v5751 = vpop.f32.mrb[0].mxu0
      %5752 = vmatprep.mubr.f32.mxu0 0.0
      %5753 = vmatmul.mubr.f32.gmra.mrb[0].mxu0 %v4184
      %v5754 = vpop.f32.mrb[0].mxu0
      %v5755 = vadd.f32 0.0, %v5754
      %v5756 = vpop.f32.mrb[0].mxu0
      %5757 = vmatprep.mubr.f32.mxu0 0.0
      %5758 = vmatmul.mubr.f32.gmra.mrb[0].mxu0 %v4187
      %v5759 = vpop.f32.mrb[0].mxu0
      %v5760 = vadd.f32 0.0, %v5759
      %v5761 = vpop.f32.mrb[0].mxu0
      %5762 = vmatprep.mubr.f32.mxu0 0.0
      %5763 = vmatmul.mubr.f32.gmra.mrb[0].mxu0 %v4190
      %v5764 = vpop.f32.mrb[0].mxu0
      %v5765 = vadd.f32 0.0, %v5764
      %v5766 = vpop.f32.mrb[0].mxu0
      %5767 = vmatprep.mubr.f32.mxu0 0.0
      %5768 = vmatmul.mubr.f32.gmra.mrb[0].mxu0 %v4193
      %v5769 = vpop.f32.mrb[0].mxu0
      %v5770 = vadd.f32 0.0, %v5769
      %v5771 = vpop.f32.mrb[0].mxu0
      %5772 = vmatprep.mubr.f32.mxu0 0.0
      %5773 = vmatmul.mubr.f32.gmra.mrb[0].mxu0 %v4196
      %v5774 = vpop.f32.mrb[0].mxu0
      %v5775 = vadd.f32 0.0, %v5774
      %v5776 = vpop.f32.mrb[0].mxu0
      %5777 = vmatprep.mubr.f32.mxu0 0.0
      %5778 = vmatmul.mubr.f32.gmra.mrb[0].mxu0 %v4199
      %v5779 = vpop.f32.mrb[0].mxu0
      %v5780 = vadd.f32 0.0, %v5779
      %v5781 = vpop.f32.mrb[0].mxu0
      %5782 = vmatprep.mubr.f32.mxu0 0.0
      %5783 = vmatmul.mubr.f32.gmra.mrb[0].mxu0 %v4202
      %v5784 = vpop.f32.mrb[0].mxu0
      %v5785 = vadd.f32 0.0, %v5784
      %v5786 = vpop.f32.mrb[0].mxu0
      %5787 = vmatprep.mubr.f32.mxu0 0.0
      %5788 = vmatmul.mubr.f32.gmra.mrb[0].mxu0 %v4205
      %v5789 = vpop.f32.mrb[0].mxu0
      %v5790 = vadd.f32 0.0, %v5789
      %v5791 = vpop.f32.mrb[0].mxu0
      %5792 = vmatprep.mubr.f32.mxu0 0.0
      %5793 = vmatmul.mubr.f32.gmra.mrb[0].mxu0 %v4208
      %v5794 = vpop.f32.mrb[0].mxu0
      %v5795 = vadd.f32 0.0, %v5794
      %v5796 = vpop.f32.mrb[0].mxu0
      %5797 = vmatprep.mubr.f32.mxu0 0.0
      %5798 = vmatmul.mubr.f32.gmra.mrb[0].mxu0 %v4793
      %v5799 = vpop.f32.mrb[0].mxu0
      %v5800 = vadd.f32 0.0, %v5799
      %v5801 = vpop.f32.mrb[0].mxu0
      %5802 = vmatprep.mubr.f32.mxu0 0.0
      %5803 = vmatmul.mubr.f32.gmra.mrb[0].mxu0 %v4796
      %v5804 = vpop.f32.mrb[0].mxu0
      %v5805 = vadd.f32 0.0, %v5804
      %v5806 = vpop.f32.mrb[0].mxu0
      %5807 = vmatprep.mubr.f32.mxu0 0.0
      %5808 = vmatmul.mubr.f32.gmra.mrb[0].mxu0 %v5588
      %v5809 = vpop.f32.mrb[0].mxu0
      %v5810 = vadd.f32 0.0, %v5809
      %v5811 = vpop.f32.mrb[0].mxu0
      %5812 = vmatprep.mubr.f32.mxu0 0.0
      %5813 = vmatmul.mubr.f32.gmra.mrb[0].mxu0 %v5591
      %v5814 = vpop.f32.mrb[0].mxu0
      %v5815 = vadd.f32 0.0, %v5814
      %v5816 = vpop.f32.mrb[0].mxu0
      %5817 = vdwg.mxu0
      %v5818 = vadd.f32 %v5553, %v5660
      %v5819 = vadd.f32 %v5554, %v5665
      %v5820 = vadd.f32 %v5555, %v5670
      %v5821 = vadd.f32 %v5556, %v5675
      %v5822 = vadd.f32 %v5557, %v5680
      %v5823 = vadd.f32 %v5558, %v5685
      %v5824 = vadd.f32 %v5559, %v5690
      %v5825 = vadd.f32 %v5560, %v5695
      %v5826 = vadd.f32 %v5561, %v5700
      %v5827 = vadd.f32 %v5562, %v5705
      %v5828 = vadd.f32 %v5563, %v5710
      %v5829 = vadd.f32 %v5564, %v5715
      %v5830 = vadd.f32 %v5565, %v5720
      %v5831 = vadd.f32 %v5566, %v5725
      %v5832 = vadd.f32 %v5567, %v5730
      %v5833 = vadd.f32 %v5568, %v5735
      %v5834 = vadd.f32 %v5569, %v5740
      %v5835 = vadd.f32 %v5570, %v5745
      %v5836 = vadd.f32 %v5571, %v5750
      %v5837 = vadd.f32 %v5572, %v5755
      %v5838 = vadd.f32 %v5573, %v5760
      %v5839 = vadd.f32 %v5574, %v5765
      %v5840 = vadd.f32 %v5575, %v5770
      %v5841 = vadd.f32 %v5576, %v5775
      %v5842 = vadd.f32 %v5577, %v5780
      %v5843 = vadd.f32 %v5578, %v5785
      %v5844 = vadd.f32 %v5579, %v5790
      %v5845 = vadd.f32 %v5580, %v5795
      %v5846 = vadd.f32 %v5581, %v5800
      %v5847 = vadd.f32 %v5582, %v5805
      %v5848 = vadd.f32 %v5583, %v5810
      %v5849 = vadd.f32 %v5584, %v5815
      %s5850 = scalar_lea.vmem %s2, 56
      %v5851 = vld [vmem:[%s5850] sm:$0xff]
      %v5853 = vsel %vm348, %v3572, 0
      %v5856 = vsel %vm348, %v3573, 0
      %5858 = vmatprep.subr.mxu0 0.0
      %5859 = vmatpush1.msra.mxu0 %v5851
      %5860 = vmatprep.subr.mxu0 0.0
      %5861 = vmatpush1.msra.mxu0 0.0
      %5862 = vmatprep.subr.mxu0 0.0
      %5863 = vmatpush1.msra.mxu0 0.0
      %5864 = vmatprep.subr.mxu0 0.0
      %5865 = vmatpush1.msra.mxu0 0.0
      %5866 = vmatprep.subr.mxu0 0.0
      %5867 = vmatpush1.msra.mxu0 0.0
      %5868 = vmatprep.subr.mxu0 0.0
      %5869 = vmatpush1.msra.mxu0 0.0
      %5870 = vmatprep.subr.mxu0 0.0
      %5871 = vmatpush1.msra.mxu0 0.0
      %5872 = vmatprep.subr.mxu0 0.0
      %5873 = vmatpush1.msra.mxu0 0.0
      %5874 = vmatprep.subr.mxu0 0.0
      %5875 = vmatpush1.msra.mxu0 0.0
      %5876 = vmatprep.subr.mxu0 0.0
      %5877 = vmatpush1.msra.mxu0 0.0
      %5878 = vmatprep.subr.mxu0 0.0
      %5879 = vmatpush1.msra.mxu0 0.0
      %5880 = vmatprep.subr.mxu0 0.0
      %5881 = vmatpush1.msra.mxu0 0.0
      %5882 = vmatprep.subr.mxu0 0.0
      %5883 = vmatpush1.msra.mxu0 0.0
      %5884 = vmatprep.subr.mxu0 0.0
      %5885 = vmatpush1.msra.mxu0 0.0
      %5886 = vmatprep.subr.mxu0 0.0
      %5887 = vmatpush1.msra.mxu0 0.0
      %5888 = vmatprep.subr.mxu0 0.0
      %5889 = vmatpush1.msra.mxu0 0.0
      %5890 = vmatprep.subr.mxu0 0.0
      %5891 = vmatpush1.msra.mxu0 0.0
      %5892 = vmatprep.subr.mxu0 0.0
      %5893 = vmatpush1.msra.mxu0 0.0
      %5894 = vmatprep.subr.mxu0 0.0
      %5895 = vmatpush1.msra.mxu0 0.0
      %5896 = vmatprep.subr.mxu0 0.0
      %5897 = vmatpush1.msra.mxu0 0.0
      %5898 = vmatprep.subr.mxu0 0.0
      %5899 = vmatpush1.msra.mxu0 0.0
      %5900 = vmatprep.subr.mxu0 0.0
      %5901 = vmatpush1.msra.mxu0 0.0
      %5902 = vmatprep.subr.mxu0 0.0
      %5903 = vmatpush1.msra.mxu0 0.0
      %5904 = vmatprep.subr.mxu0 0.0
      %5905 = vmatpush1.msra.mxu0 0.0
      %5906 = vmatprep.subr.mxu0 0.0
      %5907 = vmatpush1.msra.mxu0 0.0
      %5908 = vmatprep.subr.mxu0 0.0
      %5909 = vmatpush1.msra.mxu0 0.0
      %5910 = vmatprep.subr.mxu0 0.0
      %5911 = vmatpush1.msra.mxu0 0.0
      %5912 = vmatprep.subr.mxu0 0.0
      %5913 = vmatpush1.msra.mxu0 0.0
      %5914 = vmatprep.subr.mxu0 0.0
      %5915 = vmatpush1.msra.mxu0 0.0
      %5916 = vmatprep.subr.mxu0 0.0
      %5917 = vmatpush1.msra.mxu0 0.0
      %5918 = vmatprep.subr.mxu0 0.0
      %5919 = vmatpush1.msra.mxu0 0.0
      %5920 = vmatprep.subr.mxu0 0.0
      %5921 = vmatpush1.msra.mxu0 0.0
      %5922 = vmatprep.mubr.f32.mxu0 0.0
      %5923 = vmatmul.mubr.f32.gmra.mrb[0].mxu0 %v3806
      %v5924 = vpop.f32.mrb[0].mxu0
      %v5925 = vadd.f32 0.0, %v5924
      %v5926 = vpop.f32.mrb[0].mxu0
      %5927 = vmatprep.mubr.f32.mxu0 0.0
      %5928 = vmatmul.mubr.f32.gmra.mrb[0].mxu0 %v3809
      %v5929 = vpop.f32.mrb[0].mxu0
      %v5930 = vadd.f32 0.0, %v5929
      %v5931 = vpop.f32.mrb[0].mxu0
      %5932 = vmatprep.mubr.f32.mxu0 0.0
      %5933 = vmatmul.mubr.f32.gmra.mrb[0].mxu0 %v3812
      %v5934 = vpop.f32.mrb[0].mxu0
      %v5935 = vadd.f32 0.0, %v5934
      %v5936 = vpop.f32.mrb[0].mxu0
      %5937 = vmatprep.mubr.f32.mxu0 0.0
      %5938 = vmatmul.mubr.f32.gmra.mrb[0].mxu0 %v3815
      %v5939 = vpop.f32.mrb[0].mxu0
      %v5940 = vadd.f32 0.0, %v5939
      %v5941 = vpop.f32.mrb[0].mxu0
      %5942 = vmatprep.mubr.f32.mxu0 0.0
      %5943 = vmatmul.mubr.f32.gmra.mrb[0].mxu0 %v3818
      %v5944 = vpop.f32.mrb[0].mxu0
      %v5945 = vadd.f32 0.0, %v5944
      %v5946 = vpop.f32.mrb[0].mxu0
      %5947 = vmatprep.mubr.f32.mxu0 0.0
      %5948 = vmatmul.mubr.f32.gmra.mrb[0].mxu0 %v3821
      %v5949 = vpop.f32.mrb[0].mxu0
      %v5950 = vadd.f32 0.0, %v5949
      %v5951 = vpop.f32.mrb[0].mxu0
      %5952 = vmatprep.mubr.f32.mxu0 0.0
      %5953 = vmatmul.mubr.f32.gmra.mrb[0].mxu0 %v3824
      %v5954 = vpop.f32.mrb[0].mxu0
      %v5955 = vadd.f32 0.0, %v5954
      %v5956 = vpop.f32.mrb[0].mxu0
      %5957 = vmatprep.mubr.f32.mxu0 0.0
      %5958 = vmatmul.mubr.f32.gmra.mrb[0].mxu0 %v3827
      %v5959 = vpop.f32.mrb[0].mxu0
      %v5960 = vadd.f32 0.0, %v5959
      %v5961 = vpop.f32.mrb[0].mxu0
      %5962 = vmatprep.mubr.f32.mxu0 0.0
      %5963 = vmatmul.mubr.f32.gmra.mrb[0].mxu0 %v3830
      %v5964 = vpop.f32.mrb[0].mxu0
      %v5965 = vadd.f32 0.0, %v5964
      %v5966 = vpop.f32.mrb[0].mxu0
      %5967 = vmatprep.mubr.f32.mxu0 0.0
      %5968 = vmatmul.mubr.f32.gmra.mrb[0].mxu0 %v3833
      %v5969 = vpop.f32.mrb[0].mxu0
      %v5970 = vadd.f32 0.0, %v5969
      %v5971 = vpop.f32.mrb[0].mxu0
      %5972 = vmatprep.mubr.f32.mxu0 0.0
      %5973 = vmatmul.mubr.f32.gmra.mrb[0].mxu0 %v3836
      %v5974 = vpop.f32.mrb[0].mxu0
      %v5975 = vadd.f32 0.0, %v5974
      %v5976 = vpop.f32.mrb[0].mxu0
      %5977 = vmatprep.mubr.f32.mxu0 0.0
      %5978 = vmatmul.mubr.f32.gmra.mrb[0].mxu0 %v3839
      %v5979 = vpop.f32.mrb[0].mxu0
      %v5980 = vadd.f32 0.0, %v5979
      %v5981 = vpop.f32.mrb[0].mxu0
      %5982 = vmatprep.mubr.f32.mxu0 0.0
      %5983 = vmatmul.mubr.f32.gmra.mrb[0].mxu0 %v3842
      %v5984 = vpop.f32.mrb[0].mxu0
      %v5985 = vadd.f32 0.0, %v5984
      %v5986 = vpop.f32.mrb[0].mxu0
      %5987 = vmatprep.mubr.f32.mxu0 0.0
      %5988 = vmatmul.mubr.f32.gmra.mrb[0].mxu0 %v3845
      %v5989 = vpop.f32.mrb[0].mxu0
      %v5990 = vadd.f32 0.0, %v5989
      %v5991 = vpop.f32.mrb[0].mxu0
      %5992 = vmatprep.mubr.f32.mxu0 0.0
      %5993 = vmatmul.mubr.f32.gmra.mrb[0].mxu0 %v3848
      %v5994 = vpop.f32.mrb[0].mxu0
      %v5995 = vadd.f32 0.0, %v5994
      %v5996 = vpop.f32.mrb[0].mxu0
      %5997 = vmatprep.mubr.f32.mxu0 0.0
      %5998 = vmatmul.mubr.f32.gmra.mrb[0].mxu0 %v3851
      %v5999 = vpop.f32.mrb[0].mxu0
      %v6000 = vadd.f32 0.0, %v5999
      %v6001 = vpop.f32.mrb[0].mxu0
      %6002 = vmatprep.mubr.f32.mxu0 0.0
      %6003 = vmatmul.mubr.f32.gmra.mrb[0].mxu0 %v3854
      %v6004 = vpop.f32.mrb[0].mxu0
      %v6005 = vadd.f32 0.0, %v6004
      %v6006 = vpop.f32.mrb[0].mxu0
      %6007 = vmatprep.mubr.f32.mxu0 0.0
      %6008 = vmatmul.mubr.f32.gmra.mrb[0].mxu0 %v3857
      %v6009 = vpop.f32.mrb[0].mxu0
      %v6010 = vadd.f32 0.0, %v6009
      %v6011 = vpop.f32.mrb[0].mxu0
      %6012 = vmatprep.mubr.f32.mxu0 0.0
      %6013 = vmatmul.mubr.f32.gmra.mrb[0].mxu0 %v3860
      %v6014 = vpop.f32.mrb[0].mxu0
      %v6015 = vadd.f32 0.0, %v6014
      %v6016 = vpop.f32.mrb[0].mxu0
      %6017 = vmatprep.mubr.f32.mxu0 0.0
      %6018 = vmatmul.mubr.f32.gmra.mrb[0].mxu0 %v3863
      %v6019 = vpop.f32.mrb[0].mxu0
      %v6020 = vadd.f32 0.0, %v6019
      %v6021 = vpop.f32.mrb[0].mxu0
      %6022 = vmatprep.mubr.f32.mxu0 0.0
      %6023 = vmatmul.mubr.f32.gmra.mrb[0].mxu0 %v3866
      %v6024 = vpop.f32.mrb[0].mxu0
      %v6025 = vadd.f32 0.0, %v6024
      %v6026 = vpop.f32.mrb[0].mxu0
      %6027 = vmatprep.mubr.f32.mxu0 0.0
      %6028 = vmatmul.mubr.f32.gmra.mrb[0].mxu0 %v3869
      %v6029 = vpop.f32.mrb[0].mxu0
      %v6030 = vadd.f32 0.0, %v6029
      %v6031 = vpop.f32.mrb[0].mxu0
      %6032 = vmatprep.mubr.f32.mxu0 0.0
      %6033 = vmatmul.mubr.f32.gmra.mrb[0].mxu0 %v3872
      %v6034 = vpop.f32.mrb[0].mxu0
      %v6035 = vadd.f32 0.0, %v6034
      %v6036 = vpop.f32.mrb[0].mxu0
      %6037 = vmatprep.mubr.f32.mxu0 0.0
      %6038 = vmatmul.mubr.f32.gmra.mrb[0].mxu0 %v3875
      %v6039 = vpop.f32.mrb[0].mxu0
      %v6040 = vadd.f32 0.0, %v6039
      %v6041 = vpop.f32.mrb[0].mxu0
      %6042 = vmatprep.mubr.f32.mxu0 0.0
      %6043 = vmatmul.mubr.f32.gmra.mrb[0].mxu0 %v3878
      %v6044 = vpop.f32.mrb[0].mxu0
      %v6045 = vadd.f32 0.0, %v6044
      %v6046 = vpop.f32.mrb[0].mxu0
      %6047 = vmatprep.mubr.f32.mxu0 0.0
      %6048 = vmatmul.mubr.f32.gmra.mrb[0].mxu0 %v3881
      %v6049 = vpop.f32.mrb[0].mxu0
      %v6050 = vadd.f32 0.0, %v6049
      %v6051 = vpop.f32.mrb[0].mxu0
      %6052 = vmatprep.mubr.f32.mxu0 0.0
      %6053 = vmatmul.mubr.f32.gmra.mrb[0].mxu0 %v3884
      %v6054 = vpop.f32.mrb[0].mxu0
      %v6055 = vadd.f32 0.0, %v6054
      %v6056 = vpop.f32.mrb[0].mxu0
      %6057 = vmatprep.mubr.f32.mxu0 0.0
      %6058 = vmatmul.mubr.f32.gmra.mrb[0].mxu0 %v3887
      %v6059 = vpop.f32.mrb[0].mxu0
      %v6060 = vadd.f32 0.0, %v6059
      %v6061 = vpop.f32.mrb[0].mxu0
      %6062 = vmatprep.mubr.f32.mxu0 0.0
      %6063 = vmatmul.mubr.f32.gmra.mrb[0].mxu0 %v5058
      %v6064 = vpop.f32.mrb[0].mxu0
      %v6065 = vadd.f32 0.0, %v6064
      %v6066 = vpop.f32.mrb[0].mxu0
      %6067 = vmatprep.mubr.f32.mxu0 0.0
      %6068 = vmatmul.mubr.f32.gmra.mrb[0].mxu0 %v5061
      %v6069 = vpop.f32.mrb[0].mxu0
      %v6070 = vadd.f32 0.0, %v6069
      %v6071 = vpop.f32.mrb[0].mxu0
      %6072 = vmatprep.mubr.f32.mxu0 0.0
      %6073 = vmatmul.mubr.f32.gmra.mrb[0].mxu0 %v5853
      %v6074 = vpop.f32.mrb[0].mxu0
      %v6075 = vadd.f32 0.0, %v6074
      %v6076 = vpop.f32.mrb[0].mxu0
      %6077 = vmatprep.mubr.f32.mxu0 0.0
      %6078 = vmatmul.mubr.f32.gmra.mrb[0].mxu0 %v5856
      %v6079 = vpop.f32.mrb[0].mxu0
      %v6080 = vadd.f32 0.0, %v6079
      %v6081 = vpop.f32.mrb[0].mxu0
      %6082 = vdwg.mxu0
      %v6083 = vadd.f32 %v5818, %v5925
      %v6084 = vadd.f32 %v5819, %v5930
      %v6085 = vadd.f32 %v5820, %v5935
      %v6086 = vadd.f32 %v5821, %v5940
      %v6087 = vadd.f32 %v5822, %v5945
      %v6088 = vadd.f32 %v5823, %v5950
      %v6089 = vadd.f32 %v5824, %v5955
      %v6090 = vadd.f32 %v5825, %v5960
      %v6091 = vadd.f32 %v5826, %v5965
      %v6092 = vadd.f32 %v5827, %v5970
      %v6093 = vadd.f32 %v5828, %v5975
      %v6094 = vadd.f32 %v5829, %v5980
      %v6095 = vadd.f32 %v5830, %v5985
      %v6096 = vadd.f32 %v5831, %v5990
      %v6097 = vadd.f32 %v5832, %v5995
      %v6098 = vadd.f32 %v5833, %v6000
      %v6099 = vadd.f32 %v5834, %v6005
      %v6100 = vadd.f32 %v5835, %v6010
      %v6101 = vadd.f32 %v5836, %v6015
      %v6102 = vadd.f32 %v5837, %v6020
      %v6103 = vadd.f32 %v5838, %v6025
      %v6104 = vadd.f32 %v5839, %v6030
      %v6105 = vadd.f32 %v5840, %v6035
      %v6106 = vadd.f32 %v5841, %v6040
      %v6107 = vadd.f32 %v5842, %v6045
      %v6108 = vadd.f32 %v5843, %v6050
      %v6109 = vadd.f32 %v5844, %v6055
      %v6110 = vadd.f32 %v5845, %v6060
      %v6111 = vadd.f32 %v5846, %v6065
      %v6112 = vadd.f32 %v5847, %v6070
      %v6113 = vadd.f32 %v5848, %v6075
      %v6114 = vadd.f32 %v5849, %v6080
      %s6115 = scalar_lea.vmem %s2, 64
      %v6116 = vld [vmem:[%s6115] sm:$0xff]
      %v6118 = vsel %vm348, %v3788, 0
      %v6121 = vsel %vm348, %v3789, 0
      %6123 = vmatprep.subr.mxu0 0.0
      %6124 = vmatpush1.msra.mxu0 %v6116
      %6125 = vmatprep.subr.mxu0 0.0
      %6126 = vmatpush1.msra.mxu0 0.0
      %6127 = vmatprep.subr.mxu0 0.0
      %6128 = vmatpush1.msra.mxu0 0.0
      %6129 = vmatprep.subr.mxu0 0.0
      %6130 = vmatpush1.msra.mxu0 0.0
      %6131 = vmatprep.subr.mxu0 0.0
      %6132 = vmatpush1.msra.mxu0 0.0
      %6133 = vmatprep.subr.mxu0 0.0
      %6134 = vmatpush1.msra.mxu0 0.0
      %6135 = vmatprep.subr.mxu0 0.0
      %6136 = vmatpush1.msra.mxu0 0.0
      %6137 = vmatprep.subr.mxu0 0.0
      %6138 = vmatpush1.msra.mxu0 0.0
      %6139 = vmatprep.subr.mxu0 0.0
      %6140 = vmatpush1.msra.mxu0 0.0
      %6141 = vmatprep.subr.mxu0 0.0
      %6142 = vmatpush1.msra.mxu0 0.0
      %6143 = vmatprep.subr.mxu0 0.0
      %6144 = vmatpush1.msra.mxu0 0.0
      %6145 = vmatprep.subr.mxu0 0.0
      %6146 = vmatpush1.msra.mxu0 0.0
      %6147 = vmatprep.subr.mxu0 0.0
      %6148 = vmatpush1.msra.mxu0 0.0
      %6149 = vmatprep.subr.mxu0 0.0
      %6150 = vmatpush1.msra.mxu0 0.0
      %6151 = vmatprep.subr.mxu0 0.0
      %6152 = vmatpush1.msra.mxu0 0.0
      %6153 = vmatprep.subr.mxu0 0.0
      %6154 = vmatpush1.msra.mxu0 0.0
      %6155 = vmatprep.subr.mxu0 0.0
      %6156 = vmatpush1.msra.mxu0 0.0
      %6157 = vmatprep.subr.mxu0 0.0
      %6158 = vmatpush1.msra.mxu0 0.0
      %6159 = vmatprep.subr.mxu0 0.0
      %6160 = vmatpush1.msra.mxu0 0.0
      %6161 = vmatprep.subr.mxu0 0.0
      %6162 = vmatpush1.msra.mxu0 0.0
      %6163 = vmatprep.subr.mxu0 0.0
      %6164 = vmatpush1.msra.mxu0 0.0
      %6165 = vmatprep.subr.mxu0 0.0
      %6166 = vmatpush1.msra.mxu0 0.0
      %6167 = vmatprep.subr.mxu0 0.0
      %6168 = vmatpush1.msra.mxu0 0.0
      %6169 = vmatprep.subr.mxu0 0.0
      %6170 = vmatpush1.msra.mxu0 0.0
      %6171 = vmatprep.subr.mxu0 0.0
      %6172 = vmatpush1.msra.mxu0 0.0
      %6173 = vmatprep.subr.mxu0 0.0
      %6174 = vmatpush1.msra.mxu0 0.0
      %6175 = vmatprep.subr.mxu0 0.0
      %6176 = vmatpush1.msra.mxu0 0.0
      %6177 = vmatprep.subr.mxu0 0.0
      %6178 = vmatpush1.msra.mxu0 0.0
      %6179 = vmatprep.subr.mxu0 0.0
      %6180 = vmatpush1.msra.mxu0 0.0
      %6181 = vmatprep.subr.mxu0 0.0
      %6182 = vmatpush1.msra.mxu0 0.0
      %6183 = vmatprep.subr.mxu0 0.0
      %6184 = vmatpush1.msra.mxu0 0.0
      %6185 = vmatprep.subr.mxu0 0.0
      %6186 = vmatpush1.msra.mxu0 0.0
      %6187 = vmatprep.mubr.f32.mxu0 0.0
      %6188 = vmatmul.mubr.f32.gmra.mrb[0].mxu0 %v4450
      %v6189 = vpop.f32.mrb[0].mxu0
      %v6190 = vadd.f32 0.0, %v6189
      %v6191 = vpop.f32.mrb[0].mxu0
      %6192 = vmatprep.mubr.f32.mxu0 0.0
      %6193 = vmatmul.mubr.f32.gmra.mrb[0].mxu0 %v4453
      %v6194 = vpop.f32.mrb[0].mxu0
      %v6195 = vadd.f32 0.0, %v6194
      %v6196 = vpop.f32.mrb[0].mxu0
      %6197 = vmatprep.mubr.f32.mxu0 0.0
      %6198 = vmatmul.mubr.f32.gmra.mrb[0].mxu0 %v4456
      %v6199 = vpop.f32.mrb[0].mxu0
      %v6200 = vadd.f32 0.0, %v6199
      %v6201 = vpop.f32.mrb[0].mxu0
      %6202 = vmatprep.mubr.f32.mxu0 0.0
      %6203 = vmatmul.mubr.f32.gmra.mrb[0].mxu0 %v4459
      %v6204 = vpop.f32.mrb[0].mxu0
      %v6205 = vadd.f32 0.0, %v6204
      %v6206 = vpop.f32.mrb[0].mxu0
      %6207 = vmatprep.mubr.f32.mxu0 0.0
      %6208 = vmatmul.mubr.f32.gmra.mrb[0].mxu0 %v4462
      %v6209 = vpop.f32.mrb[0].mxu0
      %v6210 = vadd.f32 0.0, %v6209
      %v6211 = vpop.f32.mrb[0].mxu0
      %6212 = vmatprep.mubr.f32.mxu0 0.0
      %6213 = vmatmul.mubr.f32.gmra.mrb[0].mxu0 %v4465
      %v6214 = vpop.f32.mrb[0].mxu0
      %v6215 = vadd.f32 0.0, %v6214
      %v6216 = vpop.f32.mrb[0].mxu0
      %6217 = vmatprep.mubr.f32.mxu0 0.0
      %6218 = vmatmul.mubr.f32.gmra.mrb[0].mxu0 %v4468
      %v6219 = vpop.f32.mrb[0].mxu0
      %v6220 = vadd.f32 0.0, %v6219
      %v6221 = vpop.f32.mrb[0].mxu0
      %6222 = vmatprep.mubr.f32.mxu0 0.0
      %6223 = vmatmul.mubr.f32.gmra.mrb[0].mxu0 %v4471
      %v6224 = vpop.f32.mrb[0].mxu0
      %v6225 = vadd.f32 0.0, %v6224
      %v6226 = vpop.f32.mrb[0].mxu0
      %6227 = vmatprep.mubr.f32.mxu0 0.0
      %6228 = vmatmul.mubr.f32.gmra.mrb[0].mxu0 %v4474
      %v6229 = vpop.f32.mrb[0].mxu0
      %v6230 = vadd.f32 0.0, %v6229
      %v6231 = vpop.f32.mrb[0].mxu0
      %6232 = vmatprep.mubr.f32.mxu0 0.0
      %6233 = vmatmul.mubr.f32.gmra.mrb[0].mxu0 %v4477
      %v6234 = vpop.f32.mrb[0].mxu0
      %v6235 = vadd.f32 0.0, %v6234
      %v6236 = vpop.f32.mrb[0].mxu0
      %6237 = vmatprep.mubr.f32.mxu0 0.0
      %6238 = vmatmul.mubr.f32.gmra.mrb[0].mxu0 %v4480
      %v6239 = vpop.f32.mrb[0].mxu0
      %v6240 = vadd.f32 0.0, %v6239
      %v6241 = vpop.f32.mrb[0].mxu0
      %6242 = vmatprep.mubr.f32.mxu0 0.0
      %6243 = vmatmul.mubr.f32.gmra.mrb[0].mxu0 %v4483
      %v6244 = vpop.f32.mrb[0].mxu0
      %v6245 = vadd.f32 0.0, %v6244
      %v6246 = vpop.f32.mrb[0].mxu0
      %6247 = vmatprep.mubr.f32.mxu0 0.0
      %6248 = vmatmul.mubr.f32.gmra.mrb[0].mxu0 %v4486
      %v6249 = vpop.f32.mrb[0].mxu0
      %v6250 = vadd.f32 0.0, %v6249
      %v6251 = vpop.f32.mrb[0].mxu0
      %6252 = vmatprep.mubr.f32.mxu0 0.0
      %6253 = vmatmul.mubr.f32.gmra.mrb[0].mxu0 %v4489
      %v6254 = vpop.f32.mrb[0].mxu0
      %v6255 = vadd.f32 0.0, %v6254
      %v6256 = vpop.f32.mrb[0].mxu0
      %6257 = vmatprep.mubr.f32.mxu0 0.0
      %6258 = vmatmul.mubr.f32.gmra.mrb[0].mxu0 %v4492
      %v6259 = vpop.f32.mrb[0].mxu0
      %v6260 = vadd.f32 0.0, %v6259
      %v6261 = vpop.f32.mrb[0].mxu0
      %6262 = vmatprep.mubr.f32.mxu0 0.0
      %6263 = vmatmul.mubr.f32.gmra.mrb[0].mxu0 %v4495
      %v6264 = vpop.f32.mrb[0].mxu0
      %v6265 = vadd.f32 0.0, %v6264
      %v6266 = vpop.f32.mrb[0].mxu0
      %6267 = vmatprep.mubr.f32.mxu0 0.0
      %6268 = vmatmul.mubr.f32.gmra.mrb[0].mxu0 %v4498
      %v6269 = vpop.f32.mrb[0].mxu0
      %v6270 = vadd.f32 0.0, %v6269
      %v6271 = vpop.f32.mrb[0].mxu0
      %6272 = vmatprep.mubr.f32.mxu0 0.0
      %6273 = vmatmul.mubr.f32.gmra.mrb[0].mxu0 %v4501
      %v6274 = vpop.f32.mrb[0].mxu0
      %v6275 = vadd.f32 0.0, %v6274
      %v6276 = vpop.f32.mrb[0].mxu0
      %6277 = vmatprep.mubr.f32.mxu0 0.0
      %6278 = vmatmul.mubr.f32.gmra.mrb[0].mxu0 %v4504
      %v6279 = vpop.f32.mrb[0].mxu0
      %v6280 = vadd.f32 0.0, %v6279
      %v6281 = vpop.f32.mrb[0].mxu0
      %6282 = vmatprep.mubr.f32.mxu0 0.0
      %6283 = vmatmul.mubr.f32.gmra.mrb[0].mxu0 %v4507
      %v6284 = vpop.f32.mrb[0].mxu0
      %v6285 = vadd.f32 0.0, %v6284
      %v6286 = vpop.f32.mrb[0].mxu0
      %6287 = vmatprep.mubr.f32.mxu0 0.0
      %6288 = vmatmul.mubr.f32.gmra.mrb[0].mxu0 %v4510
      %v6289 = vpop.f32.mrb[0].mxu0
      %v6290 = vadd.f32 0.0, %v6289
      %v6291 = vpop.f32.mrb[0].mxu0
      %6292 = vmatprep.mubr.f32.mxu0 0.0
      %6293 = vmatmul.mubr.f32.gmra.mrb[0].mxu0 %v4513
      %v6294 = vpop.f32.mrb[0].mxu0
      %v6295 = vadd.f32 0.0, %v6294
      %v6296 = vpop.f32.mrb[0].mxu0
      %6297 = vmatprep.mubr.f32.mxu0 0.0
      %6298 = vmatmul.mubr.f32.gmra.mrb[0].mxu0 %v4516
      %v6299 = vpop.f32.mrb[0].mxu0
      %v6300 = vadd.f32 0.0, %v6299
      %v6301 = vpop.f32.mrb[0].mxu0
      %6302 = vmatprep.mubr.f32.mxu0 0.0
      %6303 = vmatmul.mubr.f32.gmra.mrb[0].mxu0 %v4519
      %v6304 = vpop.f32.mrb[0].mxu0
      %v6305 = vadd.f32 0.0, %v6304
      %v6306 = vpop.f32.mrb[0].mxu0
      %6307 = vmatprep.mubr.f32.mxu0 0.0
      %6308 = vmatmul.mubr.f32.gmra.mrb[0].mxu0 %v4522
      %v6309 = vpop.f32.mrb[0].mxu0
      %v6310 = vadd.f32 0.0, %v6309
      %v6311 = vpop.f32.mrb[0].mxu0
      %6312 = vmatprep.mubr.f32.mxu0 0.0
      %6313 = vmatmul.mubr.f32.gmra.mrb[0].mxu0 %v4525
      %v6314 = vpop.f32.mrb[0].mxu0
      %v6315 = vadd.f32 0.0, %v6314
      %v6316 = vpop.f32.mrb[0].mxu0
      %6317 = vmatprep.mubr.f32.mxu0 0.0
      %6318 = vmatmul.mubr.f32.gmra.mrb[0].mxu0 %v4528
      %v6319 = vpop.f32.mrb[0].mxu0
      %v6320 = vadd.f32 0.0, %v6319
      %v6321 = vpop.f32.mrb[0].mxu0
      %6322 = vmatprep.mubr.f32.mxu0 0.0
      %6323 = vmatmul.mubr.f32.gmra.mrb[0].mxu0 %v4531
      %v6324 = vpop.f32.mrb[0].mxu0
      %v6325 = vadd.f32 0.0, %v6324
      %v6326 = vpop.f32.mrb[0].mxu0
      %6327 = vmatprep.mubr.f32.mxu0 0.0
      %6328 = vmatmul.mubr.f32.gmra.mrb[0].mxu0 %v5323
      %v6329 = vpop.f32.mrb[0].mxu0
      %v6330 = vadd.f32 0.0, %v6329
      %v6331 = vpop.f32.mrb[0].mxu0
      %6332 = vmatprep.mubr.f32.mxu0 0.0
      %6333 = vmatmul.mubr.f32.gmra.mrb[0].mxu0 %v5326
      %v6334 = vpop.f32.mrb[0].mxu0
      %v6335 = vadd.f32 0.0, %v6334
      %v6336 = vpop.f32.mrb[0].mxu0
      %6337 = vmatprep.mubr.f32.mxu0 0.0
      %6338 = vmatmul.mubr.f32.gmra.mrb[0].mxu0 %v6118
      %v6339 = vpop.f32.mrb[0].mxu0
      %v6340 = vadd.f32 0.0, %v6339
      %v6341 = vpop.f32.mrb[0].mxu0
      %6342 = vmatprep.mubr.f32.mxu0 0.0
      %6343 = vmatmul.mubr.f32.gmra.mrb[0].mxu0 %v6121
      %v6344 = vpop.f32.mrb[0].mxu0
      %v6345 = vadd.f32 0.0, %v6344
      %v6346 = vpop.f32.mrb[0].mxu0
      %6347 = vdwg.mxu0
      %v6348 = vadd.f32 %v6083, %v6190
      %v6349 = vadd.f32 %v6084, %v6195
      %v6350 = vadd.f32 %v6085, %v6200
      %v6351 = vadd.f32 %v6086, %v6205
      %v6352 = vadd.f32 %v6087, %v6210
      %v6353 = vadd.f32 %v6088, %v6215
      %v6354 = vadd.f32 %v6089, %v6220
      %v6355 = vadd.f32 %v6090, %v6225
      %v6356 = vadd.f32 %v6091, %v6230
      %v6357 = vadd.f32 %v6092, %v6235
      %v6358 = vadd.f32 %v6093, %v6240
      %v6359 = vadd.f32 %v6094, %v6245
      %v6360 = vadd.f32 %v6095, %v6250
      %v6361 = vadd.f32 %v6096, %v6255
      %v6362 = vadd.f32 %v6097, %v6260
      %v6363 = vadd.f32 %v6098, %v6265
      %v6364 = vadd.f32 %v6099, %v6270
      %v6365 = vadd.f32 %v6100, %v6275
      %v6366 = vadd.f32 %v6101, %v6280
      %v6367 = vadd.f32 %v6102, %v6285
      %v6368 = vadd.f32 %v6103, %v6290
      %v6369 = vadd.f32 %v6104, %v6295
      %v6370 = vadd.f32 %v6105, %v6300
      %v6371 = vadd.f32 %v6106, %v6305
      %v6372 = vadd.f32 %v6107, %v6310
      %v6373 = vadd.f32 %v6108, %v6315
      %v6374 = vadd.f32 %v6109, %v6320
      %v6375 = vadd.f32 %v6110, %v6325
      %v6376 = vadd.f32 %v6111, %v6330
      %v6377 = vadd.f32 %v6112, %v6335
      %v6378 = vadd.f32 %v6113, %v6340
      %v6379 = vadd.f32 %v6114, %v6345
      %v6380 = vsel %vm348, %v6348, 0.0
      %v6381 = vsel %vm348, %v6349, 0.0
      %v6382 = vadd.f32 %v6380, %v6381
      %v6383 = vsel %vm348, %v6350, 0.0
      %v6384 = vadd.f32 %v6382, %v6383
      %v6385 = vsel %vm348, %v6351, 0.0
      %v6386 = vadd.f32 %v6384, %v6385
      %v6387 = vsel %vm348, %v6352, 0.0
      %v6388 = vadd.f32 %v6386, %v6387
      %v6389 = vsel %vm348, %v6353, 0.0
      %v6390 = vadd.f32 %v6388, %v6389
      %v6391 = vsel %vm348, %v6354, 0.0
      %v6392 = vadd.f32 %v6390, %v6391
      %v6393 = vsel %vm348, %v6355, 0.0
      %v6394 = vadd.f32 %v6392, %v6393
      %v6395 = vsel %vm348, %v6356, 0.0
      %v6396 = vadd.f32 %v6394, %v6395
      %v6397 = vsel %vm348, %v6357, 0.0
      %v6398 = vadd.f32 %v6396, %v6397
      %v6399 = vsel %vm348, %v6358, 0.0
      %v6400 = vadd.f32 %v6398, %v6399
      %v6401 = vsel %vm348, %v6359, 0.0
      %v6402 = vadd.f32 %v6400, %v6401
      %v6403 = vsel %vm348, %v6360, 0.0
      %v6404 = vadd.f32 %v6402, %v6403
      %v6405 = vsel %vm348, %v6361, 0.0
      %v6406 = vadd.f32 %v6404, %v6405
      %v6407 = vsel %vm348, %v6362, 0.0
      %v6408 = vadd.f32 %v6406, %v6407
      %v6409 = vsel %vm348, %v6363, 0.0
      %v6410 = vadd.f32 %v6408, %v6409
      %v6411 = vsel %vm348, %v6364, 0.0
      %v6412 = vadd.f32 %v6410, %v6411
      %v6413 = vsel %vm348, %v6365, 0.0
      %v6414 = vadd.f32 %v6412, %v6413
      %v6415 = vsel %vm348, %v6366, 0.0
      %v6416 = vadd.f32 %v6414, %v6415
      %v6417 = vsel %vm348, %v6367, 0.0
      %v6418 = vadd.f32 %v6416, %v6417
      %v6419 = vsel %vm348, %v6368, 0.0
      %v6420 = vadd.f32 %v6418, %v6419
      %v6421 = vsel %vm348, %v6369, 0.0
      %v6422 = vadd.f32 %v6420, %v6421
      %v6423 = vsel %vm348, %v6370, 0.0
      %v6424 = vadd.f32 %v6422, %v6423
      %v6425 = vsel %vm348, %v6371, 0.0
      %v6426 = vadd.f32 %v6424, %v6425
      %v6427 = vsel %vm348, %v6372, 0.0
      %v6428 = vadd.f32 %v6426, %v6427
      %v6429 = vsel %vm348, %v6373, 0.0
      %v6430 = vadd.f32 %v6428, %v6429
      %v6431 = vsel %vm348, %v6374, 0.0
      %v6432 = vadd.f32 %v6430, %v6431
      %v6433 = vsel %vm348, %v6375, 0.0
      %v6434 = vadd.f32 %v6432, %v6433
      %v6435 = vsel %vm348, %v6376, 0.0
      %v6436 = vadd.f32 %v6434, %v6435
      %v6437 = vsel %vm348, %v6377, 0.0
      %v6438 = vadd.f32 %v6436, %v6437
      %v6439 = vsel %vm348, %v6378, 0.0
      %v6440 = vadd.f32 %v6438, %v6439
      %v6441 = vsel %vm348, %v6379, 0.0
      %v6442 = vadd.f32 %v6440, %v6441
      %v6443 = vrot.slane %v6442, 4
      %v6444 = vadd.f32 %v6442, %v6443
      %v6445 = vrot.slane %v6444, 2
      %v6446 = vadd.f32 %v6444, %v6445
      %v6447 = vrot.slane %v6446, 1
      %v6448 = vadd.f32 %v6446, %v6447
      %v6449 = vmul.f32 %v6448, 0.00390625
      %v6450 = vmul.f32 %v6348, %v6348
      %v6451 = vmul.f32 %v6349, %v6349
      %v6452 = vmul.f32 %v6350, %v6350
      %v6453 = vmul.f32 %v6351, %v6351
      %v6454 = vmul.f32 %v6352, %v6352
      %v6455 = vmul.f32 %v6353, %v6353
      %v6456 = vmul.f32 %v6354, %v6354
      %v6457 = vmul.f32 %v6355, %v6355
      %v6458 = vmul.f32 %v6356, %v6356
      %v6459 = vmul.f32 %v6357, %v6357
      %v6460 = vmul.f32 %v6358, %v6358
      %v6461 = vmul.f32 %v6359, %v6359
      %v6462 = vmul.f32 %v6360, %v6360
      %v6463 = vmul.f32 %v6361, %v6361
      %v6464 = vmul.f32 %v6362, %v6362
      %v6465 = vmul.f32 %v6363, %v6363
      %v6466 = vmul.f32 %v6364, %v6364
      %v6467 = vmul.f32 %v6365, %v6365
      %v6468 = vmul.f32 %v6366, %v6366
      %v6469 = vmul.f32 %v6367, %v6367
      %v6470 = vmul.f32 %v6368, %v6368
      %v6471 = vmul.f32 %v6369, %v6369
      %v6472 = vmul.f32 %v6370, %v6370
      %v6473 = vmul.f32 %v6371, %v6371
      %v6474 = vmul.f32 %v6372, %v6372
      %v6475 = vmul.f32 %v6373, %v6373
      %v6476 = vmul.f32 %v6374, %v6374
      %v6477 = vmul.f32 %v6375, %v6375
      %v6478 = vmul.f32 %v6376, %v6376
      %v6479 = vmul.f32 %v6377, %v6377
      %v6480 = vmul.f32 %v6378, %v6378
      %v6481 = vmul.f32 %v6379, %v6379
      %v6482 = vsel %vm348, %v6450, 0.0
      %v6483 = vsel %vm348, %v6451, 0.0
      %v6484 = vadd.f32 %v6482, %v6483
      %v6485 = vsel %vm348, %v6452, 0.0
      %v6486 = vadd.f32 %v6484, %v6485
      %v6487 = vsel %vm348, %v6453, 0.0
      %v6488 = vadd.f32 %v6486, %v6487
      %v6489 = vsel %vm348, %v6454, 0.0
      %v6490 = vadd.f32 %v6488, %v6489
      %v6491 = vsel %vm348, %v6455, 0.0
      %v6492 = vadd.f32 %v6490, %v6491
      %v6493 = vsel %vm348, %v6456, 0.0
      %v6494 = vadd.f32 %v6492, %v6493
      %v6495 = vsel %vm348, %v6457, 0.0
      %v6496 = vadd.f32 %v6494, %v6495
      %v6497 = vsel %vm348, %v6458, 0.0
      %v6498 = vadd.f32 %v6496, %v6497
      %v6499 = vsel %vm348, %v6459, 0.0
      %v6500 = vadd.f32 %v6498, %v6499
      %v6501 = vsel %vm348, %v6460, 0.0
      %v6502 = vadd.f32 %v6500, %v6501
      %v6503 = vsel %vm348, %v6461, 0.0
      %v6504 = vadd.f32 %v6502, %v6503
      %v6505 = vsel %vm348, %v6462, 0.0
      %v6506 = vadd.f32 %v6504, %v6505
      %v6507 = vsel %vm348, %v6463, 0.0
      %v6508 = vadd.f32 %v6506, %v6507
      %v6509 = vsel %vm348, %v6464, 0.0
      %v6510 = vadd.f32 %v6508, %v6509
      %v6511 = vsel %vm348, %v6465, 0.0
      %v6512 = vadd.f32 %v6510, %v6511
      %v6513 = vsel %vm348, %v6466, 0.0
      %v6514 = vadd.f32 %v6512, %v6513
      %v6515 = vsel %vm348, %v6467, 0.0
      %v6516 = vadd.f32 %v6514, %v6515
      %v6517 = vsel %vm348, %v6468, 0.0
      %v6518 = vadd.f32 %v6516, %v6517
      %v6519 = vsel %vm348, %v6469, 0.0
      %v6520 = vadd.f32 %v6518, %v6519
      %v6521 = vsel %vm348, %v6470, 0.0
      %v6522 = vadd.f32 %v6520, %v6521
      %v6523 = vsel %vm348, %v6471, 0.0
      %v6524 = vadd.f32 %v6522, %v6523
      %v6525 = vsel %vm348, %v6472, 0.0
      %v6526 = vadd.f32 %v6524, %v6525
      %v6527 = vsel %vm348, %v6473, 0.0
      %v6528 = vadd.f32 %v6526, %v6527
      %v6529 = vsel %vm348, %v6474, 0.0
      %v6530 = vadd.f32 %v6528, %v6529
      %v6531 = vsel %vm348, %v6475, 0.0
      %v6532 = vadd.f32 %v6530, %v6531
      %v6533 = vsel %vm348, %v6476, 0.0
      %v6534 = vadd.f32 %v6532, %v6533
      %v6535 = vsel %vm348, %v6477, 0.0
      %v6536 = vadd.f32 %v6534, %v6535
      %v6537 = vsel %vm348, %v6478, 0.0
      %v6538 = vadd.f32 %v6536, %v6537
      %v6539 = vsel %vm348, %v6479, 0.0
      %v6540 = vadd.f32 %v6538, %v6539
      %v6541 = vsel %vm348, %v6480, 0.0
      %v6542 = vadd.f32 %v6540, %v6541
      %v6543 = vsel %vm348, %v6481, 0.0
      %v6544 = vadd.f32 %v6542, %v6543
      %v6545 = vrot.slane %v6544, 4
      %v6546 = vadd.f32 %v6544, %v6545
      %v6547 = vrot.slane %v6546, 2
      %v6548 = vadd.f32 %v6546, %v6547
      %v6549 = vrot.slane %v6548, 1
      %v6550 = vadd.f32 %v6548, %v6549
      %v6551 = vmul.f32 %v6550, 0.00390625
      %v6552 = vmul.f32 %v6449, %v6449
      %v6553 = vsub.f32 %v6551, %v6552
      %v6554 = vmax.f32 %v6553, 0.0
      %v6555 = vsub.f32 %v6348, %v6449
      %v6556 = vsub.f32 %v6349, %v6449
      %v6557 = vsub.f32 %v6350, %v6449
      %v6558 = vsub.f32 %v6351, %v6449
      %v6559 = vsub.f32 %v6352, %v6449
      %v6560 = vsub.f32 %v6353, %v6449
      %v6561 = vsub.f32 %v6354, %v6449
      %v6562 = vsub.f32 %v6355, %v6449
      %v6563 = vsub.f32 %v6356, %v6449
      %v6564 = vsub.f32 %v6357, %v6449
      %v6565 = vsub.f32 %v6358, %v6449
      %v6566 = vsub.f32 %v6359, %v6449
      %v6567 = vsub.f32 %v6360, %v6449
      %v6568 = vsub.f32 %v6361, %v6449
      %v6569 = vsub.f32 %v6362, %v6449
      %v6570 = vsub.f32 %v6363, %v6449
      %v6571 = vsub.f32 %v6364, %v6449
      %v6572 = vsub.f32 %v6365, %v6449
      %v6573 = vsub.f32 %v6366, %v6449
      %v6574 = vsub.f32 %v6367, %v6449
      %v6575 = vsub.f32 %v6368, %v6449
      %v6576 = vsub.f32 %v6369, %v6449
      %v6577 = vsub.f32 %v6370, %v6449
      %v6578 = vsub.f32 %v6371, %v6449
      %v6579 = vsub.f32 %v6372, %v6449
      %v6580 = vsub.f32 %v6373, %v6449
      %v6581 = vsub.f32 %v6374, %v6449
      %v6582 = vsub.f32 %v6375, %v6449
      %v6583 = vsub.f32 %v6376, %v6449
      %v6584 = vsub.f32 %v6377, %v6449
      %v6585 = vsub.f32 %v6378, %v6449
      %v6586 = vsub.f32 %v6379, %v6449
      %v6587 = vadd.f32 %v6554, 1e-05
      %v6588 = vrsqrt.pop %v6587
      %v6589 = vmul.f32 %v6555, %v6588
      %v6590 = vmul.f32 %v6556, %v6588
      %v6591 = vmul.f32 %v6557, %v6588
      %v6592 = vmul.f32 %v6558, %v6588
      %v6593 = vmul.f32 %v6559, %v6588
      %v6594 = vmul.f32 %v6560, %v6588
      %v6595 = vmul.f32 %v6561, %v6588
      %v6596 = vmul.f32 %v6562, %v6588
      %v6597 = vmul.f32 %v6563, %v6588
      %v6598 = vmul.f32 %v6564, %v6588
      %v6599 = vmul.f32 %v6565, %v6588
      %v6600 = vmul.f32 %v6566, %v6588
      %v6601 = vmul.f32 %v6567, %v6588
      %v6602 = vmul.f32 %v6568, %v6588
      %v6603 = vmul.f32 %v6569, %v6588
      %v6604 = vmul.f32 %v6570, %v6588
      %v6605 = vmul.f32 %v6571, %v6588
      %v6606 = vmul.f32 %v6572, %v6588
      %v6607 = vmul.f32 %v6573, %v6588
      %v6608 = vmul.f32 %v6574, %v6588
      %v6609 = vmul.f32 %v6575, %v6588
      %v6610 = vmul.f32 %v6576, %v6588
      %v6611 = vmul.f32 %v6577, %v6588
      %v6612 = vmul.f32 %v6578, %v6588
      %v6613 = vmul.f32 %v6579, %v6588
      %v6614 = vmul.f32 %v6580, %v6588
      %v6615 = vmul.f32 %v6581, %v6588
      %v6616 = vmul.f32 %v6582, %v6588
      %v6617 = vmul.f32 %v6583, %v6588
      %v6618 = vmul.f32 %v6584, %v6588
      %v6619 = vmul.f32 %v6585, %v6588
      %v6620 = vmul.f32 %v6586, %v6588
      %v6621 = vadd.f32 %v316, %v6589
      %v6622 = vadd.f32 %v317, %v6590
      %v6623 = vadd.f32 %v318, %v6591
      %v6624 = vadd.f32 %v319, %v6592
      %v6625 = vadd.f32 %v320, %v6593
      %v6626 = vadd.f32 %v321, %v6594
      %v6627 = vadd.f32 %v322, %v6595
      %v6628 = vadd.f32 %v323, %v6596
      %v6629 = vadd.f32 %v324, %v6597
      %v6630 = vadd.f32 %v325, %v6598
      %v6631 = vadd.f32 %v326, %v6599
      %v6632 = vadd.f32 %v327, %v6600
      %v6633 = vadd.f32 %v328, %v6601
      %v6634 = vadd.f32 %v329, %v6602
      %v6635 = vadd.f32 %v330, %v6603
      %v6636 = vadd.f32 %v331, %v6604
      %v6637 = vadd.f32 %v332, %v6605
      %v6638 = vadd.f32 %v333, %v6606
      %v6639 = vadd.f32 %v334, %v6607
      %v6640 = vadd.f32 %v335, %v6608
      %v6641 = vadd.f32 %v336, %v6609
      %v6642 = vadd.f32 %v337, %v6610
      %v6643 = vadd.f32 %v338, %v6611
      %v6644 = vadd.f32 %v339, %v6612
      %v6645 = vadd.f32 %v340, %v6613
      %v6646 = vadd.f32 %v341, %v6614
      %v6647 = vadd.f32 %v342, %v6615
      %v6648 = vadd.f32 %v343, %v6616
      %v6649 = vadd.f32 %v344, %v6617
      %v6650 = vadd.f32 %v345, %v6618
      %v6651 = vadd.f32 %v346, %v6619
      %v6652 = vadd.f32 %v347, %v6620
      %6653 = vst.msk [vmem:[%s170] sm:$0xff] %vm348, %v6621
      %6654 = vst.msk [vmem:[%s170 + $0x8] sm:$0xff] %vm348, %v6622
      %6655 = vst.msk [vmem:[%s170 + $0x10] sm:$0xff] %vm348, %v6623
      %6656 = vst.msk [vmem:[%s170 + $0x18] sm:$0xff] %vm348, %v6624
      %6657 = vst.msk [vmem:[%s170 + $0x20] sm:$0xff] %vm348, %v6625
      %6658 = vst.msk [vmem:[%s170 + $0x28] sm:$0xff] %vm348, %v6626
      %6659 = vst.msk [vmem:[%s170 + $0x30] sm:$0xff] %vm348, %v6627
      %6660 = vst.msk [vmem:[%s170 + $0x38] sm:$0xff] %vm348, %v6628
      %6661 = vst.msk [vmem:[%s170 + $0x40] sm:$0xff] %vm348, %v6629
      %6662 = vst.msk [vmem:[%s170 + $0x48] sm:$0xff] %vm348, %v6630
      %6663 = vst.msk [vmem:[%s170 + $0x50] sm:$0xff] %vm348, %v6631
      %6664 = vst.msk [vmem:[%s170 + $0x58] sm:$0xff] %vm348, %v6632
      %6665 = vst.msk [vmem:[%s170 + $0x60] sm:$0xff] %vm348, %v6633
      %6666 = vst.msk [vmem:[%s170 + $0x68] sm:$0xff] %vm348, %v6634
      %6667 = vst.msk [vmem:[%s170 + $0x70] sm:$0xff] %vm348, %v6635
      %6668 = vst.msk [vmem:[%s170 + $0x78] sm:$0xff] %vm348, %v6636
      %6669 = vst.msk [vmem:[%s170 + $0x80] sm:$0xff] %vm348, %v6637
      %6670 = vst.msk [vmem:[%s170 + $0x88] sm:$0xff] %vm348, %v6638
      %6671 = vst.msk [vmem:[%s170 + $0x90] sm:$0xff] %vm348, %v6639
      %6672 = vst.msk [vmem:[%s170 + $0x98] sm:$0xff] %vm348, %v6640
      %6673 = vst.msk [vmem:[%s170 + $0xa0] sm:$0xff] %vm348, %v6641
      %6674 = vst.msk [vmem:[%s170 + $0xa8] sm:$0xff] %vm348, %v6642
      %6675 = vst.msk [vmem:[%s170 + $0xb0] sm:$0xff] %vm348, %v6643
      %6676 = vst.msk [vmem:[%s170 + $0xb8] sm:$0xff] %vm348, %v6644
      %6677 = vst.msk [vmem:[%s170 + $0xc0] sm:$0xff] %vm348, %v6645
      %6678 = vst.msk [vmem:[%s170 + $0xc8] sm:$0xff] %vm348, %v6646
      %6679 = vst.msk [vmem:[%s170 + $0xd0] sm:$0xff] %vm348, %v6647
      %6680 = vst.msk [vmem:[%s170 + $0xd8] sm:$0xff] %vm348, %v6648
      %6681 = vst.msk [vmem:[%s170 + $0xe0] sm:$0xff] %vm348, %v6649
      %6682 = vst.msk [vmem:[%s170 + $0xe8] sm:$0xff] %vm348, %v6650
      %6683 = vst.msk [vmem:[%s170 + $0xf0] sm:$0xff] %vm348, %v6651
      %6684 = vst.msk [vmem:[%s170 + $0xf8] sm:$0xff] %vm348, %v6652
      %p6685 = scmp.lt.s32.totalorder %s14, 1
      %s6686 = scalar_select %p6685, %s14, 1
      %s6687 = smul.addr %s6686, 32
      %s6688 = smul.addr %s6687, 8
      %s6689 = scalar_lea.vmem %s3, %s6688
      // Predicated region
      $region33: #{tpu_custom_call.1} parent=31 // pred_check
        %p6690 = pneg %p100
      $region34: #{tpu_custom_call.1} parent=31 // pred_check_branch
        %6692 = sbr.rel (%p6690) target = $region36
      $region35: #{tpu_custom_call.1} parent=31 // pred_region
        _
      $region36: #{tpu_custom_call.1} parent=31 // pred_fallthru
        _
    $region32: #{tpu_custom_call.1} parent=5 // pred_fallthru
      _
    %p6693 = scmp.le.s32.totalorder 2, %s9
    // Predicated region
    $region37: #{tpu_custom_call.1} parent=5 // pred_check
      %p6694 = pneg %p6693
    $region38: #{tpu_custom_call.1} parent=5 // pred_check_branch
      %6696 = sbr.rel (%p6694) target = $region40
    $region39: #{tpu_custom_call.1} parent=5 // pred_region
      %s6697 = ssub.s32 %s9, 2
      // Predicated region
      $region41: #{tpu_custom_call.1} parent=39 // pred_check
        %p6698 = pneg %p106
      $region42: #{tpu_custom_call.1} parent=39 // pred_check_branch
        %6700 = sbr.rel (%p6698) target = $region44
      $region43: #{tpu_custom_call.1} parent=39 // pred_region
        %p6701 = scmp.lt.s32.totalorder %s15, 1
        %s6702 = scalar_select %p6701, %s15, 1
        %s6703 = smul.addr %s6702, 32
        %s6704 = smul.addr %s6703, 8
        %s6705 = scalar_lea.vmem %s3, %s6704
      $region44: #{tpu_custom_call.1} parent=39 // pred_fallthru
        _
    $region40: #{tpu_custom_call.1} parent=5 // pred_fallthru
      _
  $region6: #{tpu_custom_call.1} parent=0 // loop_footer
    %s13 = sadd.s32 1, %s9
  $region7: #{tpu_custom_call.1} parent=0 // loop_footer_branch
    %8 = sbr.rel target = $region3
  $region8: #{tpu_custom_call.1} parent=0 // loop_exit
    _

</llo_original>
